<compile_context>
chip_gen: v5e
topology: v5e:2x2
jax: 0.10.0
libtpu: 0.0.40
codegen_flags: <defaults>
</compile_context>

<pallas_src>
import math
import functools
import numpy as np

import jax
import jax.numpy as jnp
from jax import lax
from jax.experimental import pallas as pl
from jax.experimental.pallas import tpu as pltpu

# ---------------- constants (deterministic, synthetic where the codebase is external) ---
D2_MAX = np.array([1832.0, 3157.0, 236.0], dtype=np.float32)
D2_MIN = np.array([-2257.0, -1207.0, -204.128], dtype=np.float32)
MAX_SPEED_PER_SECOND = 250.0
MAX_RUN_SPEED_PER_SIM_TICK = MAX_SPEED_PER_SECOND / 16.0

BATCH = 2
NUM_PLAYERS = 4                 # 2 per team
NUM_INPUT_TIME_STEPS = 2        # == all_prior_and_cur_ticks
NUM_OUTPUT_TIME_STEPS = 2       # num_radial_ticks
INTERNAL_WIDTH = 32
NUM_HEADS = 2
NUM_LAYERS = 1
NUM_RADIAL_BINS = 16
NUM_DIM = 3
NUM_SIMILARITY_COLUMNS = 2
NON_TEMPORAL_PER_PLAYER = 8
DIM_FEEDFORWARD = 2048          # nn.TransformerEncoderLayer default
NUM_FREQS = 4                   # NeRF-style spatial positional encoder frequency bands
SPATIAL_ENC_OUT_DIM = NUM_DIM * (1 + 2 * NUM_FREQS)   # 27
COLUMNS_PER_PLAYER_TIME_STEP = (NON_TEMPORAL_PER_PLAYER + NUM_SIMILARITY_COLUMNS
                                + SPATIAL_ENC_OUT_DIM + 1)             # 38

L_IN = NUM_PLAYERS * NUM_INPUT_TIME_STEPS     # 8
L_OUT = NUM_PLAYERS * NUM_OUTPUT_TIME_STEPS   # 8
HEAD_DIM = INTERNAL_WIDTH // NUM_HEADS        # 16

NEG_MASK = jnp.float32(-1e30)   # large-negative instead of -inf (NaN-safe, same result)

# fused kernel hard-codes the (common) T_out == T_in, single-layer configuration
assert NUM_OUTPUT_TIME_STEPS == NUM_INPUT_TIME_STEPS
assert NUM_LAYERS == 1
# TODO(synk): general T_out < T_in row selection / num_layers > 1 are not fused here.

# synthetic column index layout of x (IOColumnTransformers is external; we synthesize it)
_n_pos = NUM_PLAYERS * NUM_INPUT_TIME_STEPS * NUM_DIM
_n_cross = NUM_PLAYERS * NUM_INPUT_TIME_STEPS
_n_nt = NUM_PLAYERS * NON_TEMPORAL_PER_PLAYER
POS_COLS = np.arange(0, _n_pos)
CROSSHAIR_COLS = np.arange(_n_pos, _n_pos + _n_cross)
NON_TEMPORAL_COLS = np.arange(_n_pos + _n_cross, _n_pos + _n_cross + _n_nt)
ALIVE_COLS = np.arange(_n_pos + _n_cross + _n_nt, _n_pos + _n_cross + _n_nt + NUM_PLAYERS)
X_DIM = _n_pos + _n_cross + _n_nt + NUM_PLAYERS   # 68


# ---------------- weight slab layouts (static, shared by pack_params and the kernel) ----
def _round_up(v, m):
    return ((v + m - 1) // m) * m


# bf16 matrix slab: [WMAT_ROWS, 128]; each matrix occupies rows r:r+nr, cols 0:nc.
_WMAT_SPECS = [
    ("e_w1", COLUMNS_PER_PLAYER_TIME_STEP, INTERNAL_WIDTH),
    ("e_w2", INTERNAL_WIDTH, INTERNAL_WIDTH),
    ("e_w3", INTERNAL_WIDTH, INTERNAL_WIDTH),
]
for _p in ("t", "s", "d", "dc"):
    _WMAT_SPECS.append((_p + "_qkv_w", INTERNAL_WIDTH, 3 * INTERNAL_WIDTH))
    _WMAT_SPECS.append((_p + "_out_w", INTERNAL_WIDTH, INTERNAL_WIDTH))
_WMAT_SPECS.append(("dec_w", INTERNAL_WIDTH, NUM_RADIAL_BINS))

WMAT_LAYOUT = {}
_row = 0
for _name, _nr, _nc in _WMAT_SPECS:
    WMAT_LAYOUT[_name] = (_row, _nr, _nc)
    _row = _round_up(_row + _nr, 16)          # bf16 sublane-tile aligned starts
WMAT_ROWS = max(_round_up(_row, 16), 16)

# f32 bias / LayerNorm slab: [VEC_ROWS, 128]; one parameter vector per row (cols 0:n).
_VEC_SPECS = [("e_b1", 32), ("e_b2", 32), ("e_b3", 32)]
for _p in ("t", "s", "d", "dc"):
    _VEC_SPECS.append((_p + "_qkv_b", 3 * INTERNAL_WIDTH))
    _VEC_SPECS.append((_p + "_out_b", INTERNAL_WIDTH))
for _p in ("t", "s", "d"):
    for _suf in ("_ln1_g", "_ln1_b", "_ln2_g", "_ln2_b", "_ffn_b2"):
        _VEC_SPECS.append((_p + _suf, INTERNAL_WIDTH))
_VEC_SPECS += [("d_ln3_g", INTERNAL_WIDTH), ("d_ln3_b", INTERNAL_WIDTH),
               ("dec_b", NUM_RADIAL_BINS)]
VEC_LAYOUT = {name: (i, n) for i, (name, n) in enumerate(_VEC_SPECS)}
VEC_ROWS = _round_up(len(_VEC_SPECS), 8)


# ---------------- the fused forward kernel ----------------------------------------------
def _fused_forward_kernel(xg_ref, pe_ref, mask_in_ref, mask_out_ref, inv_temp_ref,
                          wmat_ref, vec_ref, ffn_w1_ref, ffn_w2_ref, ffn_b1_ref,
                          latent_ref, prob_ref, *, num_heads, head_dim, scale,
                          ln_eps=1e-5):
    f32 = jnp.float32
    bf16 = jnp.bfloat16
    W = INTERNAL_WIDTH

    def wmat(name):
        r, nr, nc = WMAT_LAYOUT[name]
        return wmat_ref[r:r + nr, 0:nc]           # bf16 [nr, nc]

    def vec(name):
        r, n = VEC_LAYOUT[name]
        return vec_ref[r:r + 1, 0:n]              # f32 [1, n]

    def dense(x, wname, bname):
        return jnp.dot(x.astype(bf16), wmat(wname),
                       preferred_element_type=f32) + vec(bname)

    def leaky_relu(v):
        return jnp.where(v >= 0.0, v, 0.01 * v)

    def layer_norm(z, gname, bname):
        mean = jnp.mean(z, axis=-1, keepdims=True)
        var = jnp.mean(jnp.square(z - mean), axis=-1, keepdims=True)
        return (z - mean) * lax.rsqrt(var + ln_eps) * vec(gname) + vec(bname)

    def ffn(h, idx, b2name):
        # bf16 weights and bf16 hidden activation, f32 accumulation (relu FFN, eval)
        a = jnp.dot(h.astype(bf16), ffn_w1_ref[idx],
                    preferred_element_type=f32) + ffn_b1_ref[idx:idx + 1, :]
        a = jnp.maximum(a, 0.0).astype(bf16)
        return jnp.dot(a, ffn_w2_ref[idx], preferred_element_type=f32) + vec(b2name)

    def mha(q_in, kv_in, prefix, add_mask, self_attn):
        # merged QKV projection ([W, 3W]) and merged out-projection ([W, W])
        qkv_w = wmat(prefix + "_qkv_w")           # bf16 [W, 3W]
        qkv_b = vec(prefix + "_qkv_b")            # f32  [1, 3W]
        if self_attn:
            qkv = jnp.dot(q_in.astype(bf16), qkv_w, preferred_element_type=f32) + qkv_b
            q_all = qkv[:, 0:W]
            k_all = qkv[:, W:2 * W]
            v_all = qkv[:, 2 * W:3 * W]
        else:
            q_all = jnp.dot(q_in.astype(bf16), qkv_w[:, 0:W],
                            preferred_element_type=f32) + qkv_b[:, 0:W]
            kv = jnp.dot(kv_in.astype(bf16), qkv_w[:, W:3 * W],
                         preferred_element_type=f32) + qkv_b[:, W:3 * W]
            k_all = kv[:, 0:W]
            v_all = kv[:, W:2 * W]
        heads = []
        for h in range(num_heads):
            lo = h * head_dim
            q_h = q_all[:, lo:lo + head_dim]
            k_h = k_all[:, lo:lo + head_dim]
            v_h = v_all[:, lo:lo + head_dim]
            s = lax.dot_general(q_h, k_h, (((1,), (1,)), ((), ())),
                                preferred_element_type=f32) * scale + add_mask
            s = s - jnp.max(s, axis=-1, keepdims=True)
            p = jnp.exp(s)
            p = p * pl.reciprocal(jnp.sum(p, axis=-1, keepdims=True), approx=False)
            heads.append(jnp.dot(p, v_h, preferred_element_type=f32))
        o = jnp.concatenate(heads, axis=-1)       # [L, W]
        return jnp.dot(o.astype(bf16), wmat(prefix + "_out_w"),
                       preferred_element_type=f32) + vec(prefix + "_out_b")

    mask_in = mask_in_ref[...]                    # [B*L, B*L] additive (block-diagonal)
    mask_out = mask_out_ref[...]

    # ---- embedding MLP (Linear + LeakyReLU + Linear + LeakyReLU + Linear) + temporal PE
    xg = xg_ref[...]                              # [B*L, columns_per_player_time_step]
    h = leaky_relu(dense(xg, "e_w1", "e_b1"))
    h = leaky_relu(dense(h, "e_w2", "e_b2"))
    x_enc = dense(h, "e_w3", "e_b3") + pe_ref[...]

    # ---- temporal transformer encoder layer (post-LN, relu FFN, eval) ----
    sa = mha(x_enc, x_enc, "t", mask_in, True)
    h1 = layer_norm(x_enc + sa, "t_ln1_g", "t_ln1_b")
    x_temporal = layer_norm(h1 + ffn(h1, 0, "t_ffn_b2"), "t_ln2_g", "t_ln2_b")

    # ---- slice to output time steps (identity because T_out == T_in; see TODO above) ----
    enc_o = x_enc
    emb_o = x_temporal

    # ---- spatial transformer encoder layer (key-padding mask only, NoMask branch) ----
    sa = mha(emb_o, emb_o, "s", mask_out, True)
    h1 = layer_norm(emb_o + sa, "s_ln1_g", "s_ln1_b")
    spatial = layer_norm(h1 + ffn(h1, 1, "s_ffn_b2"), "s_ln2_g", "s_ln2_b")

    # ---- transformer decoder layer (self-attn + cross-attn + FFN, post-LN) ----
    sa = mha(enc_o, enc_o, "d", mask_out, True)
    h1 = layer_norm(enc_o + sa, "d_ln1_g", "d_ln1_b")
    ca = mha(h1, spatial, "dc", mask_out, False)
    h2 = layer_norm(h1 + ca, "d_ln2_g", "d_ln2_b")
    transformed = layer_norm(h2 + ffn(h2, 2, "d_ffn_b2"), "d_ln3_g", "d_ln3_b")

    # ---- radial-bin head + softmax(latent / temperature) ----
    lat = jnp.dot(transformed.astype(bf16), wmat("dec_w"),
                  preferred_element_type=f32) + vec("dec_b")
    scaled = lat * inv_temp_ref[0]
    m = jnp.max(scaled, axis=-1, keepdims=True)
    e = jnp.exp(scaled - m)
    prob = e * pl.reciprocal(jnp.sum(e, axis=-1, keepdims=True), approx=False)
    latent_ref[...] = lat
    prob_ref[...] = prob


def _fused_forward_call(xg, pe, mask_in, mask_out, inv_temp, kp):
    BL = xg.shape[0]
    vmem = pl.BlockSpec(memory_space=pltpu.MemorySpace.VMEM)
    smem = pl.BlockSpec(memory_space=pltpu.MemorySpace.SMEM)

    kernel = functools.partial(_fused_forward_kernel,
                               num_heads=NUM_HEADS, head_dim=HEAD_DIM,
                               scale=1.0 / math.sqrt(HEAD_DIM))

    out_shape = (jax.ShapeDtypeStruct((BL, NUM_RADIAL_BINS), jnp.float32),
                 jax.ShapeDtypeStruct((BL, NUM_RADIAL_BINS), jnp.float32))

    # single invocation (grid = ()): whole arrays resident in VMEM, one DMA per slab
    return pl.pallas_call(
        kernel,
        out_shape=out_shape,
        in_specs=[vmem, vmem, vmem, vmem, smem, vmem, vmem, vmem, vmem, vmem],
        out_specs=(vmem, vmem),
    )(xg, pe, mask_in, mask_out, inv_temp,
      kp["wmat"], kp["vec"], kp["ffn_w1"], kp["ffn_w2"], kp["ffn_b1"])


# ---------------- positional encoders (plain-JAX / host glue) ---------------------------
def nerf_encode(p):
    # spatial_positional_encoder: NeRF-style get_embedder (include input + sin/cos bands)
    outs = [p]
    for i in range(NUM_FREQS):
        freq = 2.0 ** i
        outs.append(jnp.sin(p * freq))
        outs.append(jnp.cos(p * freq))
    return jnp.concatenate(outs, axis=-1)


def build_temporal_pe(P, T, W):
    # PositionalEncoding1D(internal_width) applied to zeros([P, T, W])
    channels = int(np.ceil(W / 2) * 2)
    inv_freq = 1.0 / (10000 ** (np.arange(0, channels, 2, dtype=np.float32) / channels))
    pos = np.arange(T, dtype=np.float32)
    sin_inp = np.einsum("i,j->ij", pos, inv_freq)
    emb = np.zeros((T, channels), dtype=np.float32)
    emb[:, 0::2] = np.sin(sin_inp)
    emb[:, 1::2] = np.cos(sin_inp)
    pe = emb[:, :W]
    return np.broadcast_to(pe[None], (P, T, W)).copy()


TEMPORAL_PE_FLAT = jnp.asarray(
    build_temporal_pe(NUM_PLAYERS, NUM_INPUT_TIME_STEPS, INTERNAL_WIDTH)
).reshape(L_IN, INTERNAL_WIDTH)


# ---------------- parameter initialization (deterministic, synthetic, torch layout) -----
def init_linear(key, out_dim, in_dim):
    kw, kb = jax.random.split(key)
    bound = 1.0 / math.sqrt(in_dim)
    w = jax.random.uniform(kw, (out_dim, in_dim), jnp.float32, -bound, bound)
    b = jax.random.uniform(kb, (out_dim,), jnp.float32, -bound, bound)
    return w, b


def init_mha(key, W):
    k1, k2 = jax.random.split(key)
    bound = 1.0 / math.sqrt(W)
    return {"in_proj_w": jax.random.uniform(k1, (3 * W, W), jnp.float32, -bound, bound),
            "in_proj_b": jnp.zeros((3 * W,), jnp.float32),
            "out_proj_w": init_linear(k2, W, W)[0],
            "out_proj_b": jnp.zeros((W,), jnp.float32)}


def init_encoder_layer(key, W, FF):
    ks = jax.random.split(key, 3)
    w1, b1 = init_linear(ks[1], FF, W)
    w2, b2 = init_linear(ks[2], W, FF)
    return {"self_attn": init_mha(ks[0], W),
            "lin1_w": w1, "lin1_b": b1, "lin2_w": w2, "lin2_b": b2,
            "norm1_g": jnp.ones((W,), jnp.float32), "norm1_b": jnp.zeros((W,), jnp.float32),
            "norm2_g": jnp.ones((W,), jnp.float32), "norm2_b": jnp.zeros((W,), jnp.float32)}


def init_decoder_layer(key, W, FF):
    k1, k2 = jax.random.split(key)
    d = init_encoder_layer(k1, W, FF)
    d["cross_attn"] = init_mha(k2, W)
    d["norm3_g"] = jnp.ones((W,), jnp.float32)
    d["norm3_b"] = jnp.zeros((W,), jnp.float32)
    return d


def init_params(key):
    ks = jax.random.split(key, 8)
    w1, b1 = init_linear(ks[0], INTERNAL_WIDTH, COLUMNS_PER_PLAYER_TIME_STEP)
    w2, b2 = init_linear(ks[1], INTERNAL_WIDTH, INTERNAL_WIDTH)
    w3, b3 = init_linear(ks[2], INTERNAL_WIDTH, INTERNAL_WIDTH)
    dw, db = init_linear(ks[6], NUM_RADIAL_BINS, INTERNAL_WIDTH)
    return {
        "embed": {"w1": w1, "b1": b1, "w2": w2, "b2": b2, "w3": w3, "b3": b3},
        "temporal_layers": [init_encoder_layer(k, INTERNAL_WIDTH, DIM_FEEDFORWARD)
                            for k in jax.random.split(ks[3], NUM_LAYERS)],
        "spatial_layers": [init_encoder_layer(k, INTERNAL_WIDTH, DIM_FEEDFORWARD)
                           for k in jax.random.split(ks[4], NUM_LAYERS)],
        "decoder_layer": init_decoder_layer(ks[5], INTERNAL_WIDTH, DIM_FEEDFORWARD),
        "out_decoder": {"w": dw, "b": db},
    }


# ---------------- one-time weight relayout into consolidated slabs ----------------------
def pack_params(p):
    """Pack all weights into 5 slabs (x@W layout, bf16 for MXU operands)."""
    e = p["embed"]
    t = p["temporal_layers"][0]
    s = p["spatial_layers"][0]
    d = p["decoder_layer"]

    w_entries = {
        "e_w1": e["w1"].T, "e_w2": e["w2"].T, "e_w3": e["w3"].T,
        "dec_w": p["out_decoder"]["w"].T,
    }
    v_entries = {
        "e_b1": e["b1"], "e_b2": e["b2"], "e_b3": e["b3"],
        "dec_b": p["out_decoder"]["b"],
    }

    def add_attn(prefix, m):
        w_entries[prefix + "_qkv_w"] = m["in_proj_w"].T        # [W, 3W]
        w_entries[prefix + "_out_w"] = m["out_proj_w"].T       # [W, W]
        v_entries[prefix + "_qkv_b"] = m["in_proj_b"]
        v_entries[prefix + "_out_b"] = m["out_proj_b"]

    add_attn("t", t["self_attn"])
    add_attn("s", s["self_attn"])
    add_attn("d", d["self_attn"])
    add_attn("dc", d["cross_attn"])

    for prefix, lp in (("t", t), ("s", s), ("d", d)):
        v_entries[prefix + "_ln1_g"] = lp["norm1_g"]
        v_entries[prefix + "_ln1_b"] = lp["norm1_b"]
        v_entries[prefix + "_ln2_g"] = lp["norm2_g"]
        v_entries[prefix + "_ln2_b"] = lp["norm2_b"]
        v_entries[prefix + "_ffn_b2"] = lp["lin2_b"]
    v_entries["d_ln3_g"] = d["norm3_g"]
    v_entries["d_ln3_b"] = d["norm3_b"]

    wmat = jnp.zeros((WMAT_ROWS, 128), jnp.float32)
    for name, mat in w_entries.items():
        r, nr, nc = WMAT_LAYOUT[name]
        wmat = wmat.at[r:r + nr, 0:nc].set(mat)
    wmat = wmat.astype(jnp.bfloat16)

    vecs = jnp.zeros((VEC_ROWS, 128), jnp.float32)
    for name, v in v_entries.items():
        r, n = VEC_LAYOUT[name]
        vecs = vecs.at[r, 0:n].set(v)

    ffn_w1 = jnp.stack([t["lin1_w"].T, s["lin1_w"].T, d["lin1_w"].T]).astype(jnp.bfloat16)
    ffn_w2 = jnp.stack([t["lin2_w"].T, s["lin2_w"].T, d["lin2_w"].T]).astype(jnp.bfloat16)
    ffn_b1 = jnp.stack([t["lin1_b"], s["lin1_b"], d["lin1_b"]]).astype(jnp.float32)

    return {"wmat": wmat, "vec": vecs, "ffn_w1": ffn_w1, "ffn_w2": ffn_w2,
            "ffn_b1": ffn_b1}


# ---------------- forward pass -----------------------------------------------------------
def forward(kp, x, similarity, temperature):
    B = x.shape[0]
    P, T_in, T_out = NUM_PLAYERS, NUM_INPUT_TIME_STEPS, NUM_OUTPUT_TIME_STEPS
    BL = B * L_IN

    # ---- column gathering (plain-JAX glue) ----
    x_pos = x[:, POS_COLS].reshape(B, P, T_in, NUM_DIM)
    x_crosshair = x[:, CROSSHAIR_COLS].reshape(B, P, T_in, 1)
    if T_in > 1:
        x_pos_lagged = jnp.roll(x_pos, 1, axis=2)
        x_pos = jnp.concatenate(
            [x_pos[:, :, :1], x_pos_lagged[:, :, 1:] - x_pos[:, :, 1:]], axis=2)

    # ---- encode_pos (noise_var = -1 -> noise disabled) ----
    pos0 = (x_pos[:, :, 0] - D2_MIN) / (D2_MAX - D2_MIN)
    parts = [pos0[:, :, None, :]]
    if T_in > 1:
        parts.append((x_pos[:, :, 1:] + 2.0 * MAX_RUN_SPEED_PER_SIM_TICK)
                     / (4.0 * MAX_RUN_SPEED_PER_SIM_TICK))
    pos_scaled = jnp.clip(jnp.concatenate(parts, axis=2), 0.0, 1.0) * 2.0 - 1.0
    x_pos_encoded = nerf_encode(pos_scaled)                       # [B,P,T,27]

    x_non_pos_wo_sim = jnp.broadcast_to(
        x[:, NON_TEMPORAL_COLS].reshape(B, P, 1, NON_TEMPORAL_PER_PLAYER),
        (B, P, T_in, NON_TEMPORAL_PER_PLAYER))
    sim_expanded = jnp.broadcast_to(
        similarity.reshape(B, 1, 1, NUM_SIMILARITY_COLUMNS),
        (B, P, T_in, NUM_SIMILARITY_COLUMNS))
    x_non_pos = jnp.concatenate([x_non_pos_wo_sim, sim_expanded], axis=-1)
    x_gathered = jnp.concatenate([x_pos_encoded, x_crosshair, x_non_pos], axis=-1)
    x_folded = x_gathered.reshape(BL, COLUMNS_PER_PLAYER_TIME_STEP)

    # temporal PE tiled over the folded batch rows (row order = (batch, player, time))
    pe_folded = jnp.tile(TEMPORAL_PE_FLAT, (B, 1))                # [B*L, W]

    # ---- block-diagonal additive attention masks from alive flags ----
    alive = x[:, ALIVE_COLS]                                      # [B, P]
    dead_in = (jnp.repeat(alive, T_in, axis=1) < 0.1).reshape(BL)
    dead_out = (jnp.repeat(alive, T_out, axis=1) < 0.1).reshape(B * L_OUT)
    row_batch = jnp.arange(BL) // L_IN
    same_batch = row_batch[:, None] == row_batch[None, :]
    eye_bl = jnp.eye(BL, dtype=bool)
    # NoMask: temporal mask = key-padding with diagonal always allowed
    masked_in = (~same_batch) | (dead_in[None, :] & (~eye_bl))
    # spatial / decoder: plain key-padding masks
    masked_out = (~same_batch) | dead_out[None, :]
    mask_in = jnp.where(masked_in, NEG_MASK, jnp.float32(0.0))
    mask_out = jnp.where(masked_out, NEG_MASK, jnp.float32(0.0))

    inv_temp = jnp.reshape(1.0 / jnp.asarray(temperature, jnp.float32), (1,))

    latent_flat, prob_flat = _fused_forward_call(
        x_folded, pe_folded, mask_in, mask_out, inv_temp, kp)

    latent = latent_flat.reshape(B, P, T_out, NUM_RADIAL_BINS)
    prob_output = prob_flat.reshape(B, P, T_out, NUM_RADIAL_BINS)
    pred_index = jnp.argmax(prob_output, axis=-1)                 # one_hot_prob_to_index
    return latent, prob_output, pred_index


# ---------------- main -------------------------------------------------------------------
if __name__ == "__main__":
    key = jax.random.PRNGKey(0)
    k_params, k_x, k_sim = jax.random.split(key, 3)

    params = init_params(k_params)
    kp = pack_params(params)          # one-time weight relayout into consolidated slabs

    # deterministic example inputs
    x = jax.random.uniform(k_x, (BATCH, X_DIM), jnp.float32, -1.0, 1.0)
    x = x.at[:, POS_COLS].multiply(500.0)
    alive_vals = jnp.array([[1.0, 1.0, 0.05, 1.0],
                            [1.0, 0.0, 1.0, 1.0]], dtype=jnp.float32)
    x = x.at[:, ALIVE_COLS].set(alive_vals)

    similarity = jax.random.uniform(k_sim, (BATCH, NUM_SIMILARITY_COLUMNS), jnp.float32)
    temperature = 1.5

    fwd = jax.jit(forward)
    latent, prob_output, pred_index = fwd(kp, x, similarity, temperature)
    jax.block_until_ready((latent, prob_output, pred_index))

    assert latent.shape == (BATCH, NUM_PLAYERS, NUM_OUTPUT_TIME_STEPS, NUM_RADIAL_BINS)
    assert prob_output.shape == latent.shape
    assert pred_index.shape == (BATCH, NUM_PLAYERS, NUM_OUTPUT_TIME_STEPS)
    assert bool(jnp.all(jnp.isfinite(latent)))
    assert bool(jnp.allclose(jnp.sum(prob_output, axis=-1), 1.0, atol=1e-3))
    print("KERNEL_OK")
</pallas_src>

<mosaic_0001>
module attributes {stable_mosaic.version = 11 : i64} {
  func.func @_fused_forward_kernel(%arg0: memref<16x38xf32, #tpu.memory_space<vmem>>, %arg1: memref<16x32xf32, #tpu.memory_space<vmem>>, %arg2: memref<16x16xf32, #tpu.memory_space<vmem>>, %arg3: memref<16x16xf32, #tpu.memory_space<vmem>>, %arg4: memref<1xf32, #tpu.memory_space<smem>>, %arg5: memref<400x128xbf16, #tpu.memory_space<vmem>>, %arg6: memref<32x128xf32, #tpu.memory_space<vmem>>, %arg7: memref<3x32x2048xbf16, #tpu.memory_space<vmem>>, %arg8: memref<3x2048x32xbf16, #tpu.memory_space<vmem>>, %arg9: memref<3x2048xf32, #tpu.memory_space<vmem>>, %arg10: memref<16x16xf32, #tpu.memory_space<vmem>>, %arg11: memref<16x16xf32, #tpu.memory_space<vmem>>) attributes {dimension_semantics = [], scalar_prefetch = 0 : i64, scratch_operands = 0 : i64, tpu.core_type = #tpu.core_type<tc>} {
    %c0 = arith.constant 0 : index
    %c0_0 = arith.constant 0 : index
    %0 = vector.load %arg2[%c0, %c0_0] : memref<16x16xf32, #tpu.memory_space<vmem>>, vector<16x16xf32>
    %c0_1 = arith.constant 0 : index
    %c0_2 = arith.constant 0 : index
    %1 = vector.load %arg3[%c0_1, %c0_2] : memref<16x16xf32, #tpu.memory_space<vmem>>, vector<16x16xf32>
    %c0_3 = arith.constant 0 : index
    %c0_4 = arith.constant 0 : index
    %2 = vector.load %arg0[%c0_3, %c0_4] : memref<16x38xf32, #tpu.memory_space<vmem>>, vector<16x38xf32>
    %3 = arith.truncf %2 : vector<16x38xf32> to vector<16x38xbf16>
    %c0_5 = arith.constant 0 : index
    %c0_6 = arith.constant 0 : index
    %4 = vector.load %arg5[%c0_5, %c0_6] : memref<400x128xbf16, #tpu.memory_space<vmem>>, vector<38x32xbf16>
    %cst = arith.constant dense<0.000000e+00> : vector<16x32xf32>
    %5 = tpu.matmul %3, %4, %cst {dimension_numbers = #tpu.dot_dimension_numbers<[1], [0], [0], [1], [0, 0, 1, 1], [], []>} : vector<16x38xbf16>, vector<38x32xbf16>, vector<16x32xf32> -> vector<16x32xf32>
    %c0_7 = arith.constant 0 : index
    %c0_8 = arith.constant 0 : index
    %6 = vector.load %arg6[%c0_7, %c0_8] : memref<32x128xf32, #tpu.memory_space<vmem>>, vector<1x32xf32>
    %7 = vector.broadcast %6 : vector<1x32xf32> to vector<16x32xf32>
    %8 = arith.addf %5, %7 : vector<16x32xf32>
    %cst_9 = arith.constant 0.000000e+00 : f32
    %9 = vector.broadcast %cst_9 : f32 to vector<16x32xf32>
    %10 = arith.cmpf oge, %8, %9 : vector<16x32xf32>
    %cst_10 = arith.constant 0.00999999977 : f32
    %11 = vector.broadcast %cst_10 : f32 to vector<16x32xf32>
    %12 = arith.mulf %11, %8 : vector<16x32xf32>
    %13 = arith.select %10, %8, %12 : vector<16x32xi1>, vector<16x32xf32>
    %14 = arith.truncf %13 : vector<16x32xf32> to vector<16x32xbf16>
    %c48 = arith.constant 48 : index
    %c0_11 = arith.constant 0 : index
    %15 = vector.load %arg5[%c48, %c0_11] : memref<400x128xbf16, #tpu.memory_space<vmem>>, vector<32x32xbf16>
    %cst_12 = arith.constant dense<0.000000e+00> : vector<16x32xf32>
    %16 = tpu.matmul %14, %15, %cst_12 {dimension_numbers = #tpu.dot_dimension_numbers<[1], [0], [0], [1], [0, 0, 1, 1], [], []>} : vector<16x32xbf16>, vector<32x32xbf16>, vector<16x32xf32> -> vector<16x32xf32>
    %c1 = arith.constant 1 : index
    %c0_13 = arith.constant 0 : index
    %17 = vector.load %arg6[%c1, %c0_13] : memref<32x128xf32, #tpu.memory_space<vmem>>, vector<1x32xf32>
    %18 = vector.broadcast %17 : vector<1x32xf32> to vector<16x32xf32>
    %19 = arith.addf %16, %18 : vector<16x32xf32>
    %cst_14 = arith.constant 0.000000e+00 : f32
    %20 = vector.broadcast %cst_14 : f32 to vector<16x32xf32>
    %21 = arith.cmpf oge, %19, %20 : vector<16x32xf32>
    %cst_15 = arith.constant 0.00999999977 : f32
    %22 = vector.broadcast %cst_15 : f32 to vector<16x32xf32>
    %23 = arith.mulf %22, %19 : vector<16x32xf32>
    %24 = arith.select %21, %19, %23 : vector<16x32xi1>, vector<16x32xf32>
    %25 = arith.truncf %24 : vector<16x32xf32> to vector<16x32xbf16>
    %c80 = arith.constant 80 : index
    %c0_16 = arith.constant 0 : index
    %26 = vector.load %arg5[%c80, %c0_16] : memref<400x128xbf16, #tpu.memory_space<vmem>>, vector<32x32xbf16>
    %cst_17 = arith.constant dense<0.000000e+00> : vector<16x32xf32>
    %27 = tpu.matmul %25, %26, %cst_17 {dimension_numbers = #tpu.dot_dimension_numbers<[1], [0], [0], [1], [0, 0, 1, 1], [], []>} : vector<16x32xbf16>, vector<32x32xbf16>, vector<16x32xf32> -> vector<16x32xf32>
    %c2 = arith.constant 2 : index
    %c0_18 = arith.constant 0 : index
    %28 = vector.load %arg6[%c2, %c0_18] : memref<32x128xf32, #tpu.memory_space<vmem>>, vector<1x32xf32>
    %29 = vector.broadcast %28 : vector<1x32xf32> to vector<16x32xf32>
    %30 = arith.addf %27, %29 : vector<16x32xf32>
    %c0_19 = arith.constant 0 : index
    %c0_20 = arith.constant 0 : index
    %31 = vector.load %arg1[%c0_19, %c0_20] : memref<16x32xf32, #tpu.memory_space<vmem>>, vector<16x32xf32>
    %32 = arith.addf %30, %31 : vector<16x32xf32>
    %c112 = arith.constant 112 : index
    %c0_21 = arith.constant 0 : index
    %33 = vector.load %arg5[%c112, %c0_21] : memref<400x128xbf16, #tpu.memory_space<vmem>>, vector<32x96xbf16>
    %c3 = arith.constant 3 : index
    %c0_22 = arith.constant 0 : index
    %34 = vector.load %arg6[%c3, %c0_22] : memref<32x128xf32, #tpu.memory_space<vmem>>, vector<1x96xf32>
    %35 = arith.truncf %32 : vector<16x32xf32> to vector<16x32xbf16>
    %cst_23 = arith.constant dense<0.000000e+00> : vector<16x96xf32>
    %36 = tpu.matmul %35, %33, %cst_23 {dimension_numbers = #tpu.dot_dimension_numbers<[1], [0], [0], [1], [0, 0, 1, 1], [], []>} : vector<16x32xbf16>, vector<32x96xbf16>, vector<16x96xf32> -> vector<16x96xf32>
    %37 = vector.broadcast %34 : vector<1x96xf32> to vector<16x96xf32>
    %38 = arith.addf %36, %37 : vector<16x96xf32>
    %39 = vector.extract_strided_slice %38 {offsets = [0, 0], sizes = [16, 32], strides = [1, 1]} : vector<16x96xf32> to vector<16x32xf32>
    %40 = vector.extract_strided_slice %38 {offsets = [0, 32], sizes = [16, 32], strides = [1, 1]} : vector<16x96xf32> to vector<16x32xf32>
    %41 = vector.extract_strided_slice %38 {offsets = [0, 64], sizes = [16, 32], strides = [1, 1]} : vector<16x96xf32> to vector<16x32xf32>
    %42 = vector.extract_strided_slice %39 {offsets = [0, 0], sizes = [16, 16], strides = [1, 1]} : vector<16x32xf32> to vector<16x16xf32>
    %43 = vector.extract_strided_slice %40 {offsets = [0, 0], sizes = [16, 16], strides = [1, 1]} : vector<16x32xf32> to vector<16x16xf32>
    %44 = vector.extract_strided_slice %41 {offsets = [0, 0], sizes = [16, 16], strides = [1, 1]} : vector<16x32xf32> to vector<16x16xf32>
    %cst_24 = arith.constant dense<0.000000e+00> : vector<16x16xf32>
    %45 = tpu.matmul %42, %43, %cst_24 {dimension_numbers = #tpu.dot_dimension_numbers<[1], [1], [0], [0], [0, 0, 1, 0], [], []>} : vector<16x16xf32>, vector<16x16xf32>, vector<16x16xf32> -> vector<16x16xf32>
    %cst_25 = arith.constant 2.500000e-01 : f32
    %46 = vector.broadcast %cst_25 : f32 to vector<16x16xf32>
    %47 = arith.mulf %45, %46 : vector<16x16xf32>
    %48 = arith.addf %47, %0 : vector<16x16xf32>
    %cst_26 = arith.constant dense<0xFF800000> : vector<16xf32>
    %49 = vector.multi_reduction <maximumf>, %48, %cst_26 [1] : vector<16x16xf32> to vector<16xf32>
    %50 = vector.shape_cast %49 : vector<16xf32> to vector<16x1xf32>
    %51 = vector.broadcast %50 : vector<16x1xf32> to vector<16x16xf32>
    %52 = arith.subf %48, %51 : vector<16x16xf32>
    %53 = math.exp %52 : vector<16x16xf32>
    %cst_27 = arith.constant dense<0.000000e+00> : vector<16xf32>
    %54 = vector.multi_reduction <add>, %53, %cst_27 [1] : vector<16x16xf32> to vector<16xf32>
    %55 = vector.shape_cast %54 : vector<16xf32> to vector<16x1xf32>
    %56 = tpu.reciprocal %55 : vector<16x1xf32> -> vector<16x1xf32>
    %57 = vector.broadcast %56 : vector<16x1xf32> to vector<16x16xf32>
    %58 = arith.mulf %53, %57 : vector<16x16xf32>
    %cst_28 = arith.constant dense<0.000000e+00> : vector<16x16xf32>
    %59 = tpu.matmul %58, %44, %cst_28 {dimension_numbers = #tpu.dot_dimension_numbers<[1], [0], [0], [1], [0, 0, 1, 1], [], []>} : vector<16x16xf32>, vector<16x16xf32>, vector<16x16xf32> -> vector<16x16xf32>
    %60 = vector.extract_strided_slice %39 {offsets = [0, 16], sizes = [16, 16], strides = [1, 1]} : vector<16x32xf32> to vector<16x16xf32>
    %61 = vector.extract_strided_slice %40 {offsets = [0, 16], sizes = [16, 16], strides = [1, 1]} : vector<16x32xf32> to vector<16x16xf32>
    %62 = vector.extract_strided_slice %41 {offsets = [0, 16], sizes = [16, 16], strides = [1, 1]} : vector<16x32xf32> to vector<16x16xf32>
    %cst_29 = arith.constant dense<0.000000e+00> : vector<16x16xf32>
    %63 = tpu.matmul %60, %61, %cst_29 {dimension_numbers = #tpu.dot_dimension_numbers<[1], [1], [0], [0], [0, 0, 1, 0], [], []>} : vector<16x16xf32>, vector<16x16xf32>, vector<16x16xf32> -> vector<16x16xf32>
    %cst_30 = arith.constant 2.500000e-01 : f32
    %64 = vector.broadcast %cst_30 : f32 to vector<16x16xf32>
    %65 = arith.mulf %63, %64 : vector<16x16xf32>
    %66 = arith.addf %65, %0 : vector<16x16xf32>
    %cst_31 = arith.constant dense<0xFF800000> : vector<16xf32>
    %67 = vector.multi_reduction <maximumf>, %66, %cst_31 [1] : vector<16x16xf32> to vector<16xf32>
    %68 = vector.shape_cast %67 : vector<16xf32> to vector<16x1xf32>
    %69 = vector.broadcast %68 : vector<16x1xf32> to vector<16x16xf32>
    %70 = arith.subf %66, %69 : vector<16x16xf32>
    %71 = math.exp %70 : vector<16x16xf32>
    %cst_32 = arith.constant dense<0.000000e+00> : vector<16xf32>
    %72 = vector.multi_reduction <add>, %71, %cst_32 [1] : vector<16x16xf32> to vector<16xf32>
    %73 = vector.shape_cast %72 : vector<16xf32> to vector<16x1xf32>
    %74 = tpu.reciprocal %73 : vector<16x1xf32> -> vector<16x1xf32>
    %75 = vector.broadcast %74 : vector<16x1xf32> to vector<16x16xf32>
    %76 = arith.mulf %71, %75 : vector<16x16xf32>
    %cst_33 = arith.constant dense<0.000000e+00> : vector<16x16xf32>
    %77 = tpu.matmul %76, %62, %cst_33 {dimension_numbers = #tpu.dot_dimension_numbers<[1], [0], [0], [1], [0, 0, 1, 1], [], []>} : vector<16x16xf32>, vector<16x16xf32>, vector<16x16xf32> -> vector<16x16xf32>
    %78 = tpu.concatenate %59, %77 in 1 : vector<16x16xf32>, vector<16x16xf32> -> vector<16x32xf32>
    %79 = arith.truncf %78 : vector<16x32xf32> to vector<16x32xbf16>
    %c144 = arith.constant 144 : index
    %c0_34 = arith.constant 0 : index
    %80 = vector.load %arg5[%c144, %c0_34] : memref<400x128xbf16, #tpu.memory_space<vmem>>, vector<32x32xbf16>
    %cst_35 = arith.constant dense<0.000000e+00> : vector<16x32xf32>
    %81 = tpu.matmul %79, %80, %cst_35 {dimension_numbers = #tpu.dot_dimension_numbers<[1], [0], [0], [1], [0, 0, 1, 1], [], []>} : vector<16x32xbf16>, vector<32x32xbf16>, vector<16x32xf32> -> vector<16x32xf32>
    %c4 = arith.constant 4 : index
    %c0_36 = arith.constant 0 : index
    %82 = vector.load %arg6[%c4, %c0_36] : memref<32x128xf32, #tpu.memory_space<vmem>>, vector<1x32xf32>
    %83 = vector.broadcast %82 : vector<1x32xf32> to vector<16x32xf32>
    %84 = arith.addf %81, %83 : vector<16x32xf32>
    %85 = arith.addf %32, %84 : vector<16x32xf32>
    %cst_37 = arith.constant dense<0.000000e+00> : vector<16xf32>
    %86 = vector.multi_reduction <add>, %85, %cst_37 [1] : vector<16x32xf32> to vector<16xf32>
    %87 = vector.shape_cast %86 : vector<16xf32> to vector<16x1xf32>
    %cst_38 = arith.constant 3.200000e+01 : f32
    %88 = vector.broadcast %cst_38 : f32 to vector<16x1xf32>
    %89 = arith.divf %87, %88 : vector<16x1xf32>
    %90 = vector.broadcast %89 : vector<16x1xf32> to vector<16x32xf32>
    %91 = arith.subf %85, %90 : vector<16x32xf32>
    %92 = arith.mulf %91, %91 : vector<16x32xf32>
    %cst_39 = arith.constant dense<0.000000e+00> : vector<16xf32>
    %93 = vector.multi_reduction <add>, %92, %cst_39 [1] : vector<16x32xf32> to vector<16xf32>
    %94 = vector.shape_cast %93 : vector<16xf32> to vector<16x1xf32>
    %cst_40 = arith.constant 3.200000e+01 : f32
    %95 = vector.broadcast %cst_40 : f32 to vector<16x1xf32>
    %96 = arith.divf %94, %95 : vector<16x1xf32>
    %97 = vector.broadcast %89 : vector<16x1xf32> to vector<16x32xf32>
    %98 = arith.subf %85, %97 : vector<16x32xf32>
    %cst_41 = arith.constant 9.99999974E-6 : f32
    %99 = vector.broadcast %cst_41 : f32 to vector<16x1xf32>
    %100 = arith.addf %96, %99 : vector<16x1xf32>
    %101 = math.rsqrt %100 : vector<16x1xf32>
    %102 = vector.broadcast %101 : vector<16x1xf32> to vector<16x32xf32>
    %103 = arith.mulf %98, %102 : vector<16x32xf32>
    %c11 = arith.constant 11 : index
    %c0_42 = arith.constant 0 : index
    %104 = vector.load %arg6[%c11, %c0_42] : memref<32x128xf32, #tpu.memory_space<vmem>>, vector<1x32xf32>
    %105 = vector.broadcast %104 : vector<1x32xf32> to vector<16x32xf32>
    %106 = arith.mulf %103, %105 : vector<16x32xf32>
    %c12 = arith.constant 12 : index
    %c0_43 = arith.constant 0 : index
    %107 = vector.load %arg6[%c12, %c0_43] : memref<32x128xf32, #tpu.memory_space<vmem>>, vector<1x32xf32>
    %108 = vector.broadcast %107 : vector<1x32xf32> to vector<16x32xf32>
    %109 = arith.addf %106, %108 : vector<16x32xf32>
    %110 = arith.truncf %109 : vector<16x32xf32> to vector<16x32xbf16>
    %c0_44 = arith.constant 0 : index
    %c0_45 = arith.constant 0 : index
    %c0_46 = arith.constant 0 : index
    %111 = vector.load %arg7[%c0_44, %c0_45, %c0_46] : memref<3x32x2048xbf16, #tpu.memory_space<vmem>>, vector<1x32x2048xbf16>
    %112 = vector.shape_cast %111 : vector<1x32x2048xbf16> to vector<32x2048xbf16>
    %cst_47 = arith.constant dense<0.000000e+00> : vector<16x2048xf32>
    %113 = tpu.matmul %110, %112, %cst_47 {dimension_numbers = #tpu.dot_dimension_numbers<[1], [0], [0], [1], [0, 0, 1, 1], [], []>} : vector<16x32xbf16>, vector<32x2048xbf16>, vector<16x2048xf32> -> vector<16x2048xf32>
    %c0_48 = arith.constant 0 : index
    %c0_49 = arith.constant 0 : index
    %114 = vector.load %arg9[%c0_48, %c0_49] : memref<3x2048xf32, #tpu.memory_space<vmem>>, vector<1x2048xf32>
    %115 = vector.broadcast %114 : vector<1x2048xf32> to vector<16x2048xf32>
    %116 = arith.addf %113, %115 : vector<16x2048xf32>
    %cst_50 = arith.constant 0.000000e+00 : f32
    %117 = vector.broadcast %cst_50 : f32 to vector<16x2048xf32>
    %118 = arith.maximumf %116, %117 : vector<16x2048xf32>
    %119 = arith.truncf %118 : vector<16x2048xf32> to vector<16x2048xbf16>
    %c0_51 = arith.constant 0 : index
    %c0_52 = arith.constant 0 : index
    %c0_53 = arith.constant 0 : index
    %120 = vector.load %arg8[%c0_51, %c0_52, %c0_53] : memref<3x2048x32xbf16, #tpu.memory_space<vmem>>, vector<1x2048x32xbf16>
    %121 = vector.shape_cast %120 : vector<1x2048x32xbf16> to vector<2048x32xbf16>
    %cst_54 = arith.constant dense<0.000000e+00> : vector<16x32xf32>
    %122 = tpu.matmul %119, %121, %cst_54 {dimension_numbers = #tpu.dot_dimension_numbers<[1], [0], [0], [1], [0, 0, 1, 1], [], []>} : vector<16x2048xbf16>, vector<2048x32xbf16>, vector<16x32xf32> -> vector<16x32xf32>
    %c15 = arith.constant 15 : index
    %c0_55 = arith.constant 0 : index
    %123 = vector.load %arg6[%c15, %c0_55] : memref<32x128xf32, #tpu.memory_space<vmem>>, vector<1x32xf32>
    %124 = vector.broadcast %123 : vector<1x32xf32> to vector<16x32xf32>
    %125 = arith.addf %122, %124 : vector<16x32xf32>
    %126 = arith.addf %109, %125 : vector<16x32xf32>
    %cst_56 = arith.constant dense<0.000000e+00> : vector<16xf32>
    %127 = vector.multi_reduction <add>, %126, %cst_56 [1] : vector<16x32xf32> to vector<16xf32>
    %128 = vector.shape_cast %127 : vector<16xf32> to vector<16x1xf32>
    %cst_57 = arith.constant 3.200000e+01 : f32
    %129 = vector.broadcast %cst_57 : f32 to vector<16x1xf32>
    %130 = arith.divf %128, %129 : vector<16x1xf32>
    %131 = vector.broadcast %130 : vector<16x1xf32> to vector<16x32xf32>
    %132 = arith.subf %126, %131 : vector<16x32xf32>
    %133 = arith.mulf %132, %132 : vector<16x32xf32>
    %cst_58 = arith.constant dense<0.000000e+00> : vector<16xf32>
    %134 = vector.multi_reduction <add>, %133, %cst_58 [1] : vector<16x32xf32> to vector<16xf32>
    %135 = vector.shape_cast %134 : vector<16xf32> to vector<16x1xf32>
    %cst_59 = arith.constant 3.200000e+01 : f32
    %136 = vector.broadcast %cst_59 : f32 to vector<16x1xf32>
    %137 = arith.divf %135, %136 : vector<16x1xf32>
    %138 = vector.broadcast %130 : vector<16x1xf32> to vector<16x32xf32>
    %139 = arith.subf %126, %138 : vector<16x32xf32>
    %cst_60 = arith.constant 9.99999974E-6 : f32
    %140 = vector.broadcast %cst_60 : f32 to vector<16x1xf32>
    %141 = arith.addf %137, %140 : vector<16x1xf32>
    %142 = math.rsqrt %141 : vector<16x1xf32>
    %143 = vector.broadcast %142 : vector<16x1xf32> to vector<16x32xf32>
    %144 = arith.mulf %139, %143 : vector<16x32xf32>
    %c13 = arith.constant 13 : index
    %c0_61 = arith.constant 0 : index
    %145 = vector.load %arg6[%c13, %c0_61] : memref<32x128xf32, #tpu.memory_space<vmem>>, vector<1x32xf32>
    %146 = vector.broadcast %145 : vector<1x32xf32> to vector<16x32xf32>
    %147 = arith.mulf %144, %146 : vector<16x32xf32>
    %c14 = arith.constant 14 : index
    %c0_62 = arith.constant 0 : index
    %148 = vector.load %arg6[%c14, %c0_62] : memref<32x128xf32, #tpu.memory_space<vmem>>, vector<1x32xf32>
    %149 = vector.broadcast %148 : vector<1x32xf32> to vector<16x32xf32>
    %150 = arith.addf %147, %149 : vector<16x32xf32>
    %c176 = arith.constant 176 : index
    %c0_63 = arith.constant 0 : index
    %151 = vector.load %arg5[%c176, %c0_63] : memref<400x128xbf16, #tpu.memory_space<vmem>>, vector<32x96xbf16>
    %c5 = arith.constant 5 : index
    %c0_64 = arith.constant 0 : index
    %152 = vector.load %arg6[%c5, %c0_64] : memref<32x128xf32, #tpu.memory_space<vmem>>, vector<1x96xf32>
    %153 = arith.truncf %150 : vector<16x32xf32> to vector<16x32xbf16>
    %cst_65 = arith.constant dense<0.000000e+00> : vector<16x96xf32>
    %154 = tpu.matmul %153, %151, %cst_65 {dimension_numbers = #tpu.dot_dimension_numbers<[1], [0], [0], [1], [0, 0, 1, 1], [], []>} : vector<16x32xbf16>, vector<32x96xbf16>, vector<16x96xf32> -> vector<16x96xf32>
    %155 = vector.broadcast %152 : vector<1x96xf32> to vector<16x96xf32>
    %156 = arith.addf %154, %155 : vector<16x96xf32>
    %157 = vector.extract_strided_slice %156 {offsets = [0, 0], sizes = [16, 32], strides = [1, 1]} : vector<16x96xf32> to vector<16x32xf32>
    %158 = vector.extract_strided_slice %156 {offsets = [0, 32], sizes = [16, 32], strides = [1, 1]} : vector<16x96xf32> to vector<16x32xf32>
    %159 = vector.extract_strided_slice %156 {offsets = [0, 64], sizes = [16, 32], strides = [1, 1]} : vector<16x96xf32> to vector<16x32xf32>
    %160 = vector.extract_strided_slice %157 {offsets = [0, 0], sizes = [16, 16], strides = [1, 1]} : vector<16x32xf32> to vector<16x16xf32>
    %161 = vector.extract_strided_slice %158 {offsets = [0, 0], sizes = [16, 16], strides = [1, 1]} : vector<16x32xf32> to vector<16x16xf32>
    %162 = vector.extract_strided_slice %159 {offsets = [0, 0], sizes = [16, 16], strides = [1, 1]} : vector<16x32xf32> to vector<16x16xf32>
    %cst_66 = arith.constant dense<0.000000e+00> : vector<16x16xf32>
    %163 = tpu.matmul %160, %161, %cst_66 {dimension_numbers = #tpu.dot_dimension_numbers<[1], [1], [0], [0], [0, 0, 1, 0], [], []>} : vector<16x16xf32>, vector<16x16xf32>, vector<16x16xf32> -> vector<16x16xf32>
    %cst_67 = arith.constant 2.500000e-01 : f32
    %164 = vector.broadcast %cst_67 : f32 to vector<16x16xf32>
    %165 = arith.mulf %163, %164 : vector<16x16xf32>
    %166 = arith.addf %165, %1 : vector<16x16xf32>
    %cst_68 = arith.constant dense<0xFF800000> : vector<16xf32>
    %167 = vector.multi_reduction <maximumf>, %166, %cst_68 [1] : vector<16x16xf32> to vector<16xf32>
    %168 = vector.shape_cast %167 : vector<16xf32> to vector<16x1xf32>
    %169 = vector.broadcast %168 : vector<16x1xf32> to vector<16x16xf32>
    %170 = arith.subf %166, %169 : vector<16x16xf32>
    %171 = math.exp %170 : vector<16x16xf32>
    %cst_69 = arith.constant dense<0.000000e+00> : vector<16xf32>
    %172 = vector.multi_reduction <add>, %171, %cst_69 [1] : vector<16x16xf32> to vector<16xf32>
    %173 = vector.shape_cast %172 : vector<16xf32> to vector<16x1xf32>
    %174 = tpu.reciprocal %173 : vector<16x1xf32> -> vector<16x1xf32>
    %175 = vector.broadcast %174 : vector<16x1xf32> to vector<16x16xf32>
    %176 = arith.mulf %171, %175 : vector<16x16xf32>
    %cst_70 = arith.constant dense<0.000000e+00> : vector<16x16xf32>
    %177 = tpu.matmul %176, %162, %cst_70 {dimension_numbers = #tpu.dot_dimension_numbers<[1], [0], [0], [1], [0, 0, 1, 1], [], []>} : vector<16x16xf32>, vector<16x16xf32>, vector<16x16xf32> -> vector<16x16xf32>
    %178 = vector.extract_strided_slice %157 {offsets = [0, 16], sizes = [16, 16], strides = [1, 1]} : vector<16x32xf32> to vector<16x16xf32>
    %179 = vector.extract_strided_slice %158 {offsets = [0, 16], sizes = [16, 16], strides = [1, 1]} : vector<16x32xf32> to vector<16x16xf32>
    %180 = vector.extract_strided_slice %159 {offsets = [0, 16], sizes = [16, 16], strides = [1, 1]} : vector<16x32xf32> to vector<16x16xf32>
    %cst_71 = arith.constant dense<0.000000e+00> : vector<16x16xf32>
    %181 = tpu.matmul %178, %179, %cst_71 {dimension_numbers = #tpu.dot_dimension_numbers<[1], [1], [0], [0], [0, 0, 1, 0], [], []>} : vector<16x16xf32>, vector<16x16xf32>, vector<16x16xf32> -> vector<16x16xf32>
    %cst_72 = arith.constant 2.500000e-01 : f32
    %182 = vector.broadcast %cst_72 : f32 to vector<16x16xf32>
    %183 = arith.mulf %181, %182 : vector<16x16xf32>
    %184 = arith.addf %183, %1 : vector<16x16xf32>
    %cst_73 = arith.constant dense<0xFF800000> : vector<16xf32>
    %185 = vector.multi_reduction <maximumf>, %184, %cst_73 [1] : vector<16x16xf32> to vector<16xf32>
    %186 = vector.shape_cast %185 : vector<16xf32> to vector<16x1xf32>
    %187 = vector.broadcast %186 : vector<16x1xf32> to vector<16x16xf32>
    %188 = arith.subf %184, %187 : vector<16x16xf32>
    %189 = math.exp %188 : vector<16x16xf32>
    %cst_74 = arith.constant dense<0.000000e+00> : vector<16xf32>
    %190 = vector.multi_reduction <add>, %189, %cst_74 [1] : vector<16x16xf32> to vector<16xf32>
    %191 = vector.shape_cast %190 : vector<16xf32> to vector<16x1xf32>
    %192 = tpu.reciprocal %191 : vector<16x1xf32> -> vector<16x1xf32>
    %193 = vector.broadcast %192 : vector<16x1xf32> to vector<16x16xf32>
    %194 = arith.mulf %189, %193 : vector<16x16xf32>
    %cst_75 = arith.constant dense<0.000000e+00> : vector<16x16xf32>
    %195 = tpu.matmul %194, %180, %cst_75 {dimension_numbers = #tpu.dot_dimension_numbers<[1], [0], [0], [1], [0, 0, 1, 1], [], []>} : vector<16x16xf32>, vector<16x16xf32>, vector<16x16xf32> -> vector<16x16xf32>
    %196 = tpu.concatenate %177, %195 in 1 : vector<16x16xf32>, vector<16x16xf32> -> vector<16x32xf32>
    %197 = arith.truncf %196 : vector<16x32xf32> to vector<16x32xbf16>
    %c208 = arith.constant 208 : index
    %c0_76 = arith.constant 0 : index
    %198 = vector.load %arg5[%c208, %c0_76] : memref<400x128xbf16, #tpu.memory_space<vmem>>, vector<32x32xbf16>
    %cst_77 = arith.constant dense<0.000000e+00> : vector<16x32xf32>
    %199 = tpu.matmul %197, %198, %cst_77 {dimension_numbers = #tpu.dot_dimension_numbers<[1], [0], [0], [1], [0, 0, 1, 1], [], []>} : vector<16x32xbf16>, vector<32x32xbf16>, vector<16x32xf32> -> vector<16x32xf32>
    %c6 = arith.constant 6 : index
    %c0_78 = arith.constant 0 : index
    %200 = vector.load %arg6[%c6, %c0_78] : memref<32x128xf32, #tpu.memory_space<vmem>>, vector<1x32xf32>
    %201 = vector.broadcast %200 : vector<1x32xf32> to vector<16x32xf32>
    %202 = arith.addf %199, %201 : vector<16x32xf32>
    %203 = arith.addf %150, %202 : vector<16x32xf32>
    %cst_79 = arith.constant dense<0.000000e+00> : vector<16xf32>
    %204 = vector.multi_reduction <add>, %203, %cst_79 [1] : vector<16x32xf32> to vector<16xf32>
    %205 = vector.shape_cast %204 : vector<16xf32> to vector<16x1xf32>
    %cst_80 = arith.constant 3.200000e+01 : f32
    %206 = vector.broadcast %cst_80 : f32 to vector<16x1xf32>
    %207 = arith.divf %205, %206 : vector<16x1xf32>
    %208 = vector.broadcast %207 : vector<16x1xf32> to vector<16x32xf32>
    %209 = arith.subf %203, %208 : vector<16x32xf32>
    %210 = arith.mulf %209, %209 : vector<16x32xf32>
    %cst_81 = arith.constant dense<0.000000e+00> : vector<16xf32>
    %211 = vector.multi_reduction <add>, %210, %cst_81 [1] : vector<16x32xf32> to vector<16xf32>
    %212 = vector.shape_cast %211 : vector<16xf32> to vector<16x1xf32>
    %cst_82 = arith.constant 3.200000e+01 : f32
    %213 = vector.broadcast %cst_82 : f32 to vector<16x1xf32>
    %214 = arith.divf %212, %213 : vector<16x1xf32>
    %215 = vector.broadcast %207 : vector<16x1xf32> to vector<16x32xf32>
    %216 = arith.subf %203, %215 : vector<16x32xf32>
    %cst_83 = arith.constant 9.99999974E-6 : f32
    %217 = vector.broadcast %cst_83 : f32 to vector<16x1xf32>
    %218 = arith.addf %214, %217 : vector<16x1xf32>
    %219 = math.rsqrt %218 : vector<16x1xf32>
    %220 = vector.broadcast %219 : vector<16x1xf32> to vector<16x32xf32>
    %221 = arith.mulf %216, %220 : vector<16x32xf32>
    %c16 = arith.constant 16 : index
    %c0_84 = arith.constant 0 : index
    %222 = vector.load %arg6[%c16, %c0_84] : memref<32x128xf32, #tpu.memory_space<vmem>>, vector<1x32xf32>
    %223 = vector.broadcast %222 : vector<1x32xf32> to vector<16x32xf32>
    %224 = arith.mulf %221, %223 : vector<16x32xf32>
    %c17 = arith.constant 17 : index
    %c0_85 = arith.constant 0 : index
    %225 = vector.load %arg6[%c17, %c0_85] : memref<32x128xf32, #tpu.memory_space<vmem>>, vector<1x32xf32>
    %226 = vector.broadcast %225 : vector<1x32xf32> to vector<16x32xf32>
    %227 = arith.addf %224, %226 : vector<16x32xf32>
    %228 = arith.truncf %227 : vector<16x32xf32> to vector<16x32xbf16>
    %c1_86 = arith.constant 1 : index
    %c0_87 = arith.constant 0 : index
    %c0_88 = arith.constant 0 : index
    %229 = vector.load %arg7[%c1_86, %c0_87, %c0_88] : memref<3x32x2048xbf16, #tpu.memory_space<vmem>>, vector<1x32x2048xbf16>
    %230 = vector.shape_cast %229 : vector<1x32x2048xbf16> to vector<32x2048xbf16>
    %cst_89 = arith.constant dense<0.000000e+00> : vector<16x2048xf32>
    %231 = tpu.matmul %228, %230, %cst_89 {dimension_numbers = #tpu.dot_dimension_numbers<[1], [0], [0], [1], [0, 0, 1, 1], [], []>} : vector<16x32xbf16>, vector<32x2048xbf16>, vector<16x2048xf32> -> vector<16x2048xf32>
    %c1_90 = arith.constant 1 : index
    %c0_91 = arith.constant 0 : index
    %232 = vector.load %arg9[%c1_90, %c0_91] : memref<3x2048xf32, #tpu.memory_space<vmem>>, vector<1x2048xf32>
    %233 = vector.broadcast %232 : vector<1x2048xf32> to vector<16x2048xf32>
    %234 = arith.addf %231, %233 : vector<16x2048xf32>
    %cst_92 = arith.constant 0.000000e+00 : f32
    %235 = vector.broadcast %cst_92 : f32 to vector<16x2048xf32>
    %236 = arith.maximumf %234, %235 : vector<16x2048xf32>
    %237 = arith.truncf %236 : vector<16x2048xf32> to vector<16x2048xbf16>
    %c1_93 = arith.constant 1 : index
    %c0_94 = arith.constant 0 : index
    %c0_95 = arith.constant 0 : index
    %238 = vector.load %arg8[%c1_93, %c0_94, %c0_95] : memref<3x2048x32xbf16, #tpu.memory_space<vmem>>, vector<1x2048x32xbf16>
    %239 = vector.shape_cast %238 : vector<1x2048x32xbf16> to vector<2048x32xbf16>
    %cst_96 = arith.constant dense<0.000000e+00> : vector<16x32xf32>
    %240 = tpu.matmul %237, %239, %cst_96 {dimension_numbers = #tpu.dot_dimension_numbers<[1], [0], [0], [1], [0, 0, 1, 1], [], []>} : vector<16x2048xbf16>, vector<2048x32xbf16>, vector<16x32xf32> -> vector<16x32xf32>
    %c20 = arith.constant 20 : index
    %c0_97 = arith.constant 0 : index
    %241 = vector.load %arg6[%c20, %c0_97] : memref<32x128xf32, #tpu.memory_space<vmem>>, vector<1x32xf32>
    %242 = vector.broadcast %241 : vector<1x32xf32> to vector<16x32xf32>
    %243 = arith.addf %240, %242 : vector<16x32xf32>
    %244 = arith.addf %227, %243 : vector<16x32xf32>
    %cst_98 = arith.constant dense<0.000000e+00> : vector<16xf32>
    %245 = vector.multi_reduction <add>, %244, %cst_98 [1] : vector<16x32xf32> to vector<16xf32>
    %246 = vector.shape_cast %245 : vector<16xf32> to vector<16x1xf32>
    %cst_99 = arith.constant 3.200000e+01 : f32
    %247 = vector.broadcast %cst_99 : f32 to vector<16x1xf32>
    %248 = arith.divf %246, %247 : vector<16x1xf32>
    %249 = vector.broadcast %248 : vector<16x1xf32> to vector<16x32xf32>
    %250 = arith.subf %244, %249 : vector<16x32xf32>
    %251 = arith.mulf %250, %250 : vector<16x32xf32>
    %cst_100 = arith.constant dense<0.000000e+00> : vector<16xf32>
    %252 = vector.multi_reduction <add>, %251, %cst_100 [1] : vector<16x32xf32> to vector<16xf32>
    %253 = vector.shape_cast %252 : vector<16xf32> to vector<16x1xf32>
    %cst_101 = arith.constant 3.200000e+01 : f32
    %254 = vector.broadcast %cst_101 : f32 to vector<16x1xf32>
    %255 = arith.divf %253, %254 : vector<16x1xf32>
    %256 = vector.broadcast %248 : vector<16x1xf32> to vector<16x32xf32>
    %257 = arith.subf %244, %256 : vector<16x32xf32>
    %cst_102 = arith.constant 9.99999974E-6 : f32
    %258 = vector.broadcast %cst_102 : f32 to vector<16x1xf32>
    %259 = arith.addf %255, %258 : vector<16x1xf32>
    %260 = math.rsqrt %259 : vector<16x1xf32>
    %261 = vector.broadcast %260 : vector<16x1xf32> to vector<16x32xf32>
    %262 = arith.mulf %257, %261 : vector<16x32xf32>
    %c18 = arith.constant 18 : index
    %c0_103 = arith.constant 0 : index
    %263 = vector.load %arg6[%c18, %c0_103] : memref<32x128xf32, #tpu.memory_space<vmem>>, vector<1x32xf32>
    %264 = vector.broadcast %263 : vector<1x32xf32> to vector<16x32xf32>
    %265 = arith.mulf %262, %264 : vector<16x32xf32>
    %c19 = arith.constant 19 : index
    %c0_104 = arith.constant 0 : index
    %266 = vector.load %arg6[%c19, %c0_104] : memref<32x128xf32, #tpu.memory_space<vmem>>, vector<1x32xf32>
    %267 = vector.broadcast %266 : vector<1x32xf32> to vector<16x32xf32>
    %268 = arith.addf %265, %267 : vector<16x32xf32>
    %c240 = arith.constant 240 : index
    %c0_105 = arith.constant 0 : index
    %269 = vector.load %arg5[%c240, %c0_105] : memref<400x128xbf16, #tpu.memory_space<vmem>>, vector<32x96xbf16>
    %c7 = arith.constant 7 : index
    %c0_106 = arith.constant 0 : index
    %270 = vector.load %arg6[%c7, %c0_106] : memref<32x128xf32, #tpu.memory_space<vmem>>, vector<1x96xf32>
    %271 = arith.truncf %32 : vector<16x32xf32> to vector<16x32xbf16>
    %cst_107 = arith.constant dense<0.000000e+00> : vector<16x96xf32>
    %272 = tpu.matmul %271, %269, %cst_107 {dimension_numbers = #tpu.dot_dimension_numbers<[1], [0], [0], [1], [0, 0, 1, 1], [], []>} : vector<16x32xbf16>, vector<32x96xbf16>, vector<16x96xf32> -> vector<16x96xf32>
    %273 = vector.broadcast %270 : vector<1x96xf32> to vector<16x96xf32>
    %274 = arith.addf %272, %273 : vector<16x96xf32>
    %275 = vector.extract_strided_slice %274 {offsets = [0, 0], sizes = [16, 32], strides = [1, 1]} : vector<16x96xf32> to vector<16x32xf32>
    %276 = vector.extract_strided_slice %274 {offsets = [0, 32], sizes = [16, 32], strides = [1, 1]} : vector<16x96xf32> to vector<16x32xf32>
    %277 = vector.extract_strided_slice %274 {offsets = [0, 64], sizes = [16, 32], strides = [1, 1]} : vector<16x96xf32> to vector<16x32xf32>
    %278 = vector.extract_strided_slice %275 {offsets = [0, 0], sizes = [16, 16], strides = [1, 1]} : vector<16x32xf32> to vector<16x16xf32>
    %279 = vector.extract_strided_slice %276 {offsets = [0, 0], sizes = [16, 16], strides = [1, 1]} : vector<16x32xf32> to vector<16x16xf32>
    %280 = vector.extract_strided_slice %277 {offsets = [0, 0], sizes = [16, 16], strides = [1, 1]} : vector<16x32xf32> to vector<16x16xf32>
    %cst_108 = arith.constant dense<0.000000e+00> : vector<16x16xf32>
    %281 = tpu.matmul %278, %279, %cst_108 {dimension_numbers = #tpu.dot_dimension_numbers<[1], [1], [0], [0], [0, 0, 1, 0], [], []>} : vector<16x16xf32>, vector<16x16xf32>, vector<16x16xf32> -> vector<16x16xf32>
    %cst_109 = arith.constant 2.500000e-01 : f32
    %282 = vector.broadcast %cst_109 : f32 to vector<16x16xf32>
    %283 = arith.mulf %281, %282 : vector<16x16xf32>
    %284 = arith.addf %283, %1 : vector<16x16xf32>
    %cst_110 = arith.constant dense<0xFF800000> : vector<16xf32>
    %285 = vector.multi_reduction <maximumf>, %284, %cst_110 [1] : vector<16x16xf32> to vector<16xf32>
    %286 = vector.shape_cast %285 : vector<16xf32> to vector<16x1xf32>
    %287 = vector.broadcast %286 : vector<16x1xf32> to vector<16x16xf32>
    %288 = arith.subf %284, %287 : vector<16x16xf32>
    %289 = math.exp %288 : vector<16x16xf32>
    %cst_111 = arith.constant dense<0.000000e+00> : vector<16xf32>
    %290 = vector.multi_reduction <add>, %289, %cst_111 [1] : vector<16x16xf32> to vector<16xf32>
    %291 = vector.shape_cast %290 : vector<16xf32> to vector<16x1xf32>
    %292 = tpu.reciprocal %291 : vector<16x1xf32> -> vector<16x1xf32>
    %293 = vector.broadcast %292 : vector<16x1xf32> to vector<16x16xf32>
    %294 = arith.mulf %289, %293 : vector<16x16xf32>
    %cst_112 = arith.constant dense<0.000000e+00> : vector<16x16xf32>
    %295 = tpu.matmul %294, %280, %cst_112 {dimension_numbers = #tpu.dot_dimension_numbers<[1], [0], [0], [1], [0, 0, 1, 1], [], []>} : vector<16x16xf32>, vector<16x16xf32>, vector<16x16xf32> -> vector<16x16xf32>
    %296 = vector.extract_strided_slice %275 {offsets = [0, 16], sizes = [16, 16], strides = [1, 1]} : vector<16x32xf32> to vector<16x16xf32>
    %297 = vector.extract_strided_slice %276 {offsets = [0, 16], sizes = [16, 16], strides = [1, 1]} : vector<16x32xf32> to vector<16x16xf32>
    %298 = vector.extract_strided_slice %277 {offsets = [0, 16], sizes = [16, 16], strides = [1, 1]} : vector<16x32xf32> to vector<16x16xf32>
    %cst_113 = arith.constant dense<0.000000e+00> : vector<16x16xf32>
    %299 = tpu.matmul %296, %297, %cst_113 {dimension_numbers = #tpu.dot_dimension_numbers<[1], [1], [0], [0], [0, 0, 1, 0], [], []>} : vector<16x16xf32>, vector<16x16xf32>, vector<16x16xf32> -> vector<16x16xf32>
    %cst_114 = arith.constant 2.500000e-01 : f32
    %300 = vector.broadcast %cst_114 : f32 to vector<16x16xf32>
    %301 = arith.mulf %299, %300 : vector<16x16xf32>
    %302 = arith.addf %301, %1 : vector<16x16xf32>
    %cst_115 = arith.constant dense<0xFF800000> : vector<16xf32>
    %303 = vector.multi_reduction <maximumf>, %302, %cst_115 [1] : vector<16x16xf32> to vector<16xf32>
    %304 = vector.shape_cast %303 : vector<16xf32> to vector<16x1xf32>
    %305 = vector.broadcast %304 : vector<16x1xf32> to vector<16x16xf32>
    %306 = arith.subf %302, %305 : vector<16x16xf32>
    %307 = math.exp %306 : vector<16x16xf32>
    %cst_116 = arith.constant dense<0.000000e+00> : vector<16xf32>
    %308 = vector.multi_reduction <add>, %307, %cst_116 [1] : vector<16x16xf32> to vector<16xf32>
    %309 = vector.shape_cast %308 : vector<16xf32> to vector<16x1xf32>
    %310 = tpu.reciprocal %309 : vector<16x1xf32> -> vector<16x1xf32>
    %311 = vector.broadcast %310 : vector<16x1xf32> to vector<16x16xf32>
    %312 = arith.mulf %307, %311 : vector<16x16xf32>
    %cst_117 = arith.constant dense<0.000000e+00> : vector<16x16xf32>
    %313 = tpu.matmul %312, %298, %cst_117 {dimension_numbers = #tpu.dot_dimension_numbers<[1], [0], [0], [1], [0, 0, 1, 1], [], []>} : vector<16x16xf32>, vector<16x16xf32>, vector<16x16xf32> -> vector<16x16xf32>
    %314 = tpu.concatenate %295, %313 in 1 : vector<16x16xf32>, vector<16x16xf32> -> vector<16x32xf32>
    %315 = arith.truncf %314 : vector<16x32xf32> to vector<16x32xbf16>
    %c272 = arith.constant 272 : index
    %c0_118 = arith.constant 0 : index
    %316 = vector.load %arg5[%c272, %c0_118] : memref<400x128xbf16, #tpu.memory_space<vmem>>, vector<32x32xbf16>
    %cst_119 = arith.constant dense<0.000000e+00> : vector<16x32xf32>
    %317 = tpu.matmul %315, %316, %cst_119 {dimension_numbers = #tpu.dot_dimension_numbers<[1], [0], [0], [1], [0, 0, 1, 1], [], []>} : vector<16x32xbf16>, vector<32x32xbf16>, vector<16x32xf32> -> vector<16x32xf32>
    %c8 = arith.constant 8 : index
    %c0_120 = arith.constant 0 : index
    %318 = vector.load %arg6[%c8, %c0_120] : memref<32x128xf32, #tpu.memory_space<vmem>>, vector<1x32xf32>
    %319 = vector.broadcast %318 : vector<1x32xf32> to vector<16x32xf32>
    %320 = arith.addf %317, %319 : vector<16x32xf32>
    %321 = arith.addf %32, %320 : vector<16x32xf32>
    %cst_121 = arith.constant dense<0.000000e+00> : vector<16xf32>
    %322 = vector.multi_reduction <add>, %321, %cst_121 [1] : vector<16x32xf32> to vector<16xf32>
    %323 = vector.shape_cast %322 : vector<16xf32> to vector<16x1xf32>
    %cst_122 = arith.constant 3.200000e+01 : f32
    %324 = vector.broadcast %cst_122 : f32 to vector<16x1xf32>
    %325 = arith.divf %323, %324 : vector<16x1xf32>
    %326 = vector.broadcast %325 : vector<16x1xf32> to vector<16x32xf32>
    %327 = arith.subf %321, %326 : vector<16x32xf32>
    %328 = arith.mulf %327, %327 : vector<16x32xf32>
    %cst_123 = arith.constant dense<0.000000e+00> : vector<16xf32>
    %329 = vector.multi_reduction <add>, %328, %cst_123 [1] : vector<16x32xf32> to vector<16xf32>
    %330 = vector.shape_cast %329 : vector<16xf32> to vector<16x1xf32>
    %cst_124 = arith.constant 3.200000e+01 : f32
    %331 = vector.broadcast %cst_124 : f32 to vector<16x1xf32>
    %332 = arith.divf %330, %331 : vector<16x1xf32>
    %333 = vector.broadcast %325 : vector<16x1xf32> to vector<16x32xf32>
    %334 = arith.subf %321, %333 : vector<16x32xf32>
    %cst_125 = arith.constant 9.99999974E-6 : f32
    %335 = vector.broadcast %cst_125 : f32 to vector<16x1xf32>
    %336 = arith.addf %332, %335 : vector<16x1xf32>
    %337 = math.rsqrt %336 : vector<16x1xf32>
    %338 = vector.broadcast %337 : vector<16x1xf32> to vector<16x32xf32>
    %339 = arith.mulf %334, %338 : vector<16x32xf32>
    %c21 = arith.constant 21 : index
    %c0_126 = arith.constant 0 : index
    %340 = vector.load %arg6[%c21, %c0_126] : memref<32x128xf32, #tpu.memory_space<vmem>>, vector<1x32xf32>
    %341 = vector.broadcast %340 : vector<1x32xf32> to vector<16x32xf32>
    %342 = arith.mulf %339, %341 : vector<16x32xf32>
    %c22 = arith.constant 22 : index
    %c0_127 = arith.constant 0 : index
    %343 = vector.load %arg6[%c22, %c0_127] : memref<32x128xf32, #tpu.memory_space<vmem>>, vector<1x32xf32>
    %344 = vector.broadcast %343 : vector<1x32xf32> to vector<16x32xf32>
    %345 = arith.addf %342, %344 : vector<16x32xf32>
    %c304 = arith.constant 304 : index
    %c0_128 = arith.constant 0 : index
    %346 = vector.load %arg5[%c304, %c0_128] : memref<400x128xbf16, #tpu.memory_space<vmem>>, vector<32x96xbf16>
    %c9 = arith.constant 9 : index
    %c0_129 = arith.constant 0 : index
    %347 = vector.load %arg6[%c9, %c0_129] : memref<32x128xf32, #tpu.memory_space<vmem>>, vector<1x96xf32>
    %348 = arith.truncf %345 : vector<16x32xf32> to vector<16x32xbf16>
    %349 = vector.extract_strided_slice %346 {offsets = [0, 0], sizes = [32, 32], strides = [1, 1]} : vector<32x96xbf16> to vector<32x32xbf16>
    %cst_130 = arith.constant dense<0.000000e+00> : vector<16x32xf32>
    %350 = tpu.matmul %348, %349, %cst_130 {dimension_numbers = #tpu.dot_dimension_numbers<[1], [0], [0], [1], [0, 0, 1, 1], [], []>} : vector<16x32xbf16>, vector<32x32xbf16>, vector<16x32xf32> -> vector<16x32xf32>
    %351 = vector.extract_strided_slice %347 {offsets = [0, 0], sizes = [1, 32], strides = [1, 1]} : vector<1x96xf32> to vector<1x32xf32>
    %352 = vector.broadcast %351 : vector<1x32xf32> to vector<16x32xf32>
    %353 = arith.addf %350, %352 : vector<16x32xf32>
    %354 = arith.truncf %268 : vector<16x32xf32> to vector<16x32xbf16>
    %355 = vector.extract_strided_slice %346 {offsets = [0, 32], sizes = [32, 64], strides = [1, 1]} : vector<32x96xbf16> to vector<32x64xbf16>
    %cst_131 = arith.constant dense<0.000000e+00> : vector<16x64xf32>
    %356 = tpu.matmul %354, %355, %cst_131 {dimension_numbers = #tpu.dot_dimension_numbers<[1], [0], [0], [1], [0, 0, 1, 1], [], []>} : vector<16x32xbf16>, vector<32x64xbf16>, vector<16x64xf32> -> vector<16x64xf32>
    %357 = vector.extract_strided_slice %347 {offsets = [0, 32], sizes = [1, 64], strides = [1, 1]} : vector<1x96xf32> to vector<1x64xf32>
    %358 = vector.broadcast %357 : vector<1x64xf32> to vector<16x64xf32>
    %359 = arith.addf %356, %358 : vector<16x64xf32>
    %360 = vector.extract_strided_slice %359 {offsets = [0, 0], sizes = [16, 32], strides = [1, 1]} : vector<16x64xf32> to vector<16x32xf32>
    %361 = vector.extract_strided_slice %359 {offsets = [0, 32], sizes = [16, 32], strides = [1, 1]} : vector<16x64xf32> to vector<16x32xf32>
    %362 = vector.extract_strided_slice %353 {offsets = [0, 0], sizes = [16, 16], strides = [1, 1]} : vector<16x32xf32> to vector<16x16xf32>
    %363 = vector.extract_strided_slice %360 {offsets = [0, 0], sizes = [16, 16], strides = [1, 1]} : vector<16x32xf32> to vector<16x16xf32>
    %364 = vector.extract_strided_slice %361 {offsets = [0, 0], sizes = [16, 16], strides = [1, 1]} : vector<16x32xf32> to vector<16x16xf32>
    %cst_132 = arith.constant dense<0.000000e+00> : vector<16x16xf32>
    %365 = tpu.matmul %362, %363, %cst_132 {dimension_numbers = #tpu.dot_dimension_numbers<[1], [1], [0], [0], [0, 0, 1, 0], [], []>} : vector<16x16xf32>, vector<16x16xf32>, vector<16x16xf32> -> vector<16x16xf32>
    %cst_133 = arith.constant 2.500000e-01 : f32
    %366 = vector.broadcast %cst_133 : f32 to vector<16x16xf32>
    %367 = arith.mulf %365, %366 : vector<16x16xf32>
    %368 = arith.addf %367, %1 : vector<16x16xf32>
    %cst_134 = arith.constant dense<0xFF800000> : vector<16xf32>
    %369 = vector.multi_reduction <maximumf>, %368, %cst_134 [1] : vector<16x16xf32> to vector<16xf32>
    %370 = vector.shape_cast %369 : vector<16xf32> to vector<16x1xf32>
    %371 = vector.broadcast %370 : vector<16x1xf32> to vector<16x16xf32>
    %372 = arith.subf %368, %371 : vector<16x16xf32>
    %373 = math.exp %372 : vector<16x16xf32>
    %cst_135 = arith.constant dense<0.000000e+00> : vector<16xf32>
    %374 = vector.multi_reduction <add>, %373, %cst_135 [1] : vector<16x16xf32> to vector<16xf32>
    %375 = vector.shape_cast %374 : vector<16xf32> to vector<16x1xf32>
    %376 = tpu.reciprocal %375 : vector<16x1xf32> -> vector<16x1xf32>
    %377 = vector.broadcast %376 : vector<16x1xf32> to vector<16x16xf32>
    %378 = arith.mulf %373, %377 : vector<16x16xf32>
    %cst_136 = arith.constant dense<0.000000e+00> : vector<16x16xf32>
    %379 = tpu.matmul %378, %364, %cst_136 {dimension_numbers = #tpu.dot_dimension_numbers<[1], [0], [0], [1], [0, 0, 1, 1], [], []>} : vector<16x16xf32>, vector<16x16xf32>, vector<16x16xf32> -> vector<16x16xf32>
    %380 = vector.extract_strided_slice %353 {offsets = [0, 16], sizes = [16, 16], strides = [1, 1]} : vector<16x32xf32> to vector<16x16xf32>
    %381 = vector.extract_strided_slice %360 {offsets = [0, 16], sizes = [16, 16], strides = [1, 1]} : vector<16x32xf32> to vector<16x16xf32>
    %382 = vector.extract_strided_slice %361 {offsets = [0, 16], sizes = [16, 16], strides = [1, 1]} : vector<16x32xf32> to vector<16x16xf32>
    %cst_137 = arith.constant dense<0.000000e+00> : vector<16x16xf32>
    %383 = tpu.matmul %380, %381, %cst_137 {dimension_numbers = #tpu.dot_dimension_numbers<[1], [1], [0], [0], [0, 0, 1, 0], [], []>} : vector<16x16xf32>, vector<16x16xf32>, vector<16x16xf32> -> vector<16x16xf32>
    %cst_138 = arith.constant 2.500000e-01 : f32
    %384 = vector.broadcast %cst_138 : f32 to vector<16x16xf32>
    %385 = arith.mulf %383, %384 : vector<16x16xf32>
    %386 = arith.addf %385, %1 : vector<16x16xf32>
    %cst_139 = arith.constant dense<0xFF800000> : vector<16xf32>
    %387 = vector.multi_reduction <maximumf>, %386, %cst_139 [1] : vector<16x16xf32> to vector<16xf32>
    %388 = vector.shape_cast %387 : vector<16xf32> to vector<16x1xf32>
    %389 = vector.broadcast %388 : vector<16x1xf32> to vector<16x16xf32>
    %390 = arith.subf %386, %389 : vector<16x16xf32>
    %391 = math.exp %390 : vector<16x16xf32>
    %cst_140 = arith.constant dense<0.000000e+00> : vector<16xf32>
    %392 = vector.multi_reduction <add>, %391, %cst_140 [1] : vector<16x16xf32> to vector<16xf32>
    %393 = vector.shape_cast %392 : vector<16xf32> to vector<16x1xf32>
    %394 = tpu.reciprocal %393 : vector<16x1xf32> -> vector<16x1xf32>
    %395 = vector.broadcast %394 : vector<16x1xf32> to vector<16x16xf32>
    %396 = arith.mulf %391, %395 : vector<16x16xf32>
    %cst_141 = arith.constant dense<0.000000e+00> : vector<16x16xf32>
    %397 = tpu.matmul %396, %382, %cst_141 {dimension_numbers = #tpu.dot_dimension_numbers<[1], [0], [0], [1], [0, 0, 1, 1], [], []>} : vector<16x16xf32>, vector<16x16xf32>, vector<16x16xf32> -> vector<16x16xf32>
    %398 = tpu.concatenate %379, %397 in 1 : vector<16x16xf32>, vector<16x16xf32> -> vector<16x32xf32>
    %399 = arith.truncf %398 : vector<16x32xf32> to vector<16x32xbf16>
    %c336 = arith.constant 336 : index
    %c0_142 = arith.constant 0 : index
    %400 = vector.load %arg5[%c336, %c0_142] : memref<400x128xbf16, #tpu.memory_space<vmem>>, vector<32x32xbf16>
    %cst_143 = arith.constant dense<0.000000e+00> : vector<16x32xf32>
    %401 = tpu.matmul %399, %400, %cst_143 {dimension_numbers = #tpu.dot_dimension_numbers<[1], [0], [0], [1], [0, 0, 1, 1], [], []>} : vector<16x32xbf16>, vector<32x32xbf16>, vector<16x32xf32> -> vector<16x32xf32>
    %c10 = arith.constant 10 : index
    %c0_144 = arith.constant 0 : index
    %402 = vector.load %arg6[%c10, %c0_144] : memref<32x128xf32, #tpu.memory_space<vmem>>, vector<1x32xf32>
    %403 = vector.broadcast %402 : vector<1x32xf32> to vector<16x32xf32>
    %404 = arith.addf %401, %403 : vector<16x32xf32>
    %405 = arith.addf %345, %404 : vector<16x32xf32>
    %cst_145 = arith.constant dense<0.000000e+00> : vector<16xf32>
    %406 = vector.multi_reduction <add>, %405, %cst_145 [1] : vector<16x32xf32> to vector<16xf32>
    %407 = vector.shape_cast %406 : vector<16xf32> to vector<16x1xf32>
    %cst_146 = arith.constant 3.200000e+01 : f32
    %408 = vector.broadcast %cst_146 : f32 to vector<16x1xf32>
    %409 = arith.divf %407, %408 : vector<16x1xf32>
    %410 = vector.broadcast %409 : vector<16x1xf32> to vector<16x32xf32>
    %411 = arith.subf %405, %410 : vector<16x32xf32>
    %412 = arith.mulf %411, %411 : vector<16x32xf32>
    %cst_147 = arith.constant dense<0.000000e+00> : vector<16xf32>
    %413 = vector.multi_reduction <add>, %412, %cst_147 [1] : vector<16x32xf32> to vector<16xf32>
    %414 = vector.shape_cast %413 : vector<16xf32> to vector<16x1xf32>
    %cst_148 = arith.constant 3.200000e+01 : f32
    %415 = vector.broadcast %cst_148 : f32 to vector<16x1xf32>
    %416 = arith.divf %414, %415 : vector<16x1xf32>
    %417 = vector.broadcast %409 : vector<16x1xf32> to vector<16x32xf32>
    %418 = arith.subf %405, %417 : vector<16x32xf32>
    %cst_149 = arith.constant 9.99999974E-6 : f32
    %419 = vector.broadcast %cst_149 : f32 to vector<16x1xf32>
    %420 = arith.addf %416, %419 : vector<16x1xf32>
    %421 = math.rsqrt %420 : vector<16x1xf32>
    %422 = vector.broadcast %421 : vector<16x1xf32> to vector<16x32xf32>
    %423 = arith.mulf %418, %422 : vector<16x32xf32>
    %c23 = arith.constant 23 : index
    %c0_150 = arith.constant 0 : index
    %424 = vector.load %arg6[%c23, %c0_150] : memref<32x128xf32, #tpu.memory_space<vmem>>, vector<1x32xf32>
    %425 = vector.broadcast %424 : vector<1x32xf32> to vector<16x32xf32>
    %426 = arith.mulf %423, %425 : vector<16x32xf32>
    %c24 = arith.constant 24 : index
    %c0_151 = arith.constant 0 : index
    %427 = vector.load %arg6[%c24, %c0_151] : memref<32x128xf32, #tpu.memory_space<vmem>>, vector<1x32xf32>
    %428 = vector.broadcast %427 : vector<1x32xf32> to vector<16x32xf32>
    %429 = arith.addf %426, %428 : vector<16x32xf32>
    %430 = arith.truncf %429 : vector<16x32xf32> to vector<16x32xbf16>
    %c2_152 = arith.constant 2 : index
    %c0_153 = arith.constant 0 : index
    %c0_154 = arith.constant 0 : index
    %431 = vector.load %arg7[%c2_152, %c0_153, %c0_154] : memref<3x32x2048xbf16, #tpu.memory_space<vmem>>, vector<1x32x2048xbf16>
    %432 = vector.shape_cast %431 : vector<1x32x2048xbf16> to vector<32x2048xbf16>
    %cst_155 = arith.constant dense<0.000000e+00> : vector<16x2048xf32>
    %433 = tpu.matmul %430, %432, %cst_155 {dimension_numbers = #tpu.dot_dimension_numbers<[1], [0], [0], [1], [0, 0, 1, 1], [], []>} : vector<16x32xbf16>, vector<32x2048xbf16>, vector<16x2048xf32> -> vector<16x2048xf32>
    %c2_156 = arith.constant 2 : index
    %c0_157 = arith.constant 0 : index
    %434 = vector.load %arg9[%c2_156, %c0_157] : memref<3x2048xf32, #tpu.memory_space<vmem>>, vector<1x2048xf32>
    %435 = vector.broadcast %434 : vector<1x2048xf32> to vector<16x2048xf32>
    %436 = arith.addf %433, %435 : vector<16x2048xf32>
    %cst_158 = arith.constant 0.000000e+00 : f32
    %437 = vector.broadcast %cst_158 : f32 to vector<16x2048xf32>
    %438 = arith.maximumf %436, %437 : vector<16x2048xf32>
    %439 = arith.truncf %438 : vector<16x2048xf32> to vector<16x2048xbf16>
    %c2_159 = arith.constant 2 : index
    %c0_160 = arith.constant 0 : index
    %c0_161 = arith.constant 0 : index
    %440 = vector.load %arg8[%c2_159, %c0_160, %c0_161] : memref<3x2048x32xbf16, #tpu.memory_space<vmem>>, vector<1x2048x32xbf16>
    %441 = vector.shape_cast %440 : vector<1x2048x32xbf16> to vector<2048x32xbf16>
    %cst_162 = arith.constant dense<0.000000e+00> : vector<16x32xf32>
    %442 = tpu.matmul %439, %441, %cst_162 {dimension_numbers = #tpu.dot_dimension_numbers<[1], [0], [0], [1], [0, 0, 1, 1], [], []>} : vector<16x2048xbf16>, vector<2048x32xbf16>, vector<16x32xf32> -> vector<16x32xf32>
    %c25 = arith.constant 25 : index
    %c0_163 = arith.constant 0 : index
    %443 = vector.load %arg6[%c25, %c0_163] : memref<32x128xf32, #tpu.memory_space<vmem>>, vector<1x32xf32>
    %444 = vector.broadcast %443 : vector<1x32xf32> to vector<16x32xf32>
    %445 = arith.addf %442, %444 : vector<16x32xf32>
    %446 = arith.addf %429, %445 : vector<16x32xf32>
    %cst_164 = arith.constant dense<0.000000e+00> : vector<16xf32>
    %447 = vector.multi_reduction <add>, %446, %cst_164 [1] : vector<16x32xf32> to vector<16xf32>
    %448 = vector.shape_cast %447 : vector<16xf32> to vector<16x1xf32>
    %cst_165 = arith.constant 3.200000e+01 : f32
    %449 = vector.broadcast %cst_165 : f32 to vector<16x1xf32>
    %450 = arith.divf %448, %449 : vector<16x1xf32>
    %451 = vector.broadcast %450 : vector<16x1xf32> to vector<16x32xf32>
    %452 = arith.subf %446, %451 : vector<16x32xf32>
    %453 = arith.mulf %452, %452 : vector<16x32xf32>
    %cst_166 = arith.constant dense<0.000000e+00> : vector<16xf32>
    %454 = vector.multi_reduction <add>, %453, %cst_166 [1] : vector<16x32xf32> to vector<16xf32>
    %455 = vector.shape_cast %454 : vector<16xf32> to vector<16x1xf32>
    %cst_167 = arith.constant 3.200000e+01 : f32
    %456 = vector.broadcast %cst_167 : f32 to vector<16x1xf32>
    %457 = arith.divf %455, %456 : vector<16x1xf32>
    %458 = vector.broadcast %450 : vector<16x1xf32> to vector<16x32xf32>
    %459 = arith.subf %446, %458 : vector<16x32xf32>
    %cst_168 = arith.constant 9.99999974E-6 : f32
    %460 = vector.broadcast %cst_168 : f32 to vector<16x1xf32>
    %461 = arith.addf %457, %460 : vector<16x1xf32>
    %462 = math.rsqrt %461 : vector<16x1xf32>
    %463 = vector.broadcast %462 : vector<16x1xf32> to vector<16x32xf32>
    %464 = arith.mulf %459, %463 : vector<16x32xf32>
    %c26 = arith.constant 26 : index
    %c0_169 = arith.constant 0 : index
    %465 = vector.load %arg6[%c26, %c0_169] : memref<32x128xf32, #tpu.memory_space<vmem>>, vector<1x32xf32>
    %466 = vector.broadcast %465 : vector<1x32xf32> to vector<16x32xf32>
    %467 = arith.mulf %464, %466 : vector<16x32xf32>
    %c27 = arith.constant 27 : index
    %c0_170 = arith.constant 0 : index
    %468 = vector.load %arg6[%c27, %c0_170] : memref<32x128xf32, #tpu.memory_space<vmem>>, vector<1x32xf32>
    %469 = vector.broadcast %468 : vector<1x32xf32> to vector<16x32xf32>
    %470 = arith.addf %467, %469 : vector<16x32xf32>
    %471 = arith.truncf %470 : vector<16x32xf32> to vector<16x32xbf16>
    %c368 = arith.constant 368 : index
    %c0_171 = arith.constant 0 : index
    %472 = vector.load %arg5[%c368, %c0_171] : memref<400x128xbf16, #tpu.memory_space<vmem>>, vector<32x16xbf16>
    %cst_172 = arith.constant dense<0.000000e+00> : vector<16x16xf32>
    %473 = tpu.matmul %471, %472, %cst_172 {dimension_numbers = #tpu.dot_dimension_numbers<[1], [0], [0], [1], [0, 0, 1, 1], [], []>} : vector<16x32xbf16>, vector<32x16xbf16>, vector<16x16xf32> -> vector<16x16xf32>
    %c28 = arith.constant 28 : index
    %c0_173 = arith.constant 0 : index
    %474 = vector.load %arg6[%c28, %c0_173] : memref<32x128xf32, #tpu.memory_space<vmem>>, vector<1x16xf32>
    %475 = vector.broadcast %474 : vector<1x16xf32> to vector<16x16xf32>
    %476 = arith.addf %473, %475 : vector<16x16xf32>
    %c0_174 = arith.constant 0 : index
    %477 = memref.load %arg4[%c0_174] : memref<1xf32, #tpu.memory_space<smem>>
    %478 = vector.broadcast %477 : f32 to vector<16x16xf32>
    %479 = arith.mulf %476, %478 : vector<16x16xf32>
    %cst_175 = arith.constant dense<0xFF800000> : vector<16xf32>
    %480 = vector.multi_reduction <maximumf>, %479, %cst_175 [1] : vector<16x16xf32> to vector<16xf32>
    %481 = vector.shape_cast %480 : vector<16xf32> to vector<16x1xf32>
    %482 = vector.broadcast %481 : vector<16x1xf32> to vector<16x16xf32>
    %483 = arith.subf %479, %482 : vector<16x16xf32>
    %484 = math.exp %483 : vector<16x16xf32>
    %cst_176 = arith.constant dense<0.000000e+00> : vector<16xf32>
    %485 = vector.multi_reduction <add>, %484, %cst_176 [1] : vector<16x16xf32> to vector<16xf32>
    %486 = vector.shape_cast %485 : vector<16xf32> to vector<16x1xf32>
    %487 = tpu.reciprocal %486 : vector<16x1xf32> -> vector<16x1xf32>
    %488 = vector.broadcast %487 : vector<16x1xf32> to vector<16x16xf32>
    %489 = arith.mulf %484, %488 : vector<16x16xf32>
    %c0_177 = arith.constant 0 : index
    %c0_178 = arith.constant 0 : index
    %490 = vector.load %arg10[%c0_177, %c0_178] : memref<16x16xf32, #tpu.memory_space<vmem>>, vector<16x16xf32>
    tpu.vector_store %arg10[%c0_177, %c0_178], %476 {strides = array<i32>} : memref<16x16xf32, #tpu.memory_space<vmem>>, vector<16x16xf32>,
    %c0_179 = arith.constant 0 : index
    %c0_180 = arith.constant 0 : index
    %491 = vector.load %arg11[%c0_179, %c0_180] : memref<16x16xf32, #tpu.memory_space<vmem>>, vector<16x16xf32>
    tpu.vector_store %arg11[%c0_179, %c0_180], %489 {strides = array<i32>} : memref<16x16xf32, #tpu.memory_space<vmem>>, vector<16x16xf32>,
    return
  }
}

</mosaic_0001>

<llo_original>
// kernel: forward.1
$region0: #{forward.1}
  #allocation0 [shape = 'u32[]', space=smem, size = 0x4, offset = 0x4, fixed_abs, tag = 'smem constant byte address 0x4 - core index']
  #allocation1 [shape = 'u32[72,128]{1,0:T(1,128)}', space=vmem, size = 0x9000, scoped, tag = 'internal scratch']
  #allocation2 [shape = 'f32[1]{0:T(128)S(6)}', space=smem, size = 0x200, scoped, tag = 'scoped memory for forward.1']
  %s0 = inlined_call_operand.vmem [shape: f32[16,38], index: 0, kind: input, shape index: {}]
  %s1 = inlined_call_operand.vmem [shape: f32[16,32], index: 1, kind: input, shape index: {}]
  %s2 = inlined_call_operand.vmem [shape: f32[16,16], index: 2, kind: input, shape index: {}]
  %s3 = inlined_call_operand.vmem [shape: f32[16,16], index: 3, kind: input, shape index: {}]
  %s4 = inlined_call_operand.<no memory space> [shape: f32[1], index: 4, kind: input, shape index: {}]
  %s5 = inlined_call_operand.vmem [shape: bf16[400,128], index: 5, kind: input, shape index: {}]
  %s6 = inlined_call_operand.vmem [shape: f32[32,128], index: 6, kind: input, shape index: {}]
  %s7 = inlined_call_operand.vmem [shape: bf16[3,32,2048], index: 7, kind: input, shape index: {}]
  %s8 = inlined_call_operand.vmem [shape: bf16[3,2048,32], index: 8, kind: input, shape index: {}]
  %s9 = inlined_call_operand.vmem [shape: f32[3,2048], index: 9, kind: input, shape index: {}]
  %s10 = inlined_call_operand.hbm [shape: f32[16,16], index: 10, kind: output, shape index: {0}]
  %s11 = inlined_call_operand.vmem [shape: f32[16,16], index: 11, kind: output, shape index: {1}]
  %12 = xla_tuple %s10, %s11
  %s13 = sld [smem:[#allocation0]]
  $region58: #{forward.1} parent=0
    _
  %s15 = ssub.s32 1, %s13
  %s16 = scalar_select 0, %s15, %s13
  %17 = sst [smem:[#allocation2]] %s4
  $region1: #{forward.1} parent=0
    #allocation3 [shape = 'u8[8192]{0}', space=vmem, size = 0x2000, scoped, tag = 'output window, operand 0, single buffered']
    #allocation4 [shape = 's32[1]{0}', space=sflag, size = 0x4, scoped, tag = 'scoped memory for forward.1']
    %18 = vsyncpa [#allocation4], 0
    // Predicated region
    $region2: #{forward.1} parent=1 // pred_check
      _
    $region3: #{forward.1} parent=1 // pred_check_branch
      %20 = sbr.rel (0) target = $region5
    $region4: #{forward.1} parent=1 // pred_region
      _
    $region5: #{forward.1} parent=1 // pred_fallthru
      _
    // Predicated region
    $region6: #{forward.1} parent=1 // pred_check
      _
    $region7: #{forward.1} parent=1 // pred_check_branch
      %22 = sbr.rel (0) target = $region9
    $region8: #{forward.1} parent=1 // pred_region
      _
    $region9: #{forward.1} parent=1 // pred_fallthru
      _
    // Predicated region
    $region10: #{forward.1} parent=1 // pred_check
      _
    $region11: #{forward.1} parent=1 // pred_check_branch
      %24 = sbr.rel (0) target = $region13
    $region12: #{forward.1} parent=1 // pred_region
      _
    $region13: #{forward.1} parent=1 // pred_fallthru
      _
    // Predicated region
    $region14: #{forward.1} parent=1 // pred_check
      _
    $region15: #{forward.1} parent=1 // pred_check_branch
      %26 = sbr.rel (0) target = $region17
    $region16: #{forward.1} parent=1 // pred_region
      _
    $region17: #{forward.1} parent=1 // pred_fallthru
      _
    // Predicated region
    $region18: #{forward.1} parent=1 // pred_check
      _
    $region19: #{forward.1} parent=1 // pred_check_branch
      %28 = sbr.rel (0) target = $region21
    $region20: #{forward.1} parent=1 // pred_region
      _
    $region21: #{forward.1} parent=1 // pred_fallthru
      _
    // Predicated region
    $region22: #{forward.1} parent=1 // pred_check
      _
    $region23: #{forward.1} parent=1 // pred_check_branch
      %30 = sbr.rel (0) target = $region25
    $region24: #{forward.1} parent=1 // pred_region
      _
    $region25: #{forward.1} parent=1 // pred_fallthru
      _
    // Predicated region
    $region26: #{forward.1} parent=1 // pred_check
      _
    $region27: #{forward.1} parent=1 // pred_check_branch
      %32 = sbr.rel (0) target = $region29
    $region28: #{forward.1} parent=1 // pred_region
      _
    $region29: #{forward.1} parent=1 // pred_fallthru
      _
    // Predicated region
    $region30: #{forward.1} parent=1 // pred_check
      _
    $region31: #{forward.1} parent=1 // pred_check_branch
      %34 = sbr.rel (0) target = $region33
    $region32: #{forward.1} parent=1 // pred_region
      _
    $region33: #{forward.1} parent=1 // pred_fallthru
      _
    // Predicated region
    $region34: #{forward.1} parent=1 // pred_check
      _
    $region35: #{forward.1} parent=1 // pred_check_branch
      %36 = sbr.rel (0) target = $region37
    $region36: #{forward.1} parent=1 // pred_region
      _
    $region37: #{forward.1} parent=1 // pred_fallthru
      _
    // Predicated region
    $region38: #{forward.1} parent=1 // pred_check
      _
    $region39: #{forward.1} parent=1 // pred_check_branch
      %38 = sbr.rel (0) target = $region41
    $region40: #{forward.1} parent=1 // pred_region
      _
    $region41: #{forward.1} parent=1 // pred_fallthru
      _
    %v40 = vld [vmem:[%s2] sm:$0xff]
    %v41 = vld [vmem:[%s2 + $0x8] sm:$0xff]
    %v42 = vld [vmem:[%s3] sm:$0xff]
    %v43 = vld [vmem:[%s3 + $0x8] sm:$0xff]
    %v44 = vld [vmem:[%s0] sm:$0xff]
    %v45 = vld [vmem:[%s0 + $0x8] sm:$0xff]
    %v46 = vpack.c.bf16 %v45, %v44
    %v47 = vld [vmem:[%s5] sm:$0xf]
    %v48 = vld [vmem:[%s5 + $0x4] sm:$0xf]
    %v49 = vld [vmem:[%s5 + $0x8] sm:$0xf]
    %v50 = vld [vmem:[%s5 + $0xc] sm:$0xf]
    %v51 = vld [vmem:[%s5 + $0x10] sm:$0x7]
    %v52 = vld [vmem:[%s6] sm:$0x1]
    %v53 = vperm.slane %v52, 0
    %v59 = vunpack.c.l.b16 %v47
    %v60 = vunpack.c.l.b16 %v48
    %v61 = vunpack.c.l.b16 %v49
    %v62 = vunpack.c.l.b16 %v50
    %v63 = vunpack.c.l.b16 %v51
    %v64 = vpack.c.b16 %v60, %v59
    %v65 = vpack.c.b16 %v62, %v61
    %v66 = vpack.c.b16 %v63, %v63
    %vm69 = vcmask 310272
    %v71 = vsel %vm69, %v46, 0
    %vm73 = vcmask 1042432
    %v75 = vsel %vm73, %v66, 0
    %77 = vmatpush.bf16.msra.mxu0 0
    %78 = vmatpush.bf16.msra.mxu0 0
    %79 = vmatpush.bf16.msra.mxu0 0
    %80 = vmatpush.bf16.msra.mxu0 0
    %81 = vmatpush.bf16.msra.mxu0 0
    %82 = vmatpush.bf16.msra.mxu0 %v75
    %83 = vmatpush.bf16.msra.mxu0 %v65
    %84 = vmatpush.bf16.msra.mxu0 %v64
    %85 = vmatmul.bf16.gmra.mxu0 %v71
    %v86 = vpop.f32.mrf.mxu0
    %v87 = vadd.f32 %v53, %v86
    %v88 = vpop.f32.mrf.mxu0
    %v89 = vadd.f32 %v53, %v88
    %90 = vdwg.mxu0
    %vm91 = vcmp.ge.f32.partialorder %v87, 0.0
    %vm92 = vcmp.ge.f32.partialorder %v89, 0.0
    %v93 = vmul.f32 %v87, 0.01
    %v94 = vmul.f32 %v89, 0.01
    %v95 = vsel %vm91, %v87, %v93
    %v96 = vsel %vm92, %v89, %v94
    %v97 = vpack.c.bf16 %v96, %v95
    %v98 = vld [vmem:[%s5 + $0x18] sm:$0xf]
    %v99 = vld [vmem:[%s5 + $0x1c] sm:$0xf]
    %v100 = vld [vmem:[%s5 + $0x20] sm:$0xf]
    %v101 = vld [vmem:[%s5 + $0x24] sm:$0xf]
    %v102 = vld [vmem:[%s6 + $0x1] sm:$0x1]
    %v103 = vperm.slane %v102, 0
    %v108 = vunpack.c.l.b16 %v98
    %v109 = vunpack.c.l.b16 %v99
    %v110 = vunpack.c.l.b16 %v100
    %v111 = vunpack.c.l.b16 %v101
    %v112 = vpack.c.b16 %v109, %v108
    %v113 = vpack.c.b16 %v111, %v110
    %vm116 = vcmask 261120
    %v118 = vsel %vm116, %v97, 0
    %120 = vmatpush.bf16.msra.mxu0 0
    %121 = vmatpush.bf16.msra.mxu0 0
    %122 = vmatpush.bf16.msra.mxu0 0
    %123 = vmatpush.bf16.msra.mxu0 0
    %124 = vmatpush.bf16.msra.mxu0 0
    %125 = vmatpush.bf16.msra.mxu0 0
    %126 = vmatpush.bf16.msra.mxu0 %v113
    %127 = vmatpush.bf16.msra.mxu0 %v112
    %128 = vmatmul.bf16.gmra.mxu0 %v118
    %v129 = vpop.f32.mrf.mxu0
    %v130 = vadd.f32 %v103, %v129
    %v131 = vpop.f32.mrf.mxu0
    %v132 = vadd.f32 %v103, %v131
    %133 = vdwg.mxu0
    %vm134 = vcmp.ge.f32.partialorder %v130, 0.0
    %vm135 = vcmp.ge.f32.partialorder %v132, 0.0
    %v136 = vmul.f32 %v130, 0.01
    %v137 = vmul.f32 %v132, 0.01
    %v138 = vsel %vm134, %v130, %v136
    %v139 = vsel %vm135, %v132, %v137
    %v140 = vpack.c.bf16 %v139, %v138
    %v141 = vld [vmem:[%s5 + $0x28] sm:$0xf]
    %v142 = vld [vmem:[%s5 + $0x2c] sm:$0xf]
    %v143 = vld [vmem:[%s5 + $0x30] sm:$0xf]
    %v144 = vld [vmem:[%s5 + $0x34] sm:$0xf]
    %v145 = vld [vmem:[%s6 + $0x2] sm:$0x1]
    %v146 = vperm.slane %v145, 0
    %v151 = vunpack.c.l.b16 %v141
    %v152 = vunpack.c.l.b16 %v142
    %v153 = vunpack.c.l.b16 %v143
    %v154 = vunpack.c.l.b16 %v144
    %v155 = vpack.c.b16 %v152, %v151
    %v156 = vpack.c.b16 %v154, %v153
    %v160 = vsel %vm116, %v140, 0
    %162 = vmatpush.bf16.msra.mxu0 0
    %163 = vmatpush.bf16.msra.mxu0 0
    %164 = vmatpush.bf16.msra.mxu0 0
    %165 = vmatpush.bf16.msra.mxu0 0
    %166 = vmatpush.bf16.msra.mxu0 0
    %167 = vmatpush.bf16.msra.mxu0 0
    %168 = vmatpush.bf16.msra.mxu0 %v156
    %169 = vmatpush.bf16.msra.mxu0 %v155
    %170 = vmatmul.bf16.gmra.mxu0 %v160
    %v171 = vpop.f32.mrf.mxu0
    %v172 = vadd.f32 %v146, %v171
    %v173 = vpop.f32.mrf.mxu0
    %v174 = vadd.f32 %v146, %v173
    %175 = vdwg.mxu0
    %v176 = vld [vmem:[%s1] sm:$0xff]
    %v177 = vld [vmem:[%s1 + $0x8] sm:$0xff]
    %v178 = vadd.f32 %v172, %v176
    %v179 = vadd.f32 %v174, %v177
    %v180 = vld [vmem:[%s5 + $0x38] sm:$0xf]
    %v181 = vld [vmem:[%s5 + $0x3c] sm:$0xf]
    %v182 = vld [vmem:[%s5 + $0x40] sm:$0xf]
    %v183 = vld [vmem:[%s5 + $0x44] sm:$0xf]
    %v184 = vld [vmem:[%s6 + $0x3] sm:$0x1]
    %v185 = vpack.c.bf16 %v179, %v178
    %v186 = vperm.slane %v184, 0
    %v191 = vunpack.c.l.b16 %v180
    %v192 = vunpack.c.l.b16 %v181
    %v193 = vunpack.c.l.b16 %v182
    %v194 = vunpack.c.l.b16 %v183
    %v195 = vpack.c.b16 %v192, %v191
    %v196 = vpack.c.b16 %v194, %v193
    %v200 = vsel %vm116, %v185, 0
    %202 = vmatpush.bf16.msra.mxu0 0
    %203 = vmatpush.bf16.msra.mxu0 0
    %204 = vmatpush.bf16.msra.mxu0 0
    %205 = vmatpush.bf16.msra.mxu0 0
    %206 = vmatpush.bf16.msra.mxu0 0
    %207 = vmatpush.bf16.msra.mxu0 0
    %208 = vmatpush.bf16.msra.mxu0 %v196
    %209 = vmatpush.bf16.msra.mxu0 %v195
    %210 = vmatmul.bf16.gmra.mxu0 %v200
    %v211 = vpop.f32.mrf.mxu0
    %v212 = vadd.f32 %v186, %v211
    %v213 = vpop.f32.mrf.mxu0
    %v214 = vadd.f32 %v186, %v213
    %215 = vdwg.mxu0
    %218 = vrot.lane.b32.xlu0 %v212, 96
    %v219 = vpop.permute.xlu0 %218
    %220 = vrot.lane.b32.xlu0 %v214, 96
    %v221 = vpop.permute.xlu0 %220
    %vm222 = vcmask 130048
    %v223 = vsel %vm222, %v212, 0
    %v225 = vsel %vm222, %v214, 0
    %v227 = vsel %vm222, %v219, 0
    %v229 = vsel %vm222, %v221, 0
    %231 = vmatpush.xpose.msra.mxu0 0.0
    %232 = vmatpush.xpose.msra.mxu0 0.0
    %233 = vmatpush.xpose.msra.mxu0 0.0
    %234 = vmatpush.xpose.msra.mxu0 0.0
    %235 = vmatpush.xpose.msra.mxu0 0.0
    %236 = vmatpush.xpose.msra.mxu0 0.0
    %237 = vmatpush.xpose.msra.mxu0 0.0
    %238 = vmatpush.xpose.msra.mxu0 0.0
    %239 = vmatpush.xpose.msra.mxu0 0.0
    %240 = vmatpush.xpose.msra.mxu0 0.0
    %241 = vmatpush.xpose.msra.mxu0 0.0
    %242 = vmatpush.xpose.msra.mxu0 0.0
    %243 = vmatpush.xpose.msra.mxu0 0.0
    %244 = vmatpush.xpose.msra.mxu0 0.0
    %245 = vmatpush.xpose.msra.mxu0 %v229
    %246 = vmatpush.xpose.msra.mxu0 %v227
    %247 = vmatmul.f32.gmra.mxu0 %v223
    %v248 = vpop.f32.mrf.mxu0
    %v249 = vadd.f32 0.0, %v248
    %250 = vmatmul.f32.gmra.mxu0 %v225
    %v251 = vpop.f32.mrf.mxu0
    %v252 = vadd.f32 0.0, %v251
    %253 = vdwg.mxu0
    %v254 = vmul.f32 %v249, 0.25
    %v255 = vmul.f32 %v252, 0.25
    %v256 = vadd.f32 %v254, %v40
    %v257 = vadd.f32 %v255, %v41
    %v258 = vsel %vm222, %v256, -inf
    %259 = vmax.xlane.f32.xlu0 %v258
    %v260 = vpop.xlane.xlu0 %259
    %v261 = vsel %vm222, %v257, -inf
    %262 = vmax.xlane.f32.xlu0 %v261
    %v263 = vpop.xlane.xlu0 %262
    %v264 = vsub.f32 %v256, %v260
    %v265 = vsub.f32 %v257, %v263
    %v266 = vmul.f32 %v264, 1.442695
    %v267 = vpow.pop %v266
    %v268 = vmul.f32 %v265, 1.442695
    %v269 = vpow.pop %v268
    %v270 = vsel %vm222, %v267, 0.0
    %271 = vadd.xlane.f32.xlu0 %v270
    %v272 = vpop.xlane.xlu0 %271
    %v273 = vsel %vm222, %v269, 0.0
    %274 = vadd.xlane.f32.xlu0 %v273
    %v275 = vpop.xlane.xlu0 %274
    %v276 = vrcp.pop %v272
    %v277 = vmul.f32 %v272, %v276
    %v278 = vsub.f32 1.0, %v277
    %v279 = vmul.f32 %v276, %v278
    %v280 = vadd.f32 %v276, %v279
    %vm281 = vweird.f32 %v272
    %vm282 = vweird.f32 %v276
    %vm283 = vmor %vm281, %vm282
    %v284 = vsel %vm283, %v276, %v280
    %v285 = vand.u32 2147483647, %v272
    %vm286 = vcmp.eq.f32.partialorder %v285, 8.507059e+37
    %v287 = vand.u32 %v272, 2147483648
    %v288 = vor.u32 1.1754944e-38, %v287
    %v289 = vsel %vm286, %v288, %v284
    %v290 = vrcp.pop %v275
    %v291 = vmul.f32 %v275, %v290
    %v292 = vsub.f32 1.0, %v291
    %v293 = vmul.f32 %v290, %v292
    %v294 = vadd.f32 %v290, %v293
    %vm295 = vweird.f32 %v275
    %vm296 = vweird.f32 %v290
    %vm297 = vmor %vm295, %vm296
    %v298 = vsel %vm297, %v290, %v294
    %v299 = vand.u32 2147483647, %v275
    %vm300 = vcmp.eq.f32.partialorder %v299, 8.507059e+37
    %v301 = vand.u32 %v275, 2147483648
    %v302 = vor.u32 1.1754944e-38, %v301
    %v303 = vsel %vm300, %v302, %v298
    %v304 = vmul.f32 %v267, %v289
    %v305 = vmul.f32 %v269, %v303
    %306 = vrot.lane.b32.xlu0 %v212, 64
    %v307 = vpop.permute.xlu0 %306
    %308 = vrot.lane.b32.xlu0 %v214, 64
    %v309 = vpop.permute.xlu0 %308
    %v313 = vsel %vm222, %v304, 0
    %v316 = vsel %vm222, %v305, 0
    %318 = vmatpush.msra.mxu0 0.0
    %319 = vmatpush.msra.mxu0 0.0
    %320 = vmatpush.msra.mxu0 0.0
    %321 = vmatpush.msra.mxu0 0.0
    %322 = vmatpush.msra.mxu0 0.0
    %323 = vmatpush.msra.mxu0 0.0
    %324 = vmatpush.msra.mxu0 0.0
    %325 = vmatpush.msra.mxu0 0.0
    %326 = vmatpush.msra.mxu0 0.0
    %327 = vmatpush.msra.mxu0 0.0
    %328 = vmatpush.msra.mxu0 0.0
    %329 = vmatpush.msra.mxu0 0.0
    %330 = vmatpush.msra.mxu0 0.0
    %331 = vmatpush.msra.mxu0 0.0
    %332 = vmatpush.msra.mxu0 %v309
    %333 = vmatpush.msra.mxu0 %v307
    %334 = vmatmul.f32.gmra.mxu0 %v313
    %v335 = vpop.f32.mrf.mxu0
    %v336 = vadd.f32 0.0, %v335
    %337 = vmatmul.f32.gmra.mxu0 %v316
    %v338 = vpop.f32.mrf.mxu0
    %v339 = vadd.f32 0.0, %v338
    %340 = vdwg.mxu0
    %341 = vrot.lane.b32.xlu0 %v212, 112
    %v342 = vpop.permute.xlu0 %341
    %343 = vrot.lane.b32.xlu0 %v214, 112
    %v344 = vpop.permute.xlu0 %343
    %345 = vrot.lane.b32.xlu0 %v212, 80
    %v346 = vpop.permute.xlu0 %345
    %347 = vrot.lane.b32.xlu0 %v214, 80
    %v348 = vpop.permute.xlu0 %347
    %v349 = vsel %vm222, %v342, 0
    %v351 = vsel %vm222, %v344, 0
    %v353 = vsel %vm222, %v346, 0
    %v355 = vsel %vm222, %v348, 0
    %357 = vmatpush.xpose.msra.mxu0 0.0
    %358 = vmatpush.xpose.msra.mxu0 0.0
    %359 = vmatpush.xpose.msra.mxu0 0.0
    %360 = vmatpush.xpose.msra.mxu0 0.0
    %361 = vmatpush.xpose.msra.mxu0 0.0
    %362 = vmatpush.xpose.msra.mxu0 0.0
    %363 = vmatpush.xpose.msra.mxu0 0.0
    %364 = vmatpush.xpose.msra.mxu0 0.0
    %365 = vmatpush.xpose.msra.mxu0 0.0
    %366 = vmatpush.xpose.msra.mxu0 0.0
    %367 = vmatpush.xpose.msra.mxu0 0.0
    %368 = vmatpush.xpose.msra.mxu0 0.0
    %369 = vmatpush.xpose.msra.mxu0 0.0
    %370 = vmatpush.xpose.msra.mxu0 0.0
    %371 = vmatpush.xpose.msra.mxu0 %v355
    %372 = vmatpush.xpose.msra.mxu0 %v353
    %373 = vmatmul.f32.gmra.mxu0 %v349
    %v374 = vpop.f32.mrf.mxu0
    %v375 = vadd.f32 0.0, %v374
    %376 = vmatmul.f32.gmra.mxu0 %v351
    %v377 = vpop.f32.mrf.mxu0
    %v378 = vadd.f32 0.0, %v377
    %379 = vdwg.mxu0
    %v380 = vmul.f32 %v375, 0.25
    %v381 = vmul.f32 %v378, 0.25
    %v382 = vadd.f32 %v380, %v40
    %v383 = vadd.f32 %v381, %v41
    %v384 = vsel %vm222, %v382, -inf
    %385 = vmax.xlane.f32.xlu0 %v384
    %v386 = vpop.xlane.xlu0 %385
    %v387 = vsel %vm222, %v383, -inf
    %388 = vmax.xlane.f32.xlu0 %v387
    %v389 = vpop.xlane.xlu0 %388
    %v390 = vsub.f32 %v382, %v386
    %v391 = vsub.f32 %v383, %v389
    %v392 = vmul.f32 %v390, 1.442695
    %v393 = vpow.pop %v392
    %v394 = vmul.f32 %v391, 1.442695
    %v395 = vpow.pop %v394
    %v396 = vsel %vm222, %v393, 0.0
    %397 = vadd.xlane.f32.xlu0 %v396
    %v398 = vpop.xlane.xlu0 %397
    %v399 = vsel %vm222, %v395, 0.0
    %400 = vadd.xlane.f32.xlu0 %v399
    %v401 = vpop.xlane.xlu0 %400
    %v402 = vrcp.pop %v398
    %v403 = vmul.f32 %v398, %v402
    %v404 = vsub.f32 1.0, %v403
    %v405 = vmul.f32 %v402, %v404
    %v406 = vadd.f32 %v402, %v405
    %vm407 = vweird.f32 %v398
    %vm408 = vweird.f32 %v402
    %vm409 = vmor %vm407, %vm408
    %v410 = vsel %vm409, %v402, %v406
    %v411 = vand.u32 2147483647, %v398
    %vm412 = vcmp.eq.f32.partialorder %v411, 8.507059e+37
    %v413 = vand.u32 %v398, 2147483648
    %v414 = vor.u32 1.1754944e-38, %v413
    %v415 = vsel %vm412, %v414, %v410
    %v416 = vrcp.pop %v401
    %v417 = vmul.f32 %v401, %v416
    %v418 = vsub.f32 1.0, %v417
    %v419 = vmul.f32 %v416, %v418
    %v420 = vadd.f32 %v416, %v419
    %vm421 = vweird.f32 %v401
    %vm422 = vweird.f32 %v416
    %vm423 = vmor %vm421, %vm422
    %v424 = vsel %vm423, %v416, %v420
    %v425 = vand.u32 2147483647, %v401
    %vm426 = vcmp.eq.f32.partialorder %v425, 8.507059e+37
    %v427 = vand.u32 %v401, 2147483648
    %v428 = vor.u32 1.1754944e-38, %v427
    %v429 = vsel %vm426, %v428, %v424
    %v430 = vmul.f32 %v393, %v415
    %v431 = vmul.f32 %v395, %v429
    %432 = vrot.lane.b32.xlu0 %v212, 48
    %v433 = vpop.permute.xlu0 %432
    %434 = vrot.lane.b32.xlu0 %v214, 48
    %v435 = vpop.permute.xlu0 %434
    %v439 = vsel %vm222, %v430, 0
    %v442 = vsel %vm222, %v431, 0
    %444 = vmatpush.msra.mxu0 0.0
    %445 = vmatpush.msra.mxu0 0.0
    %446 = vmatpush.msra.mxu0 0.0
    %447 = vmatpush.msra.mxu0 0.0
    %448 = vmatpush.msra.mxu0 0.0
    %449 = vmatpush.msra.mxu0 0.0
    %450 = vmatpush.msra.mxu0 0.0
    %451 = vmatpush.msra.mxu0 0.0
    %452 = vmatpush.msra.mxu0 0.0
    %453 = vmatpush.msra.mxu0 0.0
    %454 = vmatpush.msra.mxu0 0.0
    %455 = vmatpush.msra.mxu0 0.0
    %456 = vmatpush.msra.mxu0 0.0
    %457 = vmatpush.msra.mxu0 0.0
    %458 = vmatpush.msra.mxu0 %v435
    %459 = vmatpush.msra.mxu0 %v433
    %460 = vmatmul.f32.gmra.mxu0 %v439
    %v461 = vpop.f32.mrf.mxu0
    %v462 = vadd.f32 0.0, %v461
    %463 = vmatmul.f32.gmra.mxu0 %v442
    %v464 = vpop.f32.mrf.mxu0
    %v465 = vadd.f32 0.0, %v464
    %466 = vdwg.mxu0
    %469 = vrot.lane.b32.xlu0 %v462, 16
    %v470 = vpop.permute.xlu0 %469
    %471 = vrot.lane.b32.xlu0 %v465, 16
    %v472 = vpop.permute.xlu0 %471
    %v475 = vsel %vm222, %v336, %v470
    %v476 = vsel %vm222, %v339, %v472
    %v477 = vpack.c.bf16 %v476, %v475
    %v478 = vld [vmem:[%s5 + $0x48] sm:$0xf]
    %v479 = vld [vmem:[%s5 + $0x4c] sm:$0xf]
    %v480 = vld [vmem:[%s5 + $0x50] sm:$0xf]
    %v481 = vld [vmem:[%s5 + $0x54] sm:$0xf]
    %v482 = vld [vmem:[%s6 + $0x4] sm:$0x1]
    %v483 = vperm.slane %v482, 0
    %v488 = vunpack.c.l.b16 %v478
    %v489 = vunpack.c.l.b16 %v479
    %v490 = vunpack.c.l.b16 %v480
    %v491 = vunpack.c.l.b16 %v481
    %v492 = vpack.c.b16 %v489, %v488
    %v493 = vpack.c.b16 %v491, %v490
    %v497 = vsel %vm116, %v477, 0
    %499 = vmatpush.bf16.msra.mxu0 0
    %500 = vmatpush.bf16.msra.mxu0 0
    %501 = vmatpush.bf16.msra.mxu0 0
    %502 = vmatpush.bf16.msra.mxu0 0
    %503 = vmatpush.bf16.msra.mxu0 0
    %504 = vmatpush.bf16.msra.mxu0 0
    %505 = vmatpush.bf16.msra.mxu0 %v493
    %506 = vmatpush.bf16.msra.mxu0 %v492
    %507 = vmatmul.bf16.gmra.mxu0 %v497
    %v508 = vpop.f32.mrf.mxu0
    %v509 = vadd.f32 %v483, %v508
    %v510 = vpop.f32.mrf.mxu0
    %v511 = vadd.f32 %v483, %v510
    %512 = vdwg.mxu0
    %v513 = vadd.f32 %v178, %v509
    %v514 = vadd.f32 %v179, %v511
    %v515 = vsel %vm116, %v513, 0.0
    %516 = vadd.xlane.f32.xlu0 %v515
    %v517 = vpop.xlane.xlu0 %516
    %v518 = vsel %vm116, %v514, 0.0
    %519 = vadd.xlane.f32.xlu0 %v518
    %v520 = vpop.xlane.xlu0 %519
    %v521 = vrcp.pop 32.0
    %v522 = vmul.f32 32.0, %v521
    %v523 = vsub.f32 1.0, %v522
    %v524 = vmul.f32 %v521, %v523
    %v525 = vadd.f32 %v521, %v524
    %vm526 = vweird.f32 %v521
    %v527 = vsel %vm526, %v521, %v525
    %v528 = vmul.f32 %v517, %v527
    %v529 = vmul.f32 %v520, %v527
    %v530 = vsub.f32 %v513, %v528
    %v531 = vsub.f32 %v514, %v529
    %v532 = vmul.f32 %v530, %v530
    %v533 = vmul.f32 %v531, %v531
    %v534 = vsel %vm116, %v532, 0.0
    %535 = vadd.xlane.f32.xlu0 %v534
    %v536 = vpop.xlane.xlu0 %535
    %v537 = vsel %vm116, %v533, 0.0
    %538 = vadd.xlane.f32.xlu0 %v537
    %v539 = vpop.xlane.xlu0 %538
    %v540 = vmul.f32 %v536, %v527
    %v541 = vmul.f32 %v539, %v527
    %v542 = vadd.f32 %v540, 1e-05
    %v543 = vadd.f32 %v541, 1e-05
    %v544 = vrsqrt.pop %v542
    %v545 = vmul.f32 %v544, %v542
    %v546 = vmul.f32 %v545, %v544
    %v547 = vmul.f32 0.5, %v546
    %v548 = vsub.f32 1.5, %v547
    %v549 = vmul.f32 %v544, %v548
    %vm550 = vweird.f32 %v542
    %vm551 = vweird.f32 %v544
    %vm552 = vmor %vm550, %vm551
    %v553 = vsel %vm552, %v544, %v549
    %v554 = vrsqrt.pop %v543
    %v555 = vmul.f32 %v554, %v543
    %v556 = vmul.f32 %v555, %v554
    %v557 = vmul.f32 0.5, %v556
    %v558 = vsub.f32 1.5, %v557
    %v559 = vmul.f32 %v554, %v558
    %vm560 = vweird.f32 %v543
    %vm561 = vweird.f32 %v554
    %vm562 = vmor %vm560, %vm561
    %v563 = vsel %vm562, %v554, %v559
    %v564 = vmul.f32 %v530, %v553
    %v565 = vmul.f32 %v531, %v563
    %v566 = vld [vmem:[%s6 + $0xb] sm:$0x1]
    %v567 = vperm.slane %v566, 0
    %v568 = vmul.f32 %v564, %v567
    %v569 = vmul.f32 %v565, %v567
    %v570 = vld [vmem:[%s6 + $0xc] sm:$0x1]
    %v571 = vperm.slane %v570, 0
    %v572 = vadd.f32 %v568, %v571
    %v573 = vadd.f32 %v569, %v571
    %v574 = vpack.c.bf16 %v573, %v572
    %v575 = vld [vmem:[%s7] sm:$0xff]
    %v576 = vld [vmem:[%s7 + $0x8] sm:$0xff]
    %v577 = vld [vmem:[%s7 + $0x10] sm:$0xff]
    %v578 = vld [vmem:[%s7 + $0x18] sm:$0xff]
    %v579 = vld [vmem:[%s7 + $0x20] sm:$0xff]
    %v580 = vld [vmem:[%s7 + $0x28] sm:$0xff]
    %v581 = vld [vmem:[%s7 + $0x30] sm:$0xff]
    %v582 = vld [vmem:[%s7 + $0x38] sm:$0xff]
    %v583 = vld [vmem:[%s7 + $0x40] sm:$0xff]
    %v584 = vld [vmem:[%s7 + $0x48] sm:$0xff]
    %v585 = vld [vmem:[%s7 + $0x50] sm:$0xff]
    %v586 = vld [vmem:[%s7 + $0x58] sm:$0xff]
    %v587 = vld [vmem:[%s7 + $0x60] sm:$0xff]
    %v588 = vld [vmem:[%s7 + $0x68] sm:$0xff]
    %v589 = vld [vmem:[%s7 + $0x70] sm:$0xff]
    %v590 = vld [vmem:[%s7 + $0x78] sm:$0xff]
    %v591 = vld [vmem:[%s7 + $0x80] sm:$0xff]
    %v592 = vld [vmem:[%s7 + $0x88] sm:$0xff]
    %v593 = vld [vmem:[%s7 + $0x90] sm:$0xff]
    %v594 = vld [vmem:[%s7 + $0x98] sm:$0xff]
    %v595 = vld [vmem:[%s7 + $0xa0] sm:$0xff]
    %v596 = vld [vmem:[%s7 + $0xa8] sm:$0xff]
    %v597 = vld [vmem:[%s7 + $0xb0] sm:$0xff]
    %v598 = vld [vmem:[%s7 + $0xb8] sm:$0xff]
    %v599 = vld [vmem:[%s7 + $0xc0] sm:$0xff]
    %v600 = vld [vmem:[%s7 + $0xc8] sm:$0xff]
    %v601 = vld [vmem:[%s7 + $0xd0] sm:$0xff]
    %v602 = vld [vmem:[%s7 + $0xd8] sm:$0xff]
    %v603 = vld [vmem:[%s7 + $0xe0] sm:$0xff]
    %v604 = vld [vmem:[%s7 + $0xe8] sm:$0xff]
    %v605 = vld [vmem:[%s7 + $0xf0] sm:$0xff]
    %v606 = vld [vmem:[%s7 + $0xf8] sm:$0xff]
    %v607 = vld [vmem:[%s9] ss:$4 sm:$0xff]
    %s608 = scalar_lea.vmem %s9, 32
    %v609 = vld [vmem:[%s608] ss:$4 sm:$0xff]
    %v612 = vperm.slane %v607, 0
    %v613 = vperm.slane %v607, 1
    %v614 = vperm.slane %v607, 2
    %v615 = vperm.slane %v607, 3
    %v616 = vperm.slane %v607, 4
    %v617 = vperm.slane %v607, 5
    %v618 = vperm.slane %v607, 6
    %v619 = vperm.slane %v607, 7
    %v620 = vperm.slane %v609, 0
    %v621 = vperm.slane %v609, 1
    %v622 = vperm.slane %v609, 2
    %v623 = vperm.slane %v609, 3
    %v624 = vperm.slane %v609, 4
    %v625 = vperm.slane %v609, 5
    %v626 = vperm.slane %v609, 6
    %v627 = vperm.slane %v609, 7
    %v676 = vunpack.c.l.b16 %v575
    %v677 = vunpack.c.h.b16 %v575
    %v678 = vunpack.c.l.b16 %v576
    %v679 = vunpack.c.h.b16 %v576
    %v680 = vunpack.c.l.b16 %v577
    %v681 = vunpack.c.h.b16 %v577
    %v682 = vunpack.c.l.b16 %v578
    %v683 = vunpack.c.h.b16 %v578
    %v684 = vunpack.c.l.b16 %v579
    %v685 = vunpack.c.h.b16 %v579
    %v686 = vunpack.c.l.b16 %v580
    %v687 = vunpack.c.h.b16 %v580
    %v688 = vunpack.c.l.b16 %v581
    %v689 = vunpack.c.h.b16 %v581
    %v690 = vunpack.c.l.b16 %v582
    %v691 = vunpack.c.h.b16 %v582
    %v692 = vunpack.c.l.b16 %v583
    %v693 = vunpack.c.h.b16 %v583
    %v694 = vunpack.c.l.b16 %v584
    %v695 = vunpack.c.h.b16 %v584
    %v696 = vunpack.c.l.b16 %v585
    %v697 = vunpack.c.h.b16 %v585
    %v698 = vunpack.c.l.b16 %v586
    %v699 = vunpack.c.h.b16 %v586
    %v700 = vunpack.c.l.b16 %v587
    %v701 = vunpack.c.h.b16 %v587
    %v702 = vunpack.c.l.b16 %v588
    %v703 = vunpack.c.h.b16 %v588
    %v704 = vunpack.c.l.b16 %v589
    %v705 = vunpack.c.h.b16 %v589
    %v706 = vunpack.c.l.b16 %v590
    %v707 = vunpack.c.h.b16 %v590
    %v708 = vunpack.c.l.b16 %v591
    %v709 = vunpack.c.h.b16 %v591
    %v710 = vunpack.c.l.b16 %v592
    %v711 = vunpack.c.h.b16 %v592
    %v712 = vunpack.c.l.b16 %v593
    %v713 = vunpack.c.h.b16 %v593
    %v714 = vunpack.c.l.b16 %v594
    %v715 = vunpack.c.h.b16 %v594
    %v716 = vunpack.c.l.b16 %v595
    %v717 = vunpack.c.h.b16 %v595
    %v718 = vunpack.c.l.b16 %v596
    %v719 = vunpack.c.h.b16 %v596
    %v720 = vunpack.c.l.b16 %v597
    %v721 = vunpack.c.h.b16 %v597
    %v722 = vunpack.c.l.b16 %v598
    %v723 = vunpack.c.h.b16 %v598
    %v724 = vunpack.c.l.b16 %v599
    %v725 = vunpack.c.h.b16 %v599
    %v726 = vunpack.c.l.b16 %v600
    %v727 = vunpack.c.h.b16 %v600
    %v728 = vunpack.c.l.b16 %v601
    %v729 = vunpack.c.h.b16 %v601
    %v730 = vunpack.c.l.b16 %v602
    %v731 = vunpack.c.h.b16 %v602
    %v732 = vunpack.c.l.b16 %v603
    %v733 = vunpack.c.h.b16 %v603
    %v734 = vunpack.c.l.b16 %v604
    %v735 = vunpack.c.h.b16 %v604
    %v736 = vunpack.c.l.b16 %v605
    %v737 = vunpack.c.h.b16 %v605
    %v738 = vunpack.c.l.b16 %v606
    %v739 = vunpack.c.h.b16 %v606
    %v740 = vpack.c.b16 %v692, %v676
    %v741 = vpack.c.b16 %v693, %v677
    %v742 = vpack.c.b16 %v694, %v678
    %v743 = vpack.c.b16 %v695, %v679
    %v744 = vpack.c.b16 %v696, %v680
    %v745 = vpack.c.b16 %v697, %v681
    %v746 = vpack.c.b16 %v698, %v682
    %v747 = vpack.c.b16 %v699, %v683
    %v748 = vpack.c.b16 %v700, %v684
    %v749 = vpack.c.b16 %v701, %v685
    %v750 = vpack.c.b16 %v702, %v686
    %v751 = vpack.c.b16 %v703, %v687
    %v752 = vpack.c.b16 %v704, %v688
    %v753 = vpack.c.b16 %v705, %v689
    %v754 = vpack.c.b16 %v706, %v690
    %v755 = vpack.c.b16 %v707, %v691
    %v756 = vpack.c.b16 %v724, %v708
    %v757 = vpack.c.b16 %v725, %v709
    %v758 = vpack.c.b16 %v726, %v710
    %v759 = vpack.c.b16 %v727, %v711
    %v760 = vpack.c.b16 %v728, %v712
    %v761 = vpack.c.b16 %v729, %v713
    %v762 = vpack.c.b16 %v730, %v714
    %v763 = vpack.c.b16 %v731, %v715
    %v764 = vpack.c.b16 %v732, %v716
    %v765 = vpack.c.b16 %v733, %v717
    %v766 = vpack.c.b16 %v734, %v718
    %v767 = vpack.c.b16 %v735, %v719
    %v768 = vpack.c.b16 %v736, %v720
    %v769 = vpack.c.b16 %v737, %v721
    %v770 = vpack.c.b16 %v738, %v722
    %v771 = vpack.c.b16 %v739, %v723
    %v805 = vsel %vm116, %v574, 0
    %807 = vmatpush.bf16.msra.mxu0 0
    %808 = vmatpush.bf16.msra.mxu0 0
    %809 = vmatpush.bf16.msra.mxu0 0
    %810 = vmatpush.bf16.msra.mxu0 0
    %811 = vmatpush.bf16.msra.mxu0 0
    %812 = vmatpush.bf16.msra.mxu0 0
    %813 = vmatpush.bf16.msra.mxu0 %v756
    %814 = vmatpush.bf16.msra.mxu0 %v740
    %815 = vmatmul.bf16.gmra.mxu0 %v805
    %v816 = vpop.f32.mrf.mxu0
    %v817 = vadd.f32 %v612, %v816
    %v818 = vpop.f32.mrf.mxu0
    %v819 = vadd.f32 %v612, %v818
    %820 = vdwg.mxu0
    %821 = vmatpush.bf16.msra.mxu0 0
    %822 = vmatpush.bf16.msra.mxu0 0
    %823 = vmatpush.bf16.msra.mxu0 0
    %824 = vmatpush.bf16.msra.mxu0 0
    %825 = vmatpush.bf16.msra.mxu0 0
    %826 = vmatpush.bf16.msra.mxu0 0
    %827 = vmatpush.bf16.msra.mxu0 %v757
    %828 = vmatpush.bf16.msra.mxu0 %v741
    %829 = vmatmul.bf16.gmra.mxu0 %v805
    %v830 = vpop.f32.mrf.mxu0
    %v831 = vadd.f32 %v613, %v830
    %v832 = vpop.f32.mrf.mxu0
    %v833 = vadd.f32 %v613, %v832
    %834 = vdwg.mxu0
    %835 = vmatpush.bf16.msra.mxu0 0
    %836 = vmatpush.bf16.msra.mxu0 0
    %837 = vmatpush.bf16.msra.mxu0 0
    %838 = vmatpush.bf16.msra.mxu0 0
    %839 = vmatpush.bf16.msra.mxu0 0
    %840 = vmatpush.bf16.msra.mxu0 0
    %841 = vmatpush.bf16.msra.mxu0 %v758
    %842 = vmatpush.bf16.msra.mxu0 %v742
    %843 = vmatmul.bf16.gmra.mxu0 %v805
    %v844 = vpop.f32.mrf.mxu0
    %v845 = vadd.f32 %v614, %v844
    %v846 = vpop.f32.mrf.mxu0
    %v847 = vadd.f32 %v614, %v846
    %848 = vdwg.mxu0
    %849 = vmatpush.bf16.msra.mxu0 0
    %850 = vmatpush.bf16.msra.mxu0 0
    %851 = vmatpush.bf16.msra.mxu0 0
    %852 = vmatpush.bf16.msra.mxu0 0
    %853 = vmatpush.bf16.msra.mxu0 0
    %854 = vmatpush.bf16.msra.mxu0 0
    %855 = vmatpush.bf16.msra.mxu0 %v759
    %856 = vmatpush.bf16.msra.mxu0 %v743
    %857 = vmatmul.bf16.gmra.mxu0 %v805
    %v858 = vpop.f32.mrf.mxu0
    %v859 = vadd.f32 %v615, %v858
    %v860 = vpop.f32.mrf.mxu0
    %v861 = vadd.f32 %v615, %v860
    %862 = vdwg.mxu0
    %863 = vmatpush.bf16.msra.mxu0 0
    %864 = vmatpush.bf16.msra.mxu0 0
    %865 = vmatpush.bf16.msra.mxu0 0
    %866 = vmatpush.bf16.msra.mxu0 0
    %867 = vmatpush.bf16.msra.mxu0 0
    %868 = vmatpush.bf16.msra.mxu0 0
    %869 = vmatpush.bf16.msra.mxu0 %v760
    %870 = vmatpush.bf16.msra.mxu0 %v744
    %871 = vmatmul.bf16.gmra.mxu0 %v805
    %v872 = vpop.f32.mrf.mxu0
    %v873 = vadd.f32 %v616, %v872
    %v874 = vpop.f32.mrf.mxu0
    %v875 = vadd.f32 %v616, %v874
    %876 = vdwg.mxu0
    %877 = vmatpush.bf16.msra.mxu0 0
    %878 = vmatpush.bf16.msra.mxu0 0
    %879 = vmatpush.bf16.msra.mxu0 0
    %880 = vmatpush.bf16.msra.mxu0 0
    %881 = vmatpush.bf16.msra.mxu0 0
    %882 = vmatpush.bf16.msra.mxu0 0
    %883 = vmatpush.bf16.msra.mxu0 %v761
    %884 = vmatpush.bf16.msra.mxu0 %v745
    %885 = vmatmul.bf16.gmra.mxu0 %v805
    %v886 = vpop.f32.mrf.mxu0
    %v887 = vadd.f32 %v617, %v886
    %v888 = vpop.f32.mrf.mxu0
    %v889 = vadd.f32 %v617, %v888
    %890 = vdwg.mxu0
    %891 = vmatpush.bf16.msra.mxu0 0
    %892 = vmatpush.bf16.msra.mxu0 0
    %893 = vmatpush.bf16.msra.mxu0 0
    %894 = vmatpush.bf16.msra.mxu0 0
    %895 = vmatpush.bf16.msra.mxu0 0
    %896 = vmatpush.bf16.msra.mxu0 0
    %897 = vmatpush.bf16.msra.mxu0 %v762
    %898 = vmatpush.bf16.msra.mxu0 %v746
    %899 = vmatmul.bf16.gmra.mxu0 %v805
    %v900 = vpop.f32.mrf.mxu0
    %v901 = vadd.f32 %v618, %v900
    %v902 = vpop.f32.mrf.mxu0
    %v903 = vadd.f32 %v618, %v902
    %904 = vdwg.mxu0
    %905 = vmatpush.bf16.msra.mxu0 0
    %906 = vmatpush.bf16.msra.mxu0 0
    %907 = vmatpush.bf16.msra.mxu0 0
    %908 = vmatpush.bf16.msra.mxu0 0
    %909 = vmatpush.bf16.msra.mxu0 0
    %910 = vmatpush.bf16.msra.mxu0 0
    %911 = vmatpush.bf16.msra.mxu0 %v763
    %912 = vmatpush.bf16.msra.mxu0 %v747
    %913 = vmatmul.bf16.gmra.mxu0 %v805
    %v914 = vpop.f32.mrf.mxu0
    %v915 = vadd.f32 %v619, %v914
    %v916 = vpop.f32.mrf.mxu0
    %v917 = vadd.f32 %v619, %v916
    %918 = vdwg.mxu0
    %919 = vmatpush.bf16.msra.mxu0 0
    %920 = vmatpush.bf16.msra.mxu0 0
    %921 = vmatpush.bf16.msra.mxu0 0
    %922 = vmatpush.bf16.msra.mxu0 0
    %923 = vmatpush.bf16.msra.mxu0 0
    %924 = vmatpush.bf16.msra.mxu0 0
    %925 = vmatpush.bf16.msra.mxu0 %v764
    %926 = vmatpush.bf16.msra.mxu0 %v748
    %927 = vmatmul.bf16.gmra.mxu0 %v805
    %v928 = vpop.f32.mrf.mxu0
    %v929 = vadd.f32 %v620, %v928
    %v930 = vpop.f32.mrf.mxu0
    %v931 = vadd.f32 %v620, %v930
    %932 = vdwg.mxu0
    %933 = vmatpush.bf16.msra.mxu0 0
    %934 = vmatpush.bf16.msra.mxu0 0
    %935 = vmatpush.bf16.msra.mxu0 0
    %936 = vmatpush.bf16.msra.mxu0 0
    %937 = vmatpush.bf16.msra.mxu0 0
    %938 = vmatpush.bf16.msra.mxu0 0
    %939 = vmatpush.bf16.msra.mxu0 %v765
    %940 = vmatpush.bf16.msra.mxu0 %v749
    %941 = vmatmul.bf16.gmra.mxu0 %v805
    %v942 = vpop.f32.mrf.mxu0
    %v943 = vadd.f32 %v621, %v942
    %v944 = vpop.f32.mrf.mxu0
    %v945 = vadd.f32 %v621, %v944
    %946 = vdwg.mxu0
    %947 = vmatpush.bf16.msra.mxu0 0
    %948 = vmatpush.bf16.msra.mxu0 0
    %949 = vmatpush.bf16.msra.mxu0 0
    %950 = vmatpush.bf16.msra.mxu0 0
    %951 = vmatpush.bf16.msra.mxu0 0
    %952 = vmatpush.bf16.msra.mxu0 0
    %953 = vmatpush.bf16.msra.mxu0 %v766
    %954 = vmatpush.bf16.msra.mxu0 %v750
    %955 = vmatmul.bf16.gmra.mxu0 %v805
    %v956 = vpop.f32.mrf.mxu0
    %v957 = vadd.f32 %v622, %v956
    %v958 = vpop.f32.mrf.mxu0
    %v959 = vadd.f32 %v622, %v958
    %960 = vdwg.mxu0
    %961 = vmatpush.bf16.msra.mxu0 0
    %962 = vmatpush.bf16.msra.mxu0 0
    %963 = vmatpush.bf16.msra.mxu0 0
    %964 = vmatpush.bf16.msra.mxu0 0
    %965 = vmatpush.bf16.msra.mxu0 0
    %966 = vmatpush.bf16.msra.mxu0 0
    %967 = vmatpush.bf16.msra.mxu0 %v767
    %968 = vmatpush.bf16.msra.mxu0 %v751
    %969 = vmatmul.bf16.gmra.mxu0 %v805
    %v970 = vpop.f32.mrf.mxu0
    %v971 = vadd.f32 %v623, %v970
    %v972 = vpop.f32.mrf.mxu0
    %v973 = vadd.f32 %v623, %v972
    %974 = vdwg.mxu0
    %975 = vmatpush.bf16.msra.mxu0 0
    %976 = vmatpush.bf16.msra.mxu0 0
    %977 = vmatpush.bf16.msra.mxu0 0
    %978 = vmatpush.bf16.msra.mxu0 0
    %979 = vmatpush.bf16.msra.mxu0 0
    %980 = vmatpush.bf16.msra.mxu0 0
    %981 = vmatpush.bf16.msra.mxu0 %v768
    %982 = vmatpush.bf16.msra.mxu0 %v752
    %983 = vmatmul.bf16.gmra.mxu0 %v805
    %v984 = vpop.f32.mrf.mxu0
    %v985 = vadd.f32 %v624, %v984
    %v986 = vpop.f32.mrf.mxu0
    %v987 = vadd.f32 %v624, %v986
    %988 = vdwg.mxu0
    %989 = vmatpush.bf16.msra.mxu0 0
    %990 = vmatpush.bf16.msra.mxu0 0
    %991 = vmatpush.bf16.msra.mxu0 0
    %992 = vmatpush.bf16.msra.mxu0 0
    %993 = vmatpush.bf16.msra.mxu0 0
    %994 = vmatpush.bf16.msra.mxu0 0
    %995 = vmatpush.bf16.msra.mxu0 %v769
    %996 = vmatpush.bf16.msra.mxu0 %v753
    %997 = vmatmul.bf16.gmra.mxu0 %v805
    %v998 = vpop.f32.mrf.mxu0
    %v999 = vadd.f32 %v625, %v998
    %v1000 = vpop.f32.mrf.mxu0
    %v1001 = vadd.f32 %v625, %v1000
    %1002 = vdwg.mxu0
    %1003 = vmatpush.bf16.msra.mxu0 0
    %1004 = vmatpush.bf16.msra.mxu0 0
    %1005 = vmatpush.bf16.msra.mxu0 0
    %1006 = vmatpush.bf16.msra.mxu0 0
    %1007 = vmatpush.bf16.msra.mxu0 0
    %1008 = vmatpush.bf16.msra.mxu0 0
    %1009 = vmatpush.bf16.msra.mxu0 %v770
    %1010 = vmatpush.bf16.msra.mxu0 %v754
    %1011 = vmatmul.bf16.gmra.mxu0 %v805
    %v1012 = vpop.f32.mrf.mxu0
    %v1013 = vadd.f32 %v626, %v1012
    %v1014 = vpop.f32.mrf.mxu0
    %v1015 = vadd.f32 %v626, %v1014
    %1016 = vdwg.mxu0
    %1017 = vmatpush.bf16.msra.mxu0 0
    %1018 = vmatpush.bf16.msra.mxu0 0
    %1019 = vmatpush.bf16.msra.mxu0 0
    %1020 = vmatpush.bf16.msra.mxu0 0
    %1021 = vmatpush.bf16.msra.mxu0 0
    %1022 = vmatpush.bf16.msra.mxu0 0
    %1023 = vmatpush.bf16.msra.mxu0 %v771
    %1024 = vmatpush.bf16.msra.mxu0 %v755
    %1025 = vmatmul.bf16.gmra.mxu0 %v805
    %v1026 = vpop.f32.mrf.mxu0
    %v1027 = vadd.f32 %v627, %v1026
    %v1028 = vpop.f32.mrf.mxu0
    %v1029 = vadd.f32 %v627, %v1028
    %1030 = vdwg.mxu0
    %v1031 = vmax.f32 %v817, 0.0
    %v1032 = vmax.f32 %v831, 0.0
    %v1033 = vmax.f32 %v845, 0.0
    %v1034 = vmax.f32 %v859, 0.0
    %v1035 = vmax.f32 %v873, 0.0
    %v1036 = vmax.f32 %v887, 0.0
    %v1037 = vmax.f32 %v901, 0.0
    %v1038 = vmax.f32 %v915, 0.0
    %v1039 = vmax.f32 %v929, 0.0
    %v1040 = vmax.f32 %v943, 0.0
    %v1041 = vmax.f32 %v957, 0.0
    %v1042 = vmax.f32 %v971, 0.0
    %v1043 = vmax.f32 %v985, 0.0
    %v1044 = vmax.f32 %v999, 0.0
    %v1045 = vmax.f32 %v1013, 0.0
    %v1046 = vmax.f32 %v1027, 0.0
    %v1047 = vmax.f32 %v819, 0.0
    %v1048 = vmax.f32 %v833, 0.0
    %v1049 = vmax.f32 %v847, 0.0
    %v1050 = vmax.f32 %v861, 0.0
    %v1051 = vmax.f32 %v875, 0.0
    %v1052 = vmax.f32 %v889, 0.0
    %v1053 = vmax.f32 %v903, 0.0
    %v1054 = vmax.f32 %v917, 0.0
    %v1055 = vmax.f32 %v931, 0.0
    %v1056 = vmax.f32 %v945, 0.0
    %v1057 = vmax.f32 %v959, 0.0
    %v1058 = vmax.f32 %v973, 0.0
    %v1059 = vmax.f32 %v987, 0.0
    %v1060 = vmax.f32 %v1001, 0.0
    %v1061 = vmax.f32 %v1015, 0.0
    %v1062 = vmax.f32 %v1029, 0.0
    %v1063 = vpack.c.bf16 %v1047, %v1031
    %v1064 = vpack.c.bf16 %v1048, %v1032
    %v1065 = vpack.c.bf16 %v1049, %v1033
    %v1066 = vpack.c.bf16 %v1050, %v1034
    %v1067 = vpack.c.bf16 %v1051, %v1035
    %v1068 = vpack.c.bf16 %v1052, %v1036
    %v1069 = vpack.c.bf16 %v1053, %v1037
    %v1070 = vpack.c.bf16 %v1054, %v1038
    %v1071 = vpack.c.bf16 %v1055, %v1039
    %v1072 = vpack.c.bf16 %v1056, %v1040
    %v1073 = vpack.c.bf16 %v1057, %v1041
    %v1074 = vpack.c.bf16 %v1058, %v1042
    %v1075 = vpack.c.bf16 %v1059, %v1043
    %v1076 = vpack.c.bf16 %v1060, %v1044
    %v1077 = vpack.c.bf16 %v1061, %v1045
    %v1078 = vpack.c.bf16 %v1062, %v1046
    %v1079 = vld [vmem:[%s8] sm:$0xf]
    %v1080 = vld [vmem:[%s8 + $0x4] sm:$0xf]
    %v1081 = vld [vmem:[%s8 + $0x8] sm:$0xf]
    %v1082 = vld [vmem:[%s8 + $0xc] sm:$0xf]
    %v1083 = vld [vmem:[%s8 + $0x10] sm:$0xf]
    %v1084 = vld [vmem:[%s8 + $0x14] sm:$0xf]
    %v1085 = vld [vmem:[%s8 + $0x18] sm:$0xf]
    %v1086 = vld [vmem:[%s8 + $0x1c] sm:$0xf]
    %v1087 = vld [vmem:[%s8 + $0x20] sm:$0xf]
    %v1088 = vld [vmem:[%s8 + $0x24] sm:$0xf]
    %v1089 = vld [vmem:[%s8 + $0x28] sm:$0xf]
    %v1090 = vld [vmem:[%s8 + $0x2c] sm:$0xf]
    %v1091 = vld [vmem:[%s8 + $0x30] sm:$0xf]
    %v1092 = vld [vmem:[%s8 + $0x34] sm:$0xf]
    %v1093 = vld [vmem:[%s8 + $0x38] sm:$0xf]
    %v1094 = vld [vmem:[%s8 + $0x3c] sm:$0xf]
    %v1095 = vld [vmem:[%s8 + $0x40] sm:$0xf]
    %v1096 = vld [vmem:[%s8 + $0x44] sm:$0xf]
    %v1097 = vld [vmem:[%s8 + $0x48] sm:$0xf]
    %v1098 = vld [vmem:[%s8 + $0x4c] sm:$0xf]
    %v1099 = vld [vmem:[%s8 + $0x50] sm:$0xf]
    %v1100 = vld [vmem:[%s8 + $0x54] sm:$0xf]
    %v1101 = vld [vmem:[%s8 + $0x58] sm:$0xf]
    %v1102 = vld [vmem:[%s8 + $0x5c] sm:$0xf]
    %v1103 = vld [vmem:[%s8 + $0x60] sm:$0xf]
    %v1104 = vld [vmem:[%s8 + $0x64] sm:$0xf]
    %v1105 = vld [vmem:[%s8 + $0x68] sm:$0xf]
    %v1106 = vld [vmem:[%s8 + $0x6c] sm:$0xf]
    %v1107 = vld [vmem:[%s8 + $0x70] sm:$0xf]
    %v1108 = vld [vmem:[%s8 + $0x74] sm:$0xf]
    %v1109 = vld [vmem:[%s8 + $0x78] sm:$0xf]
    %v1110 = vld [vmem:[%s8 + $0x7c] sm:$0xf]
    %v1111 = vld [vmem:[%s8 + $0x80] sm:$0xf]
    %v1112 = vld [vmem:[%s8 + $0x84] sm:$0xf]
    %v1113 = vld [vmem:[%s8 + $0x88] sm:$0xf]
    %v1114 = vld [vmem:[%s8 + $0x8c] sm:$0xf]
    %v1115 = vld [vmem:[%s8 + $0x90] sm:$0xf]
    %v1116 = vld [vmem:[%s8 + $0x94] sm:$0xf]
    %v1117 = vld [vmem:[%s8 + $0x98] sm:$0xf]
    %v1118 = vld [vmem:[%s8 + $0x9c] sm:$0xf]
    %v1119 = vld [vmem:[%s8 + $0xa0] sm:$0xf]
    %v1120 = vld [vmem:[%s8 + $0xa4] sm:$0xf]
    %v1121 = vld [vmem:[%s8 + $0xa8] sm:$0xf]
    %v1122 = vld [vmem:[%s8 + $0xac] sm:$0xf]
    %v1123 = vld [vmem:[%s8 + $0xb0] sm:$0xf]
    %v1124 = vld [vmem:[%s8 + $0xb4] sm:$0xf]
    %v1125 = vld [vmem:[%s8 + $0xb8] sm:$0xf]
    %v1126 = vld [vmem:[%s8 + $0xbc] sm:$0xf]
    %v1127 = vld [vmem:[%s8 + $0xc0] sm:$0xf]
    %v1128 = vld [vmem:[%s8 + $0xc4] sm:$0xf]
    %v1129 = vld [vmem:[%s8 + $0xc8] sm:$0xf]
    %v1130 = vld [vmem:[%s8 + $0xcc] sm:$0xf]
    %v1131 = vld [vmem:[%s8 + $0xd0] sm:$0xf]
    %v1132 = vld [vmem:[%s8 + $0xd4] sm:$0xf]
    %v1133 = vld [vmem:[%s8 + $0xd8] sm:$0xf]
    %v1134 = vld [vmem:[%s8 + $0xdc] sm:$0xf]
    %v1135 = vld [vmem:[%s8 + $0xe0] sm:$0xf]
    %v1136 = vld [vmem:[%s8 + $0xe4] sm:$0xf]
    %v1137 = vld [vmem:[%s8 + $0xe8] sm:$0xf]
    %v1138 = vld [vmem:[%s8 + $0xec] sm:$0xf]
    %v1139 = vld [vmem:[%s8 + $0xf0] sm:$0xf]
    %v1140 = vld [vmem:[%s8 + $0xf4] sm:$0xf]
    %v1141 = vld [vmem:[%s8 + $0xf8] sm:$0xf]
    %v1142 = vld [vmem:[%s8 + $0xfc] sm:$0xf]
    %v1143 = vld [vmem:[%s8 + $0x100] sm:$0xf]
    %v1144 = vld [vmem:[%s8 + $0x104] sm:$0xf]
    %v1145 = vld [vmem:[%s8 + $0x108] sm:$0xf]
    %v1146 = vld [vmem:[%s8 + $0x10c] sm:$0xf]
    %v1147 = vld [vmem:[%s8 + $0x110] sm:$0xf]
    %v1148 = vld [vmem:[%s8 + $0x114] sm:$0xf]
    %v1149 = vld [vmem:[%s8 + $0x118] sm:$0xf]
    %v1150 = vld [vmem:[%s8 + $0x11c] sm:$0xf]
    %v1151 = vld [vmem:[%s8 + $0x120] sm:$0xf]
    %v1152 = vld [vmem:[%s8 + $0x124] sm:$0xf]
    %v1153 = vld [vmem:[%s8 + $0x128] sm:$0xf]
    %v1154 = vld [vmem:[%s8 + $0x12c] sm:$0xf]
    %v1155 = vld [vmem:[%s8 + $0x130] sm:$0xf]
    %v1156 = vld [vmem:[%s8 + $0x134] sm:$0xf]
    %v1157 = vld [vmem:[%s8 + $0x138] sm:$0xf]
    %v1158 = vld [vmem:[%s8 + $0x13c] sm:$0xf]
    %v1159 = vld [vmem:[%s8 + $0x140] sm:$0xf]
    %v1160 = vld [vmem:[%s8 + $0x144] sm:$0xf]
    %v1161 = vld [vmem:[%s8 + $0x148] sm:$0xf]
    %v1162 = vld [vmem:[%s8 + $0x14c] sm:$0xf]
    %v1163 = vld [vmem:[%s8 + $0x150] sm:$0xf]
    %v1164 = vld [vmem:[%s8 + $0x154] sm:$0xf]
    %v1165 = vld [vmem:[%s8 + $0x158] sm:$0xf]
    %v1166 = vld [vmem:[%s8 + $0x15c] sm:$0xf]
    %v1167 = vld [vmem:[%s8 + $0x160] sm:$0xf]
    %v1168 = vld [vmem:[%s8 + $0x164] sm:$0xf]
    %v1169 = vld [vmem:[%s8 + $0x168] sm:$0xf]
    %v1170 = vld [vmem:[%s8 + $0x16c] sm:$0xf]
    %v1171 = vld [vmem:[%s8 + $0x170] sm:$0xf]
    %v1172 = vld [vmem:[%s8 + $0x174] sm:$0xf]
    %v1173 = vld [vmem:[%s8 + $0x178] sm:$0xf]
    %v1174 = vld [vmem:[%s8 + $0x17c] sm:$0xf]
    %v1175 = vld [vmem:[%s8 + $0x180] sm:$0xf]
    %v1176 = vld [vmem:[%s8 + $0x184] sm:$0xf]
    %v1177 = vld [vmem:[%s8 + $0x188] sm:$0xf]
    %v1178 = vld [vmem:[%s8 + $0x18c] sm:$0xf]
    %v1179 = vld [vmem:[%s8 + $0x190] sm:$0xf]
    %v1180 = vld [vmem:[%s8 + $0x194] sm:$0xf]
    %v1181 = vld [vmem:[%s8 + $0x198] sm:$0xf]
    %v1182 = vld [vmem:[%s8 + $0x19c] sm:$0xf]
    %v1183 = vld [vmem:[%s8 + $0x1a0] sm:$0xf]
    %v1184 = vld [vmem:[%s8 + $0x1a4] sm:$0xf]
    %v1185 = vld [vmem:[%s8 + $0x1a8] sm:$0xf]
    %v1186 = vld [vmem:[%s8 + $0x1ac] sm:$0xf]
    %v1187 = vld [vmem:[%s8 + $0x1b0] sm:$0xf]
    %v1188 = vld [vmem:[%s8 + $0x1b4] sm:$0xf]
    %v1189 = vld [vmem:[%s8 + $0x1b8] sm:$0xf]
    %v1190 = vld [vmem:[%s8 + $0x1bc] sm:$0xf]
    %v1191 = vld [vmem:[%s8 + $0x1c0] sm:$0xf]
    %v1192 = vld [vmem:[%s8 + $0x1c4] sm:$0xf]
    %v1193 = vld [vmem:[%s8 + $0x1c8] sm:$0xf]
    %v1194 = vld [vmem:[%s8 + $0x1cc] sm:$0xf]
    %v1195 = vld [vmem:[%s8 + $0x1d0] sm:$0xf]
    %v1196 = vld [vmem:[%s8 + $0x1d4] sm:$0xf]
    %v1197 = vld [vmem:[%s8 + $0x1d8] sm:$0xf]
    %v1198 = vld [vmem:[%s8 + $0x1dc] sm:$0xf]
    %v1199 = vld [vmem:[%s8 + $0x1e0] sm:$0xf]
    %v1200 = vld [vmem:[%s8 + $0x1e4] sm:$0xf]
    %v1201 = vld [vmem:[%s8 + $0x1e8] sm:$0xf]
    %v1202 = vld [vmem:[%s8 + $0x1ec] sm:$0xf]
    %v1203 = vld [vmem:[%s8 + $0x1f0] sm:$0xf]
    %v1204 = vld [vmem:[%s8 + $0x1f4] sm:$0xf]
    %v1205 = vld [vmem:[%s8 + $0x1f8] sm:$0xf]
    %v1206 = vld [vmem:[%s8 + $0x1fc] sm:$0xf]
    %v1207 = vld [vmem:[%s8 + $0x200] sm:$0xf]
    %v1208 = vld [vmem:[%s8 + $0x204] sm:$0xf]
    %v1209 = vld [vmem:[%s8 + $0x208] sm:$0xf]
    %v1210 = vld [vmem:[%s8 + $0x20c] sm:$0xf]
    %v1211 = vld [vmem:[%s8 + $0x210] sm:$0xf]
    %v1212 = vld [vmem:[%s8 + $0x214] sm:$0xf]
    %v1213 = vld [vmem:[%s8 + $0x218] sm:$0xf]
    %v1214 = vld [vmem:[%s8 + $0x21c] sm:$0xf]
    %v1215 = vld [vmem:[%s8 + $0x220] sm:$0xf]
    %v1216 = vld [vmem:[%s8 + $0x224] sm:$0xf]
    %v1217 = vld [vmem:[%s8 + $0x228] sm:$0xf]
    %v1218 = vld [vmem:[%s8 + $0x22c] sm:$0xf]
    %v1219 = vld [vmem:[%s8 + $0x230] sm:$0xf]
    %v1220 = vld [vmem:[%s8 + $0x234] sm:$0xf]
    %v1221 = vld [vmem:[%s8 + $0x238] sm:$0xf]
    %v1222 = vld [vmem:[%s8 + $0x23c] sm:$0xf]
    %v1223 = vld [vmem:[%s8 + $0x240] sm:$0xf]
    %v1224 = vld [vmem:[%s8 + $0x244] sm:$0xf]
    %v1225 = vld [vmem:[%s8 + $0x248] sm:$0xf]
    %v1226 = vld [vmem:[%s8 + $0x24c] sm:$0xf]
    %v1227 = vld [vmem:[%s8 + $0x250] sm:$0xf]
    %v1228 = vld [vmem:[%s8 + $0x254] sm:$0xf]
    %v1229 = vld [vmem:[%s8 + $0x258] sm:$0xf]
    %v1230 = vld [vmem:[%s8 + $0x25c] sm:$0xf]
    %v1231 = vld [vmem:[%s8 + $0x260] sm:$0xf]
    %v1232 = vld [vmem:[%s8 + $0x264] sm:$0xf]
    %v1233 = vld [vmem:[%s8 + $0x268] sm:$0xf]
    %v1234 = vld [vmem:[%s8 + $0x26c] sm:$0xf]
    %v1235 = vld [vmem:[%s8 + $0x270] sm:$0xf]
    %v1236 = vld [vmem:[%s8 + $0x274] sm:$0xf]
    %v1237 = vld [vmem:[%s8 + $0x278] sm:$0xf]
    %v1238 = vld [vmem:[%s8 + $0x27c] sm:$0xf]
    %v1239 = vld [vmem:[%s8 + $0x280] sm:$0xf]
    %v1240 = vld [vmem:[%s8 + $0x284] sm:$0xf]
    %v1241 = vld [vmem:[%s8 + $0x288] sm:$0xf]
    %v1242 = vld [vmem:[%s8 + $0x28c] sm:$0xf]
    %v1243 = vld [vmem:[%s8 + $0x290] sm:$0xf]
    %v1244 = vld [vmem:[%s8 + $0x294] sm:$0xf]
    %v1245 = vld [vmem:[%s8 + $0x298] sm:$0xf]
    %v1246 = vld [vmem:[%s8 + $0x29c] sm:$0xf]
    %v1247 = vld [vmem:[%s8 + $0x2a0] sm:$0xf]
    %v1248 = vld [vmem:[%s8 + $0x2a4] sm:$0xf]
    %v1249 = vld [vmem:[%s8 + $0x2a8] sm:$0xf]
    %v1250 = vld [vmem:[%s8 + $0x2ac] sm:$0xf]
    %v1251 = vld [vmem:[%s8 + $0x2b0] sm:$0xf]
    %v1252 = vld [vmem:[%s8 + $0x2b4] sm:$0xf]
    %v1253 = vld [vmem:[%s8 + $0x2b8] sm:$0xf]
    %v1254 = vld [vmem:[%s8 + $0x2bc] sm:$0xf]
    %v1255 = vld [vmem:[%s8 + $0x2c0] sm:$0xf]
    %v1256 = vld [vmem:[%s8 + $0x2c4] sm:$0xf]
    %v1257 = vld [vmem:[%s8 + $0x2c8] sm:$0xf]
    %v1258 = vld [vmem:[%s8 + $0x2cc] sm:$0xf]
    %v1259 = vld [vmem:[%s8 + $0x2d0] sm:$0xf]
    %v1260 = vld [vmem:[%s8 + $0x2d4] sm:$0xf]
    %v1261 = vld [vmem:[%s8 + $0x2d8] sm:$0xf]
    %v1262 = vld [vmem:[%s8 + $0x2dc] sm:$0xf]
    %v1263 = vld [vmem:[%s8 + $0x2e0] sm:$0xf]
    %v1264 = vld [vmem:[%s8 + $0x2e4] sm:$0xf]
    %v1265 = vld [vmem:[%s8 + $0x2e8] sm:$0xf]
    %v1266 = vld [vmem:[%s8 + $0x2ec] sm:$0xf]
    %v1267 = vld [vmem:[%s8 + $0x2f0] sm:$0xf]
    %v1268 = vld [vmem:[%s8 + $0x2f4] sm:$0xf]
    %v1269 = vld [vmem:[%s8 + $0x2f8] sm:$0xf]
    %v1270 = vld [vmem:[%s8 + $0x2fc] sm:$0xf]
    %v1271 = vld [vmem:[%s8 + $0x300] sm:$0xf]
    %v1272 = vld [vmem:[%s8 + $0x304] sm:$0xf]
    %v1273 = vld [vmem:[%s8 + $0x308] sm:$0xf]
    %v1274 = vld [vmem:[%s8 + $0x30c] sm:$0xf]
    %v1275 = vld [vmem:[%s8 + $0x310] sm:$0xf]
    %v1276 = vld [vmem:[%s8 + $0x314] sm:$0xf]
    %v1277 = vld [vmem:[%s8 + $0x318] sm:$0xf]
    %v1278 = vld [vmem:[%s8 + $0x31c] sm:$0xf]
    %v1279 = vld [vmem:[%s8 + $0x320] sm:$0xf]
    %v1280 = vld [vmem:[%s8 + $0x324] sm:$0xf]
    %v1281 = vld [vmem:[%s8 + $0x328] sm:$0xf]
    %v1282 = vld [vmem:[%s8 + $0x32c] sm:$0xf]
    %v1283 = vld [vmem:[%s8 + $0x330] sm:$0xf]
    %v1284 = vld [vmem:[%s8 + $0x334] sm:$0xf]
    %v1285 = vld [vmem:[%s8 + $0x338] sm:$0xf]
    %v1286 = vld [vmem:[%s8 + $0x33c] sm:$0xf]
    %v1287 = vld [vmem:[%s8 + $0x340] sm:$0xf]
    %v1288 = vld [vmem:[%s8 + $0x344] sm:$0xf]
    %v1289 = vld [vmem:[%s8 + $0x348] sm:$0xf]
    %v1290 = vld [vmem:[%s8 + $0x34c] sm:$0xf]
    %v1291 = vld [vmem:[%s8 + $0x350] sm:$0xf]
    %v1292 = vld [vmem:[%s8 + $0x354] sm:$0xf]
    %v1293 = vld [vmem:[%s8 + $0x358] sm:$0xf]
    %v1294 = vld [vmem:[%s8 + $0x35c] sm:$0xf]
    %v1295 = vld [vmem:[%s8 + $0x360] sm:$0xf]
    %v1296 = vld [vmem:[%s8 + $0x364] sm:$0xf]
    %v1297 = vld [vmem:[%s8 + $0x368] sm:$0xf]
    %v1298 = vld [vmem:[%s8 + $0x36c] sm:$0xf]
    %v1299 = vld [vmem:[%s8 + $0x370] sm:$0xf]
    %v1300 = vld [vmem:[%s8 + $0x374] sm:$0xf]
    %v1301 = vld [vmem:[%s8 + $0x378] sm:$0xf]
    %v1302 = vld [vmem:[%s8 + $0x37c] sm:$0xf]
    %v1303 = vld [vmem:[%s8 + $0x380] sm:$0xf]
    %v1304 = vld [vmem:[%s8 + $0x384] sm:$0xf]
    %v1305 = vld [vmem:[%s8 + $0x388] sm:$0xf]
    %v1306 = vld [vmem:[%s8 + $0x38c] sm:$0xf]
    %v1307 = vld [vmem:[%s8 + $0x390] sm:$0xf]
    %v1308 = vld [vmem:[%s8 + $0x394] sm:$0xf]
    %v1309 = vld [vmem:[%s8 + $0x398] sm:$0xf]
    %v1310 = vld [vmem:[%s8 + $0x39c] sm:$0xf]
    %v1311 = vld [vmem:[%s8 + $0x3a0] sm:$0xf]
    %v1312 = vld [vmem:[%s8 + $0x3a4] sm:$0xf]
    %v1313 = vld [vmem:[%s8 + $0x3a8] sm:$0xf]
    %v1314 = vld [vmem:[%s8 + $0x3ac] sm:$0xf]
    %v1315 = vld [vmem:[%s8 + $0x3b0] sm:$0xf]
    %v1316 = vld [vmem:[%s8 + $0x3b4] sm:$0xf]
    %v1317 = vld [vmem:[%s8 + $0x3b8] sm:$0xf]
    %v1318 = vld [vmem:[%s8 + $0x3bc] sm:$0xf]
    %v1319 = vld [vmem:[%s8 + $0x3c0] sm:$0xf]
    %v1320 = vld [vmem:[%s8 + $0x3c4] sm:$0xf]
    %v1321 = vld [vmem:[%s8 + $0x3c8] sm:$0xf]
    %v1322 = vld [vmem:[%s8 + $0x3cc] sm:$0xf]
    %v1323 = vld [vmem:[%s8 + $0x3d0] sm:$0xf]
    %v1324 = vld [vmem:[%s8 + $0x3d4] sm:$0xf]
    %v1325 = vld [vmem:[%s8 + $0x3d8] sm:$0xf]
    %v1326 = vld [vmem:[%s8 + $0x3dc] sm:$0xf]
    %v1327 = vld [vmem:[%s8 + $0x3e0] sm:$0xf]
    %v1328 = vld [vmem:[%s8 + $0x3e4] sm:$0xf]
    %v1329 = vld [vmem:[%s8 + $0x3e8] sm:$0xf]
    %v1330 = vld [vmem:[%s8 + $0x3ec] sm:$0xf]
    %v1331 = vld [vmem:[%s8 + $0x3f0] sm:$0xf]
    %v1332 = vld [vmem:[%s8 + $0x3f4] sm:$0xf]
    %v1333 = vld [vmem:[%s8 + $0x3f8] sm:$0xf]
    %v1334 = vld [vmem:[%s8 + $0x3fc] sm:$0xf]
    %v1335 = vld [vmem:[%s6 + $0xf] sm:$0x1]
    %v1336 = vperm.slane %v1335, 0
    %v1593 = vunpack.c.l.b16 %v1079
    %v1594 = vunpack.c.l.b16 %v1080
    %v1595 = vunpack.c.l.b16 %v1081
    %v1596 = vunpack.c.l.b16 %v1082
    %v1597 = vunpack.c.l.b16 %v1083
    %v1598 = vunpack.c.l.b16 %v1084
    %v1599 = vunpack.c.l.b16 %v1085
    %v1600 = vunpack.c.l.b16 %v1086
    %v1601 = vunpack.c.l.b16 %v1087
    %v1602 = vunpack.c.l.b16 %v1088
    %v1603 = vunpack.c.l.b16 %v1089
    %v1604 = vunpack.c.l.b16 %v1090
    %v1605 = vunpack.c.l.b16 %v1091
    %v1606 = vunpack.c.l.b16 %v1092
    %v1607 = vunpack.c.l.b16 %v1093
    %v1608 = vunpack.c.l.b16 %v1094
    %v1609 = vunpack.c.l.b16 %v1095
    %v1610 = vunpack.c.l.b16 %v1096
    %v1611 = vunpack.c.l.b16 %v1097
    %v1612 = vunpack.c.l.b16 %v1098
    %v1613 = vunpack.c.l.b16 %v1099
    %v1614 = vunpack.c.l.b16 %v1100
    %v1615 = vunpack.c.l.b16 %v1101
    %v1616 = vunpack.c.l.b16 %v1102
    %v1617 = vunpack.c.l.b16 %v1103
    %v1618 = vunpack.c.l.b16 %v1104
    %v1619 = vunpack.c.l.b16 %v1105
    %v1620 = vunpack.c.l.b16 %v1106
    %v1621 = vunpack.c.l.b16 %v1107
    %v1622 = vunpack.c.l.b16 %v1108
    %v1623 = vunpack.c.l.b16 %v1109
    %v1624 = vunpack.c.l.b16 %v1110
    %v1625 = vunpack.c.l.b16 %v1111
    %v1626 = vunpack.c.l.b16 %v1112
    %v1627 = vunpack.c.l.b16 %v1113
    %v1628 = vunpack.c.l.b16 %v1114
    %v1629 = vunpack.c.l.b16 %v1115
    %v1630 = vunpack.c.l.b16 %v1116
    %v1631 = vunpack.c.l.b16 %v1117
    %v1632 = vunpack.c.l.b16 %v1118
    %v1633 = vunpack.c.l.b16 %v1119
    %v1634 = vunpack.c.l.b16 %v1120
    %v1635 = vunpack.c.l.b16 %v1121
    %v1636 = vunpack.c.l.b16 %v1122
    %v1637 = vunpack.c.l.b16 %v1123
    %v1638 = vunpack.c.l.b16 %v1124
    %v1639 = vunpack.c.l.b16 %v1125
    %v1640 = vunpack.c.l.b16 %v1126
    %v1641 = vunpack.c.l.b16 %v1127
    %v1642 = vunpack.c.l.b16 %v1128
    %v1643 = vunpack.c.l.b16 %v1129
    %v1644 = vunpack.c.l.b16 %v1130
    %v1645 = vunpack.c.l.b16 %v1131
    %v1646 = vunpack.c.l.b16 %v1132
    %v1647 = vunpack.c.l.b16 %v1133
    %v1648 = vunpack.c.l.b16 %v1134
    %v1649 = vunpack.c.l.b16 %v1135
    %v1650 = vunpack.c.l.b16 %v1136
    %v1651 = vunpack.c.l.b16 %v1137
    %v1652 = vunpack.c.l.b16 %v1138
    %v1653 = vunpack.c.l.b16 %v1139
    %v1654 = vunpack.c.l.b16 %v1140
    %v1655 = vunpack.c.l.b16 %v1141
    %v1656 = vunpack.c.l.b16 %v1142
    %v1657 = vunpack.c.l.b16 %v1143
    %v1658 = vunpack.c.l.b16 %v1144
    %v1659 = vunpack.c.l.b16 %v1145
    %v1660 = vunpack.c.l.b16 %v1146
    %v1661 = vunpack.c.l.b16 %v1147
    %v1662 = vunpack.c.l.b16 %v1148
    %v1663 = vunpack.c.l.b16 %v1149
    %v1664 = vunpack.c.l.b16 %v1150
    %v1665 = vunpack.c.l.b16 %v1151
    %v1666 = vunpack.c.l.b16 %v1152
    %v1667 = vunpack.c.l.b16 %v1153
    %v1668 = vunpack.c.l.b16 %v1154
    %v1669 = vunpack.c.l.b16 %v1155
    %v1670 = vunpack.c.l.b16 %v1156
    %v1671 = vunpack.c.l.b16 %v1157
    %v1672 = vunpack.c.l.b16 %v1158
    %v1673 = vunpack.c.l.b16 %v1159
    %v1674 = vunpack.c.l.b16 %v1160
    %v1675 = vunpack.c.l.b16 %v1161
    %v1676 = vunpack.c.l.b16 %v1162
    %v1677 = vunpack.c.l.b16 %v1163
    %v1678 = vunpack.c.l.b16 %v1164
    %v1679 = vunpack.c.l.b16 %v1165
    %v1680 = vunpack.c.l.b16 %v1166
    %v1681 = vunpack.c.l.b16 %v1167
    %v1682 = vunpack.c.l.b16 %v1168
    %v1683 = vunpack.c.l.b16 %v1169
    %v1684 = vunpack.c.l.b16 %v1170
    %v1685 = vunpack.c.l.b16 %v1171
    %v1686 = vunpack.c.l.b16 %v1172
    %v1687 = vunpack.c.l.b16 %v1173
    %v1688 = vunpack.c.l.b16 %v1174
    %v1689 = vunpack.c.l.b16 %v1175
    %v1690 = vunpack.c.l.b16 %v1176
    %v1691 = vunpack.c.l.b16 %v1177
    %v1692 = vunpack.c.l.b16 %v1178
    %v1693 = vunpack.c.l.b16 %v1179
    %v1694 = vunpack.c.l.b16 %v1180
    %v1695 = vunpack.c.l.b16 %v1181
    %v1696 = vunpack.c.l.b16 %v1182
    %v1697 = vunpack.c.l.b16 %v1183
    %v1698 = vunpack.c.l.b16 %v1184
    %v1699 = vunpack.c.l.b16 %v1185
    %v1700 = vunpack.c.l.b16 %v1186
    %v1701 = vunpack.c.l.b16 %v1187
    %v1702 = vunpack.c.l.b16 %v1188
    %v1703 = vunpack.c.l.b16 %v1189
    %v1704 = vunpack.c.l.b16 %v1190
    %v1705 = vunpack.c.l.b16 %v1191
    %v1706 = vunpack.c.l.b16 %v1192
    %v1707 = vunpack.c.l.b16 %v1193
    %v1708 = vunpack.c.l.b16 %v1194
    %v1709 = vunpack.c.l.b16 %v1195
    %v1710 = vunpack.c.l.b16 %v1196
    %v1711 = vunpack.c.l.b16 %v1197
    %v1712 = vunpack.c.l.b16 %v1198
    %v1713 = vunpack.c.l.b16 %v1199
    %v1714 = vunpack.c.l.b16 %v1200
    %v1715 = vunpack.c.l.b16 %v1201
    %v1716 = vunpack.c.l.b16 %v1202
    %v1717 = vunpack.c.l.b16 %v1203
    %v1718 = vunpack.c.l.b16 %v1204
    %v1719 = vunpack.c.l.b16 %v1205
    %v1720 = vunpack.c.l.b16 %v1206
    %v1721 = vunpack.c.l.b16 %v1207
    %v1722 = vunpack.c.l.b16 %v1208
    %v1723 = vunpack.c.l.b16 %v1209
    %v1724 = vunpack.c.l.b16 %v1210
    %v1725 = vunpack.c.l.b16 %v1211
    %v1726 = vunpack.c.l.b16 %v1212
    %v1727 = vunpack.c.l.b16 %v1213
    %v1728 = vunpack.c.l.b16 %v1214
    %v1729 = vunpack.c.l.b16 %v1215
    %v1730 = vunpack.c.l.b16 %v1216
    %v1731 = vunpack.c.l.b16 %v1217
    %v1732 = vunpack.c.l.b16 %v1218
    %v1733 = vunpack.c.l.b16 %v1219
    %v1734 = vunpack.c.l.b16 %v1220
    %v1735 = vunpack.c.l.b16 %v1221
    %v1736 = vunpack.c.l.b16 %v1222
    %v1737 = vunpack.c.l.b16 %v1223
    %v1738 = vunpack.c.l.b16 %v1224
    %v1739 = vunpack.c.l.b16 %v1225
    %v1740 = vunpack.c.l.b16 %v1226
    %v1741 = vunpack.c.l.b16 %v1227
    %v1742 = vunpack.c.l.b16 %v1228
    %v1743 = vunpack.c.l.b16 %v1229
    %v1744 = vunpack.c.l.b16 %v1230
    %v1745 = vunpack.c.l.b16 %v1231
    %v1746 = vunpack.c.l.b16 %v1232
    %v1747 = vunpack.c.l.b16 %v1233
    %v1748 = vunpack.c.l.b16 %v1234
    %v1749 = vunpack.c.l.b16 %v1235
    %v1750 = vunpack.c.l.b16 %v1236
    %v1751 = vunpack.c.l.b16 %v1237
    %v1752 = vunpack.c.l.b16 %v1238
    %v1753 = vunpack.c.l.b16 %v1239
    %v1754 = vunpack.c.l.b16 %v1240
    %v1755 = vunpack.c.l.b16 %v1241
    %v1756 = vunpack.c.l.b16 %v1242
    %v1757 = vunpack.c.l.b16 %v1243
    %v1758 = vunpack.c.l.b16 %v1244
    %v1759 = vunpack.c.l.b16 %v1245
    %v1760 = vunpack.c.l.b16 %v1246
    %v1761 = vunpack.c.l.b16 %v1247
    %v1762 = vunpack.c.l.b16 %v1248
    %v1763 = vunpack.c.l.b16 %v1249
    %v1764 = vunpack.c.l.b16 %v1250
    %v1765 = vunpack.c.l.b16 %v1251
    %v1766 = vunpack.c.l.b16 %v1252
    %v1767 = vunpack.c.l.b16 %v1253
    %v1768 = vunpack.c.l.b16 %v1254
    %v1769 = vunpack.c.l.b16 %v1255
    %v1770 = vunpack.c.l.b16 %v1256
    %v1771 = vunpack.c.l.b16 %v1257
    %v1772 = vunpack.c.l.b16 %v1258
    %v1773 = vunpack.c.l.b16 %v1259
    %v1774 = vunpack.c.l.b16 %v1260
    %v1775 = vunpack.c.l.b16 %v1261
    %v1776 = vunpack.c.l.b16 %v1262
    %v1777 = vunpack.c.l.b16 %v1263
    %v1778 = vunpack.c.l.b16 %v1264
    %v1779 = vunpack.c.l.b16 %v1265
    %v1780 = vunpack.c.l.b16 %v1266
    %v1781 = vunpack.c.l.b16 %v1267
    %v1782 = vunpack.c.l.b16 %v1268
    %v1783 = vunpack.c.l.b16 %v1269
    %v1784 = vunpack.c.l.b16 %v1270
    %v1785 = vunpack.c.l.b16 %v1271
    %v1786 = vunpack.c.l.b16 %v1272
    %v1787 = vunpack.c.l.b16 %v1273
    %v1788 = vunpack.c.l.b16 %v1274
    %v1789 = vunpack.c.l.b16 %v1275
    %v1790 = vunpack.c.l.b16 %v1276
    %v1791 = vunpack.c.l.b16 %v1277
    %v1792 = vunpack.c.l.b16 %v1278
    %v1793 = vunpack.c.l.b16 %v1279
    %v1794 = vunpack.c.l.b16 %v1280
    %v1795 = vunpack.c.l.b16 %v1281
    %v1796 = vunpack.c.l.b16 %v1282
    %v1797 = vunpack.c.l.b16 %v1283
    %v1798 = vunpack.c.l.b16 %v1284
    %v1799 = vunpack.c.l.b16 %v1285
    %v1800 = vunpack.c.l.b16 %v1286
    %v1801 = vunpack.c.l.b16 %v1287
    %v1802 = vunpack.c.l.b16 %v1288
    %v1803 = vunpack.c.l.b16 %v1289
    %v1804 = vunpack.c.l.b16 %v1290
    %v1805 = vunpack.c.l.b16 %v1291
    %v1806 = vunpack.c.l.b16 %v1292
    %v1807 = vunpack.c.l.b16 %v1293
    %v1808 = vunpack.c.l.b16 %v1294
    %v1809 = vunpack.c.l.b16 %v1295
    %v1810 = vunpack.c.l.b16 %v1296
    %v1811 = vunpack.c.l.b16 %v1297
    %v1812 = vunpack.c.l.b16 %v1298
    %v1813 = vunpack.c.l.b16 %v1299
    %v1814 = vunpack.c.l.b16 %v1300
    %v1815 = vunpack.c.l.b16 %v1301
    %v1816 = vunpack.c.l.b16 %v1302
    %v1817 = vunpack.c.l.b16 %v1303
    %v1818 = vunpack.c.l.b16 %v1304
    %v1819 = vunpack.c.l.b16 %v1305
    %v1820 = vunpack.c.l.b16 %v1306
    %v1821 = vunpack.c.l.b16 %v1307
    %v1822 = vunpack.c.l.b16 %v1308
    %v1823 = vunpack.c.l.b16 %v1309
    %v1824 = vunpack.c.l.b16 %v1310
    %v1825 = vunpack.c.l.b16 %v1311
    %v1826 = vunpack.c.l.b16 %v1312
    %v1827 = vunpack.c.l.b16 %v1313
    %v1828 = vunpack.c.l.b16 %v1314
    %v1829 = vunpack.c.l.b16 %v1315
    %v1830 = vunpack.c.l.b16 %v1316
    %v1831 = vunpack.c.l.b16 %v1317
    %v1832 = vunpack.c.l.b16 %v1318
    %v1833 = vunpack.c.l.b16 %v1319
    %v1834 = vunpack.c.l.b16 %v1320
    %v1835 = vunpack.c.l.b16 %v1321
    %v1836 = vunpack.c.l.b16 %v1322
    %v1837 = vunpack.c.l.b16 %v1323
    %v1838 = vunpack.c.l.b16 %v1324
    %v1839 = vunpack.c.l.b16 %v1325
    %v1840 = vunpack.c.l.b16 %v1326
    %v1841 = vunpack.c.l.b16 %v1327
    %v1842 = vunpack.c.l.b16 %v1328
    %v1843 = vunpack.c.l.b16 %v1329
    %v1844 = vunpack.c.l.b16 %v1330
    %v1845 = vunpack.c.l.b16 %v1331
    %v1846 = vunpack.c.l.b16 %v1332
    %v1847 = vunpack.c.l.b16 %v1333
    %v1848 = vunpack.c.l.b16 %v1334
    %v1849 = vpack.c.b16 %v1594, %v1593
    %v1850 = vpack.c.b16 %v1596, %v1595
    %v1851 = vpack.c.b16 %v1598, %v1597
    %v1852 = vpack.c.b16 %v1600, %v1599
    %v1853 = vpack.c.b16 %v1602, %v1601
    %v1854 = vpack.c.b16 %v1604, %v1603
    %v1855 = vpack.c.b16 %v1606, %v1605
    %v1856 = vpack.c.b16 %v1608, %v1607
    %v1857 = vpack.c.b16 %v1610, %v1609
    %v1858 = vpack.c.b16 %v1612, %v1611
    %v1859 = vpack.c.b16 %v1614, %v1613
    %v1860 = vpack.c.b16 %v1616, %v1615
    %v1861 = vpack.c.b16 %v1618, %v1617
    %v1862 = vpack.c.b16 %v1620, %v1619
    %v1863 = vpack.c.b16 %v1622, %v1621
    %v1864 = vpack.c.b16 %v1624, %v1623
    %v1865 = vpack.c.b16 %v1626, %v1625
    %v1866 = vpack.c.b16 %v1628, %v1627
    %v1867 = vpack.c.b16 %v1630, %v1629
    %v1868 = vpack.c.b16 %v1632, %v1631
    %v1869 = vpack.c.b16 %v1634, %v1633
    %v1870 = vpack.c.b16 %v1636, %v1635
    %v1871 = vpack.c.b16 %v1638, %v1637
    %v1872 = vpack.c.b16 %v1640, %v1639
    %v1873 = vpack.c.b16 %v1642, %v1641
    %v1874 = vpack.c.b16 %v1644, %v1643
    %v1875 = vpack.c.b16 %v1646, %v1645
    %v1876 = vpack.c.b16 %v1648, %v1647
    %v1877 = vpack.c.b16 %v1650, %v1649
    %v1878 = vpack.c.b16 %v1652, %v1651
    %v1879 = vpack.c.b16 %v1654, %v1653
    %v1880 = vpack.c.b16 %v1656, %v1655
    %v1881 = vpack.c.b16 %v1658, %v1657
    %v1882 = vpack.c.b16 %v1660, %v1659
    %v1883 = vpack.c.b16 %v1662, %v1661
    %v1884 = vpack.c.b16 %v1664, %v1663
    %v1885 = vpack.c.b16 %v1666, %v1665
    %v1886 = vpack.c.b16 %v1668, %v1667
    %v1887 = vpack.c.b16 %v1670, %v1669
    %v1888 = vpack.c.b16 %v1672, %v1671
    %v1889 = vpack.c.b16 %v1674, %v1673
    %v1890 = vpack.c.b16 %v1676, %v1675
    %v1891 = vpack.c.b16 %v1678, %v1677
    %v1892 = vpack.c.b16 %v1680, %v1679
    %v1893 = vpack.c.b16 %v1682, %v1681
    %v1894 = vpack.c.b16 %v1684, %v1683
    %v1895 = vpack.c.b16 %v1686, %v1685
    %v1896 = vpack.c.b16 %v1688, %v1687
    %v1897 = vpack.c.b16 %v1690, %v1689
    %v1898 = vpack.c.b16 %v1692, %v1691
    %v1899 = vpack.c.b16 %v1694, %v1693
    %v1900 = vpack.c.b16 %v1696, %v1695
    %v1901 = vpack.c.b16 %v1698, %v1697
    %v1902 = vpack.c.b16 %v1700, %v1699
    %v1903 = vpack.c.b16 %v1702, %v1701
    %v1904 = vpack.c.b16 %v1704, %v1703
    %v1905 = vpack.c.b16 %v1706, %v1705
    %v1906 = vpack.c.b16 %v1708, %v1707
    %v1907 = vpack.c.b16 %v1710, %v1709
    %v1908 = vpack.c.b16 %v1712, %v1711
    %v1909 = vpack.c.b16 %v1714, %v1713
    %v1910 = vpack.c.b16 %v1716, %v1715
    %v1911 = vpack.c.b16 %v1718, %v1717
    %v1912 = vpack.c.b16 %v1720, %v1719
    %v1913 = vpack.c.b16 %v1722, %v1721
    %v1914 = vpack.c.b16 %v1724, %v1723
    %v1915 = vpack.c.b16 %v1726, %v1725
    %v1916 = vpack.c.b16 %v1728, %v1727
    %v1917 = vpack.c.b16 %v1730, %v1729
    %v1918 = vpack.c.b16 %v1732, %v1731
    %v1919 = vpack.c.b16 %v1734, %v1733
    %v1920 = vpack.c.b16 %v1736, %v1735
    %v1921 = vpack.c.b16 %v1738, %v1737
    %v1922 = vpack.c.b16 %v1740, %v1739
    %v1923 = vpack.c.b16 %v1742, %v1741
    %v1924 = vpack.c.b16 %v1744, %v1743
    %v1925 = vpack.c.b16 %v1746, %v1745
    %v1926 = vpack.c.b16 %v1748, %v1747
    %v1927 = vpack.c.b16 %v1750, %v1749
    %v1928 = vpack.c.b16 %v1752, %v1751
    %v1929 = vpack.c.b16 %v1754, %v1753
    %v1930 = vpack.c.b16 %v1756, %v1755
    %v1931 = vpack.c.b16 %v1758, %v1757
    %v1932 = vpack.c.b16 %v1760, %v1759
    %v1933 = vpack.c.b16 %v1762, %v1761
    %v1934 = vpack.c.b16 %v1764, %v1763
    %v1935 = vpack.c.b16 %v1766, %v1765
    %v1936 = vpack.c.b16 %v1768, %v1767
    %v1937 = vpack.c.b16 %v1770, %v1769
    %v1938 = vpack.c.b16 %v1772, %v1771
    %v1939 = vpack.c.b16 %v1774, %v1773
    %v1940 = vpack.c.b16 %v1776, %v1775
    %v1941 = vpack.c.b16 %v1778, %v1777
    %v1942 = vpack.c.b16 %v1780, %v1779
    %v1943 = vpack.c.b16 %v1782, %v1781
    %v1944 = vpack.c.b16 %v1784, %v1783
    %v1945 = vpack.c.b16 %v1786, %v1785
    %v1946 = vpack.c.b16 %v1788, %v1787
    %v1947 = vpack.c.b16 %v1790, %v1789
    %v1948 = vpack.c.b16 %v1792, %v1791
    %v1949 = vpack.c.b16 %v1794, %v1793
    %v1950 = vpack.c.b16 %v1796, %v1795
    %v1951 = vpack.c.b16 %v1798, %v1797
    %v1952 = vpack.c.b16 %v1800, %v1799
    %v1953 = vpack.c.b16 %v1802, %v1801
    %v1954 = vpack.c.b16 %v1804, %v1803
    %v1955 = vpack.c.b16 %v1806, %v1805
    %v1956 = vpack.c.b16 %v1808, %v1807
    %v1957 = vpack.c.b16 %v1810, %v1809
    %v1958 = vpack.c.b16 %v1812, %v1811
    %v1959 = vpack.c.b16 %v1814, %v1813
    %v1960 = vpack.c.b16 %v1816, %v1815
    %v1961 = vpack.c.b16 %v1818, %v1817
    %v1962 = vpack.c.b16 %v1820, %v1819
    %v1963 = vpack.c.b16 %v1822, %v1821
    %v1964 = vpack.c.b16 %v1824, %v1823
    %v1965 = vpack.c.b16 %v1826, %v1825
    %v1966 = vpack.c.b16 %v1828, %v1827
    %v1967 = vpack.c.b16 %v1830, %v1829
    %v1968 = vpack.c.b16 %v1832, %v1831
    %v1969 = vpack.c.b16 %v1834, %v1833
    %v1970 = vpack.c.b16 %v1836, %v1835
    %v1971 = vpack.c.b16 %v1838, %v1837
    %v1972 = vpack.c.b16 %v1840, %v1839
    %v1973 = vpack.c.b16 %v1842, %v1841
    %v1974 = vpack.c.b16 %v1844, %v1843
    %v1975 = vpack.c.b16 %v1846, %v1845
    %v1976 = vpack.c.b16 %v1848, %v1847
    %2105 = vmatpush.bf16.msra.mxu0 %v1856
    %2106 = vmatpush.bf16.msra.mxu0 %v1855
    %2107 = vmatpush.bf16.msra.mxu0 %v1854
    %2108 = vmatpush.bf16.msra.mxu0 %v1853
    %2109 = vmatpush.bf16.msra.mxu0 %v1852
    %2110 = vmatpush.bf16.msra.mxu0 %v1851
    %2111 = vmatpush.bf16.msra.mxu0 %v1850
    %2112 = vmatpush.bf16.msra.mxu0 %v1849
    %2113 = vmatmul.bf16.gmra.mxu0 %v1063
    %v2114 = vpop.f32.mrf.mxu0
    %v2115 = vadd.f32 %v1336, %v2114
    %v2116 = vpop.f32.mrf.mxu0
    %v2117 = vadd.f32 %v1336, %v2116
    %2118 = vdwg.mxu0
    %2119 = vmatpush.bf16.msra.mxu0 %v1864
    %2120 = vmatpush.bf16.msra.mxu0 %v1863
    %2121 = vmatpush.bf16.msra.mxu0 %v1862
    %2122 = vmatpush.bf16.msra.mxu0 %v1861
    %2123 = vmatpush.bf16.msra.mxu0 %v1860
    %2124 = vmatpush.bf16.msra.mxu0 %v1859
    %2125 = vmatpush.bf16.msra.mxu0 %v1858
    %2126 = vmatpush.bf16.msra.mxu0 %v1857
    %2127 = vmatmul.bf16.gmra.mxu0 %v1064
    %v2128 = vpop.f32.mrf.mxu0
    %v2129 = vadd.f32 %v2115, %v2128
    %v2130 = vpop.f32.mrf.mxu0
    %v2131 = vadd.f32 %v2117, %v2130
    %2132 = vdwg.mxu0
    %2133 = vmatpush.bf16.msra.mxu0 %v1872
    %2134 = vmatpush.bf16.msra.mxu0 %v1871
    %2135 = vmatpush.bf16.msra.mxu0 %v1870
    %2136 = vmatpush.bf16.msra.mxu0 %v1869
    %2137 = vmatpush.bf16.msra.mxu0 %v1868
    %2138 = vmatpush.bf16.msra.mxu0 %v1867
    %2139 = vmatpush.bf16.msra.mxu0 %v1866
    %2140 = vmatpush.bf16.msra.mxu0 %v1865
    %2141 = vmatmul.bf16.gmra.mxu0 %v1065
    %v2142 = vpop.f32.mrf.mxu0
    %v2143 = vadd.f32 %v2129, %v2142
    %v2144 = vpop.f32.mrf.mxu0
    %v2145 = vadd.f32 %v2131, %v2144
    %2146 = vdwg.mxu0
    %2147 = vmatpush.bf16.msra.mxu0 %v1880
    %2148 = vmatpush.bf16.msra.mxu0 %v1879
    %2149 = vmatpush.bf16.msra.mxu0 %v1878
    %2150 = vmatpush.bf16.msra.mxu0 %v1877
    %2151 = vmatpush.bf16.msra.mxu0 %v1876
    %2152 = vmatpush.bf16.msra.mxu0 %v1875
    %2153 = vmatpush.bf16.msra.mxu0 %v1874
    %2154 = vmatpush.bf16.msra.mxu0 %v1873
    %2155 = vmatmul.bf16.gmra.mxu0 %v1066
    %v2156 = vpop.f32.mrf.mxu0
    %v2157 = vadd.f32 %v2143, %v2156
    %v2158 = vpop.f32.mrf.mxu0
    %v2159 = vadd.f32 %v2145, %v2158
    %2160 = vdwg.mxu0
    %2161 = vmatpush.bf16.msra.mxu0 %v1888
    %2162 = vmatpush.bf16.msra.mxu0 %v1887
    %2163 = vmatpush.bf16.msra.mxu0 %v1886
    %2164 = vmatpush.bf16.msra.mxu0 %v1885
    %2165 = vmatpush.bf16.msra.mxu0 %v1884
    %2166 = vmatpush.bf16.msra.mxu0 %v1883
    %2167 = vmatpush.bf16.msra.mxu0 %v1882
    %2168 = vmatpush.bf16.msra.mxu0 %v1881
    %2169 = vmatmul.bf16.gmra.mxu0 %v1067
    %v2170 = vpop.f32.mrf.mxu0
    %v2171 = vadd.f32 %v2157, %v2170
    %v2172 = vpop.f32.mrf.mxu0
    %v2173 = vadd.f32 %v2159, %v2172
    %2174 = vdwg.mxu0
    %2175 = vmatpush.bf16.msra.mxu0 %v1896
    %2176 = vmatpush.bf16.msra.mxu0 %v1895
    %2177 = vmatpush.bf16.msra.mxu0 %v1894
    %2178 = vmatpush.bf16.msra.mxu0 %v1893
    %2179 = vmatpush.bf16.msra.mxu0 %v1892
    %2180 = vmatpush.bf16.msra.mxu0 %v1891
    %2181 = vmatpush.bf16.msra.mxu0 %v1890
    %2182 = vmatpush.bf16.msra.mxu0 %v1889
    %2183 = vmatmul.bf16.gmra.mxu0 %v1068
    %v2184 = vpop.f32.mrf.mxu0
    %v2185 = vadd.f32 %v2171, %v2184
    %v2186 = vpop.f32.mrf.mxu0
    %v2187 = vadd.f32 %v2173, %v2186
    %2188 = vdwg.mxu0
    %2189 = vmatpush.bf16.msra.mxu0 %v1904
    %2190 = vmatpush.bf16.msra.mxu0 %v1903
    %2191 = vmatpush.bf16.msra.mxu0 %v1902
    %2192 = vmatpush.bf16.msra.mxu0 %v1901
    %2193 = vmatpush.bf16.msra.mxu0 %v1900
    %2194 = vmatpush.bf16.msra.mxu0 %v1899
    %2195 = vmatpush.bf16.msra.mxu0 %v1898
    %2196 = vmatpush.bf16.msra.mxu0 %v1897
    %2197 = vmatmul.bf16.gmra.mxu0 %v1069
    %v2198 = vpop.f32.mrf.mxu0
    %v2199 = vadd.f32 %v2185, %v2198
    %v2200 = vpop.f32.mrf.mxu0
    %v2201 = vadd.f32 %v2187, %v2200
    %2202 = vdwg.mxu0
    %2203 = vmatpush.bf16.msra.mxu0 %v1912
    %2204 = vmatpush.bf16.msra.mxu0 %v1911
    %2205 = vmatpush.bf16.msra.mxu0 %v1910
    %2206 = vmatpush.bf16.msra.mxu0 %v1909
    %2207 = vmatpush.bf16.msra.mxu0 %v1908
    %2208 = vmatpush.bf16.msra.mxu0 %v1907
    %2209 = vmatpush.bf16.msra.mxu0 %v1906
    %2210 = vmatpush.bf16.msra.mxu0 %v1905
    %2211 = vmatmul.bf16.gmra.mxu0 %v1070
    %v2212 = vpop.f32.mrf.mxu0
    %v2213 = vadd.f32 %v2199, %v2212
    %v2214 = vpop.f32.mrf.mxu0
    %v2215 = vadd.f32 %v2201, %v2214
    %2216 = vdwg.mxu0
    %2217 = vmatpush.bf16.msra.mxu0 %v1920
    %2218 = vmatpush.bf16.msra.mxu0 %v1919
    %2219 = vmatpush.bf16.msra.mxu0 %v1918
    %2220 = vmatpush.bf16.msra.mxu0 %v1917
    %2221 = vmatpush.bf16.msra.mxu0 %v1916
    %2222 = vmatpush.bf16.msra.mxu0 %v1915
    %2223 = vmatpush.bf16.msra.mxu0 %v1914
    %2224 = vmatpush.bf16.msra.mxu0 %v1913
    %2225 = vmatmul.bf16.gmra.mxu0 %v1071
    %v2226 = vpop.f32.mrf.mxu0
    %v2227 = vadd.f32 %v2213, %v2226
    %v2228 = vpop.f32.mrf.mxu0
    %v2229 = vadd.f32 %v2215, %v2228
    %2230 = vdwg.mxu0
    %2231 = vmatpush.bf16.msra.mxu0 %v1928
    %2232 = vmatpush.bf16.msra.mxu0 %v1927
    %2233 = vmatpush.bf16.msra.mxu0 %v1926
    %2234 = vmatpush.bf16.msra.mxu0 %v1925
    %2235 = vmatpush.bf16.msra.mxu0 %v1924
    %2236 = vmatpush.bf16.msra.mxu0 %v1923
    %2237 = vmatpush.bf16.msra.mxu0 %v1922
    %2238 = vmatpush.bf16.msra.mxu0 %v1921
    %2239 = vmatmul.bf16.gmra.mxu0 %v1072
    %v2240 = vpop.f32.mrf.mxu0
    %v2241 = vadd.f32 %v2227, %v2240
    %v2242 = vpop.f32.mrf.mxu0
    %v2243 = vadd.f32 %v2229, %v2242
    %2244 = vdwg.mxu0
    %2245 = vmatpush.bf16.msra.mxu0 %v1936
    %2246 = vmatpush.bf16.msra.mxu0 %v1935
    %2247 = vmatpush.bf16.msra.mxu0 %v1934
    %2248 = vmatpush.bf16.msra.mxu0 %v1933
    %2249 = vmatpush.bf16.msra.mxu0 %v1932
    %2250 = vmatpush.bf16.msra.mxu0 %v1931
    %2251 = vmatpush.bf16.msra.mxu0 %v1930
    %2252 = vmatpush.bf16.msra.mxu0 %v1929
    %2253 = vmatmul.bf16.gmra.mxu0 %v1073
    %v2254 = vpop.f32.mrf.mxu0
    %v2255 = vadd.f32 %v2241, %v2254
    %v2256 = vpop.f32.mrf.mxu0
    %v2257 = vadd.f32 %v2243, %v2256
    %2258 = vdwg.mxu0
    %2259 = vmatpush.bf16.msra.mxu0 %v1944
    %2260 = vmatpush.bf16.msra.mxu0 %v1943
    %2261 = vmatpush.bf16.msra.mxu0 %v1942
    %2262 = vmatpush.bf16.msra.mxu0 %v1941
    %2263 = vmatpush.bf16.msra.mxu0 %v1940
    %2264 = vmatpush.bf16.msra.mxu0 %v1939
    %2265 = vmatpush.bf16.msra.mxu0 %v1938
    %2266 = vmatpush.bf16.msra.mxu0 %v1937
    %2267 = vmatmul.bf16.gmra.mxu0 %v1074
    %v2268 = vpop.f32.mrf.mxu0
    %v2269 = vadd.f32 %v2255, %v2268
    %v2270 = vpop.f32.mrf.mxu0
    %v2271 = vadd.f32 %v2257, %v2270
    %2272 = vdwg.mxu0
    %2273 = vmatpush.bf16.msra.mxu0 %v1952
    %2274 = vmatpush.bf16.msra.mxu0 %v1951
    %2275 = vmatpush.bf16.msra.mxu0 %v1950
    %2276 = vmatpush.bf16.msra.mxu0 %v1949
    %2277 = vmatpush.bf16.msra.mxu0 %v1948
    %2278 = vmatpush.bf16.msra.mxu0 %v1947
    %2279 = vmatpush.bf16.msra.mxu0 %v1946
    %2280 = vmatpush.bf16.msra.mxu0 %v1945
    %2281 = vmatmul.bf16.gmra.mxu0 %v1075
    %v2282 = vpop.f32.mrf.mxu0
    %v2283 = vadd.f32 %v2269, %v2282
    %v2284 = vpop.f32.mrf.mxu0
    %v2285 = vadd.f32 %v2271, %v2284
    %2286 = vdwg.mxu0
    %2287 = vmatpush.bf16.msra.mxu0 %v1960
    %2288 = vmatpush.bf16.msra.mxu0 %v1959
    %2289 = vmatpush.bf16.msra.mxu0 %v1958
    %2290 = vmatpush.bf16.msra.mxu0 %v1957
    %2291 = vmatpush.bf16.msra.mxu0 %v1956
    %2292 = vmatpush.bf16.msra.mxu0 %v1955
    %2293 = vmatpush.bf16.msra.mxu0 %v1954
    %2294 = vmatpush.bf16.msra.mxu0 %v1953
    %2295 = vmatmul.bf16.gmra.mxu0 %v1076
    %v2296 = vpop.f32.mrf.mxu0
    %v2297 = vadd.f32 %v2283, %v2296
    %v2298 = vpop.f32.mrf.mxu0
    %v2299 = vadd.f32 %v2285, %v2298
    %2300 = vdwg.mxu0
    %2301 = vmatpush.bf16.msra.mxu0 %v1968
    %2302 = vmatpush.bf16.msra.mxu0 %v1967
    %2303 = vmatpush.bf16.msra.mxu0 %v1966
    %2304 = vmatpush.bf16.msra.mxu0 %v1965
    %2305 = vmatpush.bf16.msra.mxu0 %v1964
    %2306 = vmatpush.bf16.msra.mxu0 %v1963
    %2307 = vmatpush.bf16.msra.mxu0 %v1962
    %2308 = vmatpush.bf16.msra.mxu0 %v1961
    %2309 = vmatmul.bf16.gmra.mxu0 %v1077
    %v2310 = vpop.f32.mrf.mxu0
    %v2311 = vadd.f32 %v2297, %v2310
    %v2312 = vpop.f32.mrf.mxu0
    %v2313 = vadd.f32 %v2299, %v2312
    %2314 = vdwg.mxu0
    %2315 = vmatpush.bf16.msra.mxu0 %v1976
    %2316 = vmatpush.bf16.msra.mxu0 %v1975
    %2317 = vmatpush.bf16.msra.mxu0 %v1974
    %2318 = vmatpush.bf16.msra.mxu0 %v1973
    %2319 = vmatpush.bf16.msra.mxu0 %v1972
    %2320 = vmatpush.bf16.msra.mxu0 %v1971
    %2321 = vmatpush.bf16.msra.mxu0 %v1970
    %2322 = vmatpush.bf16.msra.mxu0 %v1969
    %2323 = vmatmul.bf16.gmra.mxu0 %v1078
    %v2324 = vpop.f32.mrf.mxu0
    %v2325 = vadd.f32 %v2311, %v2324
    %v2326 = vpop.f32.mrf.mxu0
    %v2327 = vadd.f32 %v2313, %v2326
    %2328 = vdwg.mxu0
    %v2329 = vadd.f32 %v572, %v2325
    %v2330 = vadd.f32 %v573, %v2327
    %v2331 = vsel %vm116, %v2329, 0.0
    %2332 = vadd.xlane.f32.xlu0 %v2331
    %v2333 = vpop.xlane.xlu0 %2332
    %v2334 = vsel %vm116, %v2330, 0.0
    %2335 = vadd.xlane.f32.xlu0 %v2334
    %v2336 = vpop.xlane.xlu0 %2335
    %v2337 = vmul.f32 %v2333, %v527
    %v2338 = vmul.f32 %v2336, %v527
    %v2339 = vsub.f32 %v2329, %v2337
    %v2340 = vsub.f32 %v2330, %v2338
    %v2341 = vmul.f32 %v2339, %v2339
    %v2342 = vmul.f32 %v2340, %v2340
    %v2343 = vsel %vm116, %v2341, 0.0
    %2344 = vadd.xlane.f32.xlu0 %v2343
    %v2345 = vpop.xlane.xlu0 %2344
    %v2346 = vsel %vm116, %v2342, 0.0
    %2347 = vadd.xlane.f32.xlu0 %v2346
    %v2348 = vpop.xlane.xlu0 %2347
    %v2349 = vmul.f32 %v2345, %v527
    %v2350 = vmul.f32 %v2348, %v527
    %v2351 = vadd.f32 %v2349, 1e-05
    %v2352 = vadd.f32 %v2350, 1e-05
    %v2353 = vrsqrt.pop %v2351
    %v2354 = vmul.f32 %v2353, %v2351
    %v2355 = vmul.f32 %v2354, %v2353
    %v2356 = vmul.f32 0.5, %v2355
    %v2357 = vsub.f32 1.5, %v2356
    %v2358 = vmul.f32 %v2353, %v2357
    %vm2359 = vweird.f32 %v2351
    %vm2360 = vweird.f32 %v2353
    %vm2361 = vmor %vm2359, %vm2360
    %v2362 = vsel %vm2361, %v2353, %v2358
    %v2363 = vrsqrt.pop %v2352
    %v2364 = vmul.f32 %v2363, %v2352
    %v2365 = vmul.f32 %v2364, %v2363
    %v2366 = vmul.f32 0.5, %v2365
    %v2367 = vsub.f32 1.5, %v2366
    %v2368 = vmul.f32 %v2363, %v2367
    %vm2369 = vweird.f32 %v2352
    %vm2370 = vweird.f32 %v2363
    %vm2371 = vmor %vm2369, %vm2370
    %v2372 = vsel %vm2371, %v2363, %v2368
    %v2373 = vmul.f32 %v2339, %v2362
    %v2374 = vmul.f32 %v2340, %v2372
    %v2375 = vld [vmem:[%s6 + $0xd] sm:$0x1]
    %v2376 = vperm.slane %v2375, 0
    %v2377 = vmul.f32 %v2373, %v2376
    %v2378 = vmul.f32 %v2374, %v2376
    %v2379 = vld [vmem:[%s6 + $0xe] sm:$0x1]
    %v2380 = vperm.slane %v2379, 0
    %v2381 = vadd.f32 %v2377, %v2380
    %v2382 = vadd.f32 %v2378, %v2380
    %v2383 = vld [vmem:[%s5 + $0x58] sm:$0xf]
    %v2384 = vld [vmem:[%s5 + $0x5c] sm:$0xf]
    %v2385 = vld [vmem:[%s5 + $0x60] sm:$0xf]
    %v2386 = vld [vmem:[%s5 + $0x64] sm:$0xf]
    %v2387 = vld [vmem:[%s6 + $0x5] sm:$0x1]
    %v2388 = vpack.c.bf16 %v2382, %v2381
    %v2389 = vperm.slane %v2387, 0
    %v2394 = vunpack.c.l.b16 %v2383
    %v2395 = vunpack.c.l.b16 %v2384
    %v2396 = vunpack.c.l.b16 %v2385
    %v2397 = vunpack.c.l.b16 %v2386
    %v2398 = vpack.c.b16 %v2395, %v2394
    %v2399 = vpack.c.b16 %v2397, %v2396
    %v2403 = vsel %vm116, %v2388, 0
    %2405 = vmatpush.bf16.msra.mxu0 0
    %2406 = vmatpush.bf16.msra.mxu0 0
    %2407 = vmatpush.bf16.msra.mxu0 0
    %2408 = vmatpush.bf16.msra.mxu0 0
    %2409 = vmatpush.bf16.msra.mxu0 0
    %2410 = vmatpush.bf16.msra.mxu0 0
    %2411 = vmatpush.bf16.msra.mxu0 %v2399
    %2412 = vmatpush.bf16.msra.mxu0 %v2398
    %2413 = vmatmul.bf16.gmra.mxu0 %v2403
    %v2414 = vpop.f32.mrf.mxu0
    %v2415 = vadd.f32 %v2389, %v2414
    %v2416 = vpop.f32.mrf.mxu0
    %v2417 = vadd.f32 %v2389, %v2416
    %2418 = vdwg.mxu0
    %2421 = vrot.lane.b32.xlu0 %v2415, 96
    %v2422 = vpop.permute.xlu0 %2421
    %2423 = vrot.lane.b32.xlu0 %v2417, 96
    %v2424 = vpop.permute.xlu0 %2423
    %v2425 = vsel %vm222, %v2415, 0
    %v2427 = vsel %vm222, %v2417, 0
    %v2429 = vsel %vm222, %v2422, 0
    %v2431 = vsel %vm222, %v2424, 0
    %2433 = vmatpush.xpose.msra.mxu0 0.0
    %2434 = vmatpush.xpose.msra.mxu0 0.0
    %2435 = vmatpush.xpose.msra.mxu0 0.0
    %2436 = vmatpush.xpose.msra.mxu0 0.0
    %2437 = vmatpush.xpose.msra.mxu0 0.0
    %2438 = vmatpush.xpose.msra.mxu0 0.0
    %2439 = vmatpush.xpose.msra.mxu0 0.0
    %2440 = vmatpush.xpose.msra.mxu0 0.0
    %2441 = vmatpush.xpose.msra.mxu0 0.0
    %2442 = vmatpush.xpose.msra.mxu0 0.0
    %2443 = vmatpush.xpose.msra.mxu0 0.0
    %2444 = vmatpush.xpose.msra.mxu0 0.0
    %2445 = vmatpush.xpose.msra.mxu0 0.0
    %2446 = vmatpush.xpose.msra.mxu0 0.0
    %2447 = vmatpush.xpose.msra.mxu0 %v2431
    %2448 = vmatpush.xpose.msra.mxu0 %v2429
    %2449 = vmatmul.f32.gmra.mxu0 %v2425
    %v2450 = vpop.f32.mrf.mxu0
    %v2451 = vadd.f32 0.0, %v2450
    %2452 = vmatmul.f32.gmra.mxu0 %v2427
    %v2453 = vpop.f32.mrf.mxu0
    %v2454 = vadd.f32 0.0, %v2453
    %2455 = vdwg.mxu0
    %v2456 = vmul.f32 %v2451, 0.25
    %v2457 = vmul.f32 %v2454, 0.25
    %v2458 = vadd.f32 %v2456, %v42
    %v2459 = vadd.f32 %v2457, %v43
    %v2460 = vsel %vm222, %v2458, -inf
    %2461 = vmax.xlane.f32.xlu0 %v2460
    %v2462 = vpop.xlane.xlu0 %2461
    %v2463 = vsel %vm222, %v2459, -inf
    %2464 = vmax.xlane.f32.xlu0 %v2463
    %v2465 = vpop.xlane.xlu0 %2464
    %v2466 = vsub.f32 %v2458, %v2462
    %v2467 = vsub.f32 %v2459, %v2465
    %v2468 = vmul.f32 %v2466, 1.442695
    %v2469 = vpow.pop %v2468
    %v2470 = vmul.f32 %v2467, 1.442695
    %v2471 = vpow.pop %v2470
    %v2472 = vsel %vm222, %v2469, 0.0
    %2473 = vadd.xlane.f32.xlu0 %v2472
    %v2474 = vpop.xlane.xlu0 %2473
    %v2475 = vsel %vm222, %v2471, 0.0
    %2476 = vadd.xlane.f32.xlu0 %v2475
    %v2477 = vpop.xlane.xlu0 %2476
    %v2478 = vrcp.pop %v2474
    %v2479 = vmul.f32 %v2474, %v2478
    %v2480 = vsub.f32 1.0, %v2479
    %v2481 = vmul.f32 %v2478, %v2480
    %v2482 = vadd.f32 %v2478, %v2481
    %vm2483 = vweird.f32 %v2474
    %vm2484 = vweird.f32 %v2478
    %vm2485 = vmor %vm2483, %vm2484
    %v2486 = vsel %vm2485, %v2478, %v2482
    %v2487 = vand.u32 2147483647, %v2474
    %vm2488 = vcmp.eq.f32.partialorder %v2487, 8.507059e+37
    %v2489 = vand.u32 %v2474, 2147483648
    %v2490 = vor.u32 1.1754944e-38, %v2489
    %v2491 = vsel %vm2488, %v2490, %v2486
    %v2492 = vrcp.pop %v2477
    %v2493 = vmul.f32 %v2477, %v2492
    %v2494 = vsub.f32 1.0, %v2493
    %v2495 = vmul.f32 %v2492, %v2494
    %v2496 = vadd.f32 %v2492, %v2495
    %vm2497 = vweird.f32 %v2477
    %vm2498 = vweird.f32 %v2492
    %vm2499 = vmor %vm2497, %vm2498
    %v2500 = vsel %vm2499, %v2492, %v2496
    %v2501 = vand.u32 2147483647, %v2477
    %vm2502 = vcmp.eq.f32.partialorder %v2501, 8.507059e+37
    %v2503 = vand.u32 %v2477, 2147483648
    %v2504 = vor.u32 1.1754944e-38, %v2503
    %v2505 = vsel %vm2502, %v2504, %v2500
    %v2506 = vmul.f32 %v2469, %v2491
    %v2507 = vmul.f32 %v2471, %v2505
    %2508 = vrot.lane.b32.xlu0 %v2415, 64
    %v2509 = vpop.permute.xlu0 %2508
    %2510 = vrot.lane.b32.xlu0 %v2417, 64
    %v2511 = vpop.permute.xlu0 %2510
    %v2515 = vsel %vm222, %v2506, 0
    %v2518 = vsel %vm222, %v2507, 0
    %2520 = vmatpush.msra.mxu0 0.0
    %2521 = vmatpush.msra.mxu0 0.0
    %2522 = vmatpush.msra.mxu0 0.0
    %2523 = vmatpush.msra.mxu0 0.0
    %2524 = vmatpush.msra.mxu0 0.0
    %2525 = vmatpush.msra.mxu0 0.0
    %2526 = vmatpush.msra.mxu0 0.0
    %2527 = vmatpush.msra.mxu0 0.0
    %2528 = vmatpush.msra.mxu0 0.0
    %2529 = vmatpush.msra.mxu0 0.0
    %2530 = vmatpush.msra.mxu0 0.0
    %2531 = vmatpush.msra.mxu0 0.0
    %2532 = vmatpush.msra.mxu0 0.0
    %2533 = vmatpush.msra.mxu0 0.0
    %2534 = vmatpush.msra.mxu0 %v2511
    %2535 = vmatpush.msra.mxu0 %v2509
    %2536 = vmatmul.f32.gmra.mxu0 %v2515
    %v2537 = vpop.f32.mrf.mxu0
    %v2538 = vadd.f32 0.0, %v2537
    %2539 = vmatmul.f32.gmra.mxu0 %v2518
    %v2540 = vpop.f32.mrf.mxu0
    %v2541 = vadd.f32 0.0, %v2540
    %2542 = vdwg.mxu0
    %2543 = vrot.lane.b32.xlu0 %v2415, 112
    %v2544 = vpop.permute.xlu0 %2543
    %2545 = vrot.lane.b32.xlu0 %v2417, 112
    %v2546 = vpop.permute.xlu0 %2545
    %2547 = vrot.lane.b32.xlu0 %v2415, 80
    %v2548 = vpop.permute.xlu0 %2547
    %2549 = vrot.lane.b32.xlu0 %v2417, 80
    %v2550 = vpop.permute.xlu0 %2549
    %v2551 = vsel %vm222, %v2544, 0
    %v2553 = vsel %vm222, %v2546, 0
    %v2555 = vsel %vm222, %v2548, 0
    %v2557 = vsel %vm222, %v2550, 0
    %2559 = vmatpush.xpose.msra.mxu0 0.0
    %2560 = vmatpush.xpose.msra.mxu0 0.0
    %2561 = vmatpush.xpose.msra.mxu0 0.0
    %2562 = vmatpush.xpose.msra.mxu0 0.0
    %2563 = vmatpush.xpose.msra.mxu0 0.0
    %2564 = vmatpush.xpose.msra.mxu0 0.0
    %2565 = vmatpush.xpose.msra.mxu0 0.0
    %2566 = vmatpush.xpose.msra.mxu0 0.0
    %2567 = vmatpush.xpose.msra.mxu0 0.0
    %2568 = vmatpush.xpose.msra.mxu0 0.0
    %2569 = vmatpush.xpose.msra.mxu0 0.0
    %2570 = vmatpush.xpose.msra.mxu0 0.0
    %2571 = vmatpush.xpose.msra.mxu0 0.0
    %2572 = vmatpush.xpose.msra.mxu0 0.0
    %2573 = vmatpush.xpose.msra.mxu0 %v2557
    %2574 = vmatpush.xpose.msra.mxu0 %v2555
    %2575 = vmatmul.f32.gmra.mxu0 %v2551
    %v2576 = vpop.f32.mrf.mxu0
    %v2577 = vadd.f32 0.0, %v2576
    %2578 = vmatmul.f32.gmra.mxu0 %v2553
    %v2579 = vpop.f32.mrf.mxu0
    %v2580 = vadd.f32 0.0, %v2579
    %2581 = vdwg.mxu0
    %v2582 = vmul.f32 %v2577, 0.25
    %v2583 = vmul.f32 %v2580, 0.25
    %v2584 = vadd.f32 %v2582, %v42
    %v2585 = vadd.f32 %v2583, %v43
    %v2586 = vsel %vm222, %v2584, -inf
    %2587 = vmax.xlane.f32.xlu0 %v2586
    %v2588 = vpop.xlane.xlu0 %2587
    %v2589 = vsel %vm222, %v2585, -inf
    %2590 = vmax.xlane.f32.xlu0 %v2589
    %v2591 = vpop.xlane.xlu0 %2590
    %v2592 = vsub.f32 %v2584, %v2588
    %v2593 = vsub.f32 %v2585, %v2591
    %v2594 = vmul.f32 %v2592, 1.442695
    %v2595 = vpow.pop %v2594
    %v2596 = vmul.f32 %v2593, 1.442695
    %v2597 = vpow.pop %v2596
    %v2598 = vsel %vm222, %v2595, 0.0
    %2599 = vadd.xlane.f32.xlu0 %v2598
    %v2600 = vpop.xlane.xlu0 %2599
    %v2601 = vsel %vm222, %v2597, 0.0
    %2602 = vadd.xlane.f32.xlu0 %v2601
    %v2603 = vpop.xlane.xlu0 %2602
    %v2604 = vrcp.pop %v2600
    %v2605 = vmul.f32 %v2600, %v2604
    %v2606 = vsub.f32 1.0, %v2605
    %v2607 = vmul.f32 %v2604, %v2606
    %v2608 = vadd.f32 %v2604, %v2607
    %vm2609 = vweird.f32 %v2600
    %vm2610 = vweird.f32 %v2604
    %vm2611 = vmor %vm2609, %vm2610
    %v2612 = vsel %vm2611, %v2604, %v2608
    %v2613 = vand.u32 2147483647, %v2600
    %vm2614 = vcmp.eq.f32.partialorder %v2613, 8.507059e+37
    %v2615 = vand.u32 %v2600, 2147483648
    %v2616 = vor.u32 1.1754944e-38, %v2615
    %v2617 = vsel %vm2614, %v2616, %v2612
    %v2618 = vrcp.pop %v2603
    %v2619 = vmul.f32 %v2603, %v2618
    %v2620 = vsub.f32 1.0, %v2619
    %v2621 = vmul.f32 %v2618, %v2620
    %v2622 = vadd.f32 %v2618, %v2621
    %vm2623 = vweird.f32 %v2603
    %vm2624 = vweird.f32 %v2618
    %vm2625 = vmor %vm2623, %vm2624
    %v2626 = vsel %vm2625, %v2618, %v2622
    %v2627 = vand.u32 2147483647, %v2603
    %vm2628 = vcmp.eq.f32.partialorder %v2627, 8.507059e+37
    %v2629 = vand.u32 %v2603, 2147483648
    %v2630 = vor.u32 1.1754944e-38, %v2629
    %v2631 = vsel %vm2628, %v2630, %v2626
    %v2632 = vmul.f32 %v2595, %v2617
    %v2633 = vmul.f32 %v2597, %v2631
    %2634 = vrot.lane.b32.xlu0 %v2415, 48
    %v2635 = vpop.permute.xlu0 %2634
    %2636 = vrot.lane.b32.xlu0 %v2417, 48
    %v2637 = vpop.permute.xlu0 %2636
    %v2641 = vsel %vm222, %v2632, 0
    %v2644 = vsel %vm222, %v2633, 0
    %2646 = vmatpush.msra.mxu0 0.0
    %2647 = vmatpush.msra.mxu0 0.0
    %2648 = vmatpush.msra.mxu0 0.0
    %2649 = vmatpush.msra.mxu0 0.0
    %2650 = vmatpush.msra.mxu0 0.0
    %2651 = vmatpush.msra.mxu0 0.0
    %2652 = vmatpush.msra.mxu0 0.0
    %2653 = vmatpush.msra.mxu0 0.0
    %2654 = vmatpush.msra.mxu0 0.0
    %2655 = vmatpush.msra.mxu0 0.0
    %2656 = vmatpush.msra.mxu0 0.0
    %2657 = vmatpush.msra.mxu0 0.0
    %2658 = vmatpush.msra.mxu0 0.0
    %2659 = vmatpush.msra.mxu0 0.0
    %2660 = vmatpush.msra.mxu0 %v2637
    %2661 = vmatpush.msra.mxu0 %v2635
    %2662 = vmatmul.f32.gmra.mxu0 %v2641
    %v2663 = vpop.f32.mrf.mxu0
    %v2664 = vadd.f32 0.0, %v2663
    %2665 = vmatmul.f32.gmra.mxu0 %v2644
    %v2666 = vpop.f32.mrf.mxu0
    %v2667 = vadd.f32 0.0, %v2666
    %2668 = vdwg.mxu0
    %2671 = vrot.lane.b32.xlu0 %v2664, 16
    %v2672 = vpop.permute.xlu0 %2671
    %2673 = vrot.lane.b32.xlu0 %v2667, 16
    %v2674 = vpop.permute.xlu0 %2673
    %v2677 = vsel %vm222, %v2538, %v2672
    %v2678 = vsel %vm222, %v2541, %v2674
    %v2679 = vpack.c.bf16 %v2678, %v2677
    %v2680 = vld [vmem:[%s5 + $0x68] sm:$0xf]
    %v2681 = vld [vmem:[%s5 + $0x6c] sm:$0xf]
    %v2682 = vld [vmem:[%s5 + $0x70] sm:$0xf]
    %v2683 = vld [vmem:[%s5 + $0x74] sm:$0xf]
    %v2684 = vld [vmem:[%s6 + $0x6] sm:$0x1]
    %v2685 = vperm.slane %v2684, 0
    %v2690 = vunpack.c.l.b16 %v2680
    %v2691 = vunpack.c.l.b16 %v2681
    %v2692 = vunpack.c.l.b16 %v2682
    %v2693 = vunpack.c.l.b16 %v2683
    %v2694 = vpack.c.b16 %v2691, %v2690
    %v2695 = vpack.c.b16 %v2693, %v2692
    %v2699 = vsel %vm116, %v2679, 0
    %2701 = vmatpush.bf16.msra.mxu0 0
    %2702 = vmatpush.bf16.msra.mxu0 0
    %2703 = vmatpush.bf16.msra.mxu0 0
    %2704 = vmatpush.bf16.msra.mxu0 0
    %2705 = vmatpush.bf16.msra.mxu0 0
    %2706 = vmatpush.bf16.msra.mxu0 0
    %2707 = vmatpush.bf16.msra.mxu0 %v2695
    %2708 = vmatpush.bf16.msra.mxu0 %v2694
    %2709 = vmatmul.bf16.gmra.mxu0 %v2699
    %v2710 = vpop.f32.mrf.mxu0
    %v2711 = vadd.f32 %v2685, %v2710
    %v2712 = vpop.f32.mrf.mxu0
    %v2713 = vadd.f32 %v2685, %v2712
    %2714 = vdwg.mxu0
    %v2715 = vadd.f32 %v2381, %v2711
    %v2716 = vadd.f32 %v2382, %v2713
    %v2717 = vsel %vm116, %v2715, 0.0
    %2718 = vadd.xlane.f32.xlu0 %v2717
    %v2719 = vpop.xlane.xlu0 %2718
    %v2720 = vsel %vm116, %v2716, 0.0
    %2721 = vadd.xlane.f32.xlu0 %v2720
    %v2722 = vpop.xlane.xlu0 %2721
    %v2723 = vmul.f32 %v2719, %v527
    %v2724 = vmul.f32 %v2722, %v527
    %v2725 = vsub.f32 %v2715, %v2723
    %v2726 = vsub.f32 %v2716, %v2724
    %v2727 = vmul.f32 %v2725, %v2725
    %v2728 = vmul.f32 %v2726, %v2726
    %v2729 = vsel %vm116, %v2727, 0.0
    %2730 = vadd.xlane.f32.xlu0 %v2729
    %v2731 = vpop.xlane.xlu0 %2730
    %v2732 = vsel %vm116, %v2728, 0.0
    %2733 = vadd.xlane.f32.xlu0 %v2732
    %v2734 = vpop.xlane.xlu0 %2733
    %v2735 = vmul.f32 %v2731, %v527
    %v2736 = vmul.f32 %v2734, %v527
    %v2737 = vadd.f32 %v2735, 1e-05
    %v2738 = vadd.f32 %v2736, 1e-05
    %v2739 = vrsqrt.pop %v2737
    %v2740 = vmul.f32 %v2739, %v2737
    %v2741 = vmul.f32 %v2740, %v2739
    %v2742 = vmul.f32 0.5, %v2741
    %v2743 = vsub.f32 1.5, %v2742
    %v2744 = vmul.f32 %v2739, %v2743
    %vm2745 = vweird.f32 %v2737
    %vm2746 = vweird.f32 %v2739
    %vm2747 = vmor %vm2745, %vm2746
    %v2748 = vsel %vm2747, %v2739, %v2744
    %v2749 = vrsqrt.pop %v2738
    %v2750 = vmul.f32 %v2749, %v2738
    %v2751 = vmul.f32 %v2750, %v2749
    %v2752 = vmul.f32 0.5, %v2751
    %v2753 = vsub.f32 1.5, %v2752
    %v2754 = vmul.f32 %v2749, %v2753
    %vm2755 = vweird.f32 %v2738
    %vm2756 = vweird.f32 %v2749
    %vm2757 = vmor %vm2755, %vm2756
    %v2758 = vsel %vm2757, %v2749, %v2754
    %v2759 = vmul.f32 %v2725, %v2748
    %v2760 = vmul.f32 %v2726, %v2758
    %v2761 = vld [vmem:[%s6 + $0x10] sm:$0x1]
    %v2762 = vperm.slane %v2761, 0
    %v2763 = vmul.f32 %v2759, %v2762
    %v2764 = vmul.f32 %v2760, %v2762
    %v2765 = vld [vmem:[%s6 + $0x11] sm:$0x1]
    %v2766 = vperm.slane %v2765, 0
    %v2767 = vadd.f32 %v2763, %v2766
    %v2768 = vadd.f32 %v2764, %v2766
    %v2769 = vpack.c.bf16 %v2768, %v2767
    %s2770 = scalar_lea.vmem %s7, 256
    %v2771 = vld [vmem:[%s2770] sm:$0xff]
    %v2772 = vld [vmem:[%s2770 + $0x8] sm:$0xff]
    %v2773 = vld [vmem:[%s2770 + $0x10] sm:$0xff]
    %v2774 = vld [vmem:[%s2770 + $0x18] sm:$0xff]
    %v2775 = vld [vmem:[%s2770 + $0x20] sm:$0xff]
    %v2776 = vld [vmem:[%s2770 + $0x28] sm:$0xff]
    %v2777 = vld [vmem:[%s2770 + $0x30] sm:$0xff]
    %v2778 = vld [vmem:[%s2770 + $0x38] sm:$0xff]
    %v2779 = vld [vmem:[%s2770 + $0x40] sm:$0xff]
    %v2780 = vld [vmem:[%s2770 + $0x48] sm:$0xff]
    %v2781 = vld [vmem:[%s2770 + $0x50] sm:$0xff]
    %v2782 = vld [vmem:[%s2770 + $0x58] sm:$0xff]
    %v2783 = vld [vmem:[%s2770 + $0x60] sm:$0xff]
    %v2784 = vld [vmem:[%s2770 + $0x68] sm:$0xff]
    %v2785 = vld [vmem:[%s2770 + $0x70] sm:$0xff]
    %v2786 = vld [vmem:[%s2770 + $0x78] sm:$0xff]
    %v2787 = vld [vmem:[%s2770 + $0x80] sm:$0xff]
    %v2788 = vld [vmem:[%s2770 + $0x88] sm:$0xff]
    %v2789 = vld [vmem:[%s2770 + $0x90] sm:$0xff]
    %v2790 = vld [vmem:[%s2770 + $0x98] sm:$0xff]
    %v2791 = vld [vmem:[%s2770 + $0xa0] sm:$0xff]
    %v2792 = vld [vmem:[%s2770 + $0xa8] sm:$0xff]
    %v2793 = vld [vmem:[%s2770 + $0xb0] sm:$0xff]
    %v2794 = vld [vmem:[%s2770 + $0xb8] sm:$0xff]
    %v2795 = vld [vmem:[%s2770 + $0xc0] sm:$0xff]
    %v2796 = vld [vmem:[%s2770 + $0xc8] sm:$0xff]
    %v2797 = vld [vmem:[%s2770 + $0xd0] sm:$0xff]
    %v2798 = vld [vmem:[%s2770 + $0xd8] sm:$0xff]
    %v2799 = vld [vmem:[%s2770 + $0xe0] sm:$0xff]
    %v2800 = vld [vmem:[%s2770 + $0xe8] sm:$0xff]
    %v2801 = vld [vmem:[%s2770 + $0xf0] sm:$0xff]
    %v2802 = vld [vmem:[%s2770 + $0xf8] sm:$0xff]
    %s2803 = scalar_lea.vmem %s9, 1
    %v2804 = vld [vmem:[%s2803] ss:$4 sm:$0xff]
    %s2805 = scalar_lea.vmem %s9, 33
    %v2806 = vld [vmem:[%s2805] ss:$4 sm:$0xff]
    %v2809 = vperm.slane %v2804, 0
    %v2810 = vperm.slane %v2804, 1
    %v2811 = vperm.slane %v2804, 2
    %v2812 = vperm.slane %v2804, 3
    %v2813 = vperm.slane %v2804, 4
    %v2814 = vperm.slane %v2804, 5
    %v2815 = vperm.slane %v2804, 6
    %v2816 = vperm.slane %v2804, 7
    %v2817 = vperm.slane %v2806, 0
    %v2818 = vperm.slane %v2806, 1
    %v2819 = vperm.slane %v2806, 2
    %v2820 = vperm.slane %v2806, 3
    %v2821 = vperm.slane %v2806, 4
    %v2822 = vperm.slane %v2806, 5
    %v2823 = vperm.slane %v2806, 6
    %v2824 = vperm.slane %v2806, 7
    %v2873 = vunpack.c.l.b16 %v2771
    %v2874 = vunpack.c.h.b16 %v2771
    %v2875 = vunpack.c.l.b16 %v2772
    %v2876 = vunpack.c.h.b16 %v2772
    %v2877 = vunpack.c.l.b16 %v2773
    %v2878 = vunpack.c.h.b16 %v2773
    %v2879 = vunpack.c.l.b16 %v2774
    %v2880 = vunpack.c.h.b16 %v2774
    %v2881 = vunpack.c.l.b16 %v2775
    %v2882 = vunpack.c.h.b16 %v2775
    %v2883 = vunpack.c.l.b16 %v2776
    %v2884 = vunpack.c.h.b16 %v2776
    %v2885 = vunpack.c.l.b16 %v2777
    %v2886 = vunpack.c.h.b16 %v2777
    %v2887 = vunpack.c.l.b16 %v2778
    %v2888 = vunpack.c.h.b16 %v2778
    %v2889 = vunpack.c.l.b16 %v2779
    %v2890 = vunpack.c.h.b16 %v2779
    %v2891 = vunpack.c.l.b16 %v2780
    %v2892 = vunpack.c.h.b16 %v2780
    %v2893 = vunpack.c.l.b16 %v2781
    %v2894 = vunpack.c.h.b16 %v2781
    %v2895 = vunpack.c.l.b16 %v2782
    %v2896 = vunpack.c.h.b16 %v2782
    %v2897 = vunpack.c.l.b16 %v2783
    %v2898 = vunpack.c.h.b16 %v2783
    %v2899 = vunpack.c.l.b16 %v2784
    %v2900 = vunpack.c.h.b16 %v2784
    %v2901 = vunpack.c.l.b16 %v2785
    %v2902 = vunpack.c.h.b16 %v2785
    %v2903 = vunpack.c.l.b16 %v2786
    %v2904 = vunpack.c.h.b16 %v2786
    %v2905 = vunpack.c.l.b16 %v2787
    %v2906 = vunpack.c.h.b16 %v2787
    %v2907 = vunpack.c.l.b16 %v2788
    %v2908 = vunpack.c.h.b16 %v2788
    %v2909 = vunpack.c.l.b16 %v2789
    %v2910 = vunpack.c.h.b16 %v2789
    %v2911 = vunpack.c.l.b16 %v2790
    %v2912 = vunpack.c.h.b16 %v2790
    %v2913 = vunpack.c.l.b16 %v2791
    %v2914 = vunpack.c.h.b16 %v2791
    %v2915 = vunpack.c.l.b16 %v2792
    %v2916 = vunpack.c.h.b16 %v2792
    %v2917 = vunpack.c.l.b16 %v2793
    %v2918 = vunpack.c.h.b16 %v2793
    %v2919 = vunpack.c.l.b16 %v2794
    %v2920 = vunpack.c.h.b16 %v2794
    %v2921 = vunpack.c.l.b16 %v2795
    %v2922 = vunpack.c.h.b16 %v2795
    %v2923 = vunpack.c.l.b16 %v2796
    %v2924 = vunpack.c.h.b16 %v2796
    %v2925 = vunpack.c.l.b16 %v2797
    %v2926 = vunpack.c.h.b16 %v2797
    %v2927 = vunpack.c.l.b16 %v2798
    %v2928 = vunpack.c.h.b16 %v2798
    %v2929 = vunpack.c.l.b16 %v2799
    %v2930 = vunpack.c.h.b16 %v2799
    %v2931 = vunpack.c.l.b16 %v2800
    %v2932 = vunpack.c.h.b16 %v2800
    %v2933 = vunpack.c.l.b16 %v2801
    %v2934 = vunpack.c.h.b16 %v2801
    %v2935 = vunpack.c.l.b16 %v2802
    %v2936 = vunpack.c.h.b16 %v2802
    %v2937 = vpack.c.b16 %v2889, %v2873
    %v2938 = vpack.c.b16 %v2890, %v2874
    %v2939 = vpack.c.b16 %v2891, %v2875
    %v2940 = vpack.c.b16 %v2892, %v2876
    %v2941 = vpack.c.b16 %v2893, %v2877
    %v2942 = vpack.c.b16 %v2894, %v2878
    %v2943 = vpack.c.b16 %v2895, %v2879
    %v2944 = vpack.c.b16 %v2896, %v2880
    %v2945 = vpack.c.b16 %v2897, %v2881
    %v2946 = vpack.c.b16 %v2898, %v2882
    %v2947 = vpack.c.b16 %v2899, %v2883
    %v2948 = vpack.c.b16 %v2900, %v2884
    %v2949 = vpack.c.b16 %v2901, %v2885
    %v2950 = vpack.c.b16 %v2902, %v2886
    %v2951 = vpack.c.b16 %v2903, %v2887
    %v2952 = vpack.c.b16 %v2904, %v2888
    %v2953 = vpack.c.b16 %v2921, %v2905
    %v2954 = vpack.c.b16 %v2922, %v2906
    %v2955 = vpack.c.b16 %v2923, %v2907
    %v2956 = vpack.c.b16 %v2924, %v2908
    %v2957 = vpack.c.b16 %v2925, %v2909
    %v2958 = vpack.c.b16 %v2926, %v2910
    %v2959 = vpack.c.b16 %v2927, %v2911
    %v2960 = vpack.c.b16 %v2928, %v2912
    %v2961 = vpack.c.b16 %v2929, %v2913
    %v2962 = vpack.c.b16 %v2930, %v2914
    %v2963 = vpack.c.b16 %v2931, %v2915
    %v2964 = vpack.c.b16 %v2932, %v2916
    %v2965 = vpack.c.b16 %v2933, %v2917
    %v2966 = vpack.c.b16 %v2934, %v2918
    %v2967 = vpack.c.b16 %v2935, %v2919
    %v2968 = vpack.c.b16 %v2936, %v2920
    %v3002 = vsel %vm116, %v2769, 0
    %3004 = vmatpush.bf16.msra.mxu0 0
    %3005 = vmatpush.bf16.msra.mxu0 0
    %3006 = vmatpush.bf16.msra.mxu0 0
    %3007 = vmatpush.bf16.msra.mxu0 0
    %3008 = vmatpush.bf16.msra.mxu0 0
    %3009 = vmatpush.bf16.msra.mxu0 0
    %3010 = vmatpush.bf16.msra.mxu0 %v2953
    %3011 = vmatpush.bf16.msra.mxu0 %v2937
    %3012 = vmatmul.bf16.gmra.mxu0 %v3002
    %v3013 = vpop.f32.mrf.mxu0
    %v3014 = vadd.f32 %v2809, %v3013
    %v3015 = vpop.f32.mrf.mxu0
    %v3016 = vadd.f32 %v2809, %v3015
    %3017 = vdwg.mxu0
    %3018 = vmatpush.bf16.msra.mxu0 0
    %3019 = vmatpush.bf16.msra.mxu0 0
    %3020 = vmatpush.bf16.msra.mxu0 0
    %3021 = vmatpush.bf16.msra.mxu0 0
    %3022 = vmatpush.bf16.msra.mxu0 0
    %3023 = vmatpush.bf16.msra.mxu0 0
    %3024 = vmatpush.bf16.msra.mxu0 %v2954
    %3025 = vmatpush.bf16.msra.mxu0 %v2938
    %3026 = vmatmul.bf16.gmra.mxu0 %v3002
    %v3027 = vpop.f32.mrf.mxu0
    %v3028 = vadd.f32 %v2810, %v3027
    %v3029 = vpop.f32.mrf.mxu0
    %v3030 = vadd.f32 %v2810, %v3029
    %3031 = vdwg.mxu0
    %3032 = vmatpush.bf16.msra.mxu0 0
    %3033 = vmatpush.bf16.msra.mxu0 0
    %3034 = vmatpush.bf16.msra.mxu0 0
    %3035 = vmatpush.bf16.msra.mxu0 0
    %3036 = vmatpush.bf16.msra.mxu0 0
    %3037 = vmatpush.bf16.msra.mxu0 0
    %3038 = vmatpush.bf16.msra.mxu0 %v2955
    %3039 = vmatpush.bf16.msra.mxu0 %v2939
    %3040 = vmatmul.bf16.gmra.mxu0 %v3002
    %v3041 = vpop.f32.mrf.mxu0
    %v3042 = vadd.f32 %v2811, %v3041
    %v3043 = vpop.f32.mrf.mxu0
    %v3044 = vadd.f32 %v2811, %v3043
    %3045 = vdwg.mxu0
    %3046 = vmatpush.bf16.msra.mxu0 0
    %3047 = vmatpush.bf16.msra.mxu0 0
    %3048 = vmatpush.bf16.msra.mxu0 0
    %3049 = vmatpush.bf16.msra.mxu0 0
    %3050 = vmatpush.bf16.msra.mxu0 0
    %3051 = vmatpush.bf16.msra.mxu0 0
    %3052 = vmatpush.bf16.msra.mxu0 %v2956
    %3053 = vmatpush.bf16.msra.mxu0 %v2940
    %3054 = vmatmul.bf16.gmra.mxu0 %v3002
    %v3055 = vpop.f32.mrf.mxu0
    %v3056 = vadd.f32 %v2812, %v3055
    %v3057 = vpop.f32.mrf.mxu0
    %v3058 = vadd.f32 %v2812, %v3057
    %3059 = vdwg.mxu0
    %3060 = vmatpush.bf16.msra.mxu0 0
    %3061 = vmatpush.bf16.msra.mxu0 0
    %3062 = vmatpush.bf16.msra.mxu0 0
    %3063 = vmatpush.bf16.msra.mxu0 0
    %3064 = vmatpush.bf16.msra.mxu0 0
    %3065 = vmatpush.bf16.msra.mxu0 0
    %3066 = vmatpush.bf16.msra.mxu0 %v2957
    %3067 = vmatpush.bf16.msra.mxu0 %v2941
    %3068 = vmatmul.bf16.gmra.mxu0 %v3002
    %v3069 = vpop.f32.mrf.mxu0
    %v3070 = vadd.f32 %v2813, %v3069
    %v3071 = vpop.f32.mrf.mxu0
    %v3072 = vadd.f32 %v2813, %v3071
    %3073 = vdwg.mxu0
    %3074 = vmatpush.bf16.msra.mxu0 0
    %3075 = vmatpush.bf16.msra.mxu0 0
    %3076 = vmatpush.bf16.msra.mxu0 0
    %3077 = vmatpush.bf16.msra.mxu0 0
    %3078 = vmatpush.bf16.msra.mxu0 0
    %3079 = vmatpush.bf16.msra.mxu0 0
    %3080 = vmatpush.bf16.msra.mxu0 %v2958
    %3081 = vmatpush.bf16.msra.mxu0 %v2942
    %3082 = vmatmul.bf16.gmra.mxu0 %v3002
    %v3083 = vpop.f32.mrf.mxu0
    %v3084 = vadd.f32 %v2814, %v3083
    %v3085 = vpop.f32.mrf.mxu0
    %v3086 = vadd.f32 %v2814, %v3085
    %3087 = vdwg.mxu0
    %3088 = vmatpush.bf16.msra.mxu0 0
    %3089 = vmatpush.bf16.msra.mxu0 0
    %3090 = vmatpush.bf16.msra.mxu0 0
    %3091 = vmatpush.bf16.msra.mxu0 0
    %3092 = vmatpush.bf16.msra.mxu0 0
    %3093 = vmatpush.bf16.msra.mxu0 0
    %3094 = vmatpush.bf16.msra.mxu0 %v2959
    %3095 = vmatpush.bf16.msra.mxu0 %v2943
    %3096 = vmatmul.bf16.gmra.mxu0 %v3002
    %v3097 = vpop.f32.mrf.mxu0
    %v3098 = vadd.f32 %v2815, %v3097
    %v3099 = vpop.f32.mrf.mxu0
    %v3100 = vadd.f32 %v2815, %v3099
    %3101 = vdwg.mxu0
    %3102 = vmatpush.bf16.msra.mxu0 0
    %3103 = vmatpush.bf16.msra.mxu0 0
    %3104 = vmatpush.bf16.msra.mxu0 0
    %3105 = vmatpush.bf16.msra.mxu0 0
    %3106 = vmatpush.bf16.msra.mxu0 0
    %3107 = vmatpush.bf16.msra.mxu0 0
    %3108 = vmatpush.bf16.msra.mxu0 %v2960
    %3109 = vmatpush.bf16.msra.mxu0 %v2944
    %3110 = vmatmul.bf16.gmra.mxu0 %v3002
    %v3111 = vpop.f32.mrf.mxu0
    %v3112 = vadd.f32 %v2816, %v3111
    %v3113 = vpop.f32.mrf.mxu0
    %v3114 = vadd.f32 %v2816, %v3113
    %3115 = vdwg.mxu0
    %3116 = vmatpush.bf16.msra.mxu0 0
    %3117 = vmatpush.bf16.msra.mxu0 0
    %3118 = vmatpush.bf16.msra.mxu0 0
    %3119 = vmatpush.bf16.msra.mxu0 0
    %3120 = vmatpush.bf16.msra.mxu0 0
    %3121 = vmatpush.bf16.msra.mxu0 0
    %3122 = vmatpush.bf16.msra.mxu0 %v2961
    %3123 = vmatpush.bf16.msra.mxu0 %v2945
    %3124 = vmatmul.bf16.gmra.mxu0 %v3002
    %v3125 = vpop.f32.mrf.mxu0
    %v3126 = vadd.f32 %v2817, %v3125
    %v3127 = vpop.f32.mrf.mxu0
    %v3128 = vadd.f32 %v2817, %v3127
    %3129 = vdwg.mxu0
    %3130 = vmatpush.bf16.msra.mxu0 0
    %3131 = vmatpush.bf16.msra.mxu0 0
    %3132 = vmatpush.bf16.msra.mxu0 0
    %3133 = vmatpush.bf16.msra.mxu0 0
    %3134 = vmatpush.bf16.msra.mxu0 0
    %3135 = vmatpush.bf16.msra.mxu0 0
    %3136 = vmatpush.bf16.msra.mxu0 %v2962
    %3137 = vmatpush.bf16.msra.mxu0 %v2946
    %3138 = vmatmul.bf16.gmra.mxu0 %v3002
    %v3139 = vpop.f32.mrf.mxu0
    %v3140 = vadd.f32 %v2818, %v3139
    %v3141 = vpop.f32.mrf.mxu0
    %v3142 = vadd.f32 %v2818, %v3141
    %3143 = vdwg.mxu0
    %3144 = vmatpush.bf16.msra.mxu0 0
    %3145 = vmatpush.bf16.msra.mxu0 0
    %3146 = vmatpush.bf16.msra.mxu0 0
    %3147 = vmatpush.bf16.msra.mxu0 0
    %3148 = vmatpush.bf16.msra.mxu0 0
    %3149 = vmatpush.bf16.msra.mxu0 0
    %3150 = vmatpush.bf16.msra.mxu0 %v2963
    %3151 = vmatpush.bf16.msra.mxu0 %v2947
    %3152 = vmatmul.bf16.gmra.mxu0 %v3002
    %v3153 = vpop.f32.mrf.mxu0
    %v3154 = vadd.f32 %v2819, %v3153
    %v3155 = vpop.f32.mrf.mxu0
    %v3156 = vadd.f32 %v2819, %v3155
    %3157 = vdwg.mxu0
    %3158 = vmatpush.bf16.msra.mxu0 0
    %3159 = vmatpush.bf16.msra.mxu0 0
    %3160 = vmatpush.bf16.msra.mxu0 0
    %3161 = vmatpush.bf16.msra.mxu0 0
    %3162 = vmatpush.bf16.msra.mxu0 0
    %3163 = vmatpush.bf16.msra.mxu0 0
    %3164 = vmatpush.bf16.msra.mxu0 %v2964
    %3165 = vmatpush.bf16.msra.mxu0 %v2948
    %3166 = vmatmul.bf16.gmra.mxu0 %v3002
    %v3167 = vpop.f32.mrf.mxu0
    %v3168 = vadd.f32 %v2820, %v3167
    %v3169 = vpop.f32.mrf.mxu0
    %v3170 = vadd.f32 %v2820, %v3169
    %3171 = vdwg.mxu0
    %3172 = vmatpush.bf16.msra.mxu0 0
    %3173 = vmatpush.bf16.msra.mxu0 0
    %3174 = vmatpush.bf16.msra.mxu0 0
    %3175 = vmatpush.bf16.msra.mxu0 0
    %3176 = vmatpush.bf16.msra.mxu0 0
    %3177 = vmatpush.bf16.msra.mxu0 0
    %3178 = vmatpush.bf16.msra.mxu0 %v2965
    %3179 = vmatpush.bf16.msra.mxu0 %v2949
    %3180 = vmatmul.bf16.gmra.mxu0 %v3002
    %v3181 = vpop.f32.mrf.mxu0
    %v3182 = vadd.f32 %v2821, %v3181
    %v3183 = vpop.f32.mrf.mxu0
    %v3184 = vadd.f32 %v2821, %v3183
    %3185 = vdwg.mxu0
    %3186 = vmatpush.bf16.msra.mxu0 0
    %3187 = vmatpush.bf16.msra.mxu0 0
    %3188 = vmatpush.bf16.msra.mxu0 0
    %3189 = vmatpush.bf16.msra.mxu0 0
    %3190 = vmatpush.bf16.msra.mxu0 0
    %3191 = vmatpush.bf16.msra.mxu0 0
    %3192 = vmatpush.bf16.msra.mxu0 %v2966
    %3193 = vmatpush.bf16.msra.mxu0 %v2950
    %3194 = vmatmul.bf16.gmra.mxu0 %v3002
    %v3195 = vpop.f32.mrf.mxu0
    %v3196 = vadd.f32 %v2822, %v3195
    %v3197 = vpop.f32.mrf.mxu0
    %v3198 = vadd.f32 %v2822, %v3197
    %3199 = vdwg.mxu0
    %3200 = vmatpush.bf16.msra.mxu0 0
    %3201 = vmatpush.bf16.msra.mxu0 0
    %3202 = vmatpush.bf16.msra.mxu0 0
    %3203 = vmatpush.bf16.msra.mxu0 0
    %3204 = vmatpush.bf16.msra.mxu0 0
    %3205 = vmatpush.bf16.msra.mxu0 0
    %3206 = vmatpush.bf16.msra.mxu0 %v2967
    %3207 = vmatpush.bf16.msra.mxu0 %v2951
    %3208 = vmatmul.bf16.gmra.mxu0 %v3002
    %v3209 = vpop.f32.mrf.mxu0
    %v3210 = vadd.f32 %v2823, %v3209
    %v3211 = vpop.f32.mrf.mxu0
    %v3212 = vadd.f32 %v2823, %v3211
    %3213 = vdwg.mxu0
    %3214 = vmatpush.bf16.msra.mxu0 0
    %3215 = vmatpush.bf16.msra.mxu0 0
    %3216 = vmatpush.bf16.msra.mxu0 0
    %3217 = vmatpush.bf16.msra.mxu0 0
    %3218 = vmatpush.bf16.msra.mxu0 0
    %3219 = vmatpush.bf16.msra.mxu0 0
    %3220 = vmatpush.bf16.msra.mxu0 %v2968
    %3221 = vmatpush.bf16.msra.mxu0 %v2952
    %3222 = vmatmul.bf16.gmra.mxu0 %v3002
    %v3223 = vpop.f32.mrf.mxu0
    %v3224 = vadd.f32 %v2824, %v3223
    %v3225 = vpop.f32.mrf.mxu0
    %v3226 = vadd.f32 %v2824, %v3225
    %3227 = vdwg.mxu0
    %v3228 = vmax.f32 %v3014, 0.0
    %v3229 = vmax.f32 %v3028, 0.0
    %v3230 = vmax.f32 %v3042, 0.0
    %v3231 = vmax.f32 %v3056, 0.0
    %v3232 = vmax.f32 %v3070, 0.0
    %v3233 = vmax.f32 %v3084, 0.0
    %v3234 = vmax.f32 %v3098, 0.0
    %v3235 = vmax.f32 %v3112, 0.0
    %v3236 = vmax.f32 %v3126, 0.0
    %v3237 = vmax.f32 %v3140, 0.0
    %v3238 = vmax.f32 %v3154, 0.0
    %v3239 = vmax.f32 %v3168, 0.0
    %v3240 = vmax.f32 %v3182, 0.0
    %v3241 = vmax.f32 %v3196, 0.0
    %v3242 = vmax.f32 %v3210, 0.0
    %v3243 = vmax.f32 %v3224, 0.0
    %v3244 = vmax.f32 %v3016, 0.0
    %v3245 = vmax.f32 %v3030, 0.0
    %v3246 = vmax.f32 %v3044, 0.0
    %v3247 = vmax.f32 %v3058, 0.0
    %v3248 = vmax.f32 %v3072, 0.0
    %v3249 = vmax.f32 %v3086, 0.0
    %v3250 = vmax.f32 %v3100, 0.0
    %v3251 = vmax.f32 %v3114, 0.0
    %v3252 = vmax.f32 %v3128, 0.0
    %v3253 = vmax.f32 %v3142, 0.0
    %v3254 = vmax.f32 %v3156, 0.0
    %v3255 = vmax.f32 %v3170, 0.0
    %v3256 = vmax.f32 %v3184, 0.0
    %v3257 = vmax.f32 %v3198, 0.0
    %v3258 = vmax.f32 %v3212, 0.0
    %v3259 = vmax.f32 %v3226, 0.0
    %v3260 = vpack.c.bf16 %v3244, %v3228
    %v3261 = vpack.c.bf16 %v3245, %v3229
    %v3262 = vpack.c.bf16 %v3246, %v3230
    %v3263 = vpack.c.bf16 %v3247, %v3231
    %v3264 = vpack.c.bf16 %v3248, %v3232
    %v3265 = vpack.c.bf16 %v3249, %v3233
    %v3266 = vpack.c.bf16 %v3250, %v3234
    %v3267 = vpack.c.bf16 %v3251, %v3235
    %v3268 = vpack.c.bf16 %v3252, %v3236
    %v3269 = vpack.c.bf16 %v3253, %v3237
    %v3270 = vpack.c.bf16 %v3254, %v3238
    %v3271 = vpack.c.bf16 %v3255, %v3239
    %v3272 = vpack.c.bf16 %v3256, %v3240
    %v3273 = vpack.c.bf16 %v3257, %v3241
    %v3274 = vpack.c.bf16 %v3258, %v3242
    %v3275 = vpack.c.bf16 %v3259, %v3243
    %s3276 = scalar_lea.vmem %s8, 1024
    %v3277 = vld [vmem:[%s3276] sm:$0xf]
    %v3278 = vld [vmem:[%s3276 + $0x4] sm:$0xf]
    %v3279 = vld [vmem:[%s3276 + $0x8] sm:$0xf]
    %v3280 = vld [vmem:[%s3276 + $0xc] sm:$0xf]
    %v3281 = vld [vmem:[%s3276 + $0x10] sm:$0xf]
    %v3282 = vld [vmem:[%s3276 + $0x14] sm:$0xf]
    %v3283 = vld [vmem:[%s3276 + $0x18] sm:$0xf]
    %v3284 = vld [vmem:[%s3276 + $0x1c] sm:$0xf]
    %v3285 = vld [vmem:[%s3276 + $0x20] sm:$0xf]
    %v3286 = vld [vmem:[%s3276 + $0x24] sm:$0xf]
    %v3287 = vld [vmem:[%s3276 + $0x28] sm:$0xf]
    %v3288 = vld [vmem:[%s3276 + $0x2c] sm:$0xf]
    %v3289 = vld [vmem:[%s3276 + $0x30] sm:$0xf]
    %v3290 = vld [vmem:[%s3276 + $0x34] sm:$0xf]
    %v3291 = vld [vmem:[%s3276 + $0x38] sm:$0xf]
    %v3292 = vld [vmem:[%s3276 + $0x3c] sm:$0xf]
    %v3293 = vld [vmem:[%s3276 + $0x40] sm:$0xf]
    %v3294 = vld [vmem:[%s3276 + $0x44] sm:$0xf]
    %v3295 = vld [vmem:[%s3276 + $0x48] sm:$0xf]
    %v3296 = vld [vmem:[%s3276 + $0x4c] sm:$0xf]
    %v3297 = vld [vmem:[%s3276 + $0x50] sm:$0xf]
    %v3298 = vld [vmem:[%s3276 + $0x54] sm:$0xf]
    %v3299 = vld [vmem:[%s3276 + $0x58] sm:$0xf]
    %v3300 = vld [vmem:[%s3276 + $0x5c] sm:$0xf]
    %v3301 = vld [vmem:[%s3276 + $0x60] sm:$0xf]
    %v3302 = vld [vmem:[%s3276 + $0x64] sm:$0xf]
    %v3303 = vld [vmem:[%s3276 + $0x68] sm:$0xf]
    %v3304 = vld [vmem:[%s3276 + $0x6c] sm:$0xf]
    %v3305 = vld [vmem:[%s3276 + $0x70] sm:$0xf]
    %v3306 = vld [vmem:[%s3276 + $0x74] sm:$0xf]
    %v3307 = vld [vmem:[%s3276 + $0x78] sm:$0xf]
    %v3308 = vld [vmem:[%s3276 + $0x7c] sm:$0xf]
    %v3309 = vld [vmem:[%s3276 + $0x80] sm:$0xf]
    %v3310 = vld [vmem:[%s3276 + $0x84] sm:$0xf]
    %v3311 = vld [vmem:[%s3276 + $0x88] sm:$0xf]
    %v3312 = vld [vmem:[%s3276 + $0x8c] sm:$0xf]
    %v3313 = vld [vmem:[%s3276 + $0x90] sm:$0xf]
    %v3314 = vld [vmem:[%s3276 + $0x94] sm:$0xf]
    %v3315 = vld [vmem:[%s3276 + $0x98] sm:$0xf]
    %v3316 = vld [vmem:[%s3276 + $0x9c] sm:$0xf]
    %v3317 = vld [vmem:[%s3276 + $0xa0] sm:$0xf]
    %v3318 = vld [vmem:[%s3276 + $0xa4] sm:$0xf]
    %v3319 = vld [vmem:[%s3276 + $0xa8] sm:$0xf]
    %v3320 = vld [vmem:[%s3276 + $0xac] sm:$0xf]
    %v3321 = vld [vmem:[%s3276 + $0xb0] sm:$0xf]
    %v3322 = vld [vmem:[%s3276 + $0xb4] sm:$0xf]
    %v3323 = vld [vmem:[%s3276 + $0xb8] sm:$0xf]
    %v3324 = vld [vmem:[%s3276 + $0xbc] sm:$0xf]
    %v3325 = vld [vmem:[%s3276 + $0xc0] sm:$0xf]
    %v3326 = vld [vmem:[%s3276 + $0xc4] sm:$0xf]
    %v3327 = vld [vmem:[%s3276 + $0xc8] sm:$0xf]
    %v3328 = vld [vmem:[%s3276 + $0xcc] sm:$0xf]
    %v3329 = vld [vmem:[%s3276 + $0xd0] sm:$0xf]
    %v3330 = vld [vmem:[%s3276 + $0xd4] sm:$0xf]
    %v3331 = vld [vmem:[%s3276 + $0xd8] sm:$0xf]
    %v3332 = vld [vmem:[%s3276 + $0xdc] sm:$0xf]
    %v3333 = vld [vmem:[%s3276 + $0xe0] sm:$0xf]
    %v3334 = vld [vmem:[%s3276 + $0xe4] sm:$0xf]
    %v3335 = vld [vmem:[%s3276 + $0xe8] sm:$0xf]
    %v3336 = vld [vmem:[%s3276 + $0xec] sm:$0xf]
    %v3337 = vld [vmem:[%s3276 + $0xf0] sm:$0xf]
    %v3338 = vld [vmem:[%s3276 + $0xf4] sm:$0xf]
    %v3339 = vld [vmem:[%s3276 + $0xf8] sm:$0xf]
    %v3340 = vld [vmem:[%s3276 + $0xfc] sm:$0xf]
    %v3341 = vld [vmem:[%s3276 + $0x100] sm:$0xf]
    %v3342 = vld [vmem:[%s3276 + $0x104] sm:$0xf]
    %v3343 = vld [vmem:[%s3276 + $0x108] sm:$0xf]
    %v3344 = vld [vmem:[%s3276 + $0x10c] sm:$0xf]
    %v3345 = vld [vmem:[%s3276 + $0x110] sm:$0xf]
    %v3346 = vld [vmem:[%s3276 + $0x114] sm:$0xf]
    %v3347 = vld [vmem:[%s3276 + $0x118] sm:$0xf]
    %v3348 = vld [vmem:[%s3276 + $0x11c] sm:$0xf]
    %v3349 = vld [vmem:[%s3276 + $0x120] sm:$0xf]
    %v3350 = vld [vmem:[%s3276 + $0x124] sm:$0xf]
    %v3351 = vld [vmem:[%s3276 + $0x128] sm:$0xf]
    %v3352 = vld [vmem:[%s3276 + $0x12c] sm:$0xf]
    %v3353 = vld [vmem:[%s3276 + $0x130] sm:$0xf]
    %v3354 = vld [vmem:[%s3276 + $0x134] sm:$0xf]
    %v3355 = vld [vmem:[%s3276 + $0x138] sm:$0xf]
    %v3356 = vld [vmem:[%s3276 + $0x13c] sm:$0xf]
    %v3357 = vld [vmem:[%s3276 + $0x140] sm:$0xf]
    %v3358 = vld [vmem:[%s3276 + $0x144] sm:$0xf]
    %v3359 = vld [vmem:[%s3276 + $0x148] sm:$0xf]
    %v3360 = vld [vmem:[%s3276 + $0x14c] sm:$0xf]
    %v3361 = vld [vmem:[%s3276 + $0x150] sm:$0xf]
    %v3362 = vld [vmem:[%s3276 + $0x154] sm:$0xf]
    %v3363 = vld [vmem:[%s3276 + $0x158] sm:$0xf]
    %v3364 = vld [vmem:[%s3276 + $0x15c] sm:$0xf]
    %v3365 = vld [vmem:[%s3276 + $0x160] sm:$0xf]
    %v3366 = vld [vmem:[%s3276 + $0x164] sm:$0xf]
    %v3367 = vld [vmem:[%s3276 + $0x168] sm:$0xf]
    %v3368 = vld [vmem:[%s3276 + $0x16c] sm:$0xf]
    %v3369 = vld [vmem:[%s3276 + $0x170] sm:$0xf]
    %v3370 = vld [vmem:[%s3276 + $0x174] sm:$0xf]
    %v3371 = vld [vmem:[%s3276 + $0x178] sm:$0xf]
    %v3372 = vld [vmem:[%s3276 + $0x17c] sm:$0xf]
    %v3373 = vld [vmem:[%s3276 + $0x180] sm:$0xf]
    %v3374 = vld [vmem:[%s3276 + $0x184] sm:$0xf]
    %v3375 = vld [vmem:[%s3276 + $0x188] sm:$0xf]
    %v3376 = vld [vmem:[%s3276 + $0x18c] sm:$0xf]
    %v3377 = vld [vmem:[%s3276 + $0x190] sm:$0xf]
    %v3378 = vld [vmem:[%s3276 + $0x194] sm:$0xf]
    %v3379 = vld [vmem:[%s3276 + $0x198] sm:$0xf]
    %v3380 = vld [vmem:[%s3276 + $0x19c] sm:$0xf]
    %v3381 = vld [vmem:[%s3276 + $0x1a0] sm:$0xf]
    %v3382 = vld [vmem:[%s3276 + $0x1a4] sm:$0xf]
    %v3383 = vld [vmem:[%s3276 + $0x1a8] sm:$0xf]
    %v3384 = vld [vmem:[%s3276 + $0x1ac] sm:$0xf]
    %v3385 = vld [vmem:[%s3276 + $0x1b0] sm:$0xf]
    %v3386 = vld [vmem:[%s3276 + $0x1b4] sm:$0xf]
    %v3387 = vld [vmem:[%s3276 + $0x1b8] sm:$0xf]
    %v3388 = vld [vmem:[%s3276 + $0x1bc] sm:$0xf]
    %v3389 = vld [vmem:[%s3276 + $0x1c0] sm:$0xf]
    %v3390 = vld [vmem:[%s3276 + $0x1c4] sm:$0xf]
    %v3391 = vld [vmem:[%s3276 + $0x1c8] sm:$0xf]
    %v3392 = vld [vmem:[%s3276 + $0x1cc] sm:$0xf]
    %v3393 = vld [vmem:[%s3276 + $0x1d0] sm:$0xf]
    %v3394 = vld [vmem:[%s3276 + $0x1d4] sm:$0xf]
    %v3395 = vld [vmem:[%s3276 + $0x1d8] sm:$0xf]
    %v3396 = vld [vmem:[%s3276 + $0x1dc] sm:$0xf]
    %v3397 = vld [vmem:[%s3276 + $0x1e0] sm:$0xf]
    %v3398 = vld [vmem:[%s3276 + $0x1e4] sm:$0xf]
    %v3399 = vld [vmem:[%s3276 + $0x1e8] sm:$0xf]
    %v3400 = vld [vmem:[%s3276 + $0x1ec] sm:$0xf]
    %v3401 = vld [vmem:[%s3276 + $0x1f0] sm:$0xf]
    %v3402 = vld [vmem:[%s3276 + $0x1f4] sm:$0xf]
    %v3403 = vld [vmem:[%s3276 + $0x1f8] sm:$0xf]
    %v3404 = vld [vmem:[%s3276 + $0x1fc] sm:$0xf]
    %v3405 = vld [vmem:[%s3276 + $0x200] sm:$0xf]
    %v3406 = vld [vmem:[%s3276 + $0x204] sm:$0xf]
    %v3407 = vld [vmem:[%s3276 + $0x208] sm:$0xf]
    %v3408 = vld [vmem:[%s3276 + $0x20c] sm:$0xf]
    %v3409 = vld [vmem:[%s3276 + $0x210] sm:$0xf]
    %v3410 = vld [vmem:[%s3276 + $0x214] sm:$0xf]
    %v3411 = vld [vmem:[%s3276 + $0x218] sm:$0xf]
    %v3412 = vld [vmem:[%s3276 + $0x21c] sm:$0xf]
    %v3413 = vld [vmem:[%s3276 + $0x220] sm:$0xf]
    %v3414 = vld [vmem:[%s3276 + $0x224] sm:$0xf]
    %v3415 = vld [vmem:[%s3276 + $0x228] sm:$0xf]
    %v3416 = vld [vmem:[%s3276 + $0x22c] sm:$0xf]
    %v3417 = vld [vmem:[%s3276 + $0x230] sm:$0xf]
    %v3418 = vld [vmem:[%s3276 + $0x234] sm:$0xf]
    %v3419 = vld [vmem:[%s3276 + $0x238] sm:$0xf]
    %v3420 = vld [vmem:[%s3276 + $0x23c] sm:$0xf]
    %v3421 = vld [vmem:[%s3276 + $0x240] sm:$0xf]
    %v3422 = vld [vmem:[%s3276 + $0x244] sm:$0xf]
    %v3423 = vld [vmem:[%s3276 + $0x248] sm:$0xf]
    %v3424 = vld [vmem:[%s3276 + $0x24c] sm:$0xf]
    %v3425 = vld [vmem:[%s3276 + $0x250] sm:$0xf]
    %v3426 = vld [vmem:[%s3276 + $0x254] sm:$0xf]
    %v3427 = vld [vmem:[%s3276 + $0x258] sm:$0xf]
    %v3428 = vld [vmem:[%s3276 + $0x25c] sm:$0xf]
    %v3429 = vld [vmem:[%s3276 + $0x260] sm:$0xf]
    %v3430 = vld [vmem:[%s3276 + $0x264] sm:$0xf]
    %v3431 = vld [vmem:[%s3276 + $0x268] sm:$0xf]
    %v3432 = vld [vmem:[%s3276 + $0x26c] sm:$0xf]
    %v3433 = vld [vmem:[%s3276 + $0x270] sm:$0xf]
    %v3434 = vld [vmem:[%s3276 + $0x274] sm:$0xf]
    %v3435 = vld [vmem:[%s3276 + $0x278] sm:$0xf]
    %v3436 = vld [vmem:[%s3276 + $0x27c] sm:$0xf]
    %v3437 = vld [vmem:[%s3276 + $0x280] sm:$0xf]
    %v3438 = vld [vmem:[%s3276 + $0x284] sm:$0xf]
    %v3439 = vld [vmem:[%s3276 + $0x288] sm:$0xf]
    %v3440 = vld [vmem:[%s3276 + $0x28c] sm:$0xf]
    %v3441 = vld [vmem:[%s3276 + $0x290] sm:$0xf]
    %v3442 = vld [vmem:[%s3276 + $0x294] sm:$0xf]
    %v3443 = vld [vmem:[%s3276 + $0x298] sm:$0xf]
    %v3444 = vld [vmem:[%s3276 + $0x29c] sm:$0xf]
    %v3445 = vld [vmem:[%s3276 + $0x2a0] sm:$0xf]
    %v3446 = vld [vmem:[%s3276 + $0x2a4] sm:$0xf]
    %v3447 = vld [vmem:[%s3276 + $0x2a8] sm:$0xf]
    %v3448 = vld [vmem:[%s3276 + $0x2ac] sm:$0xf]
    %v3449 = vld [vmem:[%s3276 + $0x2b0] sm:$0xf]
    %v3450 = vld [vmem:[%s3276 + $0x2b4] sm:$0xf]
    %v3451 = vld [vmem:[%s3276 + $0x2b8] sm:$0xf]
    %v3452 = vld [vmem:[%s3276 + $0x2bc] sm:$0xf]
    %v3453 = vld [vmem:[%s3276 + $0x2c0] sm:$0xf]
    %v3454 = vld [vmem:[%s3276 + $0x2c4] sm:$0xf]
    %v3455 = vld [vmem:[%s3276 + $0x2c8] sm:$0xf]
    %v3456 = vld [vmem:[%s3276 + $0x2cc] sm:$0xf]
    %v3457 = vld [vmem:[%s3276 + $0x2d0] sm:$0xf]
    %v3458 = vld [vmem:[%s3276 + $0x2d4] sm:$0xf]
    %v3459 = vld [vmem:[%s3276 + $0x2d8] sm:$0xf]
    %v3460 = vld [vmem:[%s3276 + $0x2dc] sm:$0xf]
    %v3461 = vld [vmem:[%s3276 + $0x2e0] sm:$0xf]
    %v3462 = vld [vmem:[%s3276 + $0x2e4] sm:$0xf]
    %v3463 = vld [vmem:[%s3276 + $0x2e8] sm:$0xf]
    %v3464 = vld [vmem:[%s3276 + $0x2ec] sm:$0xf]
    %v3465 = vld [vmem:[%s3276 + $0x2f0] sm:$0xf]
    %v3466 = vld [vmem:[%s3276 + $0x2f4] sm:$0xf]
    %v3467 = vld [vmem:[%s3276 + $0x2f8] sm:$0xf]
    %v3468 = vld [vmem:[%s3276 + $0x2fc] sm:$0xf]
    %v3469 = vld [vmem:[%s3276 + $0x300] sm:$0xf]
    %v3470 = vld [vmem:[%s3276 + $0x304] sm:$0xf]
    %v3471 = vld [vmem:[%s3276 + $0x308] sm:$0xf]
    %v3472 = vld [vmem:[%s3276 + $0x30c] sm:$0xf]
    %v3473 = vld [vmem:[%s3276 + $0x310] sm:$0xf]
    %v3474 = vld [vmem:[%s3276 + $0x314] sm:$0xf]
    %v3475 = vld [vmem:[%s3276 + $0x318] sm:$0xf]
    %v3476 = vld [vmem:[%s3276 + $0x31c] sm:$0xf]
    %v3477 = vld [vmem:[%s3276 + $0x320] sm:$0xf]
    %v3478 = vld [vmem:[%s3276 + $0x324] sm:$0xf]
    %v3479 = vld [vmem:[%s3276 + $0x328] sm:$0xf]
    %v3480 = vld [vmem:[%s3276 + $0x32c] sm:$0xf]
    %v3481 = vld [vmem:[%s3276 + $0x330] sm:$0xf]
    %v3482 = vld [vmem:[%s3276 + $0x334] sm:$0xf]
    %v3483 = vld [vmem:[%s3276 + $0x338] sm:$0xf]
    %v3484 = vld [vmem:[%s3276 + $0x33c] sm:$0xf]
    %v3485 = vld [vmem:[%s3276 + $0x340] sm:$0xf]
    %v3486 = vld [vmem:[%s3276 + $0x344] sm:$0xf]
    %v3487 = vld [vmem:[%s3276 + $0x348] sm:$0xf]
    %v3488 = vld [vmem:[%s3276 + $0x34c] sm:$0xf]
    %v3489 = vld [vmem:[%s3276 + $0x350] sm:$0xf]
    %v3490 = vld [vmem:[%s3276 + $0x354] sm:$0xf]
    %v3491 = vld [vmem:[%s3276 + $0x358] sm:$0xf]
    %v3492 = vld [vmem:[%s3276 + $0x35c] sm:$0xf]
    %v3493 = vld [vmem:[%s3276 + $0x360] sm:$0xf]
    %v3494 = vld [vmem:[%s3276 + $0x364] sm:$0xf]
    %v3495 = vld [vmem:[%s3276 + $0x368] sm:$0xf]
    %v3496 = vld [vmem:[%s3276 + $0x36c] sm:$0xf]
    %v3497 = vld [vmem:[%s3276 + $0x370] sm:$0xf]
    %v3498 = vld [vmem:[%s3276 + $0x374] sm:$0xf]
    %v3499 = vld [vmem:[%s3276 + $0x378] sm:$0xf]
    %v3500 = vld [vmem:[%s3276 + $0x37c] sm:$0xf]
    %v3501 = vld [vmem:[%s3276 + $0x380] sm:$0xf]
    %v3502 = vld [vmem:[%s3276 + $0x384] sm:$0xf]
    %v3503 = vld [vmem:[%s3276 + $0x388] sm:$0xf]
    %v3504 = vld [vmem:[%s3276 + $0x38c] sm:$0xf]
    %v3505 = vld [vmem:[%s3276 + $0x390] sm:$0xf]
    %v3506 = vld [vmem:[%s3276 + $0x394] sm:$0xf]
    %v3507 = vld [vmem:[%s3276 + $0x398] sm:$0xf]
    %v3508 = vld [vmem:[%s3276 + $0x39c] sm:$0xf]
    %v3509 = vld [vmem:[%s3276 + $0x3a0] sm:$0xf]
    %v3510 = vld [vmem:[%s3276 + $0x3a4] sm:$0xf]
    %v3511 = vld [vmem:[%s3276 + $0x3a8] sm:$0xf]
    %v3512 = vld [vmem:[%s3276 + $0x3ac] sm:$0xf]
    %v3513 = vld [vmem:[%s3276 + $0x3b0] sm:$0xf]
    %v3514 = vld [vmem:[%s3276 + $0x3b4] sm:$0xf]
    %v3515 = vld [vmem:[%s3276 + $0x3b8] sm:$0xf]
    %v3516 = vld [vmem:[%s3276 + $0x3bc] sm:$0xf]
    %v3517 = vld [vmem:[%s3276 + $0x3c0] sm:$0xf]
    %v3518 = vld [vmem:[%s3276 + $0x3c4] sm:$0xf]
    %v3519 = vld [vmem:[%s3276 + $0x3c8] sm:$0xf]
    %v3520 = vld [vmem:[%s3276 + $0x3cc] sm:$0xf]
    %v3521 = vld [vmem:[%s3276 + $0x3d0] sm:$0xf]
    %v3522 = vld [vmem:[%s3276 + $0x3d4] sm:$0xf]
    %v3523 = vld [vmem:[%s3276 + $0x3d8] sm:$0xf]
    %v3524 = vld [vmem:[%s3276 + $0x3dc] sm:$0xf]
    %v3525 = vld [vmem:[%s3276 + $0x3e0] sm:$0xf]
    %v3526 = vld [vmem:[%s3276 + $0x3e4] sm:$0xf]
    %v3527 = vld [vmem:[%s3276 + $0x3e8] sm:$0xf]
    %v3528 = vld [vmem:[%s3276 + $0x3ec] sm:$0xf]
    %v3529 = vld [vmem:[%s3276 + $0x3f0] sm:$0xf]
    %v3530 = vld [vmem:[%s3276 + $0x3f4] sm:$0xf]
    %v3531 = vld [vmem:[%s3276 + $0x3f8] sm:$0xf]
    %v3532 = vld [vmem:[%s3276 + $0x3fc] sm:$0xf]
    %v3533 = vld [vmem:[%s6 + $0x14] sm:$0x1]
    %v3534 = vperm.slane %v3533, 0
    %v3791 = vunpack.c.l.b16 %v3277
    %v3792 = vunpack.c.l.b16 %v3278
    %v3793 = vunpack.c.l.b16 %v3279
    %v3794 = vunpack.c.l.b16 %v3280
    %v3795 = vunpack.c.l.b16 %v3281
    %v3796 = vunpack.c.l.b16 %v3282
    %v3797 = vunpack.c.l.b16 %v3283
    %v3798 = vunpack.c.l.b16 %v3284
    %v3799 = vunpack.c.l.b16 %v3285
    %v3800 = vunpack.c.l.b16 %v3286
    %v3801 = vunpack.c.l.b16 %v3287
    %v3802 = vunpack.c.l.b16 %v3288
    %v3803 = vunpack.c.l.b16 %v3289
    %v3804 = vunpack.c.l.b16 %v3290
    %v3805 = vunpack.c.l.b16 %v3291
    %v3806 = vunpack.c.l.b16 %v3292
    %v3807 = vunpack.c.l.b16 %v3293
    %v3808 = vunpack.c.l.b16 %v3294
    %v3809 = vunpack.c.l.b16 %v3295
    %v3810 = vunpack.c.l.b16 %v3296
    %v3811 = vunpack.c.l.b16 %v3297
    %v3812 = vunpack.c.l.b16 %v3298
    %v3813 = vunpack.c.l.b16 %v3299
    %v3814 = vunpack.c.l.b16 %v3300
    %v3815 = vunpack.c.l.b16 %v3301
    %v3816 = vunpack.c.l.b16 %v3302
    %v3817 = vunpack.c.l.b16 %v3303
    %v3818 = vunpack.c.l.b16 %v3304
    %v3819 = vunpack.c.l.b16 %v3305
    %v3820 = vunpack.c.l.b16 %v3306
    %v3821 = vunpack.c.l.b16 %v3307
    %v3822 = vunpack.c.l.b16 %v3308
    %v3823 = vunpack.c.l.b16 %v3309
    %v3824 = vunpack.c.l.b16 %v3310
    %v3825 = vunpack.c.l.b16 %v3311
    %v3826 = vunpack.c.l.b16 %v3312
    %v3827 = vunpack.c.l.b16 %v3313
    %v3828 = vunpack.c.l.b16 %v3314
    %v3829 = vunpack.c.l.b16 %v3315
    %v3830 = vunpack.c.l.b16 %v3316
    %v3831 = vunpack.c.l.b16 %v3317
    %v3832 = vunpack.c.l.b16 %v3318
    %v3833 = vunpack.c.l.b16 %v3319
    %v3834 = vunpack.c.l.b16 %v3320
    %v3835 = vunpack.c.l.b16 %v3321
    %v3836 = vunpack.c.l.b16 %v3322
    %v3837 = vunpack.c.l.b16 %v3323
    %v3838 = vunpack.c.l.b16 %v3324
    %v3839 = vunpack.c.l.b16 %v3325
    %v3840 = vunpack.c.l.b16 %v3326
    %v3841 = vunpack.c.l.b16 %v3327
    %v3842 = vunpack.c.l.b16 %v3328
    %v3843 = vunpack.c.l.b16 %v3329
    %v3844 = vunpack.c.l.b16 %v3330
    %v3845 = vunpack.c.l.b16 %v3331
    %v3846 = vunpack.c.l.b16 %v3332
    %v3847 = vunpack.c.l.b16 %v3333
    %v3848 = vunpack.c.l.b16 %v3334
    %v3849 = vunpack.c.l.b16 %v3335
    %v3850 = vunpack.c.l.b16 %v3336
    %v3851 = vunpack.c.l.b16 %v3337
    %v3852 = vunpack.c.l.b16 %v3338
    %v3853 = vunpack.c.l.b16 %v3339
    %v3854 = vunpack.c.l.b16 %v3340
    %v3855 = vunpack.c.l.b16 %v3341
    %v3856 = vunpack.c.l.b16 %v3342
    %v3857 = vunpack.c.l.b16 %v3343
    %v3858 = vunpack.c.l.b16 %v3344
    %v3859 = vunpack.c.l.b16 %v3345
    %v3860 = vunpack.c.l.b16 %v3346
    %v3861 = vunpack.c.l.b16 %v3347
    %v3862 = vunpack.c.l.b16 %v3348
    %v3863 = vunpack.c.l.b16 %v3349
    %v3864 = vunpack.c.l.b16 %v3350
    %v3865 = vunpack.c.l.b16 %v3351
    %v3866 = vunpack.c.l.b16 %v3352
    %v3867 = vunpack.c.l.b16 %v3353
    %v3868 = vunpack.c.l.b16 %v3354
    %v3869 = vunpack.c.l.b16 %v3355
    %v3870 = vunpack.c.l.b16 %v3356
    %v3871 = vunpack.c.l.b16 %v3357
    %v3872 = vunpack.c.l.b16 %v3358
    %v3873 = vunpack.c.l.b16 %v3359
    %v3874 = vunpack.c.l.b16 %v3360
    %v3875 = vunpack.c.l.b16 %v3361
    %v3876 = vunpack.c.l.b16 %v3362
    %v3877 = vunpack.c.l.b16 %v3363
    %v3878 = vunpack.c.l.b16 %v3364
    %v3879 = vunpack.c.l.b16 %v3365
    %v3880 = vunpack.c.l.b16 %v3366
    %v3881 = vunpack.c.l.b16 %v3367
    %v3882 = vunpack.c.l.b16 %v3368
    %v3883 = vunpack.c.l.b16 %v3369
    %v3884 = vunpack.c.l.b16 %v3370
    %v3885 = vunpack.c.l.b16 %v3371
    %v3886 = vunpack.c.l.b16 %v3372
    %v3887 = vunpack.c.l.b16 %v3373
    %v3888 = vunpack.c.l.b16 %v3374
    %v3889 = vunpack.c.l.b16 %v3375
    %v3890 = vunpack.c.l.b16 %v3376
    %v3891 = vunpack.c.l.b16 %v3377
    %v3892 = vunpack.c.l.b16 %v3378
    %v3893 = vunpack.c.l.b16 %v3379
    %v3894 = vunpack.c.l.b16 %v3380
    %v3895 = vunpack.c.l.b16 %v3381
    %v3896 = vunpack.c.l.b16 %v3382
    %v3897 = vunpack.c.l.b16 %v3383
    %v3898 = vunpack.c.l.b16 %v3384
    %v3899 = vunpack.c.l.b16 %v3385
    %v3900 = vunpack.c.l.b16 %v3386
    %v3901 = vunpack.c.l.b16 %v3387
    %v3902 = vunpack.c.l.b16 %v3388
    %v3903 = vunpack.c.l.b16 %v3389
    %v3904 = vunpack.c.l.b16 %v3390
    %v3905 = vunpack.c.l.b16 %v3391
    %v3906 = vunpack.c.l.b16 %v3392
    %v3907 = vunpack.c.l.b16 %v3393
    %v3908 = vunpack.c.l.b16 %v3394
    %v3909 = vunpack.c.l.b16 %v3395
    %v3910 = vunpack.c.l.b16 %v3396
    %v3911 = vunpack.c.l.b16 %v3397
    %v3912 = vunpack.c.l.b16 %v3398
    %v3913 = vunpack.c.l.b16 %v3399
    %v3914 = vunpack.c.l.b16 %v3400
    %v3915 = vunpack.c.l.b16 %v3401
    %v3916 = vunpack.c.l.b16 %v3402
    %v3917 = vunpack.c.l.b16 %v3403
    %v3918 = vunpack.c.l.b16 %v3404
    %v3919 = vunpack.c.l.b16 %v3405
    %v3920 = vunpack.c.l.b16 %v3406
    %v3921 = vunpack.c.l.b16 %v3407
    %v3922 = vunpack.c.l.b16 %v3408
    %v3923 = vunpack.c.l.b16 %v3409
    %v3924 = vunpack.c.l.b16 %v3410
    %v3925 = vunpack.c.l.b16 %v3411
    %v3926 = vunpack.c.l.b16 %v3412
    %v3927 = vunpack.c.l.b16 %v3413
    %v3928 = vunpack.c.l.b16 %v3414
    %v3929 = vunpack.c.l.b16 %v3415
    %v3930 = vunpack.c.l.b16 %v3416
    %v3931 = vunpack.c.l.b16 %v3417
    %v3932 = vunpack.c.l.b16 %v3418
    %v3933 = vunpack.c.l.b16 %v3419
    %v3934 = vunpack.c.l.b16 %v3420
    %v3935 = vunpack.c.l.b16 %v3421
    %v3936 = vunpack.c.l.b16 %v3422
    %v3937 = vunpack.c.l.b16 %v3423
    %v3938 = vunpack.c.l.b16 %v3424
    %v3939 = vunpack.c.l.b16 %v3425
    %v3940 = vunpack.c.l.b16 %v3426
    %v3941 = vunpack.c.l.b16 %v3427
    %v3942 = vunpack.c.l.b16 %v3428
    %v3943 = vunpack.c.l.b16 %v3429
    %v3944 = vunpack.c.l.b16 %v3430
    %v3945 = vunpack.c.l.b16 %v3431
    %v3946 = vunpack.c.l.b16 %v3432
    %v3947 = vunpack.c.l.b16 %v3433
    %v3948 = vunpack.c.l.b16 %v3434
    %v3949 = vunpack.c.l.b16 %v3435
    %v3950 = vunpack.c.l.b16 %v3436
    %v3951 = vunpack.c.l.b16 %v3437
    %v3952 = vunpack.c.l.b16 %v3438
    %v3953 = vunpack.c.l.b16 %v3439
    %v3954 = vunpack.c.l.b16 %v3440
    %v3955 = vunpack.c.l.b16 %v3441
    %v3956 = vunpack.c.l.b16 %v3442
    %v3957 = vunpack.c.l.b16 %v3443
    %v3958 = vunpack.c.l.b16 %v3444
    %v3959 = vunpack.c.l.b16 %v3445
    %v3960 = vunpack.c.l.b16 %v3446
    %v3961 = vunpack.c.l.b16 %v3447
    %v3962 = vunpack.c.l.b16 %v3448
    %v3963 = vunpack.c.l.b16 %v3449
    %v3964 = vunpack.c.l.b16 %v3450
    %v3965 = vunpack.c.l.b16 %v3451
    %v3966 = vunpack.c.l.b16 %v3452
    %v3967 = vunpack.c.l.b16 %v3453
    %v3968 = vunpack.c.l.b16 %v3454
    %v3969 = vunpack.c.l.b16 %v3455
    %v3970 = vunpack.c.l.b16 %v3456
    %v3971 = vunpack.c.l.b16 %v3457
    %v3972 = vunpack.c.l.b16 %v3458
    %v3973 = vunpack.c.l.b16 %v3459
    %v3974 = vunpack.c.l.b16 %v3460
    %v3975 = vunpack.c.l.b16 %v3461
    %v3976 = vunpack.c.l.b16 %v3462
    %v3977 = vunpack.c.l.b16 %v3463
    %v3978 = vunpack.c.l.b16 %v3464
    %v3979 = vunpack.c.l.b16 %v3465
    %v3980 = vunpack.c.l.b16 %v3466
    %v3981 = vunpack.c.l.b16 %v3467
    %v3982 = vunpack.c.l.b16 %v3468
    %v3983 = vunpack.c.l.b16 %v3469
    %v3984 = vunpack.c.l.b16 %v3470
    %v3985 = vunpack.c.l.b16 %v3471
    %v3986 = vunpack.c.l.b16 %v3472
    %v3987 = vunpack.c.l.b16 %v3473
    %v3988 = vunpack.c.l.b16 %v3474
    %v3989 = vunpack.c.l.b16 %v3475
    %v3990 = vunpack.c.l.b16 %v3476
    %v3991 = vunpack.c.l.b16 %v3477
    %v3992 = vunpack.c.l.b16 %v3478
    %v3993 = vunpack.c.l.b16 %v3479
    %v3994 = vunpack.c.l.b16 %v3480
    %v3995 = vunpack.c.l.b16 %v3481
    %v3996 = vunpack.c.l.b16 %v3482
    %v3997 = vunpack.c.l.b16 %v3483
    %v3998 = vunpack.c.l.b16 %v3484
    %v3999 = vunpack.c.l.b16 %v3485
    %v4000 = vunpack.c.l.b16 %v3486
    %v4001 = vunpack.c.l.b16 %v3487
    %v4002 = vunpack.c.l.b16 %v3488
    %v4003 = vunpack.c.l.b16 %v3489
    %v4004 = vunpack.c.l.b16 %v3490
    %v4005 = vunpack.c.l.b16 %v3491
    %v4006 = vunpack.c.l.b16 %v3492
    %v4007 = vunpack.c.l.b16 %v3493
    %v4008 = vunpack.c.l.b16 %v3494
    %v4009 = vunpack.c.l.b16 %v3495
    %v4010 = vunpack.c.l.b16 %v3496
    %v4011 = vunpack.c.l.b16 %v3497
    %v4012 = vunpack.c.l.b16 %v3498
    %v4013 = vunpack.c.l.b16 %v3499
    %v4014 = vunpack.c.l.b16 %v3500
    %v4015 = vunpack.c.l.b16 %v3501
    %v4016 = vunpack.c.l.b16 %v3502
    %v4017 = vunpack.c.l.b16 %v3503
    %v4018 = vunpack.c.l.b16 %v3504
    %v4019 = vunpack.c.l.b16 %v3505
    %v4020 = vunpack.c.l.b16 %v3506
    %v4021 = vunpack.c.l.b16 %v3507
    %v4022 = vunpack.c.l.b16 %v3508
    %v4023 = vunpack.c.l.b16 %v3509
    %v4024 = vunpack.c.l.b16 %v3510
    %v4025 = vunpack.c.l.b16 %v3511
    %v4026 = vunpack.c.l.b16 %v3512
    %v4027 = vunpack.c.l.b16 %v3513
    %v4028 = vunpack.c.l.b16 %v3514
    %v4029 = vunpack.c.l.b16 %v3515
    %v4030 = vunpack.c.l.b16 %v3516
    %v4031 = vunpack.c.l.b16 %v3517
    %v4032 = vunpack.c.l.b16 %v3518
    %v4033 = vunpack.c.l.b16 %v3519
    %v4034 = vunpack.c.l.b16 %v3520
    %v4035 = vunpack.c.l.b16 %v3521
    %v4036 = vunpack.c.l.b16 %v3522
    %v4037 = vunpack.c.l.b16 %v3523
    %v4038 = vunpack.c.l.b16 %v3524
    %v4039 = vunpack.c.l.b16 %v3525
    %v4040 = vunpack.c.l.b16 %v3526
    %v4041 = vunpack.c.l.b16 %v3527
    %v4042 = vunpack.c.l.b16 %v3528
    %v4043 = vunpack.c.l.b16 %v3529
    %v4044 = vunpack.c.l.b16 %v3530
    %v4045 = vunpack.c.l.b16 %v3531
    %v4046 = vunpack.c.l.b16 %v3532
    %v4047 = vpack.c.b16 %v3792, %v3791
    %v4048 = vpack.c.b16 %v3794, %v3793
    %v4049 = vpack.c.b16 %v3796, %v3795
    %v4050 = vpack.c.b16 %v3798, %v3797
    %v4051 = vpack.c.b16 %v3800, %v3799
    %v4052 = vpack.c.b16 %v3802, %v3801
    %v4053 = vpack.c.b16 %v3804, %v3803
    %v4054 = vpack.c.b16 %v3806, %v3805
    %v4055 = vpack.c.b16 %v3808, %v3807
    %v4056 = vpack.c.b16 %v3810, %v3809
    %v4057 = vpack.c.b16 %v3812, %v3811
    %v4058 = vpack.c.b16 %v3814, %v3813
    %v4059 = vpack.c.b16 %v3816, %v3815
    %v4060 = vpack.c.b16 %v3818, %v3817
    %v4061 = vpack.c.b16 %v3820, %v3819
    %v4062 = vpack.c.b16 %v3822, %v3821
    %v4063 = vpack.c.b16 %v3824, %v3823
    %v4064 = vpack.c.b16 %v3826, %v3825
    %v4065 = vpack.c.b16 %v3828, %v3827
    %v4066 = vpack.c.b16 %v3830, %v3829
    %v4067 = vpack.c.b16 %v3832, %v3831
    %v4068 = vpack.c.b16 %v3834, %v3833
    %v4069 = vpack.c.b16 %v3836, %v3835
    %v4070 = vpack.c.b16 %v3838, %v3837
    %v4071 = vpack.c.b16 %v3840, %v3839
    %v4072 = vpack.c.b16 %v3842, %v3841
    %v4073 = vpack.c.b16 %v3844, %v3843
    %v4074 = vpack.c.b16 %v3846, %v3845
    %v4075 = vpack.c.b16 %v3848, %v3847
    %v4076 = vpack.c.b16 %v3850, %v3849
    %v4077 = vpack.c.b16 %v3852, %v3851
    %v4078 = vpack.c.b16 %v3854, %v3853
    %v4079 = vpack.c.b16 %v3856, %v3855
    %v4080 = vpack.c.b16 %v3858, %v3857
    %v4081 = vpack.c.b16 %v3860, %v3859
    %v4082 = vpack.c.b16 %v3862, %v3861
    %v4083 = vpack.c.b16 %v3864, %v3863
    %v4084 = vpack.c.b16 %v3866, %v3865
    %v4085 = vpack.c.b16 %v3868, %v3867
    %v4086 = vpack.c.b16 %v3870, %v3869
    %v4087 = vpack.c.b16 %v3872, %v3871
    %v4088 = vpack.c.b16 %v3874, %v3873
    %v4089 = vpack.c.b16 %v3876, %v3875
    %v4090 = vpack.c.b16 %v3878, %v3877
    %v4091 = vpack.c.b16 %v3880, %v3879
    %v4092 = vpack.c.b16 %v3882, %v3881
    %v4093 = vpack.c.b16 %v3884, %v3883
    %v4094 = vpack.c.b16 %v3886, %v3885
    %v4095 = vpack.c.b16 %v3888, %v3887
    %v4096 = vpack.c.b16 %v3890, %v3889
    %v4097 = vpack.c.b16 %v3892, %v3891
    %v4098 = vpack.c.b16 %v3894, %v3893
    %v4099 = vpack.c.b16 %v3896, %v3895
    %v4100 = vpack.c.b16 %v3898, %v3897
    %v4101 = vpack.c.b16 %v3900, %v3899
    %v4102 = vpack.c.b16 %v3902, %v3901
    %v4103 = vpack.c.b16 %v3904, %v3903
    %v4104 = vpack.c.b16 %v3906, %v3905
    %v4105 = vpack.c.b16 %v3908, %v3907
    %v4106 = vpack.c.b16 %v3910, %v3909
    %v4107 = vpack.c.b16 %v3912, %v3911
    %v4108 = vpack.c.b16 %v3914, %v3913
    %v4109 = vpack.c.b16 %v3916, %v3915
    %v4110 = vpack.c.b16 %v3918, %v3917
    %v4111 = vpack.c.b16 %v3920, %v3919
    %v4112 = vpack.c.b16 %v3922, %v3921
    %v4113 = vpack.c.b16 %v3924, %v3923
    %v4114 = vpack.c.b16 %v3926, %v3925
    %v4115 = vpack.c.b16 %v3928, %v3927
    %v4116 = vpack.c.b16 %v3930, %v3929
    %v4117 = vpack.c.b16 %v3932, %v3931
    %v4118 = vpack.c.b16 %v3934, %v3933
    %v4119 = vpack.c.b16 %v3936, %v3935
    %v4120 = vpack.c.b16 %v3938, %v3937
    %v4121 = vpack.c.b16 %v3940, %v3939
    %v4122 = vpack.c.b16 %v3942, %v3941
    %v4123 = vpack.c.b16 %v3944, %v3943
    %v4124 = vpack.c.b16 %v3946, %v3945
    %v4125 = vpack.c.b16 %v3948, %v3947
    %v4126 = vpack.c.b16 %v3950, %v3949
    %v4127 = vpack.c.b16 %v3952, %v3951
    %v4128 = vpack.c.b16 %v3954, %v3953
    %v4129 = vpack.c.b16 %v3956, %v3955
    %v4130 = vpack.c.b16 %v3958, %v3957
    %v4131 = vpack.c.b16 %v3960, %v3959
    %v4132 = vpack.c.b16 %v3962, %v3961
    %v4133 = vpack.c.b16 %v3964, %v3963
    %v4134 = vpack.c.b16 %v3966, %v3965
    %v4135 = vpack.c.b16 %v3968, %v3967
    %v4136 = vpack.c.b16 %v3970, %v3969
    %v4137 = vpack.c.b16 %v3972, %v3971
    %v4138 = vpack.c.b16 %v3974, %v3973
    %v4139 = vpack.c.b16 %v3976, %v3975
    %v4140 = vpack.c.b16 %v3978, %v3977
    %v4141 = vpack.c.b16 %v3980, %v3979
    %v4142 = vpack.c.b16 %v3982, %v3981
    %v4143 = vpack.c.b16 %v3984, %v3983
    %v4144 = vpack.c.b16 %v3986, %v3985
    %v4145 = vpack.c.b16 %v3988, %v3987
    %v4146 = vpack.c.b16 %v3990, %v3989
    %v4147 = vpack.c.b16 %v3992, %v3991
    %v4148 = vpack.c.b16 %v3994, %v3993
    %v4149 = vpack.c.b16 %v3996, %v3995
    %v4150 = vpack.c.b16 %v3998, %v3997
    %v4151 = vpack.c.b16 %v4000, %v3999
    %v4152 = vpack.c.b16 %v4002, %v4001
    %v4153 = vpack.c.b16 %v4004, %v4003
    %v4154 = vpack.c.b16 %v4006, %v4005
    %v4155 = vpack.c.b16 %v4008, %v4007
    %v4156 = vpack.c.b16 %v4010, %v4009
    %v4157 = vpack.c.b16 %v4012, %v4011
    %v4158 = vpack.c.b16 %v4014, %v4013
    %v4159 = vpack.c.b16 %v4016, %v4015
    %v4160 = vpack.c.b16 %v4018, %v4017
    %v4161 = vpack.c.b16 %v4020, %v4019
    %v4162 = vpack.c.b16 %v4022, %v4021
    %v4163 = vpack.c.b16 %v4024, %v4023
    %v4164 = vpack.c.b16 %v4026, %v4025
    %v4165 = vpack.c.b16 %v4028, %v4027
    %v4166 = vpack.c.b16 %v4030, %v4029
    %v4167 = vpack.c.b16 %v4032, %v4031
    %v4168 = vpack.c.b16 %v4034, %v4033
    %v4169 = vpack.c.b16 %v4036, %v4035
    %v4170 = vpack.c.b16 %v4038, %v4037
    %v4171 = vpack.c.b16 %v4040, %v4039
    %v4172 = vpack.c.b16 %v4042, %v4041
    %v4173 = vpack.c.b16 %v4044, %v4043
    %v4174 = vpack.c.b16 %v4046, %v4045
    %4303 = vmatpush.bf16.msra.mxu0 %v4054
    %4304 = vmatpush.bf16.msra.mxu0 %v4053
    %4305 = vmatpush.bf16.msra.mxu0 %v4052
    %4306 = vmatpush.bf16.msra.mxu0 %v4051
    %4307 = vmatpush.bf16.msra.mxu0 %v4050
    %4308 = vmatpush.bf16.msra.mxu0 %v4049
    %4309 = vmatpush.bf16.msra.mxu0 %v4048
    %4310 = vmatpush.bf16.msra.mxu0 %v4047
    %4311 = vmatmul.bf16.gmra.mxu0 %v3260
    %v4312 = vpop.f32.mrf.mxu0
    %v4313 = vadd.f32 %v3534, %v4312
    %v4314 = vpop.f32.mrf.mxu0
    %v4315 = vadd.f32 %v3534, %v4314
    %4316 = vdwg.mxu0
    %4317 = vmatpush.bf16.msra.mxu0 %v4062
    %4318 = vmatpush.bf16.msra.mxu0 %v4061
    %4319 = vmatpush.bf16.msra.mxu0 %v4060
    %4320 = vmatpush.bf16.msra.mxu0 %v4059
    %4321 = vmatpush.bf16.msra.mxu0 %v4058
    %4322 = vmatpush.bf16.msra.mxu0 %v4057
    %4323 = vmatpush.bf16.msra.mxu0 %v4056
    %4324 = vmatpush.bf16.msra.mxu0 %v4055
    %4325 = vmatmul.bf16.gmra.mxu0 %v3261
    %v4326 = vpop.f32.mrf.mxu0
    %v4327 = vadd.f32 %v4313, %v4326
    %v4328 = vpop.f32.mrf.mxu0
    %v4329 = vadd.f32 %v4315, %v4328
    %4330 = vdwg.mxu0
    %4331 = vmatpush.bf16.msra.mxu0 %v4070
    %4332 = vmatpush.bf16.msra.mxu0 %v4069
    %4333 = vmatpush.bf16.msra.mxu0 %v4068
    %4334 = vmatpush.bf16.msra.mxu0 %v4067
    %4335 = vmatpush.bf16.msra.mxu0 %v4066
    %4336 = vmatpush.bf16.msra.mxu0 %v4065
    %4337 = vmatpush.bf16.msra.mxu0 %v4064
    %4338 = vmatpush.bf16.msra.mxu0 %v4063
    %4339 = vmatmul.bf16.gmra.mxu0 %v3262
    %v4340 = vpop.f32.mrf.mxu0
    %v4341 = vadd.f32 %v4327, %v4340
    %v4342 = vpop.f32.mrf.mxu0
    %v4343 = vadd.f32 %v4329, %v4342
    %4344 = vdwg.mxu0
    %4345 = vmatpush.bf16.msra.mxu0 %v4078
    %4346 = vmatpush.bf16.msra.mxu0 %v4077
    %4347 = vmatpush.bf16.msra.mxu0 %v4076
    %4348 = vmatpush.bf16.msra.mxu0 %v4075
    %4349 = vmatpush.bf16.msra.mxu0 %v4074
    %4350 = vmatpush.bf16.msra.mxu0 %v4073
    %4351 = vmatpush.bf16.msra.mxu0 %v4072
    %4352 = vmatpush.bf16.msra.mxu0 %v4071
    %4353 = vmatmul.bf16.gmra.mxu0 %v3263
    %v4354 = vpop.f32.mrf.mxu0
    %v4355 = vadd.f32 %v4341, %v4354
    %v4356 = vpop.f32.mrf.mxu0
    %v4357 = vadd.f32 %v4343, %v4356
    %4358 = vdwg.mxu0
    %4359 = vmatpush.bf16.msra.mxu0 %v4086
    %4360 = vmatpush.bf16.msra.mxu0 %v4085
    %4361 = vmatpush.bf16.msra.mxu0 %v4084
    %4362 = vmatpush.bf16.msra.mxu0 %v4083
    %4363 = vmatpush.bf16.msra.mxu0 %v4082
    %4364 = vmatpush.bf16.msra.mxu0 %v4081
    %4365 = vmatpush.bf16.msra.mxu0 %v4080
    %4366 = vmatpush.bf16.msra.mxu0 %v4079
    %4367 = vmatmul.bf16.gmra.mxu0 %v3264
    %v4368 = vpop.f32.mrf.mxu0
    %v4369 = vadd.f32 %v4355, %v4368
    %v4370 = vpop.f32.mrf.mxu0
    %v4371 = vadd.f32 %v4357, %v4370
    %4372 = vdwg.mxu0
    %4373 = vmatpush.bf16.msra.mxu0 %v4094
    %4374 = vmatpush.bf16.msra.mxu0 %v4093
    %4375 = vmatpush.bf16.msra.mxu0 %v4092
    %4376 = vmatpush.bf16.msra.mxu0 %v4091
    %4377 = vmatpush.bf16.msra.mxu0 %v4090
    %4378 = vmatpush.bf16.msra.mxu0 %v4089
    %4379 = vmatpush.bf16.msra.mxu0 %v4088
    %4380 = vmatpush.bf16.msra.mxu0 %v4087
    %4381 = vmatmul.bf16.gmra.mxu0 %v3265
    %v4382 = vpop.f32.mrf.mxu0
    %v4383 = vadd.f32 %v4369, %v4382
    %v4384 = vpop.f32.mrf.mxu0
    %v4385 = vadd.f32 %v4371, %v4384
    %4386 = vdwg.mxu0
    %4387 = vmatpush.bf16.msra.mxu0 %v4102
    %4388 = vmatpush.bf16.msra.mxu0 %v4101
    %4389 = vmatpush.bf16.msra.mxu0 %v4100
    %4390 = vmatpush.bf16.msra.mxu0 %v4099
    %4391 = vmatpush.bf16.msra.mxu0 %v4098
    %4392 = vmatpush.bf16.msra.mxu0 %v4097
    %4393 = vmatpush.bf16.msra.mxu0 %v4096
    %4394 = vmatpush.bf16.msra.mxu0 %v4095
    %4395 = vmatmul.bf16.gmra.mxu0 %v3266
    %v4396 = vpop.f32.mrf.mxu0
    %v4397 = vadd.f32 %v4383, %v4396
    %v4398 = vpop.f32.mrf.mxu0
    %v4399 = vadd.f32 %v4385, %v4398
    %4400 = vdwg.mxu0
    %4401 = vmatpush.bf16.msra.mxu0 %v4110
    %4402 = vmatpush.bf16.msra.mxu0 %v4109
    %4403 = vmatpush.bf16.msra.mxu0 %v4108
    %4404 = vmatpush.bf16.msra.mxu0 %v4107
    %4405 = vmatpush.bf16.msra.mxu0 %v4106
    %4406 = vmatpush.bf16.msra.mxu0 %v4105
    %4407 = vmatpush.bf16.msra.mxu0 %v4104
    %4408 = vmatpush.bf16.msra.mxu0 %v4103
    %4409 = vmatmul.bf16.gmra.mxu0 %v3267
    %v4410 = vpop.f32.mrf.mxu0
    %v4411 = vadd.f32 %v4397, %v4410
    %v4412 = vpop.f32.mrf.mxu0
    %v4413 = vadd.f32 %v4399, %v4412
    %4414 = vdwg.mxu0
    %4415 = vmatpush.bf16.msra.mxu0 %v4118
    %4416 = vmatpush.bf16.msra.mxu0 %v4117
    %4417 = vmatpush.bf16.msra.mxu0 %v4116
    %4418 = vmatpush.bf16.msra.mxu0 %v4115
    %4419 = vmatpush.bf16.msra.mxu0 %v4114
    %4420 = vmatpush.bf16.msra.mxu0 %v4113
    %4421 = vmatpush.bf16.msra.mxu0 %v4112
    %4422 = vmatpush.bf16.msra.mxu0 %v4111
    %4423 = vmatmul.bf16.gmra.mxu0 %v3268
    %v4424 = vpop.f32.mrf.mxu0
    %v4425 = vadd.f32 %v4411, %v4424
    %v4426 = vpop.f32.mrf.mxu0
    %v4427 = vadd.f32 %v4413, %v4426
    %4428 = vdwg.mxu0
    %4429 = vmatpush.bf16.msra.mxu0 %v4126
    %4430 = vmatpush.bf16.msra.mxu0 %v4125
    %4431 = vmatpush.bf16.msra.mxu0 %v4124
    %4432 = vmatpush.bf16.msra.mxu0 %v4123
    %4433 = vmatpush.bf16.msra.mxu0 %v4122
    %4434 = vmatpush.bf16.msra.mxu0 %v4121
    %4435 = vmatpush.bf16.msra.mxu0 %v4120
    %4436 = vmatpush.bf16.msra.mxu0 %v4119
    %4437 = vmatmul.bf16.gmra.mxu0 %v3269
    %v4438 = vpop.f32.mrf.mxu0
    %v4439 = vadd.f32 %v4425, %v4438
    %v4440 = vpop.f32.mrf.mxu0
    %v4441 = vadd.f32 %v4427, %v4440
    %4442 = vdwg.mxu0
    %4443 = vmatpush.bf16.msra.mxu0 %v4134
    %4444 = vmatpush.bf16.msra.mxu0 %v4133
    %4445 = vmatpush.bf16.msra.mxu0 %v4132
    %4446 = vmatpush.bf16.msra.mxu0 %v4131
    %4447 = vmatpush.bf16.msra.mxu0 %v4130
    %4448 = vmatpush.bf16.msra.mxu0 %v4129
    %4449 = vmatpush.bf16.msra.mxu0 %v4128
    %4450 = vmatpush.bf16.msra.mxu0 %v4127
    %4451 = vmatmul.bf16.gmra.mxu0 %v3270
    %v4452 = vpop.f32.mrf.mxu0
    %v4453 = vadd.f32 %v4439, %v4452
    %v4454 = vpop.f32.mrf.mxu0
    %v4455 = vadd.f32 %v4441, %v4454
    %4456 = vdwg.mxu0
    %4457 = vmatpush.bf16.msra.mxu0 %v4142
    %4458 = vmatpush.bf16.msra.mxu0 %v4141
    %4459 = vmatpush.bf16.msra.mxu0 %v4140
    %4460 = vmatpush.bf16.msra.mxu0 %v4139
    %4461 = vmatpush.bf16.msra.mxu0 %v4138
    %4462 = vmatpush.bf16.msra.mxu0 %v4137
    %4463 = vmatpush.bf16.msra.mxu0 %v4136
    %4464 = vmatpush.bf16.msra.mxu0 %v4135
    %4465 = vmatmul.bf16.gmra.mxu0 %v3271
    %v4466 = vpop.f32.mrf.mxu0
    %v4467 = vadd.f32 %v4453, %v4466
    %v4468 = vpop.f32.mrf.mxu0
    %v4469 = vadd.f32 %v4455, %v4468
    %4470 = vdwg.mxu0
    %4471 = vmatpush.bf16.msra.mxu0 %v4150
    %4472 = vmatpush.bf16.msra.mxu0 %v4149
    %4473 = vmatpush.bf16.msra.mxu0 %v4148
    %4474 = vmatpush.bf16.msra.mxu0 %v4147
    %4475 = vmatpush.bf16.msra.mxu0 %v4146
    %4476 = vmatpush.bf16.msra.mxu0 %v4145
    %4477 = vmatpush.bf16.msra.mxu0 %v4144
    %4478 = vmatpush.bf16.msra.mxu0 %v4143
    %4479 = vmatmul.bf16.gmra.mxu0 %v3272
    %v4480 = vpop.f32.mrf.mxu0
    %v4481 = vadd.f32 %v4467, %v4480
    %v4482 = vpop.f32.mrf.mxu0
    %v4483 = vadd.f32 %v4469, %v4482
    %4484 = vdwg.mxu0
    %4485 = vmatpush.bf16.msra.mxu0 %v4158
    %4486 = vmatpush.bf16.msra.mxu0 %v4157
    %4487 = vmatpush.bf16.msra.mxu0 %v4156
    %4488 = vmatpush.bf16.msra.mxu0 %v4155
    %4489 = vmatpush.bf16.msra.mxu0 %v4154
    %4490 = vmatpush.bf16.msra.mxu0 %v4153
    %4491 = vmatpush.bf16.msra.mxu0 %v4152
    %4492 = vmatpush.bf16.msra.mxu0 %v4151
    %4493 = vmatmul.bf16.gmra.mxu0 %v3273
    %v4494 = vpop.f32.mrf.mxu0
    %v4495 = vadd.f32 %v4481, %v4494
    %v4496 = vpop.f32.mrf.mxu0
    %v4497 = vadd.f32 %v4483, %v4496
    %4498 = vdwg.mxu0
    %4499 = vmatpush.bf16.msra.mxu0 %v4166
    %4500 = vmatpush.bf16.msra.mxu0 %v4165
    %4501 = vmatpush.bf16.msra.mxu0 %v4164
    %4502 = vmatpush.bf16.msra.mxu0 %v4163
    %4503 = vmatpush.bf16.msra.mxu0 %v4162
    %4504 = vmatpush.bf16.msra.mxu0 %v4161
    %4505 = vmatpush.bf16.msra.mxu0 %v4160
    %4506 = vmatpush.bf16.msra.mxu0 %v4159
    %4507 = vmatmul.bf16.gmra.mxu0 %v3274
    %v4508 = vpop.f32.mrf.mxu0
    %v4509 = vadd.f32 %v4495, %v4508
    %v4510 = vpop.f32.mrf.mxu0
    %v4511 = vadd.f32 %v4497, %v4510
    %4512 = vdwg.mxu0
    %4513 = vmatpush.bf16.msra.mxu0 %v4174
    %4514 = vmatpush.bf16.msra.mxu0 %v4173
    %4515 = vmatpush.bf16.msra.mxu0 %v4172
    %4516 = vmatpush.bf16.msra.mxu0 %v4171
    %4517 = vmatpush.bf16.msra.mxu0 %v4170
    %4518 = vmatpush.bf16.msra.mxu0 %v4169
    %4519 = vmatpush.bf16.msra.mxu0 %v4168
    %4520 = vmatpush.bf16.msra.mxu0 %v4167
    %4521 = vmatmul.bf16.gmra.mxu0 %v3275
    %v4522 = vpop.f32.mrf.mxu0
    %v4523 = vadd.f32 %v4509, %v4522
    %v4524 = vpop.f32.mrf.mxu0
    %v4525 = vadd.f32 %v4511, %v4524
    %4526 = vdwg.mxu0
    %v4527 = vadd.f32 %v2767, %v4523
    %v4528 = vadd.f32 %v2768, %v4525
    %v4529 = vsel %vm116, %v4527, 0.0
    %4530 = vadd.xlane.f32.xlu0 %v4529
    %v4531 = vpop.xlane.xlu0 %4530
    %v4532 = vsel %vm116, %v4528, 0.0
    %4533 = vadd.xlane.f32.xlu0 %v4532
    %v4534 = vpop.xlane.xlu0 %4533
    %v4535 = vmul.f32 %v4531, %v527
    %v4536 = vmul.f32 %v4534, %v527
    %v4537 = vsub.f32 %v4527, %v4535
    %v4538 = vsub.f32 %v4528, %v4536
    %v4539 = vmul.f32 %v4537, %v4537
    %v4540 = vmul.f32 %v4538, %v4538
    %v4541 = vsel %vm116, %v4539, 0.0
    %4542 = vadd.xlane.f32.xlu0 %v4541
    %v4543 = vpop.xlane.xlu0 %4542
    %v4544 = vsel %vm116, %v4540, 0.0
    %4545 = vadd.xlane.f32.xlu0 %v4544
    %v4546 = vpop.xlane.xlu0 %4545
    %v4547 = vmul.f32 %v4543, %v527
    %v4548 = vmul.f32 %v4546, %v527
    %v4549 = vadd.f32 %v4547, 1e-05
    %v4550 = vadd.f32 %v4548, 1e-05
    %v4551 = vrsqrt.pop %v4549
    %v4552 = vmul.f32 %v4551, %v4549
    %v4553 = vmul.f32 %v4552, %v4551
    %v4554 = vmul.f32 0.5, %v4553
    %v4555 = vsub.f32 1.5, %v4554
    %v4556 = vmul.f32 %v4551, %v4555
    %vm4557 = vweird.f32 %v4549
    %vm4558 = vweird.f32 %v4551
    %vm4559 = vmor %vm4557, %vm4558
    %v4560 = vsel %vm4559, %v4551, %v4556
    %v4561 = vrsqrt.pop %v4550
    %v4562 = vmul.f32 %v4561, %v4550
    %v4563 = vmul.f32 %v4562, %v4561
    %v4564 = vmul.f32 0.5, %v4563
    %v4565 = vsub.f32 1.5, %v4564
    %v4566 = vmul.f32 %v4561, %v4565
    %vm4567 = vweird.f32 %v4550
    %vm4568 = vweird.f32 %v4561
    %vm4569 = vmor %vm4567, %vm4568
    %v4570 = vsel %vm4569, %v4561, %v4566
    %v4571 = vmul.f32 %v4537, %v4560
    %v4572 = vmul.f32 %v4538, %v4570
    %v4573 = vld [vmem:[%s6 + $0x12] sm:$0x1]
    %v4574 = vperm.slane %v4573, 0
    %v4575 = vmul.f32 %v4571, %v4574
    %v4576 = vmul.f32 %v4572, %v4574
    %v4577 = vld [vmem:[%s6 + $0x13] sm:$0x1]
    %v4578 = vperm.slane %v4577, 0
    %v4579 = vadd.f32 %v4575, %v4578
    %v4580 = vadd.f32 %v4576, %v4578
    %v4581 = vld [vmem:[%s5 + $0x78] sm:$0xf]
    %v4582 = vld [vmem:[%s5 + $0x7c] sm:$0xf]
    %v4583 = vld [vmem:[%s5 + $0x80] sm:$0xf]
    %v4584 = vld [vmem:[%s5 + $0x84] sm:$0xf]
    %v4585 = vld [vmem:[%s6 + $0x7] sm:$0x1]
    %v4586 = vperm.slane %v4585, 0
    %v4591 = vunpack.c.l.b16 %v4581
    %v4592 = vunpack.c.l.b16 %v4582
    %v4593 = vunpack.c.l.b16 %v4583
    %v4594 = vunpack.c.l.b16 %v4584
    %v4595 = vpack.c.b16 %v4592, %v4591
    %v4596 = vpack.c.b16 %v4594, %v4593
    %4599 = vmatpush.bf16.msra.mxu0 0
    %4600 = vmatpush.bf16.msra.mxu0 0
    %4601 = vmatpush.bf16.msra.mxu0 0
    %4602 = vmatpush.bf16.msra.mxu0 0
    %4603 = vmatpush.bf16.msra.mxu0 0
    %4604 = vmatpush.bf16.msra.mxu0 0
    %4605 = vmatpush.bf16.msra.mxu0 %v4596
    %4606 = vmatpush.bf16.msra.mxu0 %v4595
    %4607 = vmatmul.bf16.gmra.mxu0 %v200
    %v4608 = vpop.f32.mrf.mxu0
    %v4609 = vadd.f32 %v4586, %v4608
    %v4610 = vpop.f32.mrf.mxu0
    %v4611 = vadd.f32 %v4586, %v4610
    %4612 = vdwg.mxu0
    %4615 = vrot.lane.b32.xlu0 %v4609, 96
    %v4616 = vpop.permute.xlu0 %4615
    %4617 = vrot.lane.b32.xlu0 %v4611, 96
    %v4618 = vpop.permute.xlu0 %4617
    %v4619 = vsel %vm222, %v4609, 0
    %v4621 = vsel %vm222, %v4611, 0
    %v4623 = vsel %vm222, %v4616, 0
    %v4625 = vsel %vm222, %v4618, 0
    %4627 = vmatpush.xpose.msra.mxu0 0.0
    %4628 = vmatpush.xpose.msra.mxu0 0.0
    %4629 = vmatpush.xpose.msra.mxu0 0.0
    %4630 = vmatpush.xpose.msra.mxu0 0.0
    %4631 = vmatpush.xpose.msra.mxu0 0.0
    %4632 = vmatpush.xpose.msra.mxu0 0.0
    %4633 = vmatpush.xpose.msra.mxu0 0.0
    %4634 = vmatpush.xpose.msra.mxu0 0.0
    %4635 = vmatpush.xpose.msra.mxu0 0.0
    %4636 = vmatpush.xpose.msra.mxu0 0.0
    %4637 = vmatpush.xpose.msra.mxu0 0.0
    %4638 = vmatpush.xpose.msra.mxu0 0.0
    %4639 = vmatpush.xpose.msra.mxu0 0.0
    %4640 = vmatpush.xpose.msra.mxu0 0.0
    %4641 = vmatpush.xpose.msra.mxu0 %v4625
    %4642 = vmatpush.xpose.msra.mxu0 %v4623
    %4643 = vmatmul.f32.gmra.mxu0 %v4619
    %v4644 = vpop.f32.mrf.mxu0
    %v4645 = vadd.f32 0.0, %v4644
    %4646 = vmatmul.f32.gmra.mxu0 %v4621
    %v4647 = vpop.f32.mrf.mxu0
    %v4648 = vadd.f32 0.0, %v4647
    %4649 = vdwg.mxu0
    %v4650 = vmul.f32 %v4645, 0.25
    %v4651 = vmul.f32 %v4648, 0.25
    %v4652 = vadd.f32 %v4650, %v42
    %v4653 = vadd.f32 %v4651, %v43
    %v4654 = vsel %vm222, %v4652, -inf
    %4655 = vmax.xlane.f32.xlu0 %v4654
    %v4656 = vpop.xlane.xlu0 %4655
    %v4657 = vsel %vm222, %v4653, -inf
    %4658 = vmax.xlane.f32.xlu0 %v4657
    %v4659 = vpop.xlane.xlu0 %4658
    %v4660 = vsub.f32 %v4652, %v4656
    %v4661 = vsub.f32 %v4653, %v4659
    %v4662 = vmul.f32 %v4660, 1.442695
    %v4663 = vpow.pop %v4662
    %v4664 = vmul.f32 %v4661, 1.442695
    %v4665 = vpow.pop %v4664
    %v4666 = vsel %vm222, %v4663, 0.0
    %4667 = vadd.xlane.f32.xlu0 %v4666
    %v4668 = vpop.xlane.xlu0 %4667
    %v4669 = vsel %vm222, %v4665, 0.0
    %4670 = vadd.xlane.f32.xlu0 %v4669
    %v4671 = vpop.xlane.xlu0 %4670
    %v4672 = vrcp.pop %v4668
    %v4673 = vmul.f32 %v4668, %v4672
    %v4674 = vsub.f32 1.0, %v4673
    %v4675 = vmul.f32 %v4672, %v4674
    %v4676 = vadd.f32 %v4672, %v4675
    %vm4677 = vweird.f32 %v4668
    %vm4678 = vweird.f32 %v4672
    %vm4679 = vmor %vm4677, %vm4678
    %v4680 = vsel %vm4679, %v4672, %v4676
    %v4681 = vand.u32 2147483647, %v4668
    %vm4682 = vcmp.eq.f32.partialorder %v4681, 8.507059e+37
    %v4683 = vand.u32 %v4668, 2147483648
    %v4684 = vor.u32 1.1754944e-38, %v4683
    %v4685 = vsel %vm4682, %v4684, %v4680
    %v4686 = vrcp.pop %v4671
    %v4687 = vmul.f32 %v4671, %v4686
    %v4688 = vsub.f32 1.0, %v4687
    %v4689 = vmul.f32 %v4686, %v4688
    %v4690 = vadd.f32 %v4686, %v4689
    %vm4691 = vweird.f32 %v4671
    %vm4692 = vweird.f32 %v4686
    %vm4693 = vmor %vm4691, %vm4692
    %v4694 = vsel %vm4693, %v4686, %v4690
    %v4695 = vand.u32 2147483647, %v4671
    %vm4696 = vcmp.eq.f32.partialorder %v4695, 8.507059e+37
    %v4697 = vand.u32 %v4671, 2147483648
    %v4698 = vor.u32 1.1754944e-38, %v4697
    %v4699 = vsel %vm4696, %v4698, %v4694
    %v4700 = vmul.f32 %v4663, %v4685
    %v4701 = vmul.f32 %v4665, %v4699
    %4702 = vrot.lane.b32.xlu0 %v4609, 64
    %v4703 = vpop.permute.xlu0 %4702
    %4704 = vrot.lane.b32.xlu0 %v4611, 64
    %v4705 = vpop.permute.xlu0 %4704
    %v4709 = vsel %vm222, %v4700, 0
    %v4712 = vsel %vm222, %v4701, 0
    %4714 = vmatpush.msra.mxu0 0.0
    %4715 = vmatpush.msra.mxu0 0.0
    %4716 = vmatpush.msra.mxu0 0.0
    %4717 = vmatpush.msra.mxu0 0.0
    %4718 = vmatpush.msra.mxu0 0.0
    %4719 = vmatpush.msra.mxu0 0.0
    %4720 = vmatpush.msra.mxu0 0.0
    %4721 = vmatpush.msra.mxu0 0.0
    %4722 = vmatpush.msra.mxu0 0.0
    %4723 = vmatpush.msra.mxu0 0.0
    %4724 = vmatpush.msra.mxu0 0.0
    %4725 = vmatpush.msra.mxu0 0.0
    %4726 = vmatpush.msra.mxu0 0.0
    %4727 = vmatpush.msra.mxu0 0.0
    %4728 = vmatpush.msra.mxu0 %v4705
    %4729 = vmatpush.msra.mxu0 %v4703
    %4730 = vmatmul.f32.gmra.mxu0 %v4709
    %v4731 = vpop.f32.mrf.mxu0
    %v4732 = vadd.f32 0.0, %v4731
    %4733 = vmatmul.f32.gmra.mxu0 %v4712
    %v4734 = vpop.f32.mrf.mxu0
    %v4735 = vadd.f32 0.0, %v4734
    %4736 = vdwg.mxu0
    %4737 = vrot.lane.b32.xlu0 %v4609, 112
    %v4738 = vpop.permute.xlu0 %4737
    %4739 = vrot.lane.b32.xlu0 %v4611, 112
    %v4740 = vpop.permute.xlu0 %4739
    %4741 = vrot.lane.b32.xlu0 %v4609, 80
    %v4742 = vpop.permute.xlu0 %4741
    %4743 = vrot.lane.b32.xlu0 %v4611, 80
    %v4744 = vpop.permute.xlu0 %4743
    %v4745 = vsel %vm222, %v4738, 0
    %v4747 = vsel %vm222, %v4740, 0
    %v4749 = vsel %vm222, %v4742, 0
    %v4751 = vsel %vm222, %v4744, 0
    %4753 = vmatpush.xpose.msra.mxu0 0.0
    %4754 = vmatpush.xpose.msra.mxu0 0.0
    %4755 = vmatpush.xpose.msra.mxu0 0.0
    %4756 = vmatpush.xpose.msra.mxu0 0.0
    %4757 = vmatpush.xpose.msra.mxu0 0.0
    %4758 = vmatpush.xpose.msra.mxu0 0.0
    %4759 = vmatpush.xpose.msra.mxu0 0.0
    %4760 = vmatpush.xpose.msra.mxu0 0.0
    %4761 = vmatpush.xpose.msra.mxu0 0.0
    %4762 = vmatpush.xpose.msra.mxu0 0.0
    %4763 = vmatpush.xpose.msra.mxu0 0.0
    %4764 = vmatpush.xpose.msra.mxu0 0.0
    %4765 = vmatpush.xpose.msra.mxu0 0.0
    %4766 = vmatpush.xpose.msra.mxu0 0.0
    %4767 = vmatpush.xpose.msra.mxu0 %v4751
    %4768 = vmatpush.xpose.msra.mxu0 %v4749
    %4769 = vmatmul.f32.gmra.mxu0 %v4745
    %v4770 = vpop.f32.mrf.mxu0
    %v4771 = vadd.f32 0.0, %v4770
    %4772 = vmatmul.f32.gmra.mxu0 %v4747
    %v4773 = vpop.f32.mrf.mxu0
    %v4774 = vadd.f32 0.0, %v4773
    %4775 = vdwg.mxu0
    %v4776 = vmul.f32 %v4771, 0.25
    %v4777 = vmul.f32 %v4774, 0.25
    %v4778 = vadd.f32 %v4776, %v42
    %v4779 = vadd.f32 %v4777, %v43
    %v4780 = vsel %vm222, %v4778, -inf
    %4781 = vmax.xlane.f32.xlu0 %v4780
    %v4782 = vpop.xlane.xlu0 %4781
    %v4783 = vsel %vm222, %v4779, -inf
    %4784 = vmax.xlane.f32.xlu0 %v4783
    %v4785 = vpop.xlane.xlu0 %4784
    %v4786 = vsub.f32 %v4778, %v4782
    %v4787 = vsub.f32 %v4779, %v4785
    %v4788 = vmul.f32 %v4786, 1.442695
    %v4789 = vpow.pop %v4788
    %v4790 = vmul.f32 %v4787, 1.442695
    %v4791 = vpow.pop %v4790
    %v4792 = vsel %vm222, %v4789, 0.0
    %4793 = vadd.xlane.f32.xlu0 %v4792
    %v4794 = vpop.xlane.xlu0 %4793
    %v4795 = vsel %vm222, %v4791, 0.0
    %4796 = vadd.xlane.f32.xlu0 %v4795
    %v4797 = vpop.xlane.xlu0 %4796
    %v4798 = vrcp.pop %v4794
    %v4799 = vmul.f32 %v4794, %v4798
    %v4800 = vsub.f32 1.0, %v4799
    %v4801 = vmul.f32 %v4798, %v4800
    %v4802 = vadd.f32 %v4798, %v4801
    %vm4803 = vweird.f32 %v4794
    %vm4804 = vweird.f32 %v4798
    %vm4805 = vmor %vm4803, %vm4804
    %v4806 = vsel %vm4805, %v4798, %v4802
    %v4807 = vand.u32 2147483647, %v4794
    %vm4808 = vcmp.eq.f32.partialorder %v4807, 8.507059e+37
    %v4809 = vand.u32 %v4794, 2147483648
    %v4810 = vor.u32 1.1754944e-38, %v4809
    %v4811 = vsel %vm4808, %v4810, %v4806
    %v4812 = vrcp.pop %v4797
    %v4813 = vmul.f32 %v4797, %v4812
    %v4814 = vsub.f32 1.0, %v4813
    %v4815 = vmul.f32 %v4812, %v4814
    %v4816 = vadd.f32 %v4812, %v4815
    %vm4817 = vweird.f32 %v4797
    %vm4818 = vweird.f32 %v4812
    %vm4819 = vmor %vm4817, %vm4818
    %v4820 = vsel %vm4819, %v4812, %v4816
    %v4821 = vand.u32 2147483647, %v4797
    %vm4822 = vcmp.eq.f32.partialorder %v4821, 8.507059e+37
    %v4823 = vand.u32 %v4797, 2147483648
    %v4824 = vor.u32 1.1754944e-38, %v4823
    %v4825 = vsel %vm4822, %v4824, %v4820
    %v4826 = vmul.f32 %v4789, %v4811
    %v4827 = vmul.f32 %v4791, %v4825
    %4828 = vrot.lane.b32.xlu0 %v4609, 48
    %v4829 = vpop.permute.xlu0 %4828
    %4830 = vrot.lane.b32.xlu0 %v4611, 48
    %v4831 = vpop.permute.xlu0 %4830
    %v4835 = vsel %vm222, %v4826, 0
    %v4838 = vsel %vm222, %v4827, 0
    %4840 = vmatpush.msra.mxu0 0.0
    %4841 = vmatpush.msra.mxu0 0.0
    %4842 = vmatpush.msra.mxu0 0.0
    %4843 = vmatpush.msra.mxu0 0.0
    %4844 = vmatpush.msra.mxu0 0.0
    %4845 = vmatpush.msra.mxu0 0.0
    %4846 = vmatpush.msra.mxu0 0.0
    %4847 = vmatpush.msra.mxu0 0.0
    %4848 = vmatpush.msra.mxu0 0.0
    %4849 = vmatpush.msra.mxu0 0.0
    %4850 = vmatpush.msra.mxu0 0.0
    %4851 = vmatpush.msra.mxu0 0.0
    %4852 = vmatpush.msra.mxu0 0.0
    %4853 = vmatpush.msra.mxu0 0.0
    %4854 = vmatpush.msra.mxu0 %v4831
    %4855 = vmatpush.msra.mxu0 %v4829
    %4856 = vmatmul.f32.gmra.mxu0 %v4835
    %v4857 = vpop.f32.mrf.mxu0
    %v4858 = vadd.f32 0.0, %v4857
    %4859 = vmatmul.f32.gmra.mxu0 %v4838
    %v4860 = vpop.f32.mrf.mxu0
    %v4861 = vadd.f32 0.0, %v4860
    %4862 = vdwg.mxu0
    %4865 = vrot.lane.b32.xlu0 %v4858, 16
    %v4866 = vpop.permute.xlu0 %4865
    %4867 = vrot.lane.b32.xlu0 %v4861, 16
    %v4868 = vpop.permute.xlu0 %4867
    %v4871 = vsel %vm222, %v4732, %v4866
    %v4872 = vsel %vm222, %v4735, %v4868
    %v4873 = vpack.c.bf16 %v4872, %v4871
    %v4874 = vld [vmem:[%s5 + $0x88] sm:$0xf]
    %v4875 = vld [vmem:[%s5 + $0x8c] sm:$0xf]
    %v4876 = vld [vmem:[%s5 + $0x90] sm:$0xf]
    %v4877 = vld [vmem:[%s5 + $0x94] sm:$0xf]
    %v4878 = vld [vmem:[%s6 + $0x8] sm:$0x1]
    %v4879 = vperm.slane %v4878, 0
    %v4884 = vunpack.c.l.b16 %v4874
    %v4885 = vunpack.c.l.b16 %v4875
    %v4886 = vunpack.c.l.b16 %v4876
    %v4887 = vunpack.c.l.b16 %v4877
    %v4888 = vpack.c.b16 %v4885, %v4884
    %v4889 = vpack.c.b16 %v4887, %v4886
    %v4893 = vsel %vm116, %v4873, 0
    %4895 = vmatpush.bf16.msra.mxu0 0
    %4896 = vmatpush.bf16.msra.mxu0 0
    %4897 = vmatpush.bf16.msra.mxu0 0
    %4898 = vmatpush.bf16.msra.mxu0 0
    %4899 = vmatpush.bf16.msra.mxu0 0
    %4900 = vmatpush.bf16.msra.mxu0 0
    %4901 = vmatpush.bf16.msra.mxu0 %v4889
    %4902 = vmatpush.bf16.msra.mxu0 %v4888
    %4903 = vmatmul.bf16.gmra.mxu0 %v4893
    %v4904 = vpop.f32.mrf.mxu0
    %v4905 = vadd.f32 %v4879, %v4904
    %v4906 = vpop.f32.mrf.mxu0
    %v4907 = vadd.f32 %v4879, %v4906
    %4908 = vdwg.mxu0
    %v4909 = vadd.f32 %v178, %v4905
    %v4910 = vadd.f32 %v179, %v4907
    %v4911 = vsel %vm116, %v4909, 0.0
    %4912 = vadd.xlane.f32.xlu0 %v4911
    %v4913 = vpop.xlane.xlu0 %4912
    %v4914 = vsel %vm116, %v4910, 0.0
    %4915 = vadd.xlane.f32.xlu0 %v4914
    %v4916 = vpop.xlane.xlu0 %4915
    %v4917 = vmul.f32 %v4913, %v527
    %v4918 = vmul.f32 %v4916, %v527
    %v4919 = vsub.f32 %v4909, %v4917
    %v4920 = vsub.f32 %v4910, %v4918
    %v4921 = vmul.f32 %v4919, %v4919
    %v4922 = vmul.f32 %v4920, %v4920
    %v4923 = vsel %vm116, %v4921, 0.0
    %4924 = vadd.xlane.f32.xlu0 %v4923
    %v4925 = vpop.xlane.xlu0 %4924
    %v4926 = vsel %vm116, %v4922, 0.0
    %4927 = vadd.xlane.f32.xlu0 %v4926
    %v4928 = vpop.xlane.xlu0 %4927
    %v4929 = vmul.f32 %v4925, %v527
    %v4930 = vmul.f32 %v4928, %v527
    %v4931 = vadd.f32 %v4929, 1e-05
    %v4932 = vadd.f32 %v4930, 1e-05
    %v4933 = vrsqrt.pop %v4931
    %v4934 = vmul.f32 %v4933, %v4931
    %v4935 = vmul.f32 %v4934, %v4933
    %v4936 = vmul.f32 0.5, %v4935
    %v4937 = vsub.f32 1.5, %v4936
    %v4938 = vmul.f32 %v4933, %v4937
    %vm4939 = vweird.f32 %v4931
    %vm4940 = vweird.f32 %v4933
    %vm4941 = vmor %vm4939, %vm4940
    %v4942 = vsel %vm4941, %v4933, %v4938
    %v4943 = vrsqrt.pop %v4932
    %v4944 = vmul.f32 %v4943, %v4932
    %v4945 = vmul.f32 %v4944, %v4943
    %v4946 = vmul.f32 0.5, %v4945
    %v4947 = vsub.f32 1.5, %v4946
    %v4948 = vmul.f32 %v4943, %v4947
    %vm4949 = vweird.f32 %v4932
    %vm4950 = vweird.f32 %v4943
    %vm4951 = vmor %vm4949, %vm4950
    %v4952 = vsel %vm4951, %v4943, %v4948
    %v4953 = vmul.f32 %v4919, %v4942
    %v4954 = vmul.f32 %v4920, %v4952
    %v4955 = vld [vmem:[%s6 + $0x15] sm:$0x1]
    %v4956 = vperm.slane %v4955, 0
    %v4957 = vmul.f32 %v4953, %v4956
    %v4958 = vmul.f32 %v4954, %v4956
    %v4959 = vld [vmem:[%s6 + $0x16] sm:$0x1]
    %v4960 = vperm.slane %v4959, 0
    %v4961 = vadd.f32 %v4957, %v4960
    %v4962 = vadd.f32 %v4958, %v4960
    %v4963 = vld [vmem:[%s5 + $0x98] sm:$0xf]
    %v4964 = vld [vmem:[%s5 + $0x9c] sm:$0xf]
    %v4965 = vld [vmem:[%s5 + $0xa0] sm:$0xf]
    %v4966 = vld [vmem:[%s5 + $0xa4] sm:$0xf]
    %v4967 = vld [vmem:[%s6 + $0x9] sm:$0x1]
    %v4968 = vpack.c.bf16 %v4962, %v4961
    %v4969 = vperm.slane %v4967, 0
    %v4974 = vunpack.c.l.b16 %v4963
    %v4975 = vunpack.c.l.b16 %v4964
    %v4976 = vunpack.c.l.b16 %v4965
    %v4977 = vunpack.c.l.b16 %v4966
    %v4978 = vpack.c.b16 %v4975, %v4974
    %v4979 = vpack.c.b16 %v4977, %v4976
    %v4983 = vsel %vm116, %v4968, 0
    %4985 = vmatpush.bf16.msra.mxu0 0
    %4986 = vmatpush.bf16.msra.mxu0 0
    %4987 = vmatpush.bf16.msra.mxu0 0
    %4988 = vmatpush.bf16.msra.mxu0 0
    %4989 = vmatpush.bf16.msra.mxu0 0
    %4990 = vmatpush.bf16.msra.mxu0 0
    %4991 = vmatpush.bf16.msra.mxu0 %v4979
    %4992 = vmatpush.bf16.msra.mxu0 %v4978
    %4993 = vmatmul.bf16.gmra.mxu0 %v4983
    %v4994 = vpop.f32.mrf.mxu0
    %v4995 = vadd.f32 %v4969, %v4994
    %v4996 = vpop.f32.mrf.mxu0
    %v4997 = vadd.f32 %v4969, %v4996
    %4998 = vdwg.mxu0
    %v4999 = vpack.c.bf16 %v4580, %v4579
    %5000 = vrot.lane.b32.xlu0 %v4978, 96
    %v5001 = vpop.permute.xlu0 %5000
    %5002 = vrot.lane.b32.xlu0 %v4979, 96
    %v5003 = vpop.permute.xlu0 %5002
    %5007 = vrot.lane.b32.xlu0 %v4969, 96
    %v5008 = vpop.permute.xlu0 %5007
    %v5011 = vsel %vm116, %v4999, 0
    %5013 = vmatpush.bf16.msra.mxu0 0
    %5014 = vmatpush.bf16.msra.mxu0 0
    %5015 = vmatpush.bf16.msra.mxu0 0
    %5016 = vmatpush.bf16.msra.mxu0 0
    %5017 = vmatpush.bf16.msra.mxu0 0
    %5018 = vmatpush.bf16.msra.mxu0 0
    %5019 = vmatpush.bf16.msra.mxu0 %v5003
    %5020 = vmatpush.bf16.msra.mxu0 %v5001
    %5021 = vmatmul.bf16.gmra.mxu0 %v5011
    %v5022 = vpop.f32.mrf.mxu0
    %v5023 = vadd.f32 %v5008, %v5022
    %v5024 = vpop.f32.mrf.mxu0
    %v5025 = vadd.f32 %v5008, %v5024
    %5026 = vdwg.mxu0
    %v5028 = vsel %vm222, %v4995, 0
    %v5031 = vsel %vm222, %v4997, 0
    %v5034 = vsel %vm222, %v5023, 0
    %v5037 = vsel %vm222, %v5025, 0
    %5039 = vmatpush.xpose.msra.mxu0 0.0
    %5040 = vmatpush.xpose.msra.mxu0 0.0
    %5041 = vmatpush.xpose.msra.mxu0 0.0
    %5042 = vmatpush.xpose.msra.mxu0 0.0
    %5043 = vmatpush.xpose.msra.mxu0 0.0
    %5044 = vmatpush.xpose.msra.mxu0 0.0
    %5045 = vmatpush.xpose.msra.mxu0 0.0
    %5046 = vmatpush.xpose.msra.mxu0 0.0
    %5047 = vmatpush.xpose.msra.mxu0 0.0
    %5048 = vmatpush.xpose.msra.mxu0 0.0
    %5049 = vmatpush.xpose.msra.mxu0 0.0
    %5050 = vmatpush.xpose.msra.mxu0 0.0
    %5051 = vmatpush.xpose.msra.mxu0 0.0
    %5052 = vmatpush.xpose.msra.mxu0 0.0
    %5053 = vmatpush.xpose.msra.mxu0 %v5037
    %5054 = vmatpush.xpose.msra.mxu0 %v5034
    %5055 = vmatmul.f32.gmra.mxu0 %v5028
    %v5056 = vpop.f32.mrf.mxu0
    %v5057 = vadd.f32 0.0, %v5056
    %5058 = vmatmul.f32.gmra.mxu0 %v5031
    %v5059 = vpop.f32.mrf.mxu0
    %v5060 = vadd.f32 0.0, %v5059
    %5061 = vdwg.mxu0
    %v5062 = vmul.f32 %v5057, 0.25
    %v5063 = vmul.f32 %v5060, 0.25
    %v5064 = vadd.f32 %v5062, %v42
    %v5065 = vadd.f32 %v5063, %v43
    %v5066 = vsel %vm222, %v5064, -inf
    %5067 = vmax.xlane.f32.xlu0 %v5066
    %v5068 = vpop.xlane.xlu0 %5067
    %v5069 = vsel %vm222, %v5065, -inf
    %5070 = vmax.xlane.f32.xlu0 %v5069
    %v5071 = vpop.xlane.xlu0 %5070
    %v5072 = vsub.f32 %v5064, %v5068
    %v5073 = vsub.f32 %v5065, %v5071
    %v5074 = vmul.f32 %v5072, 1.442695
    %v5075 = vpow.pop %v5074
    %v5076 = vmul.f32 %v5073, 1.442695
    %v5077 = vpow.pop %v5076
    %v5078 = vsel %vm222, %v5075, 0.0
    %5079 = vadd.xlane.f32.xlu0 %v5078
    %v5080 = vpop.xlane.xlu0 %5079
    %v5081 = vsel %vm222, %v5077, 0.0
    %5082 = vadd.xlane.f32.xlu0 %v5081
    %v5083 = vpop.xlane.xlu0 %5082
    %v5084 = vrcp.pop %v5080
    %v5085 = vmul.f32 %v5080, %v5084
    %v5086 = vsub.f32 1.0, %v5085
    %v5087 = vmul.f32 %v5084, %v5086
    %v5088 = vadd.f32 %v5084, %v5087
    %vm5089 = vweird.f32 %v5080
    %vm5090 = vweird.f32 %v5084
    %vm5091 = vmor %vm5089, %vm5090
    %v5092 = vsel %vm5091, %v5084, %v5088
    %v5093 = vand.u32 2147483647, %v5080
    %vm5094 = vcmp.eq.f32.partialorder %v5093, 8.507059e+37
    %v5095 = vand.u32 %v5080, 2147483648
    %v5096 = vor.u32 1.1754944e-38, %v5095
    %v5097 = vsel %vm5094, %v5096, %v5092
    %v5098 = vrcp.pop %v5083
    %v5099 = vmul.f32 %v5083, %v5098
    %v5100 = vsub.f32 1.0, %v5099
    %v5101 = vmul.f32 %v5098, %v5100
    %v5102 = vadd.f32 %v5098, %v5101
    %vm5103 = vweird.f32 %v5083
    %vm5104 = vweird.f32 %v5098
    %vm5105 = vmor %vm5103, %vm5104
    %v5106 = vsel %vm5105, %v5098, %v5102
    %v5107 = vand.u32 2147483647, %v5083
    %vm5108 = vcmp.eq.f32.partialorder %v5107, 8.507059e+37
    %v5109 = vand.u32 %v5083, 2147483648
    %v5110 = vor.u32 1.1754944e-38, %v5109
    %v5111 = vsel %vm5108, %v5110, %v5106
    %v5112 = vmul.f32 %v5075, %v5097
    %v5113 = vmul.f32 %v5077, %v5111
    %5114 = vrot.lane.b32.xlu0 %v5023, 96
    %v5115 = vpop.permute.xlu0 %5114
    %5116 = vrot.lane.b32.xlu0 %v5025, 96
    %v5117 = vpop.permute.xlu0 %5116
    %v5121 = vsel %vm222, %v5112, 0
    %v5124 = vsel %vm222, %v5113, 0
    %5126 = vmatpush.msra.mxu0 0.0
    %5127 = vmatpush.msra.mxu0 0.0
    %5128 = vmatpush.msra.mxu0 0.0
    %5129 = vmatpush.msra.mxu0 0.0
    %5130 = vmatpush.msra.mxu0 0.0
    %5131 = vmatpush.msra.mxu0 0.0
    %5132 = vmatpush.msra.mxu0 0.0
    %5133 = vmatpush.msra.mxu0 0.0
    %5134 = vmatpush.msra.mxu0 0.0
    %5135 = vmatpush.msra.mxu0 0.0
    %5136 = vmatpush.msra.mxu0 0.0
    %5137 = vmatpush.msra.mxu0 0.0
    %5138 = vmatpush.msra.mxu0 0.0
    %5139 = vmatpush.msra.mxu0 0.0
    %5140 = vmatpush.msra.mxu0 %v5117
    %5141 = vmatpush.msra.mxu0 %v5115
    %5142 = vmatmul.f32.gmra.mxu0 %v5121
    %v5143 = vpop.f32.mrf.mxu0
    %v5144 = vadd.f32 0.0, %v5143
    %5145 = vmatmul.f32.gmra.mxu0 %v5124
    %v5146 = vpop.f32.mrf.mxu0
    %v5147 = vadd.f32 0.0, %v5146
    %5148 = vdwg.mxu0
    %5149 = vrot.lane.b32.xlu0 %v4995, 112
    %v5150 = vpop.permute.xlu0 %5149
    %5151 = vrot.lane.b32.xlu0 %v4997, 112
    %v5152 = vpop.permute.xlu0 %5151
    %5153 = vrot.lane.b32.xlu0 %v5023, 112
    %v5154 = vpop.permute.xlu0 %5153
    %5155 = vrot.lane.b32.xlu0 %v5025, 112
    %v5156 = vpop.permute.xlu0 %5155
    %v5157 = vsel %vm222, %v5150, 0
    %v5159 = vsel %vm222, %v5152, 0
    %v5161 = vsel %vm222, %v5154, 0
    %v5163 = vsel %vm222, %v5156, 0
    %5165 = vmatpush.xpose.msra.mxu0 0.0
    %5166 = vmatpush.xpose.msra.mxu0 0.0
    %5167 = vmatpush.xpose.msra.mxu0 0.0
    %5168 = vmatpush.xpose.msra.mxu0 0.0
    %5169 = vmatpush.xpose.msra.mxu0 0.0
    %5170 = vmatpush.xpose.msra.mxu0 0.0
    %5171 = vmatpush.xpose.msra.mxu0 0.0
    %5172 = vmatpush.xpose.msra.mxu0 0.0
    %5173 = vmatpush.xpose.msra.mxu0 0.0
    %5174 = vmatpush.xpose.msra.mxu0 0.0
    %5175 = vmatpush.xpose.msra.mxu0 0.0
    %5176 = vmatpush.xpose.msra.mxu0 0.0
    %5177 = vmatpush.xpose.msra.mxu0 0.0
    %5178 = vmatpush.xpose.msra.mxu0 0.0
    %5179 = vmatpush.xpose.msra.mxu0 %v5163
    %5180 = vmatpush.xpose.msra.mxu0 %v5161
    %5181 = vmatmul.f32.gmra.mxu0 %v5157
    %v5182 = vpop.f32.mrf.mxu0
    %v5183 = vadd.f32 0.0, %v5182
    %5184 = vmatmul.f32.gmra.mxu0 %v5159
    %v5185 = vpop.f32.mrf.mxu0
    %v5186 = vadd.f32 0.0, %v5185
    %5187 = vdwg.mxu0
    %v5188 = vmul.f32 %v5183, 0.25
    %v5189 = vmul.f32 %v5186, 0.25
    %v5190 = vadd.f32 %v5188, %v42
    %v5191 = vadd.f32 %v5189, %v43
    %v5192 = vsel %vm222, %v5190, -inf
    %5193 = vmax.xlane.f32.xlu0 %v5192
    %v5194 = vpop.xlane.xlu0 %5193
    %v5195 = vsel %vm222, %v5191, -inf
    %5196 = vmax.xlane.f32.xlu0 %v5195
    %v5197 = vpop.xlane.xlu0 %5196
    %v5198 = vsub.f32 %v5190, %v5194
    %v5199 = vsub.f32 %v5191, %v5197
    %v5200 = vmul.f32 %v5198, 1.442695
    %v5201 = vpow.pop %v5200
    %v5202 = vmul.f32 %v5199, 1.442695
    %v5203 = vpow.pop %v5202
    %v5204 = vsel %vm222, %v5201, 0.0
    %5205 = vadd.xlane.f32.xlu0 %v5204
    %v5206 = vpop.xlane.xlu0 %5205
    %v5207 = vsel %vm222, %v5203, 0.0
    %5208 = vadd.xlane.f32.xlu0 %v5207
    %v5209 = vpop.xlane.xlu0 %5208
    %v5210 = vrcp.pop %v5206
    %v5211 = vmul.f32 %v5206, %v5210
    %v5212 = vsub.f32 1.0, %v5211
    %v5213 = vmul.f32 %v5210, %v5212
    %v5214 = vadd.f32 %v5210, %v5213
    %vm5215 = vweird.f32 %v5206
    %vm5216 = vweird.f32 %v5210
    %vm5217 = vmor %vm5215, %vm5216
    %v5218 = vsel %vm5217, %v5210, %v5214
    %v5219 = vand.u32 2147483647, %v5206
    %vm5220 = vcmp.eq.f32.partialorder %v5219, 8.507059e+37
    %v5221 = vand.u32 %v5206, 2147483648
    %v5222 = vor.u32 1.1754944e-38, %v5221
    %v5223 = vsel %vm5220, %v5222, %v5218
    %v5224 = vrcp.pop %v5209
    %v5225 = vmul.f32 %v5209, %v5224
    %v5226 = vsub.f32 1.0, %v5225
    %v5227 = vmul.f32 %v5224, %v5226
    %v5228 = vadd.f32 %v5224, %v5227
    %vm5229 = vweird.f32 %v5209
    %vm5230 = vweird.f32 %v5224
    %vm5231 = vmor %vm5229, %vm5230
    %v5232 = vsel %vm5231, %v5224, %v5228
    %v5233 = vand.u32 2147483647, %v5209
    %vm5234 = vcmp.eq.f32.partialorder %v5233, 8.507059e+37
    %v5235 = vand.u32 %v5209, 2147483648
    %v5236 = vor.u32 1.1754944e-38, %v5235
    %v5237 = vsel %vm5234, %v5236, %v5232
    %v5238 = vmul.f32 %v5201, %v5223
    %v5239 = vmul.f32 %v5203, %v5237
    %5240 = vrot.lane.b32.xlu0 %v5023, 80
    %v5241 = vpop.permute.xlu0 %5240
    %5242 = vrot.lane.b32.xlu0 %v5025, 80
    %v5243 = vpop.permute.xlu0 %5242
    %v5247 = vsel %vm222, %v5238, 0
    %v5250 = vsel %vm222, %v5239, 0
    %5252 = vmatpush.msra.mxu0 0.0
    %5253 = vmatpush.msra.mxu0 0.0
    %5254 = vmatpush.msra.mxu0 0.0
    %5255 = vmatpush.msra.mxu0 0.0
    %5256 = vmatpush.msra.mxu0 0.0
    %5257 = vmatpush.msra.mxu0 0.0
    %5258 = vmatpush.msra.mxu0 0.0
    %5259 = vmatpush.msra.mxu0 0.0
    %5260 = vmatpush.msra.mxu0 0.0
    %5261 = vmatpush.msra.mxu0 0.0
    %5262 = vmatpush.msra.mxu0 0.0
    %5263 = vmatpush.msra.mxu0 0.0
    %5264 = vmatpush.msra.mxu0 0.0
    %5265 = vmatpush.msra.mxu0 0.0
    %5266 = vmatpush.msra.mxu0 %v5243
    %5267 = vmatpush.msra.mxu0 %v5241
    %5268 = vmatmul.f32.gmra.mxu0 %v5247
    %v5269 = vpop.f32.mrf.mxu0
    %v5270 = vadd.f32 0.0, %v5269
    %5271 = vmatmul.f32.gmra.mxu0 %v5250
    %v5272 = vpop.f32.mrf.mxu0
    %v5273 = vadd.f32 0.0, %v5272
    %5274 = vdwg.mxu0
    %5277 = vrot.lane.b32.xlu0 %v5270, 16
    %v5278 = vpop.permute.xlu0 %5277
    %5279 = vrot.lane.b32.xlu0 %v5273, 16
    %v5280 = vpop.permute.xlu0 %5279
    %v5283 = vsel %vm222, %v5144, %v5278
    %v5284 = vsel %vm222, %v5147, %v5280
    %v5285 = vpack.c.bf16 %v5284, %v5283
    %v5286 = vld [vmem:[%s5 + $0xa8] sm:$0xf]
    %v5287 = vld [vmem:[%s5 + $0xac] sm:$0xf]
    %v5288 = vld [vmem:[%s5 + $0xb0] sm:$0xf]
    %v5289 = vld [vmem:[%s5 + $0xb4] sm:$0xf]
    %v5290 = vld [vmem:[%s6 + $0xa] sm:$0x1]
    %v5291 = vperm.slane %v5290, 0
    %v5296 = vunpack.c.l.b16 %v5286
    %v5297 = vunpack.c.l.b16 %v5287
    %v5298 = vunpack.c.l.b16 %v5288
    %v5299 = vunpack.c.l.b16 %v5289
    %v5300 = vpack.c.b16 %v5297, %v5296
    %v5301 = vpack.c.b16 %v5299, %v5298
    %v5305 = vsel %vm116, %v5285, 0
    %5307 = vmatpush.bf16.msra.mxu0 0
    %5308 = vmatpush.bf16.msra.mxu0 0
    %5309 = vmatpush.bf16.msra.mxu0 0
    %5310 = vmatpush.bf16.msra.mxu0 0
    %5311 = vmatpush.bf16.msra.mxu0 0
    %5312 = vmatpush.bf16.msra.mxu0 0
    %5313 = vmatpush.bf16.msra.mxu0 %v5301
    %5314 = vmatpush.bf16.msra.mxu0 %v5300
    %5315 = vmatmul.bf16.gmra.mxu0 %v5305
    %v5316 = vpop.f32.mrf.mxu0
    %v5317 = vadd.f32 %v5291, %v5316
    %v5318 = vpop.f32.mrf.mxu0
    %v5319 = vadd.f32 %v5291, %v5318
    %5320 = vdwg.mxu0
    %v5321 = vadd.f32 %v4961, %v5317
    %v5322 = vadd.f32 %v4962, %v5319
    %v5323 = vsel %vm116, %v5321, 0.0
    %5324 = vadd.xlane.f32.xlu0 %v5323
    %v5325 = vpop.xlane.xlu0 %5324
    %v5326 = vsel %vm116, %v5322, 0.0
    %5327 = vadd.xlane.f32.xlu0 %v5326
    %v5328 = vpop.xlane.xlu0 %5327
    %v5329 = vmul.f32 %v5325, %v527
    %v5330 = vmul.f32 %v5328, %v527
    %v5331 = vsub.f32 %v5321, %v5329
    %v5332 = vsub.f32 %v5322, %v5330
    %v5333 = vmul.f32 %v5331, %v5331
    %v5334 = vmul.f32 %v5332, %v5332
    %v5335 = vsel %vm116, %v5333, 0.0
    %5336 = vadd.xlane.f32.xlu0 %v5335
    %v5337 = vpop.xlane.xlu0 %5336
    %v5338 = vsel %vm116, %v5334, 0.0
    %5339 = vadd.xlane.f32.xlu0 %v5338
    %v5340 = vpop.xlane.xlu0 %5339
    %v5341 = vmul.f32 %v5337, %v527
    %v5342 = vmul.f32 %v5340, %v527
    %v5343 = vadd.f32 %v5341, 1e-05
    %v5344 = vadd.f32 %v5342, 1e-05
    %v5345 = vrsqrt.pop %v5343
    %v5346 = vmul.f32 %v5345, %v5343
    %v5347 = vmul.f32 %v5346, %v5345
    %v5348 = vmul.f32 0.5, %v5347
    %v5349 = vsub.f32 1.5, %v5348
    %v5350 = vmul.f32 %v5345, %v5349
    %vm5351 = vweird.f32 %v5343
    %vm5352 = vweird.f32 %v5345
    %vm5353 = vmor %vm5351, %vm5352
    %v5354 = vsel %vm5353, %v5345, %v5350
    %v5355 = vrsqrt.pop %v5344
    %v5356 = vmul.f32 %v5355, %v5344
    %v5357 = vmul.f32 %v5356, %v5355
    %v5358 = vmul.f32 0.5, %v5357
    %v5359 = vsub.f32 1.5, %v5358
    %v5360 = vmul.f32 %v5355, %v5359
    %vm5361 = vweird.f32 %v5344
    %vm5362 = vweird.f32 %v5355
    %vm5363 = vmor %vm5361, %vm5362
    %v5364 = vsel %vm5363, %v5355, %v5360
    %v5365 = vmul.f32 %v5331, %v5354
    %v5366 = vmul.f32 %v5332, %v5364
    %v5367 = vld [vmem:[%s6 + $0x17] sm:$0x1]
    %v5368 = vperm.slane %v5367, 0
    %v5369 = vmul.f32 %v5365, %v5368
    %v5370 = vmul.f32 %v5366, %v5368
    %v5371 = vld [vmem:[%s6 + $0x18] sm:$0x1]
    %v5372 = vperm.slane %v5371, 0
    %v5373 = vadd.f32 %v5369, %v5372
    %v5374 = vadd.f32 %v5370, %v5372
    %v5375 = vpack.c.bf16 %v5374, %v5373
    %s5376 = scalar_lea.vmem %s7, 512
    %v5377 = vld [vmem:[%s5376] sm:$0xff]
    %v5378 = vld [vmem:[%s5376 + $0x8] sm:$0xff]
    %v5379 = vld [vmem:[%s5376 + $0x10] sm:$0xff]
    %v5380 = vld [vmem:[%s5376 + $0x18] sm:$0xff]
    %v5381 = vld [vmem:[%s5376 + $0x20] sm:$0xff]
    %v5382 = vld [vmem:[%s5376 + $0x28] sm:$0xff]
    %v5383 = vld [vmem:[%s5376 + $0x30] sm:$0xff]
    %v5384 = vld [vmem:[%s5376 + $0x38] sm:$0xff]
    %v5385 = vld [vmem:[%s5376 + $0x40] sm:$0xff]
    %v5386 = vld [vmem:[%s5376 + $0x48] sm:$0xff]
    %v5387 = vld [vmem:[%s5376 + $0x50] sm:$0xff]
    %v5388 = vld [vmem:[%s5376 + $0x58] sm:$0xff]
    %v5389 = vld [vmem:[%s5376 + $0x60] sm:$0xff]
    %v5390 = vld [vmem:[%s5376 + $0x68] sm:$0xff]
    %v5391 = vld [vmem:[%s5376 + $0x70] sm:$0xff]
    %v5392 = vld [vmem:[%s5376 + $0x78] sm:$0xff]
    %v5393 = vld [vmem:[%s5376 + $0x80] sm:$0xff]
    %v5394 = vld [vmem:[%s5376 + $0x88] sm:$0xff]
    %v5395 = vld [vmem:[%s5376 + $0x90] sm:$0xff]
    %v5396 = vld [vmem:[%s5376 + $0x98] sm:$0xff]
    %v5397 = vld [vmem:[%s5376 + $0xa0] sm:$0xff]
    %v5398 = vld [vmem:[%s5376 + $0xa8] sm:$0xff]
    %v5399 = vld [vmem:[%s5376 + $0xb0] sm:$0xff]
    %v5400 = vld [vmem:[%s5376 + $0xb8] sm:$0xff]
    %v5401 = vld [vmem:[%s5376 + $0xc0] sm:$0xff]
    %v5402 = vld [vmem:[%s5376 + $0xc8] sm:$0xff]
    %v5403 = vld [vmem:[%s5376 + $0xd0] sm:$0xff]
    %v5404 = vld [vmem:[%s5376 + $0xd8] sm:$0xff]
    %v5405 = vld [vmem:[%s5376 + $0xe0] sm:$0xff]
    %v5406 = vld [vmem:[%s5376 + $0xe8] sm:$0xff]
    %v5407 = vld [vmem:[%s5376 + $0xf0] sm:$0xff]
    %v5408 = vld [vmem:[%s5376 + $0xf8] sm:$0xff]
    %s5409 = scalar_lea.vmem %s9, 2
    %v5410 = vld [vmem:[%s5409] ss:$4 sm:$0xff]
    %s5411 = scalar_lea.vmem %s9, 34
    %v5412 = vld [vmem:[%s5411] ss:$4 sm:$0xff]
    %v5415 = vperm.slane %v5410, 0
    %v5416 = vperm.slane %v5410, 1
    %v5417 = vperm.slane %v5410, 2
    %v5418 = vperm.slane %v5410, 3
    %v5419 = vperm.slane %v5410, 4
    %v5420 = vperm.slane %v5410, 5
    %v5421 = vperm.slane %v5410, 6
    %v5422 = vperm.slane %v5410, 7
    %v5423 = vperm.slane %v5412, 0
    %v5424 = vperm.slane %v5412, 1
    %v5425 = vperm.slane %v5412, 2
    %v5426 = vperm.slane %v5412, 3
    %v5427 = vperm.slane %v5412, 4
    %v5428 = vperm.slane %v5412, 5
    %v5429 = vperm.slane %v5412, 6
    %v5430 = vperm.slane %v5412, 7
    %v5479 = vunpack.c.l.b16 %v5377
    %v5480 = vunpack.c.h.b16 %v5377
    %v5481 = vunpack.c.l.b16 %v5378
    %v5482 = vunpack.c.h.b16 %v5378
    %v5483 = vunpack.c.l.b16 %v5379
    %v5484 = vunpack.c.h.b16 %v5379
    %v5485 = vunpack.c.l.b16 %v5380
    %v5486 = vunpack.c.h.b16 %v5380
    %v5487 = vunpack.c.l.b16 %v5381
    %v5488 = vunpack.c.h.b16 %v5381
    %v5489 = vunpack.c.l.b16 %v5382
    %v5490 = vunpack.c.h.b16 %v5382
    %v5491 = vunpack.c.l.b16 %v5383
    %v5492 = vunpack.c.h.b16 %v5383
    %v5493 = vunpack.c.l.b16 %v5384
    %v5494 = vunpack.c.h.b16 %v5384
    %v5495 = vunpack.c.l.b16 %v5385
    %v5496 = vunpack.c.h.b16 %v5385
    %v5497 = vunpack.c.l.b16 %v5386
    %v5498 = vunpack.c.h.b16 %v5386
    %v5499 = vunpack.c.l.b16 %v5387
    %v5500 = vunpack.c.h.b16 %v5387
    %v5501 = vunpack.c.l.b16 %v5388
    %v5502 = vunpack.c.h.b16 %v5388
    %v5503 = vunpack.c.l.b16 %v5389
    %v5504 = vunpack.c.h.b16 %v5389
    %v5505 = vunpack.c.l.b16 %v5390
    %v5506 = vunpack.c.h.b16 %v5390
    %v5507 = vunpack.c.l.b16 %v5391
    %v5508 = vunpack.c.h.b16 %v5391
    %v5509 = vunpack.c.l.b16 %v5392
    %v5510 = vunpack.c.h.b16 %v5392
    %v5511 = vunpack.c.l.b16 %v5393
    %v5512 = vunpack.c.h.b16 %v5393
    %v5513 = vunpack.c.l.b16 %v5394
    %v5514 = vunpack.c.h.b16 %v5394
    %v5515 = vunpack.c.l.b16 %v5395
    %v5516 = vunpack.c.h.b16 %v5395
    %v5517 = vunpack.c.l.b16 %v5396
    %v5518 = vunpack.c.h.b16 %v5396
    %v5519 = vunpack.c.l.b16 %v5397
    %v5520 = vunpack.c.h.b16 %v5397
    %v5521 = vunpack.c.l.b16 %v5398
    %v5522 = vunpack.c.h.b16 %v5398
    %v5523 = vunpack.c.l.b16 %v5399
    %v5524 = vunpack.c.h.b16 %v5399
    %v5525 = vunpack.c.l.b16 %v5400
    %v5526 = vunpack.c.h.b16 %v5400
    %v5527 = vunpack.c.l.b16 %v5401
    %v5528 = vunpack.c.h.b16 %v5401
    %v5529 = vunpack.c.l.b16 %v5402
    %v5530 = vunpack.c.h.b16 %v5402
    %v5531 = vunpack.c.l.b16 %v5403
    %v5532 = vunpack.c.h.b16 %v5403
    %v5533 = vunpack.c.l.b16 %v5404
    %v5534 = vunpack.c.h.b16 %v5404
    %v5535 = vunpack.c.l.b16 %v5405
    %v5536 = vunpack.c.h.b16 %v5405
    %v5537 = vunpack.c.l.b16 %v5406
    %v5538 = vunpack.c.h.b16 %v5406
    %v5539 = vunpack.c.l.b16 %v5407
    %v5540 = vunpack.c.h.b16 %v5407
    %v5541 = vunpack.c.l.b16 %v5408
    %v5542 = vunpack.c.h.b16 %v5408
    %v5543 = vpack.c.b16 %v5495, %v5479
    %v5544 = vpack.c.b16 %v5496, %v5480
    %v5545 = vpack.c.b16 %v5497, %v5481
    %v5546 = vpack.c.b16 %v5498, %v5482
    %v5547 = vpack.c.b16 %v5499, %v5483
    %v5548 = vpack.c.b16 %v5500, %v5484
    %v5549 = vpack.c.b16 %v5501, %v5485
    %v5550 = vpack.c.b16 %v5502, %v5486
    %v5551 = vpack.c.b16 %v5503, %v5487
    %v5552 = vpack.c.b16 %v5504, %v5488
    %v5553 = vpack.c.b16 %v5505, %v5489
    %v5554 = vpack.c.b16 %v5506, %v5490
    %v5555 = vpack.c.b16 %v5507, %v5491
    %v5556 = vpack.c.b16 %v5508, %v5492
    %v5557 = vpack.c.b16 %v5509, %v5493
    %v5558 = vpack.c.b16 %v5510, %v5494
    %v5559 = vpack.c.b16 %v5527, %v5511
    %v5560 = vpack.c.b16 %v5528, %v5512
    %v5561 = vpack.c.b16 %v5529, %v5513
    %v5562 = vpack.c.b16 %v5530, %v5514
    %v5563 = vpack.c.b16 %v5531, %v5515
    %v5564 = vpack.c.b16 %v5532, %v5516
    %v5565 = vpack.c.b16 %v5533, %v5517
    %v5566 = vpack.c.b16 %v5534, %v5518
    %v5567 = vpack.c.b16 %v5535, %v5519
    %v5568 = vpack.c.b16 %v5536, %v5520
    %v5569 = vpack.c.b16 %v5537, %v5521
    %v5570 = vpack.c.b16 %v5538, %v5522
    %v5571 = vpack.c.b16 %v5539, %v5523
    %v5572 = vpack.c.b16 %v5540, %v5524
    %v5573 = vpack.c.b16 %v5541, %v5525
    %v5574 = vpack.c.b16 %v5542, %v5526
    %v5608 = vsel %vm116, %v5375, 0
    %5610 = vmatpush.bf16.msra.mxu0 0
    %5611 = vmatpush.bf16.msra.mxu0 0
    %5612 = vmatpush.bf16.msra.mxu0 0
    %5613 = vmatpush.bf16.msra.mxu0 0
    %5614 = vmatpush.bf16.msra.mxu0 0
    %5615 = vmatpush.bf16.msra.mxu0 0
    %5616 = vmatpush.bf16.msra.mxu0 %v5559
    %5617 = vmatpush.bf16.msra.mxu0 %v5543
    %5618 = vmatmul.bf16.gmra.mxu0 %v5608
    %v5619 = vpop.f32.mrf.mxu0
    %v5620 = vadd.f32 %v5415, %v5619
    %v5621 = vpop.f32.mrf.mxu0
    %v5622 = vadd.f32 %v5415, %v5621
    %5623 = vdwg.mxu0
    %5624 = vmatpush.bf16.msra.mxu0 0
    %5625 = vmatpush.bf16.msra.mxu0 0
    %5626 = vmatpush.bf16.msra.mxu0 0
    %5627 = vmatpush.bf16.msra.mxu0 0
    %5628 = vmatpush.bf16.msra.mxu0 0
    %5629 = vmatpush.bf16.msra.mxu0 0
    %5630 = vmatpush.bf16.msra.mxu0 %v5560
    %5631 = vmatpush.bf16.msra.mxu0 %v5544
    %5632 = vmatmul.bf16.gmra.mxu0 %v5608
    %v5633 = vpop.f32.mrf.mxu0
    %v5634 = vadd.f32 %v5416, %v5633
    %v5635 = vpop.f32.mrf.mxu0
    %v5636 = vadd.f32 %v5416, %v5635
    %5637 = vdwg.mxu0
    %5638 = vmatpush.bf16.msra.mxu0 0
    %5639 = vmatpush.bf16.msra.mxu0 0
    %5640 = vmatpush.bf16.msra.mxu0 0
    %5641 = vmatpush.bf16.msra.mxu0 0
    %5642 = vmatpush.bf16.msra.mxu0 0
    %5643 = vmatpush.bf16.msra.mxu0 0
    %5644 = vmatpush.bf16.msra.mxu0 %v5561
    %5645 = vmatpush.bf16.msra.mxu0 %v5545
    %5646 = vmatmul.bf16.gmra.mxu0 %v5608
    %v5647 = vpop.f32.mrf.mxu0
    %v5648 = vadd.f32 %v5417, %v5647
    %v5649 = vpop.f32.mrf.mxu0
    %v5650 = vadd.f32 %v5417, %v5649
    %5651 = vdwg.mxu0
    %5652 = vmatpush.bf16.msra.mxu0 0
    %5653 = vmatpush.bf16.msra.mxu0 0
    %5654 = vmatpush.bf16.msra.mxu0 0
    %5655 = vmatpush.bf16.msra.mxu0 0
    %5656 = vmatpush.bf16.msra.mxu0 0
    %5657 = vmatpush.bf16.msra.mxu0 0
    %5658 = vmatpush.bf16.msra.mxu0 %v5562
    %5659 = vmatpush.bf16.msra.mxu0 %v5546
    %5660 = vmatmul.bf16.gmra.mxu0 %v5608
    %v5661 = vpop.f32.mrf.mxu0
    %v5662 = vadd.f32 %v5418, %v5661
    %v5663 = vpop.f32.mrf.mxu0
    %v5664 = vadd.f32 %v5418, %v5663
    %5665 = vdwg.mxu0
    %5666 = vmatpush.bf16.msra.mxu0 0
    %5667 = vmatpush.bf16.msra.mxu0 0
    %5668 = vmatpush.bf16.msra.mxu0 0
    %5669 = vmatpush.bf16.msra.mxu0 0
    %5670 = vmatpush.bf16.msra.mxu0 0
    %5671 = vmatpush.bf16.msra.mxu0 0
    %5672 = vmatpush.bf16.msra.mxu0 %v5563
    %5673 = vmatpush.bf16.msra.mxu0 %v5547
    %5674 = vmatmul.bf16.gmra.mxu0 %v5608
    %v5675 = vpop.f32.mrf.mxu0
    %v5676 = vadd.f32 %v5419, %v5675
    %v5677 = vpop.f32.mrf.mxu0
    %v5678 = vadd.f32 %v5419, %v5677
    %5679 = vdwg.mxu0
    %5680 = vmatpush.bf16.msra.mxu0 0
    %5681 = vmatpush.bf16.msra.mxu0 0
    %5682 = vmatpush.bf16.msra.mxu0 0
    %5683 = vmatpush.bf16.msra.mxu0 0
    %5684 = vmatpush.bf16.msra.mxu0 0
    %5685 = vmatpush.bf16.msra.mxu0 0
    %5686 = vmatpush.bf16.msra.mxu0 %v5564
    %5687 = vmatpush.bf16.msra.mxu0 %v5548
    %5688 = vmatmul.bf16.gmra.mxu0 %v5608
    %v5689 = vpop.f32.mrf.mxu0
    %v5690 = vadd.f32 %v5420, %v5689
    %v5691 = vpop.f32.mrf.mxu0
    %v5692 = vadd.f32 %v5420, %v5691
    %5693 = vdwg.mxu0
    %5694 = vmatpush.bf16.msra.mxu0 0
    %5695 = vmatpush.bf16.msra.mxu0 0
    %5696 = vmatpush.bf16.msra.mxu0 0
    %5697 = vmatpush.bf16.msra.mxu0 0
    %5698 = vmatpush.bf16.msra.mxu0 0
    %5699 = vmatpush.bf16.msra.mxu0 0
    %5700 = vmatpush.bf16.msra.mxu0 %v5565
    %5701 = vmatpush.bf16.msra.mxu0 %v5549
    %5702 = vmatmul.bf16.gmra.mxu0 %v5608
    %v5703 = vpop.f32.mrf.mxu0
    %v5704 = vadd.f32 %v5421, %v5703
    %v5705 = vpop.f32.mrf.mxu0
    %v5706 = vadd.f32 %v5421, %v5705
    %5707 = vdwg.mxu0
    %5708 = vmatpush.bf16.msra.mxu0 0
    %5709 = vmatpush.bf16.msra.mxu0 0
    %5710 = vmatpush.bf16.msra.mxu0 0
    %5711 = vmatpush.bf16.msra.mxu0 0
    %5712 = vmatpush.bf16.msra.mxu0 0
    %5713 = vmatpush.bf16.msra.mxu0 0
    %5714 = vmatpush.bf16.msra.mxu0 %v5566
    %5715 = vmatpush.bf16.msra.mxu0 %v5550
    %5716 = vmatmul.bf16.gmra.mxu0 %v5608
    %v5717 = vpop.f32.mrf.mxu0
    %v5718 = vadd.f32 %v5422, %v5717
    %v5719 = vpop.f32.mrf.mxu0
    %v5720 = vadd.f32 %v5422, %v5719
    %5721 = vdwg.mxu0
    %5722 = vmatpush.bf16.msra.mxu0 0
    %5723 = vmatpush.bf16.msra.mxu0 0
    %5724 = vmatpush.bf16.msra.mxu0 0
    %5725 = vmatpush.bf16.msra.mxu0 0
    %5726 = vmatpush.bf16.msra.mxu0 0
    %5727 = vmatpush.bf16.msra.mxu0 0
    %5728 = vmatpush.bf16.msra.mxu0 %v5567
    %5729 = vmatpush.bf16.msra.mxu0 %v5551
    %5730 = vmatmul.bf16.gmra.mxu0 %v5608
    %v5731 = vpop.f32.mrf.mxu0
    %v5732 = vadd.f32 %v5423, %v5731
    %v5733 = vpop.f32.mrf.mxu0
    %v5734 = vadd.f32 %v5423, %v5733
    %5735 = vdwg.mxu0
    %5736 = vmatpush.bf16.msra.mxu0 0
    %5737 = vmatpush.bf16.msra.mxu0 0
    %5738 = vmatpush.bf16.msra.mxu0 0
    %5739 = vmatpush.bf16.msra.mxu0 0
    %5740 = vmatpush.bf16.msra.mxu0 0
    %5741 = vmatpush.bf16.msra.mxu0 0
    %5742 = vmatpush.bf16.msra.mxu0 %v5568
    %5743 = vmatpush.bf16.msra.mxu0 %v5552
    %5744 = vmatmul.bf16.gmra.mxu0 %v5608
    %v5745 = vpop.f32.mrf.mxu0
    %v5746 = vadd.f32 %v5424, %v5745
    %v5747 = vpop.f32.mrf.mxu0
    %v5748 = vadd.f32 %v5424, %v5747
    %5749 = vdwg.mxu0
    %5750 = vmatpush.bf16.msra.mxu0 0
    %5751 = vmatpush.bf16.msra.mxu0 0
    %5752 = vmatpush.bf16.msra.mxu0 0
    %5753 = vmatpush.bf16.msra.mxu0 0
    %5754 = vmatpush.bf16.msra.mxu0 0
    %5755 = vmatpush.bf16.msra.mxu0 0
    %5756 = vmatpush.bf16.msra.mxu0 %v5569
    %5757 = vmatpush.bf16.msra.mxu0 %v5553
    %5758 = vmatmul.bf16.gmra.mxu0 %v5608
    %v5759 = vpop.f32.mrf.mxu0
    %v5760 = vadd.f32 %v5425, %v5759
    %v5761 = vpop.f32.mrf.mxu0
    %v5762 = vadd.f32 %v5425, %v5761
    %5763 = vdwg.mxu0
    %5764 = vmatpush.bf16.msra.mxu0 0
    %5765 = vmatpush.bf16.msra.mxu0 0
    %5766 = vmatpush.bf16.msra.mxu0 0
    %5767 = vmatpush.bf16.msra.mxu0 0
    %5768 = vmatpush.bf16.msra.mxu0 0
    %5769 = vmatpush.bf16.msra.mxu0 0
    %5770 = vmatpush.bf16.msra.mxu0 %v5570
    %5771 = vmatpush.bf16.msra.mxu0 %v5554
    %5772 = vmatmul.bf16.gmra.mxu0 %v5608
    %v5773 = vpop.f32.mrf.mxu0
    %v5774 = vadd.f32 %v5426, %v5773
    %v5775 = vpop.f32.mrf.mxu0
    %v5776 = vadd.f32 %v5426, %v5775
    %5777 = vdwg.mxu0
    %5778 = vmatpush.bf16.msra.mxu0 0
    %5779 = vmatpush.bf16.msra.mxu0 0
    %5780 = vmatpush.bf16.msra.mxu0 0
    %5781 = vmatpush.bf16.msra.mxu0 0
    %5782 = vmatpush.bf16.msra.mxu0 0
    %5783 = vmatpush.bf16.msra.mxu0 0
    %5784 = vmatpush.bf16.msra.mxu0 %v5571
    %5785 = vmatpush.bf16.msra.mxu0 %v5555
    %5786 = vmatmul.bf16.gmra.mxu0 %v5608
    %v5787 = vpop.f32.mrf.mxu0
    %v5788 = vadd.f32 %v5427, %v5787
    %v5789 = vpop.f32.mrf.mxu0
    %v5790 = vadd.f32 %v5427, %v5789
    %5791 = vdwg.mxu0
    %5792 = vmatpush.bf16.msra.mxu0 0
    %5793 = vmatpush.bf16.msra.mxu0 0
    %5794 = vmatpush.bf16.msra.mxu0 0
    %5795 = vmatpush.bf16.msra.mxu0 0
    %5796 = vmatpush.bf16.msra.mxu0 0
    %5797 = vmatpush.bf16.msra.mxu0 0
    %5798 = vmatpush.bf16.msra.mxu0 %v5572
    %5799 = vmatpush.bf16.msra.mxu0 %v5556
    %5800 = vmatmul.bf16.gmra.mxu0 %v5608
    %v5801 = vpop.f32.mrf.mxu0
    %v5802 = vadd.f32 %v5428, %v5801
    %v5803 = vpop.f32.mrf.mxu0
    %v5804 = vadd.f32 %v5428, %v5803
    %5805 = vdwg.mxu0
    %5806 = vmatpush.bf16.msra.mxu0 0
    %5807 = vmatpush.bf16.msra.mxu0 0
    %5808 = vmatpush.bf16.msra.mxu0 0
    %5809 = vmatpush.bf16.msra.mxu0 0
    %5810 = vmatpush.bf16.msra.mxu0 0
    %5811 = vmatpush.bf16.msra.mxu0 0
    %5812 = vmatpush.bf16.msra.mxu0 %v5573
    %5813 = vmatpush.bf16.msra.mxu0 %v5557
    %5814 = vmatmul.bf16.gmra.mxu0 %v5608
    %v5815 = vpop.f32.mrf.mxu0
    %v5816 = vadd.f32 %v5429, %v5815
    %v5817 = vpop.f32.mrf.mxu0
    %v5818 = vadd.f32 %v5429, %v5817
    %5819 = vdwg.mxu0
    %5820 = vmatpush.bf16.msra.mxu0 0
    %5821 = vmatpush.bf16.msra.mxu0 0
    %5822 = vmatpush.bf16.msra.mxu0 0
    %5823 = vmatpush.bf16.msra.mxu0 0
    %5824 = vmatpush.bf16.msra.mxu0 0
    %5825 = vmatpush.bf16.msra.mxu0 0
    %5826 = vmatpush.bf16.msra.mxu0 %v5574
    %5827 = vmatpush.bf16.msra.mxu0 %v5558
    %5828 = vmatmul.bf16.gmra.mxu0 %v5608
    %v5829 = vpop.f32.mrf.mxu0
    %v5830 = vadd.f32 %v5430, %v5829
    %v5831 = vpop.f32.mrf.mxu0
    %v5832 = vadd.f32 %v5430, %v5831
    %5833 = vdwg.mxu0
    %v5834 = vmax.f32 %v5620, 0.0
    %v5835 = vmax.f32 %v5634, 0.0
    %v5836 = vmax.f32 %v5648, 0.0
    %v5837 = vmax.f32 %v5662, 0.0
    %v5838 = vmax.f32 %v5676, 0.0
    %v5839 = vmax.f32 %v5690, 0.0
    %v5840 = vmax.f32 %v5704, 0.0
    %v5841 = vmax.f32 %v5718, 0.0
    %v5842 = vmax.f32 %v5732, 0.0
    %v5843 = vmax.f32 %v5746, 0.0
    %v5844 = vmax.f32 %v5760, 0.0
    %v5845 = vmax.f32 %v5774, 0.0
    %v5846 = vmax.f32 %v5788, 0.0
    %v5847 = vmax.f32 %v5802, 0.0
    %v5848 = vmax.f32 %v5816, 0.0
    %v5849 = vmax.f32 %v5830, 0.0
    %v5850 = vmax.f32 %v5622, 0.0
    %v5851 = vmax.f32 %v5636, 0.0
    %v5852 = vmax.f32 %v5650, 0.0
    %v5853 = vmax.f32 %v5664, 0.0
    %v5854 = vmax.f32 %v5678, 0.0
    %v5855 = vmax.f32 %v5692, 0.0
    %v5856 = vmax.f32 %v5706, 0.0
    %v5857 = vmax.f32 %v5720, 0.0
    %v5858 = vmax.f32 %v5734, 0.0
    %v5859 = vmax.f32 %v5748, 0.0
    %v5860 = vmax.f32 %v5762, 0.0
    %v5861 = vmax.f32 %v5776, 0.0
    %v5862 = vmax.f32 %v5790, 0.0
    %v5863 = vmax.f32 %v5804, 0.0
    %v5864 = vmax.f32 %v5818, 0.0
    %v5865 = vmax.f32 %v5832, 0.0
    %v5866 = vpack.c.bf16 %v5850, %v5834
    %v5867 = vpack.c.bf16 %v5851, %v5835
    %v5868 = vpack.c.bf16 %v5852, %v5836
    %v5869 = vpack.c.bf16 %v5853, %v5837
    %v5870 = vpack.c.bf16 %v5854, %v5838
    %v5871 = vpack.c.bf16 %v5855, %v5839
    %v5872 = vpack.c.bf16 %v5856, %v5840
    %v5873 = vpack.c.bf16 %v5857, %v5841
    %v5874 = vpack.c.bf16 %v5858, %v5842
    %v5875 = vpack.c.bf16 %v5859, %v5843
    %v5876 = vpack.c.bf16 %v5860, %v5844
    %v5877 = vpack.c.bf16 %v5861, %v5845
    %v5878 = vpack.c.bf16 %v5862, %v5846
    %v5879 = vpack.c.bf16 %v5863, %v5847
    %v5880 = vpack.c.bf16 %v5864, %v5848
    %v5881 = vpack.c.bf16 %v5865, %v5849
    %s5882 = scalar_lea.vmem %s8, 2048
    %v5883 = vld [vmem:[%s5882] sm:$0xf]
    %v5884 = vld [vmem:[%s5882 + $0x4] sm:$0xf]
    %v5885 = vld [vmem:[%s5882 + $0x8] sm:$0xf]
    %v5886 = vld [vmem:[%s5882 + $0xc] sm:$0xf]
    %v5887 = vld [vmem:[%s5882 + $0x10] sm:$0xf]
    %v5888 = vld [vmem:[%s5882 + $0x14] sm:$0xf]
    %v5889 = vld [vmem:[%s5882 + $0x18] sm:$0xf]
    %v5890 = vld [vmem:[%s5882 + $0x1c] sm:$0xf]
    %v5891 = vld [vmem:[%s5882 + $0x20] sm:$0xf]
    %v5892 = vld [vmem:[%s5882 + $0x24] sm:$0xf]
    %v5893 = vld [vmem:[%s5882 + $0x28] sm:$0xf]
    %v5894 = vld [vmem:[%s5882 + $0x2c] sm:$0xf]
    %v5895 = vld [vmem:[%s5882 + $0x30] sm:$0xf]
    %v5896 = vld [vmem:[%s5882 + $0x34] sm:$0xf]
    %v5897 = vld [vmem:[%s5882 + $0x38] sm:$0xf]
    %v5898 = vld [vmem:[%s5882 + $0x3c] sm:$0xf]
    %v5899 = vld [vmem:[%s5882 + $0x40] sm:$0xf]
    %v5900 = vld [vmem:[%s5882 + $0x44] sm:$0xf]
    %v5901 = vld [vmem:[%s5882 + $0x48] sm:$0xf]
    %v5902 = vld [vmem:[%s5882 + $0x4c] sm:$0xf]
    %v5903 = vld [vmem:[%s5882 + $0x50] sm:$0xf]
    %v5904 = vld [vmem:[%s5882 + $0x54] sm:$0xf]
    %v5905 = vld [vmem:[%s5882 + $0x58] sm:$0xf]
    %v5906 = vld [vmem:[%s5882 + $0x5c] sm:$0xf]
    %v5907 = vld [vmem:[%s5882 + $0x60] sm:$0xf]
    %v5908 = vld [vmem:[%s5882 + $0x64] sm:$0xf]
    %v5909 = vld [vmem:[%s5882 + $0x68] sm:$0xf]
    %v5910 = vld [vmem:[%s5882 + $0x6c] sm:$0xf]
    %v5911 = vld [vmem:[%s5882 + $0x70] sm:$0xf]
    %v5912 = vld [vmem:[%s5882 + $0x74] sm:$0xf]
    %v5913 = vld [vmem:[%s5882 + $0x78] sm:$0xf]
    %v5914 = vld [vmem:[%s5882 + $0x7c] sm:$0xf]
    %v5915 = vld [vmem:[%s5882 + $0x80] sm:$0xf]
    %v5916 = vld [vmem:[%s5882 + $0x84] sm:$0xf]
    %v5917 = vld [vmem:[%s5882 + $0x88] sm:$0xf]
    %v5918 = vld [vmem:[%s5882 + $0x8c] sm:$0xf]
    %v5919 = vld [vmem:[%s5882 + $0x90] sm:$0xf]
    %v5920 = vld [vmem:[%s5882 + $0x94] sm:$0xf]
    %v5921 = vld [vmem:[%s5882 + $0x98] sm:$0xf]
    %v5922 = vld [vmem:[%s5882 + $0x9c] sm:$0xf]
    %v5923 = vld [vmem:[%s5882 + $0xa0] sm:$0xf]
    %v5924 = vld [vmem:[%s5882 + $0xa4] sm:$0xf]
    %v5925 = vld [vmem:[%s5882 + $0xa8] sm:$0xf]
    %v5926 = vld [vmem:[%s5882 + $0xac] sm:$0xf]
    %v5927 = vld [vmem:[%s5882 + $0xb0] sm:$0xf]
    %v5928 = vld [vmem:[%s5882 + $0xb4] sm:$0xf]
    %v5929 = vld [vmem:[%s5882 + $0xb8] sm:$0xf]
    %v5930 = vld [vmem:[%s5882 + $0xbc] sm:$0xf]
    %v5931 = vld [vmem:[%s5882 + $0xc0] sm:$0xf]
    %v5932 = vld [vmem:[%s5882 + $0xc4] sm:$0xf]
    %v5933 = vld [vmem:[%s5882 + $0xc8] sm:$0xf]
    %v5934 = vld [vmem:[%s5882 + $0xcc] sm:$0xf]
    %v5935 = vld [vmem:[%s5882 + $0xd0] sm:$0xf]
    %v5936 = vld [vmem:[%s5882 + $0xd4] sm:$0xf]
    %v5937 = vld [vmem:[%s5882 + $0xd8] sm:$0xf]
    %v5938 = vld [vmem:[%s5882 + $0xdc] sm:$0xf]
    %v5939 = vld [vmem:[%s5882 + $0xe0] sm:$0xf]
    %v5940 = vld [vmem:[%s5882 + $0xe4] sm:$0xf]
    %v5941 = vld [vmem:[%s5882 + $0xe8] sm:$0xf]
    %v5942 = vld [vmem:[%s5882 + $0xec] sm:$0xf]
    %v5943 = vld [vmem:[%s5882 + $0xf0] sm:$0xf]
    %v5944 = vld [vmem:[%s5882 + $0xf4] sm:$0xf]
    %v5945 = vld [vmem:[%s5882 + $0xf8] sm:$0xf]
    %v5946 = vld [vmem:[%s5882 + $0xfc] sm:$0xf]
    %v5947 = vld [vmem:[%s5882 + $0x100] sm:$0xf]
    %v5948 = vld [vmem:[%s5882 + $0x104] sm:$0xf]
    %v5949 = vld [vmem:[%s5882 + $0x108] sm:$0xf]
    %v5950 = vld [vmem:[%s5882 + $0x10c] sm:$0xf]
    %v5951 = vld [vmem:[%s5882 + $0x110] sm:$0xf]
    %v5952 = vld [vmem:[%s5882 + $0x114] sm:$0xf]
    %v5953 = vld [vmem:[%s5882 + $0x118] sm:$0xf]
    %v5954 = vld [vmem:[%s5882 + $0x11c] sm:$0xf]
    %v5955 = vld [vmem:[%s5882 + $0x120] sm:$0xf]
    %v5956 = vld [vmem:[%s5882 + $0x124] sm:$0xf]
    %v5957 = vld [vmem:[%s5882 + $0x128] sm:$0xf]
    %v5958 = vld [vmem:[%s5882 + $0x12c] sm:$0xf]
    %v5959 = vld [vmem:[%s5882 + $0x130] sm:$0xf]
    %v5960 = vld [vmem:[%s5882 + $0x134] sm:$0xf]
    %v5961 = vld [vmem:[%s5882 + $0x138] sm:$0xf]
    %v5962 = vld [vmem:[%s5882 + $0x13c] sm:$0xf]
    %v5963 = vld [vmem:[%s5882 + $0x140] sm:$0xf]
    %v5964 = vld [vmem:[%s5882 + $0x144] sm:$0xf]
    %v5965 = vld [vmem:[%s5882 + $0x148] sm:$0xf]
    %v5966 = vld [vmem:[%s5882 + $0x14c] sm:$0xf]
    %v5967 = vld [vmem:[%s5882 + $0x150] sm:$0xf]
    %v5968 = vld [vmem:[%s5882 + $0x154] sm:$0xf]
    %v5969 = vld [vmem:[%s5882 + $0x158] sm:$0xf]
    %v5970 = vld [vmem:[%s5882 + $0x15c] sm:$0xf]
    %v5971 = vld [vmem:[%s5882 + $0x160] sm:$0xf]
    %v5972 = vld [vmem:[%s5882 + $0x164] sm:$0xf]
    %v5973 = vld [vmem:[%s5882 + $0x168] sm:$0xf]
    %v5974 = vld [vmem:[%s5882 + $0x16c] sm:$0xf]
    %v5975 = vld [vmem:[%s5882 + $0x170] sm:$0xf]
    %v5976 = vld [vmem:[%s5882 + $0x174] sm:$0xf]
    %v5977 = vld [vmem:[%s5882 + $0x178] sm:$0xf]
    %v5978 = vld [vmem:[%s5882 + $0x17c] sm:$0xf]
    %v5979 = vld [vmem:[%s5882 + $0x180] sm:$0xf]
    %v5980 = vld [vmem:[%s5882 + $0x184] sm:$0xf]
    %v5981 = vld [vmem:[%s5882 + $0x188] sm:$0xf]
    %v5982 = vld [vmem:[%s5882 + $0x18c] sm:$0xf]
    %v5983 = vld [vmem:[%s5882 + $0x190] sm:$0xf]
    %v5984 = vld [vmem:[%s5882 + $0x194] sm:$0xf]
    %v5985 = vld [vmem:[%s5882 + $0x198] sm:$0xf]
    %v5986 = vld [vmem:[%s5882 + $0x19c] sm:$0xf]
    %v5987 = vld [vmem:[%s5882 + $0x1a0] sm:$0xf]
    %v5988 = vld [vmem:[%s5882 + $0x1a4] sm:$0xf]
    %v5989 = vld [vmem:[%s5882 + $0x1a8] sm:$0xf]
    %v5990 = vld [vmem:[%s5882 + $0x1ac] sm:$0xf]
    %v5991 = vld [vmem:[%s5882 + $0x1b0] sm:$0xf]
    %v5992 = vld [vmem:[%s5882 + $0x1b4] sm:$0xf]
    %v5993 = vld [vmem:[%s5882 + $0x1b8] sm:$0xf]
    %v5994 = vld [vmem:[%s5882 + $0x1bc] sm:$0xf]
    %v5995 = vld [vmem:[%s5882 + $0x1c0] sm:$0xf]
    %v5996 = vld [vmem:[%s5882 + $0x1c4] sm:$0xf]
    %v5997 = vld [vmem:[%s5882 + $0x1c8] sm:$0xf]
    %v5998 = vld [vmem:[%s5882 + $0x1cc] sm:$0xf]
    %v5999 = vld [vmem:[%s5882 + $0x1d0] sm:$0xf]
    %v6000 = vld [vmem:[%s5882 + $0x1d4] sm:$0xf]
    %v6001 = vld [vmem:[%s5882 + $0x1d8] sm:$0xf]
    %v6002 = vld [vmem:[%s5882 + $0x1dc] sm:$0xf]
    %v6003 = vld [vmem:[%s5882 + $0x1e0] sm:$0xf]
    %v6004 = vld [vmem:[%s5882 + $0x1e4] sm:$0xf]
    %v6005 = vld [vmem:[%s5882 + $0x1e8] sm:$0xf]
    %v6006 = vld [vmem:[%s5882 + $0x1ec] sm:$0xf]
    %v6007 = vld [vmem:[%s5882 + $0x1f0] sm:$0xf]
    %v6008 = vld [vmem:[%s5882 + $0x1f4] sm:$0xf]
    %v6009 = vld [vmem:[%s5882 + $0x1f8] sm:$0xf]
    %v6010 = vld [vmem:[%s5882 + $0x1fc] sm:$0xf]
    %v6011 = vld [vmem:[%s5882 + $0x200] sm:$0xf]
    %v6012 = vld [vmem:[%s5882 + $0x204] sm:$0xf]
    %v6013 = vld [vmem:[%s5882 + $0x208] sm:$0xf]
    %v6014 = vld [vmem:[%s5882 + $0x20c] sm:$0xf]
    %v6015 = vld [vmem:[%s5882 + $0x210] sm:$0xf]
    %v6016 = vld [vmem:[%s5882 + $0x214] sm:$0xf]
    %v6017 = vld [vmem:[%s5882 + $0x218] sm:$0xf]
    %v6018 = vld [vmem:[%s5882 + $0x21c] sm:$0xf]
    %v6019 = vld [vmem:[%s5882 + $0x220] sm:$0xf]
    %v6020 = vld [vmem:[%s5882 + $0x224] sm:$0xf]
    %v6021 = vld [vmem:[%s5882 + $0x228] sm:$0xf]
    %v6022 = vld [vmem:[%s5882 + $0x22c] sm:$0xf]
    %v6023 = vld [vmem:[%s5882 + $0x230] sm:$0xf]
    %v6024 = vld [vmem:[%s5882 + $0x234] sm:$0xf]
    %v6025 = vld [vmem:[%s5882 + $0x238] sm:$0xf]
    %v6026 = vld [vmem:[%s5882 + $0x23c] sm:$0xf]
    %v6027 = vld [vmem:[%s5882 + $0x240] sm:$0xf]
    %v6028 = vld [vmem:[%s5882 + $0x244] sm:$0xf]
    %v6029 = vld [vmem:[%s5882 + $0x248] sm:$0xf]
    %v6030 = vld [vmem:[%s5882 + $0x24c] sm:$0xf]
    %v6031 = vld [vmem:[%s5882 + $0x250] sm:$0xf]
    %v6032 = vld [vmem:[%s5882 + $0x254] sm:$0xf]
    %v6033 = vld [vmem:[%s5882 + $0x258] sm:$0xf]
    %v6034 = vld [vmem:[%s5882 + $0x25c] sm:$0xf]
    %v6035 = vld [vmem:[%s5882 + $0x260] sm:$0xf]
    %v6036 = vld [vmem:[%s5882 + $0x264] sm:$0xf]
    %v6037 = vld [vmem:[%s5882 + $0x268] sm:$0xf]
    %v6038 = vld [vmem:[%s5882 + $0x26c] sm:$0xf]
    %v6039 = vld [vmem:[%s5882 + $0x270] sm:$0xf]
    %v6040 = vld [vmem:[%s5882 + $0x274] sm:$0xf]
    %v6041 = vld [vmem:[%s5882 + $0x278] sm:$0xf]
    %v6042 = vld [vmem:[%s5882 + $0x27c] sm:$0xf]
    %v6043 = vld [vmem:[%s5882 + $0x280] sm:$0xf]
    %v6044 = vld [vmem:[%s5882 + $0x284] sm:$0xf]
    %v6045 = vld [vmem:[%s5882 + $0x288] sm:$0xf]
    %v6046 = vld [vmem:[%s5882 + $0x28c] sm:$0xf]
    %v6047 = vld [vmem:[%s5882 + $0x290] sm:$0xf]
    %v6048 = vld [vmem:[%s5882 + $0x294] sm:$0xf]
    %v6049 = vld [vmem:[%s5882 + $0x298] sm:$0xf]
    %v6050 = vld [vmem:[%s5882 + $0x29c] sm:$0xf]
    %v6051 = vld [vmem:[%s5882 + $0x2a0] sm:$0xf]
    %v6052 = vld [vmem:[%s5882 + $0x2a4] sm:$0xf]
    %v6053 = vld [vmem:[%s5882 + $0x2a8] sm:$0xf]
    %v6054 = vld [vmem:[%s5882 + $0x2ac] sm:$0xf]
    %v6055 = vld [vmem:[%s5882 + $0x2b0] sm:$0xf]
    %v6056 = vld [vmem:[%s5882 + $0x2b4] sm:$0xf]
    %v6057 = vld [vmem:[%s5882 + $0x2b8] sm:$0xf]
    %v6058 = vld [vmem:[%s5882 + $0x2bc] sm:$0xf]
    %v6059 = vld [vmem:[%s5882 + $0x2c0] sm:$0xf]
    %v6060 = vld [vmem:[%s5882 + $0x2c4] sm:$0xf]
    %v6061 = vld [vmem:[%s5882 + $0x2c8] sm:$0xf]
    %v6062 = vld [vmem:[%s5882 + $0x2cc] sm:$0xf]
    %v6063 = vld [vmem:[%s5882 + $0x2d0] sm:$0xf]
    %v6064 = vld [vmem:[%s5882 + $0x2d4] sm:$0xf]
    %v6065 = vld [vmem:[%s5882 + $0x2d8] sm:$0xf]
    %v6066 = vld [vmem:[%s5882 + $0x2dc] sm:$0xf]
    %v6067 = vld [vmem:[%s5882 + $0x2e0] sm:$0xf]
    %v6068 = vld [vmem:[%s5882 + $0x2e4] sm:$0xf]
    %v6069 = vld [vmem:[%s5882 + $0x2e8] sm:$0xf]
    %v6070 = vld [vmem:[%s5882 + $0x2ec] sm:$0xf]
    %v6071 = vld [vmem:[%s5882 + $0x2f0] sm:$0xf]
    %v6072 = vld [vmem:[%s5882 + $0x2f4] sm:$0xf]
    %v6073 = vld [vmem:[%s5882 + $0x2f8] sm:$0xf]
    %v6074 = vld [vmem:[%s5882 + $0x2fc] sm:$0xf]
    %v6075 = vld [vmem:[%s5882 + $0x300] sm:$0xf]
    %v6076 = vld [vmem:[%s5882 + $0x304] sm:$0xf]
    %v6077 = vld [vmem:[%s5882 + $0x308] sm:$0xf]
    %v6078 = vld [vmem:[%s5882 + $0x30c] sm:$0xf]
    %v6079 = vld [vmem:[%s5882 + $0x310] sm:$0xf]
    %v6080 = vld [vmem:[%s5882 + $0x314] sm:$0xf]
    %v6081 = vld [vmem:[%s5882 + $0x318] sm:$0xf]
    %v6082 = vld [vmem:[%s5882 + $0x31c] sm:$0xf]
    %v6083 = vld [vmem:[%s5882 + $0x320] sm:$0xf]
    %v6084 = vld [vmem:[%s5882 + $0x324] sm:$0xf]
    %v6085 = vld [vmem:[%s5882 + $0x328] sm:$0xf]
    %v6086 = vld [vmem:[%s5882 + $0x32c] sm:$0xf]
    %v6087 = vld [vmem:[%s5882 + $0x330] sm:$0xf]
    %v6088 = vld [vmem:[%s5882 + $0x334] sm:$0xf]
    %v6089 = vld [vmem:[%s5882 + $0x338] sm:$0xf]
    %v6090 = vld [vmem:[%s5882 + $0x33c] sm:$0xf]
    %v6091 = vld [vmem:[%s5882 + $0x340] sm:$0xf]
    %v6092 = vld [vmem:[%s5882 + $0x344] sm:$0xf]
    %v6093 = vld [vmem:[%s5882 + $0x348] sm:$0xf]
    %v6094 = vld [vmem:[%s5882 + $0x34c] sm:$0xf]
    %v6095 = vld [vmem:[%s5882 + $0x350] sm:$0xf]
    %v6096 = vld [vmem:[%s5882 + $0x354] sm:$0xf]
    %v6097 = vld [vmem:[%s5882 + $0x358] sm:$0xf]
    %v6098 = vld [vmem:[%s5882 + $0x35c] sm:$0xf]
    %v6099 = vld [vmem:[%s5882 + $0x360] sm:$0xf]
    %v6100 = vld [vmem:[%s5882 + $0x364] sm:$0xf]
    %v6101 = vld [vmem:[%s5882 + $0x368] sm:$0xf]
    %v6102 = vld [vmem:[%s5882 + $0x36c] sm:$0xf]
    %v6103 = vld [vmem:[%s5882 + $0x370] sm:$0xf]
    %v6104 = vld [vmem:[%s5882 + $0x374] sm:$0xf]
    %v6105 = vld [vmem:[%s5882 + $0x378] sm:$0xf]
    %v6106 = vld [vmem:[%s5882 + $0x37c] sm:$0xf]
    %v6107 = vld [vmem:[%s5882 + $0x380] sm:$0xf]
    %v6108 = vld [vmem:[%s5882 + $0x384] sm:$0xf]
    %v6109 = vld [vmem:[%s5882 + $0x388] sm:$0xf]
    %v6110 = vld [vmem:[%s5882 + $0x38c] sm:$0xf]
    %v6111 = vld [vmem:[%s5882 + $0x390] sm:$0xf]
    %v6112 = vld [vmem:[%s5882 + $0x394] sm:$0xf]
    %v6113 = vld [vmem:[%s5882 + $0x398] sm:$0xf]
    %v6114 = vld [vmem:[%s5882 + $0x39c] sm:$0xf]
    %v6115 = vld [vmem:[%s5882 + $0x3a0] sm:$0xf]
    %v6116 = vld [vmem:[%s5882 + $0x3a4] sm:$0xf]
    %v6117 = vld [vmem:[%s5882 + $0x3a8] sm:$0xf]
    %v6118 = vld [vmem:[%s5882 + $0x3ac] sm:$0xf]
    %v6119 = vld [vmem:[%s5882 + $0x3b0] sm:$0xf]
    %v6120 = vld [vmem:[%s5882 + $0x3b4] sm:$0xf]
    %v6121 = vld [vmem:[%s5882 + $0x3b8] sm:$0xf]
    %v6122 = vld [vmem:[%s5882 + $0x3bc] sm:$0xf]
    %v6123 = vld [vmem:[%s5882 + $0x3c0] sm:$0xf]
    %v6124 = vld [vmem:[%s5882 + $0x3c4] sm:$0xf]
    %v6125 = vld [vmem:[%s5882 + $0x3c8] sm:$0xf]
    %v6126 = vld [vmem:[%s5882 + $0x3cc] sm:$0xf]
    %v6127 = vld [vmem:[%s5882 + $0x3d0] sm:$0xf]
    %v6128 = vld [vmem:[%s5882 + $0x3d4] sm:$0xf]
    %v6129 = vld [vmem:[%s5882 + $0x3d8] sm:$0xf]
    %v6130 = vld [vmem:[%s5882 + $0x3dc] sm:$0xf]
    %v6131 = vld [vmem:[%s5882 + $0x3e0] sm:$0xf]
    %v6132 = vld [vmem:[%s5882 + $0x3e4] sm:$0xf]
    %v6133 = vld [vmem:[%s5882 + $0x3e8] sm:$0xf]
    %v6134 = vld [vmem:[%s5882 + $0x3ec] sm:$0xf]
    %v6135 = vld [vmem:[%s5882 + $0x3f0] sm:$0xf]
    %v6136 = vld [vmem:[%s5882 + $0x3f4] sm:$0xf]
    %v6137 = vld [vmem:[%s5882 + $0x3f8] sm:$0xf]
    %v6138 = vld [vmem:[%s5882 + $0x3fc] sm:$0xf]
    %v6139 = vld [vmem:[%s6 + $0x19] sm:$0x1]
    %v6140 = vperm.slane %v6139, 0
    %v6397 = vunpack.c.l.b16 %v5883
    %v6398 = vunpack.c.l.b16 %v5884
    %v6399 = vunpack.c.l.b16 %v5885
    %v6400 = vunpack.c.l.b16 %v5886
    %v6401 = vunpack.c.l.b16 %v5887
    %v6402 = vunpack.c.l.b16 %v5888
    %v6403 = vunpack.c.l.b16 %v5889
    %v6404 = vunpack.c.l.b16 %v5890
    %v6405 = vunpack.c.l.b16 %v5891
    %v6406 = vunpack.c.l.b16 %v5892
    %v6407 = vunpack.c.l.b16 %v5893
    %v6408 = vunpack.c.l.b16 %v5894
    %v6409 = vunpack.c.l.b16 %v5895
    %v6410 = vunpack.c.l.b16 %v5896
    %v6411 = vunpack.c.l.b16 %v5897
    %v6412 = vunpack.c.l.b16 %v5898
    %v6413 = vunpack.c.l.b16 %v5899
    %v6414 = vunpack.c.l.b16 %v5900
    %v6415 = vunpack.c.l.b16 %v5901
    %v6416 = vunpack.c.l.b16 %v5902
    %v6417 = vunpack.c.l.b16 %v5903
    %v6418 = vunpack.c.l.b16 %v5904
    %v6419 = vunpack.c.l.b16 %v5905
    %v6420 = vunpack.c.l.b16 %v5906
    %v6421 = vunpack.c.l.b16 %v5907
    %v6422 = vunpack.c.l.b16 %v5908
    %v6423 = vunpack.c.l.b16 %v5909
    %v6424 = vunpack.c.l.b16 %v5910
    %v6425 = vunpack.c.l.b16 %v5911
    %v6426 = vunpack.c.l.b16 %v5912
    %v6427 = vunpack.c.l.b16 %v5913
    %v6428 = vunpack.c.l.b16 %v5914
    %v6429 = vunpack.c.l.b16 %v5915
    %v6430 = vunpack.c.l.b16 %v5916
    %v6431 = vunpack.c.l.b16 %v5917
    %v6432 = vunpack.c.l.b16 %v5918
    %v6433 = vunpack.c.l.b16 %v5919
    %v6434 = vunpack.c.l.b16 %v5920
    %v6435 = vunpack.c.l.b16 %v5921
    %v6436 = vunpack.c.l.b16 %v5922
    %v6437 = vunpack.c.l.b16 %v5923
    %v6438 = vunpack.c.l.b16 %v5924
    %v6439 = vunpack.c.l.b16 %v5925
    %v6440 = vunpack.c.l.b16 %v5926
    %v6441 = vunpack.c.l.b16 %v5927
    %v6442 = vunpack.c.l.b16 %v5928
    %v6443 = vunpack.c.l.b16 %v5929
    %v6444 = vunpack.c.l.b16 %v5930
    %v6445 = vunpack.c.l.b16 %v5931
    %v6446 = vunpack.c.l.b16 %v5932
    %v6447 = vunpack.c.l.b16 %v5933
    %v6448 = vunpack.c.l.b16 %v5934
    %v6449 = vunpack.c.l.b16 %v5935
    %v6450 = vunpack.c.l.b16 %v5936
    %v6451 = vunpack.c.l.b16 %v5937
    %v6452 = vunpack.c.l.b16 %v5938
    %v6453 = vunpack.c.l.b16 %v5939
    %v6454 = vunpack.c.l.b16 %v5940
    %v6455 = vunpack.c.l.b16 %v5941
    %v6456 = vunpack.c.l.b16 %v5942
    %v6457 = vunpack.c.l.b16 %v5943
    %v6458 = vunpack.c.l.b16 %v5944
    %v6459 = vunpack.c.l.b16 %v5945
    %v6460 = vunpack.c.l.b16 %v5946
    %v6461 = vunpack.c.l.b16 %v5947
    %v6462 = vunpack.c.l.b16 %v5948
    %v6463 = vunpack.c.l.b16 %v5949
    %v6464 = vunpack.c.l.b16 %v5950
    %v6465 = vunpack.c.l.b16 %v5951
    %v6466 = vunpack.c.l.b16 %v5952
    %v6467 = vunpack.c.l.b16 %v5953
    %v6468 = vunpack.c.l.b16 %v5954
    %v6469 = vunpack.c.l.b16 %v5955
    %v6470 = vunpack.c.l.b16 %v5956
    %v6471 = vunpack.c.l.b16 %v5957
    %v6472 = vunpack.c.l.b16 %v5958
    %v6473 = vunpack.c.l.b16 %v5959
    %v6474 = vunpack.c.l.b16 %v5960
    %v6475 = vunpack.c.l.b16 %v5961
    %v6476 = vunpack.c.l.b16 %v5962
    %v6477 = vunpack.c.l.b16 %v5963
    %v6478 = vunpack.c.l.b16 %v5964
    %v6479 = vunpack.c.l.b16 %v5965
    %v6480 = vunpack.c.l.b16 %v5966
    %v6481 = vunpack.c.l.b16 %v5967
    %v6482 = vunpack.c.l.b16 %v5968
    %v6483 = vunpack.c.l.b16 %v5969
    %v6484 = vunpack.c.l.b16 %v5970
    %v6485 = vunpack.c.l.b16 %v5971
    %v6486 = vunpack.c.l.b16 %v5972
    %v6487 = vunpack.c.l.b16 %v5973
    %v6488 = vunpack.c.l.b16 %v5974
    %v6489 = vunpack.c.l.b16 %v5975
    %v6490 = vunpack.c.l.b16 %v5976
    %v6491 = vunpack.c.l.b16 %v5977
    %v6492 = vunpack.c.l.b16 %v5978
    %v6493 = vunpack.c.l.b16 %v5979
    %v6494 = vunpack.c.l.b16 %v5980
    %v6495 = vunpack.c.l.b16 %v5981
    %v6496 = vunpack.c.l.b16 %v5982
    %v6497 = vunpack.c.l.b16 %v5983
    %v6498 = vunpack.c.l.b16 %v5984
    %v6499 = vunpack.c.l.b16 %v5985
    %v6500 = vunpack.c.l.b16 %v5986
    %v6501 = vunpack.c.l.b16 %v5987
    %v6502 = vunpack.c.l.b16 %v5988
    %v6503 = vunpack.c.l.b16 %v5989
    %v6504 = vunpack.c.l.b16 %v5990
    %v6505 = vunpack.c.l.b16 %v5991
    %v6506 = vunpack.c.l.b16 %v5992
    %v6507 = vunpack.c.l.b16 %v5993
    %v6508 = vunpack.c.l.b16 %v5994
    %v6509 = vunpack.c.l.b16 %v5995
    %v6510 = vunpack.c.l.b16 %v5996
    %v6511 = vunpack.c.l.b16 %v5997
    %v6512 = vunpack.c.l.b16 %v5998
    %v6513 = vunpack.c.l.b16 %v5999
    %v6514 = vunpack.c.l.b16 %v6000
    %v6515 = vunpack.c.l.b16 %v6001
    %v6516 = vunpack.c.l.b16 %v6002
    %v6517 = vunpack.c.l.b16 %v6003
    %v6518 = vunpack.c.l.b16 %v6004
    %v6519 = vunpack.c.l.b16 %v6005
    %v6520 = vunpack.c.l.b16 %v6006
    %v6521 = vunpack.c.l.b16 %v6007
    %v6522 = vunpack.c.l.b16 %v6008
    %v6523 = vunpack.c.l.b16 %v6009
    %v6524 = vunpack.c.l.b16 %v6010
    %v6525 = vunpack.c.l.b16 %v6011
    %v6526 = vunpack.c.l.b16 %v6012
    %v6527 = vunpack.c.l.b16 %v6013
    %v6528 = vunpack.c.l.b16 %v6014
    %v6529 = vunpack.c.l.b16 %v6015
    %v6530 = vunpack.c.l.b16 %v6016
    %v6531 = vunpack.c.l.b16 %v6017
    %v6532 = vunpack.c.l.b16 %v6018
    %v6533 = vunpack.c.l.b16 %v6019
    %v6534 = vunpack.c.l.b16 %v6020
    %v6535 = vunpack.c.l.b16 %v6021
    %v6536 = vunpack.c.l.b16 %v6022
    %v6537 = vunpack.c.l.b16 %v6023
    %v6538 = vunpack.c.l.b16 %v6024
    %v6539 = vunpack.c.l.b16 %v6025
    %v6540 = vunpack.c.l.b16 %v6026
    %v6541 = vunpack.c.l.b16 %v6027
    %v6542 = vunpack.c.l.b16 %v6028
    %v6543 = vunpack.c.l.b16 %v6029
    %v6544 = vunpack.c.l.b16 %v6030
    %v6545 = vunpack.c.l.b16 %v6031
    %v6546 = vunpack.c.l.b16 %v6032
    %v6547 = vunpack.c.l.b16 %v6033
    %v6548 = vunpack.c.l.b16 %v6034
    %v6549 = vunpack.c.l.b16 %v6035
    %v6550 = vunpack.c.l.b16 %v6036
    %v6551 = vunpack.c.l.b16 %v6037
    %v6552 = vunpack.c.l.b16 %v6038
    %v6553 = vunpack.c.l.b16 %v6039
    %v6554 = vunpack.c.l.b16 %v6040
    %v6555 = vunpack.c.l.b16 %v6041
    %v6556 = vunpack.c.l.b16 %v6042
    %v6557 = vunpack.c.l.b16 %v6043
    %v6558 = vunpack.c.l.b16 %v6044
    %v6559 = vunpack.c.l.b16 %v6045
    %v6560 = vunpack.c.l.b16 %v6046
    %v6561 = vunpack.c.l.b16 %v6047
    %v6562 = vunpack.c.l.b16 %v6048
    %v6563 = vunpack.c.l.b16 %v6049
    %v6564 = vunpack.c.l.b16 %v6050
    %v6565 = vunpack.c.l.b16 %v6051
    %v6566 = vunpack.c.l.b16 %v6052
    %v6567 = vunpack.c.l.b16 %v6053
    %v6568 = vunpack.c.l.b16 %v6054
    %v6569 = vunpack.c.l.b16 %v6055
    %v6570 = vunpack.c.l.b16 %v6056
    %v6571 = vunpack.c.l.b16 %v6057
    %v6572 = vunpack.c.l.b16 %v6058
    %v6573 = vunpack.c.l.b16 %v6059
    %v6574 = vunpack.c.l.b16 %v6060
    %v6575 = vunpack.c.l.b16 %v6061
    %v6576 = vunpack.c.l.b16 %v6062
    %v6577 = vunpack.c.l.b16 %v6063
    %v6578 = vunpack.c.l.b16 %v6064
    %v6579 = vunpack.c.l.b16 %v6065
    %v6580 = vunpack.c.l.b16 %v6066
    %v6581 = vunpack.c.l.b16 %v6067
    %v6582 = vunpack.c.l.b16 %v6068
    %v6583 = vunpack.c.l.b16 %v6069
    %v6584 = vunpack.c.l.b16 %v6070
    %v6585 = vunpack.c.l.b16 %v6071
    %v6586 = vunpack.c.l.b16 %v6072
    %v6587 = vunpack.c.l.b16 %v6073
    %v6588 = vunpack.c.l.b16 %v6074
    %v6589 = vunpack.c.l.b16 %v6075
    %v6590 = vunpack.c.l.b16 %v6076
    %v6591 = vunpack.c.l.b16 %v6077
    %v6592 = vunpack.c.l.b16 %v6078
    %v6593 = vunpack.c.l.b16 %v6079
    %v6594 = vunpack.c.l.b16 %v6080
    %v6595 = vunpack.c.l.b16 %v6081
    %v6596 = vunpack.c.l.b16 %v6082
    %v6597 = vunpack.c.l.b16 %v6083
    %v6598 = vunpack.c.l.b16 %v6084
    %v6599 = vunpack.c.l.b16 %v6085
    %v6600 = vunpack.c.l.b16 %v6086
    %v6601 = vunpack.c.l.b16 %v6087
    %v6602 = vunpack.c.l.b16 %v6088
    %v6603 = vunpack.c.l.b16 %v6089
    %v6604 = vunpack.c.l.b16 %v6090
    %v6605 = vunpack.c.l.b16 %v6091
    %v6606 = vunpack.c.l.b16 %v6092
    %v6607 = vunpack.c.l.b16 %v6093
    %v6608 = vunpack.c.l.b16 %v6094
    %v6609 = vunpack.c.l.b16 %v6095
    %v6610 = vunpack.c.l.b16 %v6096
    %v6611 = vunpack.c.l.b16 %v6097
    %v6612 = vunpack.c.l.b16 %v6098
    %v6613 = vunpack.c.l.b16 %v6099
    %v6614 = vunpack.c.l.b16 %v6100
    %v6615 = vunpack.c.l.b16 %v6101
    %v6616 = vunpack.c.l.b16 %v6102
    %v6617 = vunpack.c.l.b16 %v6103
    %v6618 = vunpack.c.l.b16 %v6104
    %v6619 = vunpack.c.l.b16 %v6105
    %v6620 = vunpack.c.l.b16 %v6106
    %v6621 = vunpack.c.l.b16 %v6107
    %v6622 = vunpack.c.l.b16 %v6108
    %v6623 = vunpack.c.l.b16 %v6109
    %v6624 = vunpack.c.l.b16 %v6110
    %v6625 = vunpack.c.l.b16 %v6111
    %v6626 = vunpack.c.l.b16 %v6112
    %v6627 = vunpack.c.l.b16 %v6113
    %v6628 = vunpack.c.l.b16 %v6114
    %v6629 = vunpack.c.l.b16 %v6115
    %v6630 = vunpack.c.l.b16 %v6116
    %v6631 = vunpack.c.l.b16 %v6117
    %v6632 = vunpack.c.l.b16 %v6118
    %v6633 = vunpack.c.l.b16 %v6119
    %v6634 = vunpack.c.l.b16 %v6120
    %v6635 = vunpack.c.l.b16 %v6121
    %v6636 = vunpack.c.l.b16 %v6122
    %v6637 = vunpack.c.l.b16 %v6123
    %v6638 = vunpack.c.l.b16 %v6124
    %v6639 = vunpack.c.l.b16 %v6125
    %v6640 = vunpack.c.l.b16 %v6126
    %v6641 = vunpack.c.l.b16 %v6127
    %v6642 = vunpack.c.l.b16 %v6128
    %v6643 = vunpack.c.l.b16 %v6129
    %v6644 = vunpack.c.l.b16 %v6130
    %v6645 = vunpack.c.l.b16 %v6131
    %v6646 = vunpack.c.l.b16 %v6132
    %v6647 = vunpack.c.l.b16 %v6133
    %v6648 = vunpack.c.l.b16 %v6134
    %v6649 = vunpack.c.l.b16 %v6135
    %v6650 = vunpack.c.l.b16 %v6136
    %v6651 = vunpack.c.l.b16 %v6137
    %v6652 = vunpack.c.l.b16 %v6138
    %v6653 = vpack.c.b16 %v6398, %v6397
    %v6654 = vpack.c.b16 %v6400, %v6399
    %v6655 = vpack.c.b16 %v6402, %v6401
    %v6656 = vpack.c.b16 %v6404, %v6403
    %v6657 = vpack.c.b16 %v6406, %v6405
    %v6658 = vpack.c.b16 %v6408, %v6407
    %v6659 = vpack.c.b16 %v6410, %v6409
    %v6660 = vpack.c.b16 %v6412, %v6411
    %v6661 = vpack.c.b16 %v6414, %v6413
    %v6662 = vpack.c.b16 %v6416, %v6415
    %v6663 = vpack.c.b16 %v6418, %v6417
    %v6664 = vpack.c.b16 %v6420, %v6419
    %v6665 = vpack.c.b16 %v6422, %v6421
    %v6666 = vpack.c.b16 %v6424, %v6423
    %v6667 = vpack.c.b16 %v6426, %v6425
    %v6668 = vpack.c.b16 %v6428, %v6427
    %v6669 = vpack.c.b16 %v6430, %v6429
    %v6670 = vpack.c.b16 %v6432, %v6431
    %v6671 = vpack.c.b16 %v6434, %v6433
    %v6672 = vpack.c.b16 %v6436, %v6435
    %v6673 = vpack.c.b16 %v6438, %v6437
    %v6674 = vpack.c.b16 %v6440, %v6439
    %v6675 = vpack.c.b16 %v6442, %v6441
    %v6676 = vpack.c.b16 %v6444, %v6443
    %v6677 = vpack.c.b16 %v6446, %v6445
    %v6678 = vpack.c.b16 %v6448, %v6447
    %v6679 = vpack.c.b16 %v6450, %v6449
    %v6680 = vpack.c.b16 %v6452, %v6451
    %v6681 = vpack.c.b16 %v6454, %v6453
    %v6682 = vpack.c.b16 %v6456, %v6455
    %v6683 = vpack.c.b16 %v6458, %v6457
    %v6684 = vpack.c.b16 %v6460, %v6459
    %v6685 = vpack.c.b16 %v6462, %v6461
    %v6686 = vpack.c.b16 %v6464, %v6463
    %v6687 = vpack.c.b16 %v6466, %v6465
    %v6688 = vpack.c.b16 %v6468, %v6467
    %v6689 = vpack.c.b16 %v6470, %v6469
    %v6690 = vpack.c.b16 %v6472, %v6471
    %v6691 = vpack.c.b16 %v6474, %v6473
    %v6692 = vpack.c.b16 %v6476, %v6475
    %v6693 = vpack.c.b16 %v6478, %v6477
    %v6694 = vpack.c.b16 %v6480, %v6479
    %v6695 = vpack.c.b16 %v6482, %v6481
    %v6696 = vpack.c.b16 %v6484, %v6483
    %v6697 = vpack.c.b16 %v6486, %v6485
    %v6698 = vpack.c.b16 %v6488, %v6487
    %v6699 = vpack.c.b16 %v6490, %v6489
    %v6700 = vpack.c.b16 %v6492, %v6491
    %v6701 = vpack.c.b16 %v6494, %v6493
    %v6702 = vpack.c.b16 %v6496, %v6495
    %v6703 = vpack.c.b16 %v6498, %v6497
    %v6704 = vpack.c.b16 %v6500, %v6499
    %v6705 = vpack.c.b16 %v6502, %v6501
    %v6706 = vpack.c.b16 %v6504, %v6503
    %v6707 = vpack.c.b16 %v6506, %v6505
    %v6708 = vpack.c.b16 %v6508, %v6507
    %v6709 = vpack.c.b16 %v6510, %v6509
    %v6710 = vpack.c.b16 %v6512, %v6511
    %v6711 = vpack.c.b16 %v6514, %v6513
    %v6712 = vpack.c.b16 %v6516, %v6515
    %v6713 = vpack.c.b16 %v6518, %v6517
    %v6714 = vpack.c.b16 %v6520, %v6519
    %v6715 = vpack.c.b16 %v6522, %v6521
    %v6716 = vpack.c.b16 %v6524, %v6523
    %v6717 = vpack.c.b16 %v6526, %v6525
    %v6718 = vpack.c.b16 %v6528, %v6527
    %v6719 = vpack.c.b16 %v6530, %v6529
    %v6720 = vpack.c.b16 %v6532, %v6531
    %v6721 = vpack.c.b16 %v6534, %v6533
    %v6722 = vpack.c.b16 %v6536, %v6535
    %v6723 = vpack.c.b16 %v6538, %v6537
    %v6724 = vpack.c.b16 %v6540, %v6539
    %v6725 = vpack.c.b16 %v6542, %v6541
    %v6726 = vpack.c.b16 %v6544, %v6543
    %v6727 = vpack.c.b16 %v6546, %v6545
    %v6728 = vpack.c.b16 %v6548, %v6547
    %v6729 = vpack.c.b16 %v6550, %v6549
    %v6730 = vpack.c.b16 %v6552, %v6551
    %v6731 = vpack.c.b16 %v6554, %v6553
    %v6732 = vpack.c.b16 %v6556, %v6555
    %v6733 = vpack.c.b16 %v6558, %v6557
    %v6734 = vpack.c.b16 %v6560, %v6559
    %v6735 = vpack.c.b16 %v6562, %v6561
    %v6736 = vpack.c.b16 %v6564, %v6563
    %v6737 = vpack.c.b16 %v6566, %v6565
    %v6738 = vpack.c.b16 %v6568, %v6567
    %v6739 = vpack.c.b16 %v6570, %v6569
    %v6740 = vpack.c.b16 %v6572, %v6571
    %v6741 = vpack.c.b16 %v6574, %v6573
    %v6742 = vpack.c.b16 %v6576, %v6575
    %v6743 = vpack.c.b16 %v6578, %v6577
    %v6744 = vpack.c.b16 %v6580, %v6579
    %v6745 = vpack.c.b16 %v6582, %v6581
    %v6746 = vpack.c.b16 %v6584, %v6583
    %v6747 = vpack.c.b16 %v6586, %v6585
    %v6748 = vpack.c.b16 %v6588, %v6587
    %v6749 = vpack.c.b16 %v6590, %v6589
    %v6750 = vpack.c.b16 %v6592, %v6591
    %v6751 = vpack.c.b16 %v6594, %v6593
    %v6752 = vpack.c.b16 %v6596, %v6595
    %v6753 = vpack.c.b16 %v6598, %v6597
    %v6754 = vpack.c.b16 %v6600, %v6599
    %v6755 = vpack.c.b16 %v6602, %v6601
    %v6756 = vpack.c.b16 %v6604, %v6603
    %v6757 = vpack.c.b16 %v6606, %v6605
    %v6758 = vpack.c.b16 %v6608, %v6607
    %v6759 = vpack.c.b16 %v6610, %v6609
    %v6760 = vpack.c.b16 %v6612, %v6611
    %v6761 = vpack.c.b16 %v6614, %v6613
    %v6762 = vpack.c.b16 %v6616, %v6615
    %v6763 = vpack.c.b16 %v6618, %v6617
    %v6764 = vpack.c.b16 %v6620, %v6619
    %v6765 = vpack.c.b16 %v6622, %v6621
    %v6766 = vpack.c.b16 %v6624, %v6623
    %v6767 = vpack.c.b16 %v6626, %v6625
    %v6768 = vpack.c.b16 %v6628, %v6627
    %v6769 = vpack.c.b16 %v6630, %v6629
    %v6770 = vpack.c.b16 %v6632, %v6631
    %v6771 = vpack.c.b16 %v6634, %v6633
    %v6772 = vpack.c.b16 %v6636, %v6635
    %v6773 = vpack.c.b16 %v6638, %v6637
    %v6774 = vpack.c.b16 %v6640, %v6639
    %v6775 = vpack.c.b16 %v6642, %v6641
    %v6776 = vpack.c.b16 %v6644, %v6643
    %v6777 = vpack.c.b16 %v6646, %v6645
    %v6778 = vpack.c.b16 %v6648, %v6647
    %v6779 = vpack.c.b16 %v6650, %v6649
    %v6780 = vpack.c.b16 %v6652, %v6651
    %6909 = vmatpush.bf16.msra.mxu0 %v6660
    %6910 = vmatpush.bf16.msra.mxu0 %v6659
    %6911 = vmatpush.bf16.msra.mxu0 %v6658
    %6912 = vmatpush.bf16.msra.mxu0 %v6657
    %6913 = vmatpush.bf16.msra.mxu0 %v6656
    %6914 = vmatpush.bf16.msra.mxu0 %v6655
    %6915 = vmatpush.bf16.msra.mxu0 %v6654
    %6916 = vmatpush.bf16.msra.mxu0 %v6653
    %6917 = vmatmul.bf16.gmra.mxu0 %v5866
    %v6918 = vpop.f32.mrf.mxu0
    %v6919 = vadd.f32 %v6140, %v6918
    %v6920 = vpop.f32.mrf.mxu0
    %v6921 = vadd.f32 %v6140, %v6920
    %6922 = vdwg.mxu0
    %6923 = vmatpush.bf16.msra.mxu0 %v6668
    %6924 = vmatpush.bf16.msra.mxu0 %v6667
    %6925 = vmatpush.bf16.msra.mxu0 %v6666
    %6926 = vmatpush.bf16.msra.mxu0 %v6665
    %6927 = vmatpush.bf16.msra.mxu0 %v6664
    %6928 = vmatpush.bf16.msra.mxu0 %v6663
    %6929 = vmatpush.bf16.msra.mxu0 %v6662
    %6930 = vmatpush.bf16.msra.mxu0 %v6661
    %6931 = vmatmul.bf16.gmra.mxu0 %v5867
    %v6932 = vpop.f32.mrf.mxu0
    %v6933 = vadd.f32 %v6919, %v6932
    %v6934 = vpop.f32.mrf.mxu0
    %v6935 = vadd.f32 %v6921, %v6934
    %6936 = vdwg.mxu0
    %6937 = vmatpush.bf16.msra.mxu0 %v6676
    %6938 = vmatpush.bf16.msra.mxu0 %v6675
    %6939 = vmatpush.bf16.msra.mxu0 %v6674
    %6940 = vmatpush.bf16.msra.mxu0 %v6673
    %6941 = vmatpush.bf16.msra.mxu0 %v6672
    %6942 = vmatpush.bf16.msra.mxu0 %v6671
    %6943 = vmatpush.bf16.msra.mxu0 %v6670
    %6944 = vmatpush.bf16.msra.mxu0 %v6669
    %6945 = vmatmul.bf16.gmra.mxu0 %v5868
    %v6946 = vpop.f32.mrf.mxu0
    %v6947 = vadd.f32 %v6933, %v6946
    %v6948 = vpop.f32.mrf.mxu0
    %v6949 = vadd.f32 %v6935, %v6948
    %6950 = vdwg.mxu0
    %6951 = vmatpush.bf16.msra.mxu0 %v6684
    %6952 = vmatpush.bf16.msra.mxu0 %v6683
    %6953 = vmatpush.bf16.msra.mxu0 %v6682
    %6954 = vmatpush.bf16.msra.mxu0 %v6681
    %6955 = vmatpush.bf16.msra.mxu0 %v6680
    %6956 = vmatpush.bf16.msra.mxu0 %v6679
    %6957 = vmatpush.bf16.msra.mxu0 %v6678
    %6958 = vmatpush.bf16.msra.mxu0 %v6677
    %6959 = vmatmul.bf16.gmra.mxu0 %v5869
    %v6960 = vpop.f32.mrf.mxu0
    %v6961 = vadd.f32 %v6947, %v6960
    %v6962 = vpop.f32.mrf.mxu0
    %v6963 = vadd.f32 %v6949, %v6962
    %6964 = vdwg.mxu0
    %6965 = vmatpush.bf16.msra.mxu0 %v6692
    %6966 = vmatpush.bf16.msra.mxu0 %v6691
    %6967 = vmatpush.bf16.msra.mxu0 %v6690
    %6968 = vmatpush.bf16.msra.mxu0 %v6689
    %6969 = vmatpush.bf16.msra.mxu0 %v6688
    %6970 = vmatpush.bf16.msra.mxu0 %v6687
    %6971 = vmatpush.bf16.msra.mxu0 %v6686
    %6972 = vmatpush.bf16.msra.mxu0 %v6685
    %6973 = vmatmul.bf16.gmra.mxu0 %v5870
    %v6974 = vpop.f32.mrf.mxu0
    %v6975 = vadd.f32 %v6961, %v6974
    %v6976 = vpop.f32.mrf.mxu0
    %v6977 = vadd.f32 %v6963, %v6976
    %6978 = vdwg.mxu0
    %6979 = vmatpush.bf16.msra.mxu0 %v6700
    %6980 = vmatpush.bf16.msra.mxu0 %v6699
    %6981 = vmatpush.bf16.msra.mxu0 %v6698
    %6982 = vmatpush.bf16.msra.mxu0 %v6697
    %6983 = vmatpush.bf16.msra.mxu0 %v6696
    %6984 = vmatpush.bf16.msra.mxu0 %v6695
    %6985 = vmatpush.bf16.msra.mxu0 %v6694
    %6986 = vmatpush.bf16.msra.mxu0 %v6693
    %6987 = vmatmul.bf16.gmra.mxu0 %v5871
    %v6988 = vpop.f32.mrf.mxu0
    %v6989 = vadd.f32 %v6975, %v6988
    %v6990 = vpop.f32.mrf.mxu0
    %v6991 = vadd.f32 %v6977, %v6990
    %6992 = vdwg.mxu0
    %6993 = vmatpush.bf16.msra.mxu0 %v6708
    %6994 = vmatpush.bf16.msra.mxu0 %v6707
    %6995 = vmatpush.bf16.msra.mxu0 %v6706
    %6996 = vmatpush.bf16.msra.mxu0 %v6705
    %6997 = vmatpush.bf16.msra.mxu0 %v6704
    %6998 = vmatpush.bf16.msra.mxu0 %v6703
    %6999 = vmatpush.bf16.msra.mxu0 %v6702
    %7000 = vmatpush.bf16.msra.mxu0 %v6701
    %7001 = vmatmul.bf16.gmra.mxu0 %v5872
    %v7002 = vpop.f32.mrf.mxu0
    %v7003 = vadd.f32 %v6989, %v7002
    %v7004 = vpop.f32.mrf.mxu0
    %v7005 = vadd.f32 %v6991, %v7004
    %7006 = vdwg.mxu0
    %7007 = vmatpush.bf16.msra.mxu0 %v6716
    %7008 = vmatpush.bf16.msra.mxu0 %v6715
    %7009 = vmatpush.bf16.msra.mxu0 %v6714
    %7010 = vmatpush.bf16.msra.mxu0 %v6713
    %7011 = vmatpush.bf16.msra.mxu0 %v6712
    %7012 = vmatpush.bf16.msra.mxu0 %v6711
    %7013 = vmatpush.bf16.msra.mxu0 %v6710
    %7014 = vmatpush.bf16.msra.mxu0 %v6709
    %7015 = vmatmul.bf16.gmra.mxu0 %v5873
    %v7016 = vpop.f32.mrf.mxu0
    %v7017 = vadd.f32 %v7003, %v7016
    %v7018 = vpop.f32.mrf.mxu0
    %v7019 = vadd.f32 %v7005, %v7018
    %7020 = vdwg.mxu0
    %7021 = vmatpush.bf16.msra.mxu0 %v6724
    %7022 = vmatpush.bf16.msra.mxu0 %v6723
    %7023 = vmatpush.bf16.msra.mxu0 %v6722
    %7024 = vmatpush.bf16.msra.mxu0 %v6721
    %7025 = vmatpush.bf16.msra.mxu0 %v6720
    %7026 = vmatpush.bf16.msra.mxu0 %v6719
    %7027 = vmatpush.bf16.msra.mxu0 %v6718
    %7028 = vmatpush.bf16.msra.mxu0 %v6717
    %7029 = vmatmul.bf16.gmra.mxu0 %v5874
    %v7030 = vpop.f32.mrf.mxu0
    %v7031 = vadd.f32 %v7017, %v7030
    %v7032 = vpop.f32.mrf.mxu0
    %v7033 = vadd.f32 %v7019, %v7032
    %7034 = vdwg.mxu0
    %7035 = vmatpush.bf16.msra.mxu0 %v6732
    %7036 = vmatpush.bf16.msra.mxu0 %v6731
    %7037 = vmatpush.bf16.msra.mxu0 %v6730
    %7038 = vmatpush.bf16.msra.mxu0 %v6729
    %7039 = vmatpush.bf16.msra.mxu0 %v6728
    %7040 = vmatpush.bf16.msra.mxu0 %v6727
    %7041 = vmatpush.bf16.msra.mxu0 %v6726
    %7042 = vmatpush.bf16.msra.mxu0 %v6725
    %7043 = vmatmul.bf16.gmra.mxu0 %v5875
    %v7044 = vpop.f32.mrf.mxu0
    %v7045 = vadd.f32 %v7031, %v7044
    %v7046 = vpop.f32.mrf.mxu0
    %v7047 = vadd.f32 %v7033, %v7046
    %7048 = vdwg.mxu0
    %7049 = vmatpush.bf16.msra.mxu0 %v6740
    %7050 = vmatpush.bf16.msra.mxu0 %v6739
    %7051 = vmatpush.bf16.msra.mxu0 %v6738
    %7052 = vmatpush.bf16.msra.mxu0 %v6737
    %7053 = vmatpush.bf16.msra.mxu0 %v6736
    %7054 = vmatpush.bf16.msra.mxu0 %v6735
    %7055 = vmatpush.bf16.msra.mxu0 %v6734
    %7056 = vmatpush.bf16.msra.mxu0 %v6733
    %7057 = vmatmul.bf16.gmra.mxu0 %v5876
    %v7058 = vpop.f32.mrf.mxu0
    %v7059 = vadd.f32 %v7045, %v7058
    %v7060 = vpop.f32.mrf.mxu0
    %v7061 = vadd.f32 %v7047, %v7060
    %7062 = vdwg.mxu0
    %7063 = vmatpush.bf16.msra.mxu0 %v6748
    %7064 = vmatpush.bf16.msra.mxu0 %v6747
    %7065 = vmatpush.bf16.msra.mxu0 %v6746
    %7066 = vmatpush.bf16.msra.mxu0 %v6745
    %7067 = vmatpush.bf16.msra.mxu0 %v6744
    %7068 = vmatpush.bf16.msra.mxu0 %v6743
    %7069 = vmatpush.bf16.msra.mxu0 %v6742
    %7070 = vmatpush.bf16.msra.mxu0 %v6741
    %7071 = vmatmul.bf16.gmra.mxu0 %v5877
    %v7072 = vpop.f32.mrf.mxu0
    %v7073 = vadd.f32 %v7059, %v7072
    %v7074 = vpop.f32.mrf.mxu0
    %v7075 = vadd.f32 %v7061, %v7074
    %7076 = vdwg.mxu0
    %7077 = vmatpush.bf16.msra.mxu0 %v6756
    %7078 = vmatpush.bf16.msra.mxu0 %v6755
    %7079 = vmatpush.bf16.msra.mxu0 %v6754
    %7080 = vmatpush.bf16.msra.mxu0 %v6753
    %7081 = vmatpush.bf16.msra.mxu0 %v6752
    %7082 = vmatpush.bf16.msra.mxu0 %v6751
    %7083 = vmatpush.bf16.msra.mxu0 %v6750
    %7084 = vmatpush.bf16.msra.mxu0 %v6749
    %7085 = vmatmul.bf16.gmra.mxu0 %v5878
    %v7086 = vpop.f32.mrf.mxu0
    %v7087 = vadd.f32 %v7073, %v7086
    %v7088 = vpop.f32.mrf.mxu0
    %v7089 = vadd.f32 %v7075, %v7088
    %7090 = vdwg.mxu0
    %7091 = vmatpush.bf16.msra.mxu0 %v6764
    %7092 = vmatpush.bf16.msra.mxu0 %v6763
    %7093 = vmatpush.bf16.msra.mxu0 %v6762
    %7094 = vmatpush.bf16.msra.mxu0 %v6761
    %7095 = vmatpush.bf16.msra.mxu0 %v6760
    %7096 = vmatpush.bf16.msra.mxu0 %v6759
    %7097 = vmatpush.bf16.msra.mxu0 %v6758
    %7098 = vmatpush.bf16.msra.mxu0 %v6757
    %7099 = vmatmul.bf16.gmra.mxu0 %v5879
    %v7100 = vpop.f32.mrf.mxu0
    %v7101 = vadd.f32 %v7087, %v7100
    %v7102 = vpop.f32.mrf.mxu0
    %v7103 = vadd.f32 %v7089, %v7102
    %7104 = vdwg.mxu0
    %7105 = vmatpush.bf16.msra.mxu0 %v6772
    %7106 = vmatpush.bf16.msra.mxu0 %v6771
    %7107 = vmatpush.bf16.msra.mxu0 %v6770
    %7108 = vmatpush.bf16.msra.mxu0 %v6769
    %7109 = vmatpush.bf16.msra.mxu0 %v6768
    %7110 = vmatpush.bf16.msra.mxu0 %v6767
    %7111 = vmatpush.bf16.msra.mxu0 %v6766
    %7112 = vmatpush.bf16.msra.mxu0 %v6765
    %7113 = vmatmul.bf16.gmra.mxu0 %v5880
    %v7114 = vpop.f32.mrf.mxu0
    %v7115 = vadd.f32 %v7101, %v7114
    %v7116 = vpop.f32.mrf.mxu0
    %v7117 = vadd.f32 %v7103, %v7116
    %7118 = vdwg.mxu0
    %7119 = vmatpush.bf16.msra.mxu0 %v6780
    %7120 = vmatpush.bf16.msra.mxu0 %v6779
    %7121 = vmatpush.bf16.msra.mxu0 %v6778
    %7122 = vmatpush.bf16.msra.mxu0 %v6777
    %7123 = vmatpush.bf16.msra.mxu0 %v6776
    %7124 = vmatpush.bf16.msra.mxu0 %v6775
    %7125 = vmatpush.bf16.msra.mxu0 %v6774
    %7126 = vmatpush.bf16.msra.mxu0 %v6773
    %7127 = vmatmul.bf16.gmra.mxu0 %v5881
    %v7128 = vpop.f32.mrf.mxu0
    %v7129 = vadd.f32 %v7115, %v7128
    %v7130 = vpop.f32.mrf.mxu0
    %v7131 = vadd.f32 %v7117, %v7130
    %7132 = vdwg.mxu0
    %v7133 = vadd.f32 %v5373, %v7129
    %v7134 = vadd.f32 %v5374, %v7131
    %v7135 = vsel %vm116, %v7133, 0.0
    %7136 = vadd.xlane.f32.xlu0 %v7135
    %v7137 = vpop.xlane.xlu0 %7136
    %v7138 = vsel %vm116, %v7134, 0.0
    %7139 = vadd.xlane.f32.xlu0 %v7138
    %v7140 = vpop.xlane.xlu0 %7139
    %v7141 = vmul.f32 %v7137, %v527
    %v7142 = vmul.f32 %v7140, %v527
    %v7143 = vsub.f32 %v7133, %v7141
    %v7144 = vsub.f32 %v7134, %v7142
    %v7145 = vmul.f32 %v7143, %v7143
    %v7146 = vmul.f32 %v7144, %v7144
    %v7147 = vsel %vm116, %v7145, 0.0
    %7148 = vadd.xlane.f32.xlu0 %v7147
    %v7149 = vpop.xlane.xlu0 %7148
    %v7150 = vsel %vm116, %v7146, 0.0
    %7151 = vadd.xlane.f32.xlu0 %v7150
    %v7152 = vpop.xlane.xlu0 %7151
    %v7153 = vmul.f32 %v7149, %v527
    %v7154 = vmul.f32 %v7152, %v527
    %v7155 = vadd.f32 %v7153, 1e-05
    %v7156 = vadd.f32 %v7154, 1e-05
    %v7157 = vrsqrt.pop %v7155
    %v7158 = vmul.f32 %v7157, %v7155
    %v7159 = vmul.f32 %v7158, %v7157
    %v7160 = vmul.f32 0.5, %v7159
    %v7161 = vsub.f32 1.5, %v7160
    %v7162 = vmul.f32 %v7157, %v7161
    %vm7163 = vweird.f32 %v7155
    %vm7164 = vweird.f32 %v7157
    %vm7165 = vmor %vm7163, %vm7164
    %v7166 = vsel %vm7165, %v7157, %v7162
    %v7167 = vrsqrt.pop %v7156
    %v7168 = vmul.f32 %v7167, %v7156
    %v7169 = vmul.f32 %v7168, %v7167
    %v7170 = vmul.f32 0.5, %v7169
    %v7171 = vsub.f32 1.5, %v7170
    %v7172 = vmul.f32 %v7167, %v7171
    %vm7173 = vweird.f32 %v7156
    %vm7174 = vweird.f32 %v7167
    %vm7175 = vmor %vm7173, %vm7174
    %v7176 = vsel %vm7175, %v7167, %v7172
    %v7177 = vmul.f32 %v7143, %v7166
    %v7178 = vmul.f32 %v7144, %v7176
    %v7179 = vld [vmem:[%s6 + $0x1a] sm:$0x1]
    %v7180 = vperm.slane %v7179, 0
    %v7181 = vmul.f32 %v7177, %v7180
    %v7182 = vmul.f32 %v7178, %v7180
    %v7183 = vld [vmem:[%s6 + $0x1b] sm:$0x1]
    %v7184 = vperm.slane %v7183, 0
    %v7185 = vadd.f32 %v7181, %v7184
    %v7186 = vadd.f32 %v7182, %v7184
    %v7187 = vpack.c.bf16 %v7186, %v7185
    %v7188 = vld [vmem:[%s5 + $0xb8] sm:$0xf]
    %v7189 = vld [vmem:[%s5 + $0xbc] sm:$0xf]
    %v7190 = vld [vmem:[%s5 + $0xc0] sm:$0xf]
    %v7191 = vld [vmem:[%s5 + $0xc4] sm:$0xf]
    %v7192 = vld [vmem:[%s6 + $0x1c] sm:$0x1]
    %v7193 = vperm.slane %v7192, 0
    %v7198 = vunpack.c.l.b16 %v7188
    %v7199 = vunpack.c.l.b16 %v7189
    %v7200 = vunpack.c.l.b16 %v7190
    %v7201 = vunpack.c.l.b16 %v7191
    %v7202 = vpack.c.b16 %v7199, %v7198
    %v7203 = vpack.c.b16 %v7201, %v7200
    %v7207 = vsel %vm116, %v7187, 0
    %7209 = vmatpush.bf16.msra.mxu0 0
    %7210 = vmatpush.bf16.msra.mxu0 0
    %7211 = vmatpush.bf16.msra.mxu0 0
    %7212 = vmatpush.bf16.msra.mxu0 0
    %7213 = vmatpush.bf16.msra.mxu0 0
    %7214 = vmatpush.bf16.msra.mxu0 0
    %7215 = vmatpush.bf16.msra.mxu0 %v7203
    %7216 = vmatpush.bf16.msra.mxu0 %v7202
    %7217 = vmatmul.bf16.gmra.mxu0 %v7207
    %v7218 = vpop.f32.mrf.mxu0
    %v7219 = vadd.f32 %v7193, %v7218
    %v7220 = vpop.f32.mrf.mxu0
    %v7221 = vadd.f32 %v7193, %v7220
    %7222 = vdwg.mxu0
    %s7223 = sld [smem:[#allocation2]]
    %v7224 = vstv %s7223
    %v7225 = vmul.f32 %v7219, %v7224
    %v7226 = vmul.f32 %v7221, %v7224
    %v7227 = vsel %vm222, %v7225, -inf
    %7228 = vmax.xlane.f32.xlu0 %v7227
    %v7229 = vpop.xlane.xlu0 %7228
    %v7230 = vsel %vm222, %v7226, -inf
    %7231 = vmax.xlane.f32.xlu0 %v7230
    %v7232 = vpop.xlane.xlu0 %7231
    %v7233 = vsub.f32 %v7225, %v7229
    %v7234 = vsub.f32 %v7226, %v7232
    %v7235 = vmul.f32 %v7233, 1.442695
    %v7236 = vpow.pop %v7235
    %v7237 = vmul.f32 %v7234, 1.442695
    %v7238 = vpow.pop %v7237
    %v7239 = vsel %vm222, %v7236, 0.0
    %7240 = vadd.xlane.f32.xlu0 %v7239
    %v7241 = vpop.xlane.xlu0 %7240
    %v7242 = vsel %vm222, %v7238, 0.0
    %7243 = vadd.xlane.f32.xlu0 %v7242
    %v7244 = vpop.xlane.xlu0 %7243
    %v7245 = vrcp.pop %v7241
    %v7246 = vmul.f32 %v7241, %v7245
    %v7247 = vsub.f32 1.0, %v7246
    %v7248 = vmul.f32 %v7245, %v7247
    %v7249 = vadd.f32 %v7245, %v7248
    %vm7250 = vweird.f32 %v7241
    %vm7251 = vweird.f32 %v7245
    %vm7252 = vmor %vm7250, %vm7251
    %v7253 = vsel %vm7252, %v7245, %v7249
    %v7254 = vand.u32 2147483647, %v7241
    %vm7255 = vcmp.eq.f32.partialorder %v7254, 8.507059e+37
    %v7256 = vand.u32 %v7241, 2147483648
    %v7257 = vor.u32 1.1754944e-38, %v7256
    %v7258 = vsel %vm7255, %v7257, %v7253
    %v7259 = vrcp.pop %v7244
    %v7260 = vmul.f32 %v7244, %v7259
    %v7261 = vsub.f32 1.0, %v7260
    %v7262 = vmul.f32 %v7259, %v7261
    %v7263 = vadd.f32 %v7259, %v7262
    %vm7264 = vweird.f32 %v7244
    %vm7265 = vweird.f32 %v7259
    %vm7266 = vmor %vm7264, %vm7265
    %v7267 = vsel %vm7266, %v7259, %v7263
    %v7268 = vand.u32 2147483647, %v7244
    %vm7269 = vcmp.eq.f32.partialorder %v7268, 8.507059e+37
    %v7270 = vand.u32 %v7244, 2147483648
    %v7271 = vor.u32 1.1754944e-38, %v7270
    %v7272 = vsel %vm7269, %v7271, %v7267
    %v7273 = vmul.f32 %v7236, %v7258
    %v7274 = vmul.f32 %v7238, %v7272
    %7275 = vst.msk [vmem:[#allocation3] sm:$0xff] %vm222, %v7219
    %7276 = vst.msk [vmem:[#allocation3 + $0x8] sm:$0xff] %vm222, %v7221
    %7277 = vst.msk [vmem:[%s11] sm:$0xff] %vm222, %v7273
    %7278 = vst.msk [vmem:[%s11 + $0x8] sm:$0xff] %vm222, %v7274
    // Predicated region
    $region42: #{forward.1} parent=1 // pred_check
      _
    $region43: #{forward.1} parent=1 // pred_check_branch
      %7280 = sbr.rel (0) target = $region45
    $region44: #{forward.1} parent=1 // pred_region
      %7282 = vsyncadd [#allocation4], 0
      %s7283 = sshll.u32 [#allocation3], 4
      %s7284 = int_to_ptr.vmem [resolvable:$true] %s7283
      %s7285 = sshll.u32 %s10, 4
      %s7286 = int_to_ptr.hbm [resolvable:$true] %s7285
      %7291 = dma.vmem_to_hbm [thread:$0]  %s7284, 256, %s7286, [#allocation4], 128, 128, 8
    $region45: #{forward.1} parent=1 // pred_fallthru
      _
    // Predicated region
    $region46: #{forward.1} parent=1 // pred_check
      _
    $region47: #{forward.1} parent=1 // pred_check_branch
      %7293 = sbr.rel (0) target = $region49
    $region48: #{forward.1} parent=1 // pred_region
      _
    $region49: #{forward.1} parent=1 // pred_fallthru
      _
    // Predicated region
    $region50: #{forward.1} parent=1 // pred_check
      _
    $region51: #{forward.1} parent=1 // pred_check_branch
      %7295 = sbr.rel (0) target = $region53
    $region52: #{forward.1} parent=1 // pred_region
      %7297 = dma.done [#allocation4], 256
    $region53: #{forward.1} parent=1 // pred_fallthru
      _
    // Predicated region
    $region54: #{forward.1} parent=1 // pred_check
      _
    $region55: #{forward.1} parent=1 // pred_check_branch
      %7299 = sbr.rel (0) target = $region57
    $region56: #{forward.1} parent=1 // pred_region
      _
    $region57: #{forward.1} parent=1 // pred_fallthru
      _
    %7300 = vsyncpa [#allocation4], 1

</llo_original>
